<compile_context>
chip_gen: v6e
topology: v6e:2x2x1
jax: 0.10.0
libtpu: 0.0.40
codegen_flags: <defaults>
</compile_context>

<pallas_src>
import functools
import numpy as np

import jax
import jax.numpy as jnp
from jax.experimental import pallas as pl
from jax.experimental.pallas import tpu as pltpu

# ----------------------------- config -----------------------------
IMG = 32
PATCH = 4
IN_CH = 3
EMBED = 32
WINDOW = 4
DEPTHS = (2, 2)
HEADS = (2, 4)
MLP_RATIO = 4
NUM_CLASSES = 2
LN_EPS = 1e-5

# ----------------------------- kernel helpers -----------------------------


def _layernorm(x, g, b, eps):
    mu = jnp.mean(x, axis=-1, keepdims=True)
    var = jnp.mean(jnp.square(x - mu), axis=-1, keepdims=True)
    return (x - mu) * jax.lax.rsqrt(var + eps) * g + b


def _swin_core(x, blk_refs, num_heads, eps):
    """One Swin block on resident tokens x (L, C) f32; returns (L, C) f32.

    Window / shift structure lives entirely in the precomputed (H, L, L) bias.
    """
    (bias_ref, ln1g, ln1b, wqkv, bqkv, wproj, bproj,
     ln2g, ln2b, fc1w, fc1b, fc2w, fc2b) = blk_refs
    L, C = x.shape
    D = C // num_heads

    # ---- LN1 + fused QKV (scale pre-folded into q columns) ----
    xn = _layernorm(x, ln1g[...], ln1b[...], eps)
    qkv = jnp.dot(xn.astype(jnp.bfloat16), wqkv[...],
                  preferred_element_type=jnp.float32) + bqkv[...]      # (L, 3C)

    # ---- full-L attention per head (static unroll, 2 or 4 heads) ----
    heads = []
    for h in range(num_heads):
        q_h = qkv[:, h * D:(h + 1) * D].astype(jnp.bfloat16)
        k_h = qkv[:, C + h * D:C + (h + 1) * D].astype(jnp.bfloat16)
        v_h = qkv[:, 2 * C + h * D:2 * C + (h + 1) * D].astype(jnp.bfloat16)

        s = jnp.dot(q_h, k_h.T, preferred_element_type=jnp.float32)   # (L, L)
        s = s + bias_ref[h]                    # rel-pos bias + window/shift mask
        s = s - jnp.max(s, axis=-1, keepdims=True)
        p = jnp.exp(s)
        p = p * pl.reciprocal(jnp.sum(p, axis=-1, keepdims=True), approx=True)
        heads.append(jnp.dot(p.astype(jnp.bfloat16), v_h,
                             preferred_element_type=jnp.float32))      # (L, D)

    # concat heads -> single (L, C)@(C, C) projection
    o = jnp.concatenate(heads, axis=-1).astype(jnp.bfloat16)
    attn = jnp.dot(o, wproj[...], preferred_element_type=jnp.float32) + bproj[...]
    x1 = x + attn                                                      # residual 1

    # ---- LN2 + MLP + residual 2 ----
    x2 = _layernorm(x1, ln2g[...], ln2b[...], eps)
    h1 = jnp.dot(x2.astype(jnp.bfloat16), fc1w[...],
                 preferred_element_type=jnp.float32) + fc1b[...]
    # TODO(synk): timm uses exact erf-GELU; tanh-approx GELU used here.
    h1 = jax.nn.gelu(h1, approximate=True)
    h2 = jnp.dot(h1.astype(jnp.bfloat16), fc2w[...],
                 preferred_element_type=jnp.float32) + fc2b[...]
    return x1 + h2


# ----------------------------- fused kernels (4 per forward) -----------------------------


def _block_embed_kernel(p_ref, pw, pb, plg, plb, *rest, num_heads, eps):
    """patch-embed matmul + LN + stage-0 block 0."""
    blk, o_ref = rest[:13], rest[13]
    x = jnp.dot(p_ref[0].astype(jnp.bfloat16), pw[...],
                preferred_element_type=jnp.float32) + pb[...]
    x = _layernorm(x, plg[...], plb[...], eps)
    o_ref[0] = _swin_core(x, blk, num_heads, eps).astype(o_ref.dtype)


def _block_plain_kernel(x_ref, *rest, num_heads, eps):
    blk, o_ref = rest[:13], rest[13]
    x = x_ref[0].astype(jnp.float32)
    o_ref[0] = _swin_core(x, blk, num_heads, eps).astype(o_ref.dtype)


def _block_merge_kernel(xm_ref, mlg, mlb, mw, *rest, num_heads, eps):
    """patch-merging LN + reduction matmul + stage-1 block 0."""
    blk, o_ref = rest[:13], rest[13]
    xm = xm_ref[0].astype(jnp.float32)
    xn = _layernorm(xm, mlg[...], mlb[...], eps)
    x = jnp.dot(xn.astype(jnp.bfloat16), mw[...], preferred_element_type=jnp.float32)
    o_ref[0] = _swin_core(x, blk, num_heads, eps).astype(o_ref.dtype)


def _block_head_kernel(x_ref, *rest, num_heads, eps):
    """stage-1 block 1 + final norm + global-avg-pool + classifier."""
    blk = rest[:13]
    ng, nb, hw, hb, o_ref = rest[13:]
    x = x_ref[0].astype(jnp.float32)
    y = _swin_core(x, blk, num_heads, eps)
    yn = _layernorm(y, ng[...], nb[...], eps)
    pooled = jnp.mean(yn, axis=0, keepdims=True)                       # (1, C)
    o_ref[0] = (jnp.dot(pooled.astype(jnp.bfloat16), hw[...],
                        preferred_element_type=jnp.float32) + hb[...]).astype(o_ref.dtype)


# ----------------------------- pallas_call wrappers -----------------------------


def _block_specs(num_heads, L, C, hidden):
    v2 = lambda b: (0, 0)
    v3 = lambda b: (0, 0, 0)
    return [
        pl.BlockSpec((num_heads, L, L), v3),    # attention bias (rel-pos + window/shift)
        pl.BlockSpec((1, C), v2),               # ln1 gamma
        pl.BlockSpec((1, C), v2),               # ln1 beta
        pl.BlockSpec((C, 3 * C), v2),           # fused Wqkv (bf16, q-scale folded)
        pl.BlockSpec((1, 3 * C), v2),           # fused bqkv
        pl.BlockSpec((C, C), v2),               # Wproj
        pl.BlockSpec((1, C), v2),               # proj bias
        pl.BlockSpec((1, C), v2),               # ln2 gamma
        pl.BlockSpec((1, C), v2),               # ln2 beta
        pl.BlockSpec((C, hidden), v2),          # fc1 W
        pl.BlockSpec((1, hidden), v2),          # fc1 b
        pl.BlockSpec((hidden, C), v2),          # fc2 W
        pl.BlockSpec((1, C), v2),               # fc2 b
    ]


def _block_args(blk):
    return (blk["bias"], blk["ln1_g"], blk["ln1_b"], blk["wqkv"], blk["bqkv"],
            blk["wproj"], blk["bproj"], blk["ln2_g"], blk["ln2_b"],
            blk["fc1_w"], blk["fc1_b"], blk["fc2_w"], blk["fc2_b"])


_PARALLEL = pltpu.CompilerParams(dimension_semantics=("parallel",))


def call_block_embed(patches, prep, blk, num_heads):
    B, L, Kin = patches.shape
    C = prep["patch_w"].shape[1]
    hidden = blk["fc1_w"].shape[1]
    kernel = functools.partial(_block_embed_kernel, num_heads=num_heads, eps=LN_EPS)
    return pl.pallas_call(
        kernel,
        out_shape=jax.ShapeDtypeStruct((B, L, C), jnp.bfloat16),
        grid=(B,),
        in_specs=[pl.BlockSpec((1, L, Kin), lambda b: (b, 0, 0)),
                  pl.BlockSpec((Kin, C), lambda b: (0, 0)),
                  pl.BlockSpec((1, C), lambda b: (0, 0)),
                  pl.BlockSpec((1, C), lambda b: (0, 0)),
                  pl.BlockSpec((1, C), lambda b: (0, 0))] + _block_specs(num_heads, L, C, hidden),
        out_specs=pl.BlockSpec((1, L, C), lambda b: (b, 0, 0)),
        compiler_params=_PARALLEL,
    )(patches, prep["patch_w"], prep["patch_b"], prep["patch_ln_g"], prep["patch_ln_b"],
      *_block_args(blk))


def call_block_plain(x, blk, num_heads):
    B, L, C = x.shape
    hidden = blk["fc1_w"].shape[1]
    kernel = functools.partial(_block_plain_kernel, num_heads=num_heads, eps=LN_EPS)
    return pl.pallas_call(
        kernel,
        out_shape=jax.ShapeDtypeStruct((B, L, C), jnp.bfloat16),
        grid=(B,),
        in_specs=[pl.BlockSpec((1, L, C), lambda b: (b, 0, 0))] + _block_specs(num_heads, L, C, hidden),
        out_specs=pl.BlockSpec((1, L, C), lambda b: (b, 0, 0)),
        compiler_params=_PARALLEL,
    )(x, *_block_args(blk))


def call_block_merge(xm, prep, blk, num_heads):
    B, L, K4 = xm.shape
    C = prep["merge_w"].shape[1]
    hidden = blk["fc1_w"].shape[1]
    kernel = functools.partial(_block_merge_kernel, num_heads=num_heads, eps=LN_EPS)
    return pl.pallas_call(
        kernel,
        out_shape=jax.ShapeDtypeStruct((B, L, C), jnp.bfloat16),
        grid=(B,),
        in_specs=[pl.BlockSpec((1, L, K4), lambda b: (b, 0, 0)),
                  pl.BlockSpec((1, K4), lambda b: (0, 0)),
                  pl.BlockSpec((1, K4), lambda b: (0, 0)),
                  pl.BlockSpec((K4, C), lambda b: (0, 0))] + _block_specs(num_heads, L, C, hidden),
        out_specs=pl.BlockSpec((1, L, C), lambda b: (b, 0, 0)),
        compiler_params=_PARALLEL,
    )(xm, prep["merge_ln_g"], prep["merge_ln_b"], prep["merge_w"], *_block_args(blk))


def call_block_head(x, prep, blk, num_heads):
    B, L, C = x.shape
    hidden = blk["fc1_w"].shape[1]
    NC = prep["head_w"].shape[1]
    kernel = functools.partial(_block_head_kernel, num_heads=num_heads, eps=LN_EPS)
    out = pl.pallas_call(
        kernel,
        out_shape=jax.ShapeDtypeStruct((B, 1, NC), jnp.float32),
        grid=(B,),
        in_specs=[pl.BlockSpec((1, L, C), lambda b: (b, 0, 0))] + _block_specs(num_heads, L, C, hidden)
                 + [pl.BlockSpec((1, C), lambda b: (0, 0)),
                    pl.BlockSpec((1, C), lambda b: (0, 0)),
                    pl.BlockSpec((C, NC), lambda b: (0, 0)),
                    pl.BlockSpec((1, NC), lambda b: (0, 0))],
        out_specs=pl.BlockSpec((1, 1, NC), lambda b: (b, 0, 0)),
        compiler_params=_PARALLEL,
    )(x, *_block_args(blk), prep["norm_g"], prep["norm_b"], prep["head_w"], prep["head_b"])
    return out.reshape(B, NC)


# ----------------------------- static bias tables (numpy, built once) -----------------------------


def make_full_bias(Hs, Ws, ws, shift, rel_table_np):
    """(H, L, L) additive bias = rel-pos bias + timm shift mask + off-window -1e9.

    Folds the cyclic shift, window partition and attention mask into one table,
    so the kernel can run full-L attention in original raster token order.
    """
    L = Hs * Ws
    rows, cols = np.divmod(np.arange(L), Ws)
    rr = (rows - shift) % Hs                     # coords in the rolled frame
    cc = (cols - shift) % Ws
    win = (rr // ws) * (Ws // ws) + (cc // ws)   # rolled-frame window id
    pos = (rr % ws) * ws + (cc % ws)             # within-window position

    # timm relative-position index between within-window positions
    pr, pc = np.divmod(np.arange(ws * ws), ws)
    dr = pr[:, None] - pr[None, :] + ws - 1
    dc = pc[:, None] - pc[None, :] + ws - 1
    rel_index = dr * (2 * ws - 1) + dc                                  # (N, N)

    pair_idx = rel_index[pos[:, None], pos[None, :]]                    # (L, L)
    bias = rel_table_np[pair_idx].transpose(2, 0, 1).astype(np.float32)  # (H, L, L)

    if shift > 0:
        def band(v, size):
            return np.where(v < size - ws, 0, np.where(v < size - shift, 1, 2))
        lab = band(rr, Hs) * 3 + band(cc, Ws)
        bias = bias + np.where(lab[:, None] != lab[None, :], -100.0, 0.0)[None]

    same_win = win[:, None] == win[None, :]
    bias = np.where(same_win[None], bias, -1e9).astype(np.float32)
    return jnp.asarray(bias)


# ----------------------------- params -----------------------------


def init_params(key):
    """Synthetic weights in the standard timm-like layout."""
    def nrm(k, shape, std=0.02):
        return std * jax.random.normal(k, shape, jnp.float32)

    keys = iter(jax.random.split(key, 64))
    p = {}
    # TODO(synk): patch-embed flattening order (PATCH, PATCH, IN_CH) must match the
    # conv weight layout if real pretrained weights are ever loaded.
    p["patch_w"] = nrm(next(keys), (PATCH * PATCH * IN_CH, EMBED))
    p["patch_b"] = jnp.zeros((EMBED,), jnp.float32)
    p["patch_ln_g"] = jnp.ones((EMBED,), jnp.float32)
    p["patch_ln_b"] = jnp.zeros((EMBED,), jnp.float32)

    dims = (EMBED, 2 * EMBED)
    p["stages"] = []
    for s in range(2):
        C, H = dims[s], HEADS[s]
        blocks = []
        for _ in range(DEPTHS[s]):
            blocks.append(dict(
                ln1_g=jnp.ones((C,), jnp.float32), ln1_b=jnp.zeros((C,), jnp.float32),
                qkv_w=nrm(next(keys), (C, 3 * C)), qkv_b=jnp.zeros((3 * C,), jnp.float32),
                rel_table=nrm(next(keys), ((2 * WINDOW - 1) ** 2, H)),
                proj_w=nrm(next(keys), (C, C)), proj_b=jnp.zeros((C,), jnp.float32),
                ln2_g=jnp.ones((C,), jnp.float32), ln2_b=jnp.zeros((C,), jnp.float32),
                fc1_w=nrm(next(keys), (C, MLP_RATIO * C)),
                fc1_b=jnp.zeros((MLP_RATIO * C,), jnp.float32),
                fc2_w=nrm(next(keys), (MLP_RATIO * C, C)),
                fc2_b=jnp.zeros((C,), jnp.float32),
            ))
        p["stages"].append(blocks)

    p["merge_ln_g"] = jnp.ones((4 * EMBED,), jnp.float32)
    p["merge_ln_b"] = jnp.zeros((4 * EMBED,), jnp.float32)
    p["merge_w"] = nrm(next(keys), (4 * EMBED, 2 * EMBED))      # timm reduction has no bias
    p["norm_g"] = jnp.ones((2 * EMBED,), jnp.float32)
    p["norm_b"] = jnp.zeros((2 * EMBED,), jnp.float32)
    p["head_w"] = nrm(next(keys), (2 * EMBED, NUM_CLASSES))
    p["head_b"] = jnp.zeros((NUM_CLASSES,), jnp.float32)
    return p


def prepare_params(params):
    """One-time, input-independent prep: fused QKV with scale folded in, bf16
    weight cast, and the (H, L, L) window/shift/rel-pos bias tables."""
    Hp = IMG // PATCH
    prep = {
        "patch_w": params["patch_w"].astype(jnp.bfloat16),
        "patch_b": params["patch_b"].reshape(1, -1),
        "patch_ln_g": params["patch_ln_g"].reshape(1, -1),
        "patch_ln_b": params["patch_ln_b"].reshape(1, -1),
        "merge_ln_g": params["merge_ln_g"].reshape(1, -1),
        "merge_ln_b": params["merge_ln_b"].reshape(1, -1),
        "merge_w": params["merge_w"].astype(jnp.bfloat16),
        "norm_g": params["norm_g"].reshape(1, -1),
        "norm_b": params["norm_b"].reshape(1, -1),
        "head_w": params["head_w"].astype(jnp.bfloat16),
        "head_b": params["head_b"].reshape(1, -1),
        "stages": [],
    }

    dims = (EMBED, 2 * EMBED)
    resolutions = ((Hp, Hp), (Hp // 2, Hp // 2))
    for s in range(2):
        C, H = dims[s], HEADS[s]
        D = C // H
        scale = float(D) ** -0.5
        Hs, Ws = resolutions[s]
        blocks = []
        for d, blk in enumerate(params["stages"][s]):
            # shift only in stage-0 odd blocks (stage-1 resolution == window -> no shift, as timm)
            shift = WINDOW // 2 if (s == 0 and d % 2 == 1) else 0

            # fused QKV with the attention scale folded into the q columns/bias
            wqkv = jnp.concatenate([blk["qkv_w"][:, :C] * scale, blk["qkv_w"][:, C:]], axis=1)
            bqkv = jnp.concatenate([blk["qkv_b"][:C] * scale, blk["qkv_b"][C:]])

            bias = make_full_bias(Hs, Ws, WINDOW, shift, np.asarray(blk["rel_table"]))

            blocks.append(dict(
                bias=bias,
                ln1_g=blk["ln1_g"].reshape(1, C), ln1_b=blk["ln1_b"].reshape(1, C),
                wqkv=wqkv.astype(jnp.bfloat16), bqkv=bqkv.reshape(1, 3 * C),
                wproj=blk["proj_w"].astype(jnp.bfloat16), bproj=blk["proj_b"].reshape(1, C),
                ln2_g=blk["ln2_g"].reshape(1, C), ln2_b=blk["ln2_b"].reshape(1, C),
                fc1_w=blk["fc1_w"].astype(jnp.bfloat16), fc1_b=blk["fc1_b"].reshape(1, -1),
                fc2_w=blk["fc2_w"].astype(jnp.bfloat16), fc2_b=blk["fc2_b"].reshape(1, C),
            ))
        prep["stages"].append(blocks)
    return prep


# ----------------------------- model forward (4 pallas_calls) -----------------------------


def swin_forward(prep, x):
    B = x.shape[0]
    Hp = Wp = IMG // PATCH

    # 4x4 stride-4 patch extraction (pure layout op in the wrapper)
    patches = x.reshape(B, Hp, PATCH, Wp, PATCH, IN_CH).transpose(0, 1, 3, 2, 4, 5)
    patches = patches.reshape(B, Hp * Wp, PATCH * PATCH * IN_CH)

    s0, s1 = prep["stages"]
    # kernel 1: patch-embed + LN + stage-0 block 0 (W-MSA)
    t = call_block_embed(patches, prep, s0[0], HEADS[0])          # (B, 64, 32) bf16
    # kernel 2: stage-0 block 1 (SW-MSA; shift folded into bias)
    t = call_block_plain(t, s0[1], HEADS[0])                      # (B, 64, 32) bf16

    # patch-merging rearrangement 8x8x32 -> 4x4x128 (layout op in the wrapper)
    xg = t.reshape(B, Hp, Wp, EMBED)
    xm = jnp.concatenate([xg[:, 0::2, 0::2], xg[:, 1::2, 0::2],
                          xg[:, 0::2, 1::2], xg[:, 1::2, 1::2]], axis=-1)
    xm = xm.reshape(B, (Hp // 2) * (Wp // 2), 4 * EMBED)          # (B, 16, 128)

    # kernel 3: merge LN + reduction + stage-1 block 0
    t = call_block_merge(xm, prep, s1[0], HEADS[1])               # (B, 16, 64) bf16
    # kernel 4: stage-1 block 1 + final norm + avg-pool + classifier
    return call_block_head(t, prep, s1[1], HEADS[1])              # (B, NUM_CLASSES) f32


# ----------------------------- main -----------------------------

if __name__ == "__main__":
    key = jax.random.PRNGKey(0)
    pkey, xkey = jax.random.split(key)
    params = init_params(pkey)
    prep = prepare_params(params)                      # one-time, input-independent
    x = jax.random.normal(xkey, (2, IMG, IMG, IN_CH), jnp.float32)   # NHWC input
    fwd = jax.jit(swin_forward)
    out = jax.block_until_ready(fwd(prep, x))
    assert out.shape == (2, NUM_CLASSES) and out.dtype == jnp.float32
    assert bool(jnp.all(jnp.isfinite(out)))
    print("KERNEL_OK")
</pallas_src>

<mosaic_0001>
module attributes {stable_mosaic.version = 11 : i64} {
  func.func @_block_embed_kernel(%arg0: i32, %arg1: memref<1x64x48xf32, #tpu.memory_space<vmem>>, %arg2: memref<48x32xbf16, #tpu.memory_space<vmem>>, %arg3: memref<1x32xf32, #tpu.memory_space<vmem>>, %arg4: memref<1x32xf32, #tpu.memory_space<vmem>>, %arg5: memref<1x32xf32, #tpu.memory_space<vmem>>, %arg6: memref<2x64x64xf32, #tpu.memory_space<vmem>>, %arg7: memref<1x32xf32, #tpu.memory_space<vmem>>, %arg8: memref<1x32xf32, #tpu.memory_space<vmem>>, %arg9: memref<32x96xbf16, #tpu.memory_space<vmem>>, %arg10: memref<1x96xf32, #tpu.memory_space<vmem>>, %arg11: memref<32x32xbf16, #tpu.memory_space<vmem>>, %arg12: memref<1x32xf32, #tpu.memory_space<vmem>>, %arg13: memref<1x32xf32, #tpu.memory_space<vmem>>, %arg14: memref<1x32xf32, #tpu.memory_space<vmem>>, %arg15: memref<32x128xbf16, #tpu.memory_space<vmem>>, %arg16: memref<1x128xf32, #tpu.memory_space<vmem>>, %arg17: memref<128x32xbf16, #tpu.memory_space<vmem>>, %arg18: memref<1x32xf32, #tpu.memory_space<vmem>>, %arg19: memref<1x64x32xbf16, #tpu.memory_space<vmem>>) attributes {dimension_semantics = [#tpu.dimension_semantics<parallel>], iteration_bounds = array<i64: 2>, scalar_prefetch = 0 : i64, scratch_operands = 0 : i64, tpu.core_type = #tpu.core_type<tc>, window_params = [{transform_indices = @transform_0, window_bounds = array<i64: 1, 64, 48>}, {pipeline_mode = #tpu.pipeline_mode<synchronous>, transform_indices = @transform_1, window_bounds = array<i64: 48, 32>}, {pipeline_mode = #tpu.pipeline_mode<synchronous>, transform_indices = @transform_2, window_bounds = array<i64: 1, 32>}, {pipeline_mode = #tpu.pipeline_mode<synchronous>, transform_indices = @transform_3, window_bounds = array<i64: 1, 32>}, {pipeline_mode = #tpu.pipeline_mode<synchronous>, transform_indices = @transform_4, window_bounds = array<i64: 1, 32>}, {pipeline_mode = #tpu.pipeline_mode<synchronous>, transform_indices = @transform_5, window_bounds = array<i64: 2, 64, 64>}, {pipeline_mode = #tpu.pipeline_mode<synchronous>, transform_indices = @transform_6, window_bounds = array<i64: 1, 32>}, {pipeline_mode = #tpu.pipeline_mode<synchronous>, transform_indices = @transform_7, window_bounds = array<i64: 1, 32>}, {pipeline_mode = #tpu.pipeline_mode<synchronous>, transform_indices = @transform_8, window_bounds = array<i64: 32, 96>}, {pipeline_mode = #tpu.pipeline_mode<synchronous>, transform_indices = @transform_9, window_bounds = array<i64: 1, 96>}, {pipeline_mode = #tpu.pipeline_mode<synchronous>, transform_indices = @transform_10, window_bounds = array<i64: 32, 32>}, {pipeline_mode = #tpu.pipeline_mode<synchronous>, transform_indices = @transform_11, window_bounds = array<i64: 1, 32>}, {pipeline_mode = #tpu.pipeline_mode<synchronous>, transform_indices = @transform_12, window_bounds = array<i64: 1, 32>}, {pipeline_mode = #tpu.pipeline_mode<synchronous>, transform_indices = @transform_13, window_bounds = array<i64: 1, 32>}, {pipeline_mode = #tpu.pipeline_mode<synchronous>, transform_indices = @transform_14, window_bounds = array<i64: 32, 128>}, {pipeline_mode = #tpu.pipeline_mode<synchronous>, transform_indices = @transform_15, window_bounds = array<i64: 1, 128>}, {pipeline_mode = #tpu.pipeline_mode<synchronous>, transform_indices = @transform_16, window_bounds = array<i64: 128, 32>}, {pipeline_mode = #tpu.pipeline_mode<synchronous>, transform_indices = @transform_17, window_bounds = array<i64: 1, 32>}, {transform_indices = @transform_18, window_bounds = array<i64: 1, 64, 32>}]} {
    %c0 = arith.constant 0 : index
    %c0_0 = arith.constant 0 : index
    %c0_1 = arith.constant 0 : index
    %0 = vector.load %arg1[%c0, %c0_0, %c0_1] : memref<1x64x48xf32, #tpu.memory_space<vmem>>, vector<1x64x48xf32>
    %1 = vector.shape_cast %0 : vector<1x64x48xf32> to vector<64x48xf32>
    %2 = arith.truncf %1 : vector<64x48xf32> to vector<64x48xbf16>
    %c0_2 = arith.constant 0 : index
    %c0_3 = arith.constant 0 : index
    %3 = vector.load %arg2[%c0_2, %c0_3] : memref<48x32xbf16, #tpu.memory_space<vmem>>, vector<48x32xbf16>
    %cst = arith.constant dense<0.000000e+00> : vector<64x32xf32>
    %4 = tpu.matmul %2, %3, %cst {dimension_numbers = #tpu.dot_dimension_numbers<[1], [0], [0], [1], [0, 0, 1, 1], [], []>} : vector<64x48xbf16>, vector<48x32xbf16>, vector<64x32xf32> -> vector<64x32xf32>
    %c0_4 = arith.constant 0 : index
    %c0_5 = arith.constant 0 : index
    %5 = vector.load %arg3[%c0_4, %c0_5] : memref<1x32xf32, #tpu.memory_space<vmem>>, vector<1x32xf32>
    %6 = vector.broadcast %5 : vector<1x32xf32> to vector<64x32xf32>
    %7 = arith.addf %4, %6 : vector<64x32xf32>
    %c0_6 = arith.constant 0 : index
    %c0_7 = arith.constant 0 : index
    %8 = vector.load %arg4[%c0_6, %c0_7] : memref<1x32xf32, #tpu.memory_space<vmem>>, vector<1x32xf32>
    %c0_8 = arith.constant 0 : index
    %c0_9 = arith.constant 0 : index
    %9 = vector.load %arg5[%c0_8, %c0_9] : memref<1x32xf32, #tpu.memory_space<vmem>>, vector<1x32xf32>
    %cst_10 = arith.constant dense<0.000000e+00> : vector<64xf32>
    %10 = vector.multi_reduction <add>, %7, %cst_10 [1] : vector<64x32xf32> to vector<64xf32>
    %11 = vector.shape_cast %10 : vector<64xf32> to vector<64x1xf32>
    %cst_11 = arith.constant 3.200000e+01 : f32
    %12 = vector.broadcast %cst_11 : f32 to vector<64x1xf32>
    %13 = arith.divf %11, %12 : vector<64x1xf32>
    %14 = vector.broadcast %13 : vector<64x1xf32> to vector<64x32xf32>
    %15 = arith.subf %7, %14 : vector<64x32xf32>
    %16 = arith.mulf %15, %15 : vector<64x32xf32>
    %cst_12 = arith.constant dense<0.000000e+00> : vector<64xf32>
    %17 = vector.multi_reduction <add>, %16, %cst_12 [1] : vector<64x32xf32> to vector<64xf32>
    %18 = vector.shape_cast %17 : vector<64xf32> to vector<64x1xf32>
    %cst_13 = arith.constant 3.200000e+01 : f32
    %19 = vector.broadcast %cst_13 : f32 to vector<64x1xf32>
    %20 = arith.divf %18, %19 : vector<64x1xf32>
    %21 = vector.broadcast %13 : vector<64x1xf32> to vector<64x32xf32>
    %22 = arith.subf %7, %21 : vector<64x32xf32>
    %cst_14 = arith.constant 9.99999974E-6 : f32
    %23 = vector.broadcast %cst_14 : f32 to vector<64x1xf32>
    %24 = arith.addf %20, %23 : vector<64x1xf32>
    %25 = math.rsqrt %24 : vector<64x1xf32>
    %26 = vector.broadcast %25 : vector<64x1xf32> to vector<64x32xf32>
    %27 = arith.mulf %22, %26 : vector<64x32xf32>
    %28 = vector.broadcast %8 : vector<1x32xf32> to vector<64x32xf32>
    %29 = arith.mulf %27, %28 : vector<64x32xf32>
    %30 = vector.broadcast %9 : vector<1x32xf32> to vector<64x32xf32>
    %31 = arith.addf %29, %30 : vector<64x32xf32>
    %c0_15 = arith.constant 0 : index
    %c0_16 = arith.constant 0 : index
    %32 = vector.load %arg7[%c0_15, %c0_16] : memref<1x32xf32, #tpu.memory_space<vmem>>, vector<1x32xf32>
    %c0_17 = arith.constant 0 : index
    %c0_18 = arith.constant 0 : index
    %33 = vector.load %arg8[%c0_17, %c0_18] : memref<1x32xf32, #tpu.memory_space<vmem>>, vector<1x32xf32>
    %cst_19 = arith.constant dense<0.000000e+00> : vector<64xf32>
    %34 = vector.multi_reduction <add>, %31, %cst_19 [1] : vector<64x32xf32> to vector<64xf32>
    %35 = vector.shape_cast %34 : vector<64xf32> to vector<64x1xf32>
    %cst_20 = arith.constant 3.200000e+01 : f32
    %36 = vector.broadcast %cst_20 : f32 to vector<64x1xf32>
    %37 = arith.divf %35, %36 : vector<64x1xf32>
    %38 = vector.broadcast %37 : vector<64x1xf32> to vector<64x32xf32>
    %39 = arith.subf %31, %38 : vector<64x32xf32>
    %40 = arith.mulf %39, %39 : vector<64x32xf32>
    %cst_21 = arith.constant dense<0.000000e+00> : vector<64xf32>
    %41 = vector.multi_reduction <add>, %40, %cst_21 [1] : vector<64x32xf32> to vector<64xf32>
    %42 = vector.shape_cast %41 : vector<64xf32> to vector<64x1xf32>
    %cst_22 = arith.constant 3.200000e+01 : f32
    %43 = vector.broadcast %cst_22 : f32 to vector<64x1xf32>
    %44 = arith.divf %42, %43 : vector<64x1xf32>
    %45 = vector.broadcast %37 : vector<64x1xf32> to vector<64x32xf32>
    %46 = arith.subf %31, %45 : vector<64x32xf32>
    %cst_23 = arith.constant 9.99999974E-6 : f32
    %47 = vector.broadcast %cst_23 : f32 to vector<64x1xf32>
    %48 = arith.addf %44, %47 : vector<64x1xf32>
    %49 = math.rsqrt %48 : vector<64x1xf32>
    %50 = vector.broadcast %49 : vector<64x1xf32> to vector<64x32xf32>
    %51 = arith.mulf %46, %50 : vector<64x32xf32>
    %52 = vector.broadcast %32 : vector<1x32xf32> to vector<64x32xf32>
    %53 = arith.mulf %51, %52 : vector<64x32xf32>
    %54 = vector.broadcast %33 : vector<1x32xf32> to vector<64x32xf32>
    %55 = arith.addf %53, %54 : vector<64x32xf32>
    %56 = arith.truncf %55 : vector<64x32xf32> to vector<64x32xbf16>
    %c0_24 = arith.constant 0 : index
    %c0_25 = arith.constant 0 : index
    %57 = vector.load %arg9[%c0_24, %c0_25] : memref<32x96xbf16, #tpu.memory_space<vmem>>, vector<32x96xbf16>
    %cst_26 = arith.constant dense<0.000000e+00> : vector<64x96xf32>
    %58 = tpu.matmul %56, %57, %cst_26 {dimension_numbers = #tpu.dot_dimension_numbers<[1], [0], [0], [1], [0, 0, 1, 1], [], []>} : vector<64x32xbf16>, vector<32x96xbf16>, vector<64x96xf32> -> vector<64x96xf32>
    %c0_27 = arith.constant 0 : index
    %c0_28 = arith.constant 0 : index
    %59 = vector.load %arg10[%c0_27, %c0_28] : memref<1x96xf32, #tpu.memory_space<vmem>>, vector<1x96xf32>
    %60 = vector.broadcast %59 : vector<1x96xf32> to vector<64x96xf32>
    %61 = arith.addf %58, %60 : vector<64x96xf32>
    %62 = vector.extract_strided_slice %61 {offsets = [0, 0], sizes = [64, 16], strides = [1, 1]} : vector<64x96xf32> to vector<64x16xf32>
    %63 = arith.truncf %62 : vector<64x16xf32> to vector<64x16xbf16>
    %64 = vector.extract_strided_slice %61 {offsets = [0, 32], sizes = [64, 16], strides = [1, 1]} : vector<64x96xf32> to vector<64x16xf32>
    %65 = arith.truncf %64 : vector<64x16xf32> to vector<64x16xbf16>
    %66 = vector.extract_strided_slice %61 {offsets = [0, 64], sizes = [64, 16], strides = [1, 1]} : vector<64x96xf32> to vector<64x16xf32>
    %67 = arith.truncf %66 : vector<64x16xf32> to vector<64x16xbf16>
    %68 = tpu.transpose %65, [1, 0] : vector<64x16xbf16> -> vector<16x64xbf16>
    %cst_29 = arith.constant dense<0.000000e+00> : vector<64x64xf32>
    %69 = tpu.matmul %63, %68, %cst_29 {dimension_numbers = #tpu.dot_dimension_numbers<[1], [0], [0], [1], [0, 0, 1, 1], [], []>} : vector<64x16xbf16>, vector<16x64xbf16>, vector<64x64xf32> -> vector<64x64xf32>
    %c0_30 = arith.constant 0 : index
    %c0_31 = arith.constant 0 : index
    %c0_32 = arith.constant 0 : index
    %70 = vector.load %arg6[%c0_30, %c0_31, %c0_32] : memref<2x64x64xf32, #tpu.memory_space<vmem>>, vector<1x64x64xf32>
    %71 = vector.shape_cast %70 : vector<1x64x64xf32> to vector<64x64xf32>
    %72 = arith.addf %69, %71 : vector<64x64xf32>
    %cst_33 = arith.constant dense<0xFF800000> : vector<64xf32>
    %73 = vector.multi_reduction <maximumf>, %72, %cst_33 [1] : vector<64x64xf32> to vector<64xf32>
    %74 = vector.shape_cast %73 : vector<64xf32> to vector<64x1xf32>
    %75 = vector.broadcast %74 : vector<64x1xf32> to vector<64x64xf32>
    %76 = arith.subf %72, %75 : vector<64x64xf32>
    %77 = math.exp %76 : vector<64x64xf32>
    %cst_34 = arith.constant dense<0.000000e+00> : vector<64xf32>
    %78 = vector.multi_reduction <add>, %77, %cst_34 [1] : vector<64x64xf32> to vector<64xf32>
    %79 = vector.shape_cast %78 : vector<64xf32> to vector<64x1xf32>
    %80 = tpu.reciprocal %79 {approx = true} : vector<64x1xf32> -> vector<64x1xf32>
    %81 = vector.broadcast %80 : vector<64x1xf32> to vector<64x64xf32>
    %82 = arith.mulf %77, %81 : vector<64x64xf32>
    %83 = arith.truncf %82 : vector<64x64xf32> to vector<64x64xbf16>
    %cst_35 = arith.constant dense<0.000000e+00> : vector<64x16xf32>
    %84 = tpu.matmul %83, %67, %cst_35 {dimension_numbers = #tpu.dot_dimension_numbers<[1], [0], [0], [1], [0, 0, 1, 1], [], []>} : vector<64x64xbf16>, vector<64x16xbf16>, vector<64x16xf32> -> vector<64x16xf32>
    %85 = vector.extract_strided_slice %61 {offsets = [0, 16], sizes = [64, 16], strides = [1, 1]} : vector<64x96xf32> to vector<64x16xf32>
    %86 = arith.truncf %85 : vector<64x16xf32> to vector<64x16xbf16>
    %87 = vector.extract_strided_slice %61 {offsets = [0, 48], sizes = [64, 16], strides = [1, 1]} : vector<64x96xf32> to vector<64x16xf32>
    %88 = arith.truncf %87 : vector<64x16xf32> to vector<64x16xbf16>
    %89 = vector.extract_strided_slice %61 {offsets = [0, 80], sizes = [64, 16], strides = [1, 1]} : vector<64x96xf32> to vector<64x16xf32>
    %90 = arith.truncf %89 : vector<64x16xf32> to vector<64x16xbf16>
    %91 = tpu.transpose %88, [1, 0] : vector<64x16xbf16> -> vector<16x64xbf16>
    %cst_36 = arith.constant dense<0.000000e+00> : vector<64x64xf32>
    %92 = tpu.matmul %86, %91, %cst_36 {dimension_numbers = #tpu.dot_dimension_numbers<[1], [0], [0], [1], [0, 0, 1, 1], [], []>} : vector<64x16xbf16>, vector<16x64xbf16>, vector<64x64xf32> -> vector<64x64xf32>
    %c1 = arith.constant 1 : index
    %c0_37 = arith.constant 0 : index
    %c0_38 = arith.constant 0 : index
    %93 = vector.load %arg6[%c1, %c0_37, %c0_38] : memref<2x64x64xf32, #tpu.memory_space<vmem>>, vector<1x64x64xf32>
    %94 = vector.shape_cast %93 : vector<1x64x64xf32> to vector<64x64xf32>
    %95 = arith.addf %92, %94 : vector<64x64xf32>
    %cst_39 = arith.constant dense<0xFF800000> : vector<64xf32>
    %96 = vector.multi_reduction <maximumf>, %95, %cst_39 [1] : vector<64x64xf32> to vector<64xf32>
    %97 = vector.shape_cast %96 : vector<64xf32> to vector<64x1xf32>
    %98 = vector.broadcast %97 : vector<64x1xf32> to vector<64x64xf32>
    %99 = arith.subf %95, %98 : vector<64x64xf32>
    %100 = math.exp %99 : vector<64x64xf32>
    %cst_40 = arith.constant dense<0.000000e+00> : vector<64xf32>
    %101 = vector.multi_reduction <add>, %100, %cst_40 [1] : vector<64x64xf32> to vector<64xf32>
    %102 = vector.shape_cast %101 : vector<64xf32> to vector<64x1xf32>
    %103 = tpu.reciprocal %102 {approx = true} : vector<64x1xf32> -> vector<64x1xf32>
    %104 = vector.broadcast %103 : vector<64x1xf32> to vector<64x64xf32>
    %105 = arith.mulf %100, %104 : vector<64x64xf32>
    %106 = arith.truncf %105 : vector<64x64xf32> to vector<64x64xbf16>
    %cst_41 = arith.constant dense<0.000000e+00> : vector<64x16xf32>
    %107 = tpu.matmul %106, %90, %cst_41 {dimension_numbers = #tpu.dot_dimension_numbers<[1], [0], [0], [1], [0, 0, 1, 1], [], []>} : vector<64x64xbf16>, vector<64x16xbf16>, vector<64x16xf32> -> vector<64x16xf32>
    %108 = tpu.concatenate %84, %107 in 1 : vector<64x16xf32>, vector<64x16xf32> -> vector<64x32xf32>
    %109 = arith.truncf %108 : vector<64x32xf32> to vector<64x32xbf16>
    %c0_42 = arith.constant 0 : index
    %c0_43 = arith.constant 0 : index
    %110 = vector.load %arg11[%c0_42, %c0_43] : memref<32x32xbf16, #tpu.memory_space<vmem>>, vector<32x32xbf16>
    %cst_44 = arith.constant dense<0.000000e+00> : vector<64x32xf32>
    %111 = tpu.matmul %109, %110, %cst_44 {dimension_numbers = #tpu.dot_dimension_numbers<[1], [0], [0], [1], [0, 0, 1, 1], [], []>} : vector<64x32xbf16>, vector<32x32xbf16>, vector<64x32xf32> -> vector<64x32xf32>
    %c0_45 = arith.constant 0 : index
    %c0_46 = arith.constant 0 : index
    %112 = vector.load %arg12[%c0_45, %c0_46] : memref<1x32xf32, #tpu.memory_space<vmem>>, vector<1x32xf32>
    %113 = vector.broadcast %112 : vector<1x32xf32> to vector<64x32xf32>
    %114 = arith.addf %111, %113 : vector<64x32xf32>
    %115 = arith.addf %31, %114 : vector<64x32xf32>
    %c0_47 = arith.constant 0 : index
    %c0_48 = arith.constant 0 : index
    %116 = vector.load %arg13[%c0_47, %c0_48] : memref<1x32xf32, #tpu.memory_space<vmem>>, vector<1x32xf32>
    %c0_49 = arith.constant 0 : index
    %c0_50 = arith.constant 0 : index
    %117 = vector.load %arg14[%c0_49, %c0_50] : memref<1x32xf32, #tpu.memory_space<vmem>>, vector<1x32xf32>
    %cst_51 = arith.constant dense<0.000000e+00> : vector<64xf32>
    %118 = vector.multi_reduction <add>, %115, %cst_51 [1] : vector<64x32xf32> to vector<64xf32>
    %119 = vector.shape_cast %118 : vector<64xf32> to vector<64x1xf32>
    %cst_52 = arith.constant 3.200000e+01 : f32
    %120 = vector.broadcast %cst_52 : f32 to vector<64x1xf32>
    %121 = arith.divf %119, %120 : vector<64x1xf32>
    %122 = vector.broadcast %121 : vector<64x1xf32> to vector<64x32xf32>
    %123 = arith.subf %115, %122 : vector<64x32xf32>
    %124 = arith.mulf %123, %123 : vector<64x32xf32>
    %cst_53 = arith.constant dense<0.000000e+00> : vector<64xf32>
    %125 = vector.multi_reduction <add>, %124, %cst_53 [1] : vector<64x32xf32> to vector<64xf32>
    %126 = vector.shape_cast %125 : vector<64xf32> to vector<64x1xf32>
    %cst_54 = arith.constant 3.200000e+01 : f32
    %127 = vector.broadcast %cst_54 : f32 to vector<64x1xf32>
    %128 = arith.divf %126, %127 : vector<64x1xf32>
    %129 = vector.broadcast %121 : vector<64x1xf32> to vector<64x32xf32>
    %130 = arith.subf %115, %129 : vector<64x32xf32>
    %cst_55 = arith.constant 9.99999974E-6 : f32
    %131 = vector.broadcast %cst_55 : f32 to vector<64x1xf32>
    %132 = arith.addf %128, %131 : vector<64x1xf32>
    %133 = math.rsqrt %132 : vector<64x1xf32>
    %134 = vector.broadcast %133 : vector<64x1xf32> to vector<64x32xf32>
    %135 = arith.mulf %130, %134 : vector<64x32xf32>
    %136 = vector.broadcast %116 : vector<1x32xf32> to vector<64x32xf32>
    %137 = arith.mulf %135, %136 : vector<64x32xf32>
    %138 = vector.broadcast %117 : vector<1x32xf32> to vector<64x32xf32>
    %139 = arith.addf %137, %138 : vector<64x32xf32>
    %140 = arith.truncf %139 : vector<64x32xf32> to vector<64x32xbf16>
    %c0_56 = arith.constant 0 : index
    %c0_57 = arith.constant 0 : index
    %141 = vector.load %arg15[%c0_56, %c0_57] : memref<32x128xbf16, #tpu.memory_space<vmem>>, vector<32x128xbf16>
    %cst_58 = arith.constant dense<0.000000e+00> : vector<64x128xf32>
    %142 = tpu.matmul %140, %141, %cst_58 {dimension_numbers = #tpu.dot_dimension_numbers<[1], [0], [0], [1], [0, 0, 1, 1], [], []>} : vector<64x32xbf16>, vector<32x128xbf16>, vector<64x128xf32> -> vector<64x128xf32>
    %c0_59 = arith.constant 0 : index
    %c0_60 = arith.constant 0 : index
    %143 = vector.load %arg16[%c0_59, %c0_60] : memref<1x128xf32, #tpu.memory_space<vmem>>, vector<1x128xf32>
    %144 = vector.broadcast %143 : vector<1x128xf32> to vector<64x128xf32>
    %145 = arith.addf %142, %144 : vector<64x128xf32>
    %146 = arith.mulf %145, %145 : vector<64x128xf32>
    %147 = arith.mulf %145, %146 : vector<64x128xf32>
    %cst_61 = arith.constant 4.471500e-02 : f32
    %148 = vector.broadcast %cst_61 : f32 to vector<64x128xf32>
    %149 = arith.mulf %148, %147 : vector<64x128xf32>
    %150 = arith.addf %145, %149 : vector<64x128xf32>
    %cst_62 = arith.constant 0.797884583 : f32
    %151 = vector.broadcast %cst_62 : f32 to vector<64x128xf32>
    %152 = arith.mulf %151, %150 : vector<64x128xf32>
    %153 = math.tanh %152 : vector<64x128xf32>
    %cst_63 = arith.constant 1.000000e+00 : f32
    %154 = vector.broadcast %cst_63 : f32 to vector<64x128xf32>
    %155 = arith.addf %154, %153 : vector<64x128xf32>
    %cst_64 = arith.constant 5.000000e-01 : f32
    %156 = vector.broadcast %cst_64 : f32 to vector<64x128xf32>
    %157 = arith.mulf %156, %155 : vector<64x128xf32>
    %158 = arith.mulf %145, %157 : vector<64x128xf32>
    %159 = arith.truncf %158 : vector<64x128xf32> to vector<64x128xbf16>
    %c0_65 = arith.constant 0 : index
    %c0_66 = arith.constant 0 : index
    %160 = vector.load %arg17[%c0_65, %c0_66] : memref<128x32xbf16, #tpu.memory_space<vmem>>, vector<128x32xbf16>
    %cst_67 = arith.constant dense<0.000000e+00> : vector<64x32xf32>
    %161 = tpu.matmul %159, %160, %cst_67 {dimension_numbers = #tpu.dot_dimension_numbers<[1], [0], [0], [1], [0, 0, 1, 1], [], []>} : vector<64x128xbf16>, vector<128x32xbf16>, vector<64x32xf32> -> vector<64x32xf32>
    %c0_68 = arith.constant 0 : index
    %c0_69 = arith.constant 0 : index
    %162 = vector.load %arg18[%c0_68, %c0_69] : memref<1x32xf32, #tpu.memory_space<vmem>>, vector<1x32xf32>
    %163 = vector.broadcast %162 : vector<1x32xf32> to vector<64x32xf32>
    %164 = arith.addf %161, %163 : vector<64x32xf32>
    %165 = arith.addf %115, %164 : vector<64x32xf32>
    %166 = arith.truncf %165 : vector<64x32xf32> to vector<64x32xbf16>
    %c0_70 = arith.constant 0 : index
    %c0_71 = arith.constant 0 : index
    %c0_72 = arith.constant 0 : index
    %167 = vector.load %arg19[%c0_70, %c0_71, %c0_72] : memref<1x64x32xbf16, #tpu.memory_space<vmem>>, vector<1x64x32xbf16>
    %168 = vector.shape_cast %167 : vector<1x64x32xbf16> to vector<64x32xbf16>
    %169 = vector.shape_cast %166 : vector<64x32xbf16> to vector<1x64x32xbf16>
    tpu.vector_store %arg19[%c0_70, %c0_71, %c0_72], %169 {strides = array<i32>} : memref<1x64x32xbf16, #tpu.memory_space<vmem>>, vector<1x64x32xbf16>,
    return
  }
  func.func @transform_0(%arg0: i32) -> (i32, i32, i32) {
    %c0_i32 = arith.constant 0 : i32
    %c0_i32_0 = arith.constant 0 : i32
    %c0_i32_1 = arith.constant 0 : i32
    return %arg0, %c0_i32, %c0_i32_0 : i32, i32, i32
  }
  func.func @transform_1(%arg0: i32) -> (i32, i32) {
    %c0_i32 = arith.constant 0 : i32
    %c0_i32_0 = arith.constant 0 : i32
    %c0_i32_1 = arith.constant 0 : i32
    return %c0_i32, %c0_i32_0 : i32, i32
  }
  func.func @transform_2(%arg0: i32) -> (i32, i32) {
    %c0_i32 = arith.constant 0 : i32
    %c0_i32_0 = arith.constant 0 : i32
    %c0_i32_1 = arith.constant 0 : i32
    return %c0_i32, %c0_i32_0 : i32, i32
  }
  func.func @transform_3(%arg0: i32) -> (i32, i32) {
    %c0_i32 = arith.constant 0 : i32
    %c0_i32_0 = arith.constant 0 : i32
    %c0_i32_1 = arith.constant 0 : i32
    return %c0_i32, %c0_i32_0 : i32, i32
  }
  func.func @transform_4(%arg0: i32) -> (i32, i32) {
    %c0_i32 = arith.constant 0 : i32
    %c0_i32_0 = arith.constant 0 : i32
    %c0_i32_1 = arith.constant 0 : i32
    return %c0_i32, %c0_i32_0 : i32, i32
  }
  func.func @transform_5(%arg0: i32) -> (i32, i32, i32) {
    %c0_i32 = arith.constant 0 : i32
    %c0_i32_0 = arith.constant 0 : i32
    %c0_i32_1 = arith.constant 0 : i32
    %c0_i32_2 = arith.constant 0 : i32
    return %c0_i32, %c0_i32_0, %c0_i32_1 : i32, i32, i32
  }
  func.func @transform_6(%arg0: i32) -> (i32, i32) {
    %c0_i32 = arith.constant 0 : i32
    %c0_i32_0 = arith.constant 0 : i32
    %c0_i32_1 = arith.constant 0 : i32
    return %c0_i32, %c0_i32_0 : i32, i32
  }
  func.func @transform_7(%arg0: i32) -> (i32, i32) {
    %c0_i32 = arith.constant 0 : i32
    %c0_i32_0 = arith.constant 0 : i32
    %c0_i32_1 = arith.constant 0 : i32
    return %c0_i32, %c0_i32_0 : i32, i32
  }
  func.func @transform_8(%arg0: i32) -> (i32, i32) {
    %c0_i32 = arith.constant 0 : i32
    %c0_i32_0 = arith.constant 0 : i32
    %c0_i32_1 = arith.constant 0 : i32
    return %c0_i32, %c0_i32_0 : i32, i32
  }
  func.func @transform_9(%arg0: i32) -> (i32, i32) {
    %c0_i32 = arith.constant 0 : i32
    %c0_i32_0 = arith.constant 0 : i32
    %c0_i32_1 = arith.constant 0 : i32
    return %c0_i32, %c0_i32_0 : i32, i32
  }
  func.func @transform_10(%arg0: i32) -> (i32, i32) {
    %c0_i32 = arith.constant 0 : i32
    %c0_i32_0 = arith.constant 0 : i32
    %c0_i32_1 = arith.constant 0 : i32
    return %c0_i32, %c0_i32_0 : i32, i32
  }
  func.func @transform_11(%arg0: i32) -> (i32, i32) {
    %c0_i32 = arith.constant 0 : i32
    %c0_i32_0 = arith.constant 0 : i32
    %c0_i32_1 = arith.constant 0 : i32
    return %c0_i32, %c0_i32_0 : i32, i32
  }
  func.func @transform_12(%arg0: i32) -> (i32, i32) {
    %c0_i32 = arith.constant 0 : i32
    %c0_i32_0 = arith.constant 0 : i32
    %c0_i32_1 = arith.constant 0 : i32
    return %c0_i32, %c0_i32_0 : i32, i32
  }
  func.func @transform_13(%arg0: i32) -> (i32, i32) {
    %c0_i32 = arith.constant 0 : i32
    %c0_i32_0 = arith.constant 0 : i32
    %c0_i32_1 = arith.constant 0 : i32
    return %c0_i32, %c0_i32_0 : i32, i32
  }
  func.func @transform_14(%arg0: i32) -> (i32, i32) {
    %c0_i32 = arith.constant 0 : i32
    %c0_i32_0 = arith.constant 0 : i32
    %c0_i32_1 = arith.constant 0 : i32
    return %c0_i32, %c0_i32_0 : i32, i32
  }
  func.func @transform_15(%arg0: i32) -> (i32, i32) {
    %c0_i32 = arith.constant 0 : i32
    %c0_i32_0 = arith.constant 0 : i32
    %c0_i32_1 = arith.constant 0 : i32
    return %c0_i32, %c0_i32_0 : i32, i32
  }
  func.func @transform_16(%arg0: i32) -> (i32, i32) {
    %c0_i32 = arith.constant 0 : i32
    %c0_i32_0 = arith.constant 0 : i32
    %c0_i32_1 = arith.constant 0 : i32
    return %c0_i32, %c0_i32_0 : i32, i32
  }
  func.func @transform_17(%arg0: i32) -> (i32, i32) {
    %c0_i32 = arith.constant 0 : i32
    %c0_i32_0 = arith.constant 0 : i32
    %c0_i32_1 = arith.constant 0 : i32
    return %c0_i32, %c0_i32_0 : i32, i32
  }
  func.func @transform_18(%arg0: i32) -> (i32, i32, i32) {
    %c0_i32 = arith.constant 0 : i32
    %c0_i32_0 = arith.constant 0 : i32
    %c0_i32_1 = arith.constant 0 : i32
    return %arg0, %c0_i32, %c0_i32_0 : i32, i32, i32
  }
}

module attributes {stable_mosaic.version = 11 : i64} {
  func.func @_block_plain_kernel(%arg0: i32, %arg1: memref<1x64x32xbf16, #tpu.memory_space<vmem>>, %arg2: memref<2x64x64xf32, #tpu.memory_space<vmem>>, %arg3: memref<1x32xf32, #tpu.memory_space<vmem>>, %arg4: memref<1x32xf32, #tpu.memory_space<vmem>>, %arg5: memref<32x96xbf16, #tpu.memory_space<vmem>>, %arg6: memref<1x96xf32, #tpu.memory_space<vmem>>, %arg7: memref<32x32xbf16, #tpu.memory_space<vmem>>, %arg8: memref<1x32xf32, #tpu.memory_space<vmem>>, %arg9: memref<1x32xf32, #tpu.memory_space<vmem>>, %arg10: memref<1x32xf32, #tpu.memory_space<vmem>>, %arg11: memref<32x128xbf16, #tpu.memory_space<vmem>>, %arg12: memref<1x128xf32, #tpu.memory_space<vmem>>, %arg13: memref<128x32xbf16, #tpu.memory_space<vmem>>, %arg14: memref<1x32xf32, #tpu.memory_space<vmem>>, %arg15: memref<1x64x32xbf16, #tpu.memory_space<vmem>>) attributes {dimension_semantics = [#tpu.dimension_semantics<parallel>], iteration_bounds = array<i64: 2>, scalar_prefetch = 0 : i64, scratch_operands = 0 : i64, tpu.core_type = #tpu.core_type<tc>, window_params = [{transform_indices = @transform_0, window_bounds = array<i64: 1, 64, 32>}, {pipeline_mode = #tpu.pipeline_mode<synchronous>, transform_indices = @transform_1, window_bounds = array<i64: 2, 64, 64>}, {pipeline_mode = #tpu.pipeline_mode<synchronous>, transform_indices = @transform_2, window_bounds = array<i64: 1, 32>}, {pipeline_mode = #tpu.pipeline_mode<synchronous>, transform_indices = @transform_3, window_bounds = array<i64: 1, 32>}, {pipeline_mode = #tpu.pipeline_mode<synchronous>, transform_indices = @transform_4, window_bounds = array<i64: 32, 96>}, {pipeline_mode = #tpu.pipeline_mode<synchronous>, transform_indices = @transform_5, window_bounds = array<i64: 1, 96>}, {pipeline_mode = #tpu.pipeline_mode<synchronous>, transform_indices = @transform_6, window_bounds = array<i64: 32, 32>}, {pipeline_mode = #tpu.pipeline_mode<synchronous>, transform_indices = @transform_7, window_bounds = array<i64: 1, 32>}, {pipeline_mode = #tpu.pipeline_mode<synchronous>, transform_indices = @transform_8, window_bounds = array<i64: 1, 32>}, {pipeline_mode = #tpu.pipeline_mode<synchronous>, transform_indices = @transform_9, window_bounds = array<i64: 1, 32>}, {pipeline_mode = #tpu.pipeline_mode<synchronous>, transform_indices = @transform_10, window_bounds = array<i64: 32, 128>}, {pipeline_mode = #tpu.pipeline_mode<synchronous>, transform_indices = @transform_11, window_bounds = array<i64: 1, 128>}, {pipeline_mode = #tpu.pipeline_mode<synchronous>, transform_indices = @transform_12, window_bounds = array<i64: 128, 32>}, {pipeline_mode = #tpu.pipeline_mode<synchronous>, transform_indices = @transform_13, window_bounds = array<i64: 1, 32>}, {transform_indices = @transform_14, window_bounds = array<i64: 1, 64, 32>}]} {
    %c0 = arith.constant 0 : index
    %c0_0 = arith.constant 0 : index
    %c0_1 = arith.constant 0 : index
    %0 = vector.load %arg1[%c0, %c0_0, %c0_1] : memref<1x64x32xbf16, #tpu.memory_space<vmem>>, vector<1x64x32xbf16>
    %1 = vector.shape_cast %0 : vector<1x64x32xbf16> to vector<64x32xbf16>
    %2 = arith.extf %1 : vector<64x32xbf16> to vector<64x32xf32>
    %c0_2 = arith.constant 0 : index
    %c0_3 = arith.constant 0 : index
    %3 = vector.load %arg3[%c0_2, %c0_3] : memref<1x32xf32, #tpu.memory_space<vmem>>, vector<1x32xf32>
    %c0_4 = arith.constant 0 : index
    %c0_5 = arith.constant 0 : index
    %4 = vector.load %arg4[%c0_4, %c0_5] : memref<1x32xf32, #tpu.memory_space<vmem>>, vector<1x32xf32>
    %cst = arith.constant dense<0.000000e+00> : vector<64xf32>
    %5 = vector.multi_reduction <add>, %2, %cst [1] : vector<64x32xf32> to vector<64xf32>
    %6 = vector.shape_cast %5 : vector<64xf32> to vector<64x1xf32>
    %cst_6 = arith.constant 3.200000e+01 : f32
    %7 = vector.broadcast %cst_6 : f32 to vector<64x1xf32>
    %8 = arith.divf %6, %7 : vector<64x1xf32>
    %9 = vector.broadcast %8 : vector<64x1xf32> to vector<64x32xf32>
    %10 = arith.subf %2, %9 : vector<64x32xf32>
    %11 = arith.mulf %10, %10 : vector<64x32xf32>
    %cst_7 = arith.constant dense<0.000000e+00> : vector<64xf32>
    %12 = vector.multi_reduction <add>, %11, %cst_7 [1] : vector<64x32xf32> to vector<64xf32>
    %13 = vector.shape_cast %12 : vector<64xf32> to vector<64x1xf32>
    %cst_8 = arith.constant 3.200000e+01 : f32
    %14 = vector.broadcast %cst_8 : f32 to vector<64x1xf32>
    %15 = arith.divf %13, %14 : vector<64x1xf32>
    %16 = vector.broadcast %8 : vector<64x1xf32> to vector<64x32xf32>
    %17 = arith.subf %2, %16 : vector<64x32xf32>
    %cst_9 = arith.constant 9.99999974E-6 : f32
    %18 = vector.broadcast %cst_9 : f32 to vector<64x1xf32>
    %19 = arith.addf %15, %18 : vector<64x1xf32>
    %20 = math.rsqrt %19 : vector<64x1xf32>
    %21 = vector.broadcast %20 : vector<64x1xf32> to vector<64x32xf32>
    %22 = arith.mulf %17, %21 : vector<64x32xf32>
    %23 = vector.broadcast %3 : vector<1x32xf32> to vector<64x32xf32>
    %24 = arith.mulf %22, %23 : vector<64x32xf32>
    %25 = vector.broadcast %4 : vector<1x32xf32> to vector<64x32xf32>
    %26 = arith.addf %24, %25 : vector<64x32xf32>
    %27 = arith.truncf %26 : vector<64x32xf32> to vector<64x32xbf16>
    %c0_10 = arith.constant 0 : index
    %c0_11 = arith.constant 0 : index
    %28 = vector.load %arg5[%c0_10, %c0_11] : memref<32x96xbf16, #tpu.memory_space<vmem>>, vector<32x96xbf16>
    %cst_12 = arith.constant dense<0.000000e+00> : vector<64x96xf32>
    %29 = tpu.matmul %27, %28, %cst_12 {dimension_numbers = #tpu.dot_dimension_numbers<[1], [0], [0], [1], [0, 0, 1, 1], [], []>} : vector<64x32xbf16>, vector<32x96xbf16>, vector<64x96xf32> -> vector<64x96xf32>
    %c0_13 = arith.constant 0 : index
    %c0_14 = arith.constant 0 : index
    %30 = vector.load %arg6[%c0_13, %c0_14] : memref<1x96xf32, #tpu.memory_space<vmem>>, vector<1x96xf32>
    %31 = vector.broadcast %30 : vector<1x96xf32> to vector<64x96xf32>
    %32 = arith.addf %29, %31 : vector<64x96xf32>
    %33 = vector.extract_strided_slice %32 {offsets = [0, 0], sizes = [64, 16], strides = [1, 1]} : vector<64x96xf32> to vector<64x16xf32>
    %34 = arith.truncf %33 : vector<64x16xf32> to vector<64x16xbf16>
    %35 = vector.extract_strided_slice %32 {offsets = [0, 32], sizes = [64, 16], strides = [1, 1]} : vector<64x96xf32> to vector<64x16xf32>
    %36 = arith.truncf %35 : vector<64x16xf32> to vector<64x16xbf16>
    %37 = vector.extract_strided_slice %32 {offsets = [0, 64], sizes = [64, 16], strides = [1, 1]} : vector<64x96xf32> to vector<64x16xf32>
    %38 = arith.truncf %37 : vector<64x16xf32> to vector<64x16xbf16>
    %39 = tpu.transpose %36, [1, 0] : vector<64x16xbf16> -> vector<16x64xbf16>
    %cst_15 = arith.constant dense<0.000000e+00> : vector<64x64xf32>
    %40 = tpu.matmul %34, %39, %cst_15 {dimension_numbers = #tpu.dot_dimension_numbers<[1], [0], [0], [1], [0, 0, 1, 1], [], []>} : vector<64x16xbf16>, vector<16x64xbf16>, vector<64x64xf32> -> vector<64x64xf32>
    %c0_16 = arith.constant 0 : index
    %c0_17 = arith.constant 0 : index
    %c0_18 = arith.constant 0 : index
    %41 = vector.load %arg2[%c0_16, %c0_17, %c0_18] : memref<2x64x64xf32, #tpu.memory_space<vmem>>, vector<1x64x64xf32>
    %42 = vector.shape_cast %41 : vector<1x64x64xf32> to vector<64x64xf32>
    %43 = arith.addf %40, %42 : vector<64x64xf32>
    %cst_19 = arith.constant dense<0xFF800000> : vector<64xf32>
    %44 = vector.multi_reduction <maximumf>, %43, %cst_19 [1] : vector<64x64xf32> to vector<64xf32>
    %45 = vector.shape_cast %44 : vector<64xf32> to vector<64x1xf32>
    %46 = vector.broadcast %45 : vector<64x1xf32> to vector<64x64xf32>
    %47 = arith.subf %43, %46 : vector<64x64xf32>
    %48 = math.exp %47 : vector<64x64xf32>
    %cst_20 = arith.constant dense<0.000000e+00> : vector<64xf32>
    %49 = vector.multi_reduction <add>, %48, %cst_20 [1] : vector<64x64xf32> to vector<64xf32>
    %50 = vector.shape_cast %49 : vector<64xf32> to vector<64x1xf32>
    %51 = tpu.reciprocal %50 {approx = true} : vector<64x1xf32> -> vector<64x1xf32>
    %52 = vector.broadcast %51 : vector<64x1xf32> to vector<64x64xf32>
    %53 = arith.mulf %48, %52 : vector<64x64xf32>
    %54 = arith.truncf %53 : vector<64x64xf32> to vector<64x64xbf16>
    %cst_21 = arith.constant dense<0.000000e+00> : vector<64x16xf32>
    %55 = tpu.matmul %54, %38, %cst_21 {dimension_numbers = #tpu.dot_dimension_numbers<[1], [0], [0], [1], [0, 0, 1, 1], [], []>} : vector<64x64xbf16>, vector<64x16xbf16>, vector<64x16xf32> -> vector<64x16xf32>
    %56 = vector.extract_strided_slice %32 {offsets = [0, 16], sizes = [64, 16], strides = [1, 1]} : vector<64x96xf32> to vector<64x16xf32>
    %57 = arith.truncf %56 : vector<64x16xf32> to vector<64x16xbf16>
    %58 = vector.extract_strided_slice %32 {offsets = [0, 48], sizes = [64, 16], strides = [1, 1]} : vector<64x96xf32> to vector<64x16xf32>
    %59 = arith.truncf %58 : vector<64x16xf32> to vector<64x16xbf16>
    %60 = vector.extract_strided_slice %32 {offsets = [0, 80], sizes = [64, 16], strides = [1, 1]} : vector<64x96xf32> to vector<64x16xf32>
    %61 = arith.truncf %60 : vector<64x16xf32> to vector<64x16xbf16>
    %62 = tpu.transpose %59, [1, 0] : vector<64x16xbf16> -> vector<16x64xbf16>
    %cst_22 = arith.constant dense<0.000000e+00> : vector<64x64xf32>
    %63 = tpu.matmul %57, %62, %cst_22 {dimension_numbers = #tpu.dot_dimension_numbers<[1], [0], [0], [1], [0, 0, 1, 1], [], []>} : vector<64x16xbf16>, vector<16x64xbf16>, vector<64x64xf32> -> vector<64x64xf32>
    %c1 = arith.constant 1 : index
    %c0_23 = arith.constant 0 : index
    %c0_24 = arith.constant 0 : index
    %64 = vector.load %arg2[%c1, %c0_23, %c0_24] : memref<2x64x64xf32, #tpu.memory_space<vmem>>, vector<1x64x64xf32>
    %65 = vector.shape_cast %64 : vector<1x64x64xf32> to vector<64x64xf32>
    %66 = arith.addf %63, %65 : vector<64x64xf32>
    %cst_25 = arith.constant dense<0xFF800000> : vector<64xf32>
    %67 = vector.multi_reduction <maximumf>, %66, %cst_25 [1] : vector<64x64xf32> to vector<64xf32>
    %68 = vector.shape_cast %67 : vector<64xf32> to vector<64x1xf32>
    %69 = vector.broadcast %68 : vector<64x1xf32> to vector<64x64xf32>
    %70 = arith.subf %66, %69 : vector<64x64xf32>
    %71 = math.exp %70 : vector<64x64xf32>
    %cst_26 = arith.constant dense<0.000000e+00> : vector<64xf32>
    %72 = vector.multi_reduction <add>, %71, %cst_26 [1] : vector<64x64xf32> to vector<64xf32>
    %73 = vector.shape_cast %72 : vector<64xf32> to vector<64x1xf32>
    %74 = tpu.reciprocal %73 {approx = true} : vector<64x1xf32> -> vector<64x1xf32>
    %75 = vector.broadcast %74 : vector<64x1xf32> to vector<64x64xf32>
    %76 = arith.mulf %71, %75 : vector<64x64xf32>
    %77 = arith.truncf %76 : vector<64x64xf32> to vector<64x64xbf16>
    %cst_27 = arith.constant dense<0.000000e+00> : vector<64x16xf32>
    %78 = tpu.matmul %77, %61, %cst_27 {dimension_numbers = #tpu.dot_dimension_numbers<[1], [0], [0], [1], [0, 0, 1, 1], [], []>} : vector<64x64xbf16>, vector<64x16xbf16>, vector<64x16xf32> -> vector<64x16xf32>
    %79 = tpu.concatenate %55, %78 in 1 : vector<64x16xf32>, vector<64x16xf32> -> vector<64x32xf32>
    %80 = arith.truncf %79 : vector<64x32xf32> to vector<64x32xbf16>
    %c0_28 = arith.constant 0 : index
    %c0_29 = arith.constant 0 : index
    %81 = vector.load %arg7[%c0_28, %c0_29] : memref<32x32xbf16, #tpu.memory_space<vmem>>, vector<32x32xbf16>
    %cst_30 = arith.constant dense<0.000000e+00> : vector<64x32xf32>
    %82 = tpu.matmul %80, %81, %cst_30 {dimension_numbers = #tpu.dot_dimension_numbers<[1], [0], [0], [1], [0, 0, 1, 1], [], []>} : vector<64x32xbf16>, vector<32x32xbf16>, vector<64x32xf32> -> vector<64x32xf32>
    %c0_31 = arith.constant 0 : index
    %c0_32 = arith.constant 0 : index
    %83 = vector.load %arg8[%c0_31, %c0_32] : memref<1x32xf32, #tpu.memory_space<vmem>>, vector<1x32xf32>
    %84 = vector.broadcast %83 : vector<1x32xf32> to vector<64x32xf32>
    %85 = arith.addf %82, %84 : vector<64x32xf32>
    %86 = arith.addf %2, %85 : vector<64x32xf32>
    %c0_33 = arith.constant 0 : index
    %c0_34 = arith.constant 0 : index
    %87 = vector.load %arg9[%c0_33, %c0_34] : memref<1x32xf32, #tpu.memory_space<vmem>>, vector<1x32xf32>
    %c0_35 = arith.constant 0 : index
    %c0_36 = arith.constant 0 : index
    %88 = vector.load %arg10[%c0_35, %c0_36] : memref<1x32xf32, #tpu.memory_space<vmem>>, vector<1x32xf32>
    %cst_37 = arith.constant dense<0.000000e+00> : vector<64xf32>
    %89 = vector.multi_reduction <add>, %86, %cst_37 [1] : vector<64x32xf32> to vector<64xf32>
    %90 = vector.shape_cast %89 : vector<64xf32> to vector<64x1xf32>
    %cst_38 = arith.constant 3.200000e+01 : f32
    %91 = vector.broadcast %cst_38 : f32 to vector<64x1xf32>
    %92 = arith.divf %90, %91 : vector<64x1xf32>
    %93 = vector.broadcast %92 : vector<64x1xf32> to vector<64x32xf32>
    %94 = arith.subf %86, %93 : vector<64x32xf32>
    %95 = arith.mulf %94, %94 : vector<64x32xf32>
    %cst_39 = arith.constant dense<0.000000e+00> : vector<64xf32>
    %96 = vector.multi_reduction <add>, %95, %cst_39 [1] : vector<64x32xf32> to vector<64xf32>
    %97 = vector.shape_cast %96 : vector<64xf32> to vector<64x1xf32>
    %cst_40 = arith.constant 3.200000e+01 : f32
    %98 = vector.broadcast %cst_40 : f32 to vector<64x1xf32>
    %99 = arith.divf %97, %98 : vector<64x1xf32>
    %100 = vector.broadcast %92 : vector<64x1xf32> to vector<64x32xf32>
    %101 = arith.subf %86, %100 : vector<64x32xf32>
    %cst_41 = arith.constant 9.99999974E-6 : f32
    %102 = vector.broadcast %cst_41 : f32 to vector<64x1xf32>
    %103 = arith.addf %99, %102 : vector<64x1xf32>
    %104 = math.rsqrt %103 : vector<64x1xf32>
    %105 = vector.broadcast %104 : vector<64x1xf32> to vector<64x32xf32>
    %106 = arith.mulf %101, %105 : vector<64x32xf32>
    %107 = vector.broadcast %87 : vector<1x32xf32> to vector<64x32xf32>
    %108 = arith.mulf %106, %107 : vector<64x32xf32>
    %109 = vector.broadcast %88 : vector<1x32xf32> to vector<64x32xf32>
    %110 = arith.addf %108, %109 : vector<64x32xf32>
    %111 = arith.truncf %110 : vector<64x32xf32> to vector<64x32xbf16>
    %c0_42 = arith.constant 0 : index
    %c0_43 = arith.constant 0 : index
    %112 = vector.load %arg11[%c0_42, %c0_43] : memref<32x128xbf16, #tpu.memory_space<vmem>>, vector<32x128xbf16>
    %cst_44 = arith.constant dense<0.000000e+00> : vector<64x128xf32>
    %113 = tpu.matmul %111, %112, %cst_44 {dimension_numbers = #tpu.dot_dimension_numbers<[1], [0], [0], [1], [0, 0, 1, 1], [], []>} : vector<64x32xbf16>, vector<32x128xbf16>, vector<64x128xf32> -> vector<64x128xf32>
    %c0_45 = arith.constant 0 : index
    %c0_46 = arith.constant 0 : index
    %114 = vector.load %arg12[%c0_45, %c0_46] : memref<1x128xf32, #tpu.memory_space<vmem>>, vector<1x128xf32>
    %115 = vector.broadcast %114 : vector<1x128xf32> to vector<64x128xf32>
    %116 = arith.addf %113, %115 : vector<64x128xf32>
    %117 = arith.mulf %116, %116 : vector<64x128xf32>
    %118 = arith.mulf %116, %117 : vector<64x128xf32>
    %cst_47 = arith.constant 4.471500e-02 : f32
    %119 = vector.broadcast %cst_47 : f32 to vector<64x128xf32>
    %120 = arith.mulf %119, %118 : vector<64x128xf32>
    %121 = arith.addf %116, %120 : vector<64x128xf32>
    %cst_48 = arith.constant 0.797884583 : f32
    %122 = vector.broadcast %cst_48 : f32 to vector<64x128xf32>
    %123 = arith.mulf %122, %121 : vector<64x128xf32>
    %124 = math.tanh %123 : vector<64x128xf32>
    %cst_49 = arith.constant 1.000000e+00 : f32
    %125 = vector.broadcast %cst_49 : f32 to vector<64x128xf32>
    %126 = arith.addf %125, %124 : vector<64x128xf32>
    %cst_50 = arith.constant 5.000000e-01 : f32
    %127 = vector.broadcast %cst_50 : f32 to vector<64x128xf32>
    %128 = arith.mulf %127, %126 : vector<64x128xf32>
    %129 = arith.mulf %116, %128 : vector<64x128xf32>
    %130 = arith.truncf %129 : vector<64x128xf32> to vector<64x128xbf16>
    %c0_51 = arith.constant 0 : index
    %c0_52 = arith.constant 0 : index
    %131 = vector.load %arg13[%c0_51, %c0_52] : memref<128x32xbf16, #tpu.memory_space<vmem>>, vector<128x32xbf16>
    %cst_53 = arith.constant dense<0.000000e+00> : vector<64x32xf32>
    %132 = tpu.matmul %130, %131, %cst_53 {dimension_numbers = #tpu.dot_dimension_numbers<[1], [0], [0], [1], [0, 0, 1, 1], [], []>} : vector<64x128xbf16>, vector<128x32xbf16>, vector<64x32xf32> -> vector<64x32xf32>
    %c0_54 = arith.constant 0 : index
    %c0_55 = arith.constant 0 : index
    %133 = vector.load %arg14[%c0_54, %c0_55] : memref<1x32xf32, #tpu.memory_space<vmem>>, vector<1x32xf32>
    %134 = vector.broadcast %133 : vector<1x32xf32> to vector<64x32xf32>
    %135 = arith.addf %132, %134 : vector<64x32xf32>
    %136 = arith.addf %86, %135 : vector<64x32xf32>
    %137 = arith.truncf %136 : vector<64x32xf32> to vector<64x32xbf16>
    %c0_56 = arith.constant 0 : index
    %c0_57 = arith.constant 0 : index
    %c0_58 = arith.constant 0 : index
    %138 = vector.load %arg15[%c0_56, %c0_57, %c0_58] : memref<1x64x32xbf16, #tpu.memory_space<vmem>>, vector<1x64x32xbf16>
    %139 = vector.shape_cast %138 : vector<1x64x32xbf16> to vector<64x32xbf16>
    %140 = vector.shape_cast %137 : vector<64x32xbf16> to vector<1x64x32xbf16>
    tpu.vector_store %arg15[%c0_56, %c0_57, %c0_58], %140 {strides = array<i32>} : memref<1x64x32xbf16, #tpu.memory_space<vmem>>, vector<1x64x32xbf16>,
    return
  }
  func.func @transform_0(%arg0: i32) -> (i32, i32, i32) {
    %c0_i32 = arith.constant 0 : i32
    %c0_i32_0 = arith.constant 0 : i32
    %c0_i32_1 = arith.constant 0 : i32
    return %arg0, %c0_i32, %c0_i32_0 : i32, i32, i32
  }
  func.func @transform_1(%arg0: i32) -> (i32, i32, i32) {
    %c0_i32 = arith.constant 0 : i32
    %c0_i32_0 = arith.constant 0 : i32
    %c0_i32_1 = arith.constant 0 : i32
    %c0_i32_2 = arith.constant 0 : i32
    return %c0_i32, %c0_i32_0, %c0_i32_1 : i32, i32, i32
  }
  func.func @transform_2(%arg0: i32) -> (i32, i32) {
    %c0_i32 = arith.constant 0 : i32
    %c0_i32_0 = arith.constant 0 : i32
    %c0_i32_1 = arith.constant 0 : i32
    return %c0_i32, %c0_i32_0 : i32, i32
  }
  func.func @transform_3(%arg0: i32) -> (i32, i32) {
    %c0_i32 = arith.constant 0 : i32
    %c0_i32_0 = arith.constant 0 : i32
    %c0_i32_1 = arith.constant 0 : i32
    return %c0_i32, %c0_i32_0 : i32, i32
  }
  func.func @transform_4(%arg0: i32) -> (i32, i32) {
    %c0_i32 = arith.constant 0 : i32
    %c0_i32_0 = arith.constant 0 : i32
    %c0_i32_1 = arith.constant 0 : i32
    return %c0_i32, %c0_i32_0 : i32, i32
  }
  func.func @transform_5(%arg0: i32) -> (i32, i32) {
    %c0_i32 = arith.constant 0 : i32
    %c0_i32_0 = arith.constant 0 : i32
    %c0_i32_1 = arith.constant 0 : i32
    return %c0_i32, %c0_i32_0 : i32, i32
  }
  func.func @transform_6(%arg0: i32) -> (i32, i32) {
    %c0_i32 = arith.constant 0 : i32
    %c0_i32_0 = arith.constant 0 : i32
    %c0_i32_1 = arith.constant 0 : i32
    return %c0_i32, %c0_i32_0 : i32, i32
  }
  func.func @transform_7(%arg0: i32) -> (i32, i32) {
    %c0_i32 = arith.constant 0 : i32
    %c0_i32_0 = arith.constant 0 : i32
    %c0_i32_1 = arith.constant 0 : i32
    return %c0_i32, %c0_i32_0 : i32, i32
  }
  func.func @transform_8(%arg0: i32) -> (i32, i32) {
    %c0_i32 = arith.constant 0 : i32
    %c0_i32_0 = arith.constant 0 : i32
    %c0_i32_1 = arith.constant 0 : i32
    return %c0_i32, %c0_i32_0 : i32, i32
  }
  func.func @transform_9(%arg0: i32) -> (i32, i32) {
    %c0_i32 = arith.constant 0 : i32
    %c0_i32_0 = arith.constant 0 : i32
    %c0_i32_1 = arith.constant 0 : i32
    return %c0_i32, %c0_i32_0 : i32, i32
  }
  func.func @transform_10(%arg0: i32) -> (i32, i32) {
    %c0_i32 = arith.constant 0 : i32
    %c0_i32_0 = arith.constant 0 : i32
    %c0_i32_1 = arith.constant 0 : i32
    return %c0_i32, %c0_i32_0 : i32, i32
  }
  func.func @transform_11(%arg0: i32) -> (i32, i32) {
    %c0_i32 = arith.constant 0 : i32
    %c0_i32_0 = arith.constant 0 : i32
    %c0_i32_1 = arith.constant 0 : i32
    return %c0_i32, %c0_i32_0 : i32, i32
  }
  func.func @transform_12(%arg0: i32) -> (i32, i32) {
    %c0_i32 = arith.constant 0 : i32
    %c0_i32_0 = arith.constant 0 : i32
    %c0_i32_1 = arith.constant 0 : i32
    return %c0_i32, %c0_i32_0 : i32, i32
  }
  func.func @transform_13(%arg0: i32) -> (i32, i32) {
    %c0_i32 = arith.constant 0 : i32
    %c0_i32_0 = arith.constant 0 : i32
    %c0_i32_1 = arith.constant 0 : i32
    return %c0_i32, %c0_i32_0 : i32, i32
  }
  func.func @transform_14(%arg0: i32) -> (i32, i32, i32) {
    %c0_i32 = arith.constant 0 : i32
    %c0_i32_0 = arith.constant 0 : i32
    %c0_i32_1 = arith.constant 0 : i32
    return %arg0, %c0_i32, %c0_i32_0 : i32, i32, i32
  }
}

module attributes {stable_mosaic.version = 11 : i64} {
  func.func @_block_head_kernel(%arg0: i32, %arg1: memref<1x16x64xbf16, #tpu.memory_space<vmem>>, %arg2: memref<4x16x16xf32, #tpu.memory_space<vmem>>, %arg3: memref<1x64xf32, #tpu.memory_space<vmem>>, %arg4: memref<1x64xf32, #tpu.memory_space<vmem>>, %arg5: memref<64x192xbf16, #tpu.memory_space<vmem>>, %arg6: memref<1x192xf32, #tpu.memory_space<vmem>>, %arg7: memref<64x64xbf16, #tpu.memory_space<vmem>>, %arg8: memref<1x64xf32, #tpu.memory_space<vmem>>, %arg9: memref<1x64xf32, #tpu.memory_space<vmem>>, %arg10: memref<1x64xf32, #tpu.memory_space<vmem>>, %arg11: memref<64x256xbf16, #tpu.memory_space<vmem>>, %arg12: memref<1x256xf32, #tpu.memory_space<vmem>>, %arg13: memref<256x64xbf16, #tpu.memory_space<vmem>>, %arg14: memref<1x64xf32, #tpu.memory_space<vmem>>, %arg15: memref<1x64xf32, #tpu.memory_space<vmem>>, %arg16: memref<1x64xf32, #tpu.memory_space<vmem>>, %arg17: memref<64x2xbf16, #tpu.memory_space<vmem>>, %arg18: memref<1x2xf32, #tpu.memory_space<vmem>>, %arg19: memref<1x1x2xf32, #tpu.memory_space<vmem>>) attributes {dimension_semantics = [#tpu.dimension_semantics<parallel>], iteration_bounds = array<i64: 2>, scalar_prefetch = 0 : i64, scratch_operands = 0 : i64, tpu.core_type = #tpu.core_type<tc>, window_params = [{transform_indices = @transform_0, window_bounds = array<i64: 1, 16, 64>}, {pipeline_mode = #tpu.pipeline_mode<synchronous>, transform_indices = @transform_1, window_bounds = array<i64: 4, 16, 16>}, {pipeline_mode = #tpu.pipeline_mode<synchronous>, transform_indices = @transform_2, window_bounds = array<i64: 1, 64>}, {pipeline_mode = #tpu.pipeline_mode<synchronous>, transform_indices = @transform_3, window_bounds = array<i64: 1, 64>}, {pipeline_mode = #tpu.pipeline_mode<synchronous>, transform_indices = @transform_4, window_bounds = array<i64: 64, 192>}, {pipeline_mode = #tpu.pipeline_mode<synchronous>, transform_indices = @transform_5, window_bounds = array<i64: 1, 192>}, {pipeline_mode = #tpu.pipeline_mode<synchronous>, transform_indices = @transform_6, window_bounds = array<i64: 64, 64>}, {pipeline_mode = #tpu.pipeline_mode<synchronous>, transform_indices = @transform_7, window_bounds = array<i64: 1, 64>}, {pipeline_mode = #tpu.pipeline_mode<synchronous>, transform_indices = @transform_8, window_bounds = array<i64: 1, 64>}, {pipeline_mode = #tpu.pipeline_mode<synchronous>, transform_indices = @transform_9, window_bounds = array<i64: 1, 64>}, {pipeline_mode = #tpu.pipeline_mode<synchronous>, transform_indices = @transform_10, window_bounds = array<i64: 64, 256>}, {pipeline_mode = #tpu.pipeline_mode<synchronous>, transform_indices = @transform_11, window_bounds = array<i64: 1, 256>}, {pipeline_mode = #tpu.pipeline_mode<synchronous>, transform_indices = @transform_12, window_bounds = array<i64: 256, 64>}, {pipeline_mode = #tpu.pipeline_mode<synchronous>, transform_indices = @transform_13, window_bounds = array<i64: 1, 64>}, {pipeline_mode = #tpu.pipeline_mode<synchronous>, transform_indices = @transform_14, window_bounds = array<i64: 1, 64>}, {pipeline_mode = #tpu.pipeline_mode<synchronous>, transform_indices = @transform_15, window_bounds = array<i64: 1, 64>}, {pipeline_mode = #tpu.pipeline_mode<synchronous>, transform_indices = @transform_16, window_bounds = array<i64: 64, 2>}, {pipeline_mode = #tpu.pipeline_mode<synchronous>, transform_indices = @transform_17, window_bounds = array<i64: 1, 2>}, {transform_indices = @transform_18, window_bounds = array<i64: 1, 1, 2>}]} {
    %c0 = arith.constant 0 : index
    %c0_0 = arith.constant 0 : index
    %c0_1 = arith.constant 0 : index
    %0 = vector.load %arg1[%c0, %c0_0, %c0_1] : memref<1x16x64xbf16, #tpu.memory_space<vmem>>, vector<1x16x64xbf16>
    %1 = vector.shape_cast %0 : vector<1x16x64xbf16> to vector<16x64xbf16>
    %2 = arith.extf %1 : vector<16x64xbf16> to vector<16x64xf32>
    %c0_2 = arith.constant 0 : index
    %c0_3 = arith.constant 0 : index
    %3 = vector.load %arg3[%c0_2, %c0_3] : memref<1x64xf32, #tpu.memory_space<vmem>>, vector<1x64xf32>
    %c0_4 = arith.constant 0 : index
    %c0_5 = arith.constant 0 : index
    %4 = vector.load %arg4[%c0_4, %c0_5] : memref<1x64xf32, #tpu.memory_space<vmem>>, vector<1x64xf32>
    %cst = arith.constant dense<0.000000e+00> : vector<16xf32>
    %5 = vector.multi_reduction <add>, %2, %cst [1] : vector<16x64xf32> to vector<16xf32>
    %6 = vector.shape_cast %5 : vector<16xf32> to vector<16x1xf32>
    %cst_6 = arith.constant 6.400000e+01 : f32
    %7 = vector.broadcast %cst_6 : f32 to vector<16x1xf32>
    %8 = arith.divf %6, %7 : vector<16x1xf32>
    %9 = vector.broadcast %8 : vector<16x1xf32> to vector<16x64xf32>
    %10 = arith.subf %2, %9 : vector<16x64xf32>
    %11 = arith.mulf %10, %10 : vector<16x64xf32>
    %cst_7 = arith.constant dense<0.000000e+00> : vector<16xf32>
    %12 = vector.multi_reduction <add>, %11, %cst_7 [1] : vector<16x64xf32> to vector<16xf32>
    %13 = vector.shape_cast %12 : vector<16xf32> to vector<16x1xf32>
    %cst_8 = arith.constant 6.400000e+01 : f32
    %14 = vector.broadcast %cst_8 : f32 to vector<16x1xf32>
    %15 = arith.divf %13, %14 : vector<16x1xf32>
    %16 = vector.broadcast %8 : vector<16x1xf32> to vector<16x64xf32>
    %17 = arith.subf %2, %16 : vector<16x64xf32>
    %cst_9 = arith.constant 9.99999974E-6 : f32
    %18 = vector.broadcast %cst_9 : f32 to vector<16x1xf32>
    %19 = arith.addf %15, %18 : vector<16x1xf32>
    %20 = math.rsqrt %19 : vector<16x1xf32>
    %21 = vector.broadcast %20 : vector<16x1xf32> to vector<16x64xf32>
    %22 = arith.mulf %17, %21 : vector<16x64xf32>
    %23 = vector.broadcast %3 : vector<1x64xf32> to vector<16x64xf32>
    %24 = arith.mulf %22, %23 : vector<16x64xf32>
    %25 = vector.broadcast %4 : vector<1x64xf32> to vector<16x64xf32>
    %26 = arith.addf %24, %25 : vector<16x64xf32>
    %27 = arith.truncf %26 : vector<16x64xf32> to vector<16x64xbf16>
    %c0_10 = arith.constant 0 : index
    %c0_11 = arith.constant 0 : index
    %28 = vector.load %arg5[%c0_10, %c0_11] : memref<64x192xbf16, #tpu.memory_space<vmem>>, vector<64x192xbf16>
    %cst_12 = arith.constant dense<0.000000e+00> : vector<16x192xf32>
    %29 = tpu.matmul %27, %28, %cst_12 {dimension_numbers = #tpu.dot_dimension_numbers<[1], [0], [0], [1], [0, 0, 1, 1], [], []>} : vector<16x64xbf16>, vector<64x192xbf16>, vector<16x192xf32> -> vector<16x192xf32>
    %c0_13 = arith.constant 0 : index
    %c0_14 = arith.constant 0 : index
    %30 = vector.load %arg6[%c0_13, %c0_14] : memref<1x192xf32, #tpu.memory_space<vmem>>, vector<1x192xf32>
    %31 = vector.broadcast %30 : vector<1x192xf32> to vector<16x192xf32>
    %32 = arith.addf %29, %31 : vector<16x192xf32>
    %33 = vector.extract_strided_slice %32 {offsets = [0, 0], sizes = [16, 16], strides = [1, 1]} : vector<16x192xf32> to vector<16x16xf32>
    %34 = arith.truncf %33 : vector<16x16xf32> to vector<16x16xbf16>
    %35 = vector.extract_strided_slice %32 {offsets = [0, 64], sizes = [16, 16], strides = [1, 1]} : vector<16x192xf32> to vector<16x16xf32>
    %36 = arith.truncf %35 : vector<16x16xf32> to vector<16x16xbf16>
    %37 = vector.extract_strided_slice %32 {offsets = [0, 128], sizes = [16, 16], strides = [1, 1]} : vector<16x192xf32> to vector<16x16xf32>
    %38 = arith.truncf %37 : vector<16x16xf32> to vector<16x16xbf16>
    %39 = tpu.transpose %36, [1, 0] : vector<16x16xbf16> -> vector<16x16xbf16>
    %cst_15 = arith.constant dense<0.000000e+00> : vector<16x16xf32>
    %40 = tpu.matmul %34, %39, %cst_15 {dimension_numbers = #tpu.dot_dimension_numbers<[1], [0], [0], [1], [0, 0, 1, 1], [], []>} : vector<16x16xbf16>, vector<16x16xbf16>, vector<16x16xf32> -> vector<16x16xf32>
    %c0_16 = arith.constant 0 : index
    %c0_17 = arith.constant 0 : index
    %c0_18 = arith.constant 0 : index
    %41 = vector.load %arg2[%c0_16, %c0_17, %c0_18] : memref<4x16x16xf32, #tpu.memory_space<vmem>>, vector<1x16x16xf32>
    %42 = vector.shape_cast %41 : vector<1x16x16xf32> to vector<16x16xf32>
    %43 = arith.addf %40, %42 : vector<16x16xf32>
    %cst_19 = arith.constant dense<0xFF800000> : vector<16xf32>
    %44 = vector.multi_reduction <maximumf>, %43, %cst_19 [1] : vector<16x16xf32> to vector<16xf32>
    %45 = vector.shape_cast %44 : vector<16xf32> to vector<16x1xf32>
    %46 = vector.broadcast %45 : vector<16x1xf32> to vector<16x16xf32>
    %47 = arith.subf %43, %46 : vector<16x16xf32>
    %48 = math.exp %47 : vector<16x16xf32>
    %cst_20 = arith.constant dense<0.000000e+00> : vector<16xf32>
    %49 = vector.multi_reduction <add>, %48, %cst_20 [1] : vector<16x16xf32> to vector<16xf32>
    %50 = vector.shape_cast %49 : vector<16xf32> to vector<16x1xf32>
    %51 = tpu.reciprocal %50 {approx = true} : vector<16x1xf32> -> vector<16x1xf32>
    %52 = vector.broadcast %51 : vector<16x1xf32> to vector<16x16xf32>
    %53 = arith.mulf %48, %52 : vector<16x16xf32>
    %54 = arith.truncf %53 : vector<16x16xf32> to vector<16x16xbf16>
    %cst_21 = arith.constant dense<0.000000e+00> : vector<16x16xf32>
    %55 = tpu.matmul %54, %38, %cst_21 {dimension_numbers = #tpu.dot_dimension_numbers<[1], [0], [0], [1], [0, 0, 1, 1], [], []>} : vector<16x16xbf16>, vector<16x16xbf16>, vector<16x16xf32> -> vector<16x16xf32>
    %56 = vector.extract_strided_slice %32 {offsets = [0, 16], sizes = [16, 16], strides = [1, 1]} : vector<16x192xf32> to vector<16x16xf32>
    %57 = arith.truncf %56 : vector<16x16xf32> to vector<16x16xbf16>
    %58 = vector.extract_strided_slice %32 {offsets = [0, 80], sizes = [16, 16], strides = [1, 1]} : vector<16x192xf32> to vector<16x16xf32>
    %59 = arith.truncf %58 : vector<16x16xf32> to vector<16x16xbf16>
    %60 = vector.extract_strided_slice %32 {offsets = [0, 144], sizes = [16, 16], strides = [1, 1]} : vector<16x192xf32> to vector<16x16xf32>
    %61 = arith.truncf %60 : vector<16x16xf32> to vector<16x16xbf16>
    %62 = tpu.transpose %59, [1, 0] : vector<16x16xbf16> -> vector<16x16xbf16>
    %cst_22 = arith.constant dense<0.000000e+00> : vector<16x16xf32>
    %63 = tpu.matmul %57, %62, %cst_22 {dimension_numbers = #tpu.dot_dimension_numbers<[1], [0], [0], [1], [0, 0, 1, 1], [], []>} : vector<16x16xbf16>, vector<16x16xbf16>, vector<16x16xf32> -> vector<16x16xf32>
    %c1 = arith.constant 1 : index
    %c0_23 = arith.constant 0 : index
    %c0_24 = arith.constant 0 : index
    %64 = vector.load %arg2[%c1, %c0_23, %c0_24] : memref<4x16x16xf32, #tpu.memory_space<vmem>>, vector<1x16x16xf32>
    %65 = vector.shape_cast %64 : vector<1x16x16xf32> to vector<16x16xf32>
    %66 = arith.addf %63, %65 : vector<16x16xf32>
    %cst_25 = arith.constant dense<0xFF800000> : vector<16xf32>
    %67 = vector.multi_reduction <maximumf>, %66, %cst_25 [1] : vector<16x16xf32> to vector<16xf32>
    %68 = vector.shape_cast %67 : vector<16xf32> to vector<16x1xf32>
    %69 = vector.broadcast %68 : vector<16x1xf32> to vector<16x16xf32>
    %70 = arith.subf %66, %69 : vector<16x16xf32>
    %71 = math.exp %70 : vector<16x16xf32>
    %cst_26 = arith.constant dense<0.000000e+00> : vector<16xf32>
    %72 = vector.multi_reduction <add>, %71, %cst_26 [1] : vector<16x16xf32> to vector<16xf32>
    %73 = vector.shape_cast %72 : vector<16xf32> to vector<16x1xf32>
    %74 = tpu.reciprocal %73 {approx = true} : vector<16x1xf32> -> vector<16x1xf32>
    %75 = vector.broadcast %74 : vector<16x1xf32> to vector<16x16xf32>
    %76 = arith.mulf %71, %75 : vector<16x16xf32>
    %77 = arith.truncf %76 : vector<16x16xf32> to vector<16x16xbf16>
    %cst_27 = arith.constant dense<0.000000e+00> : vector<16x16xf32>
    %78 = tpu.matmul %77, %61, %cst_27 {dimension_numbers = #tpu.dot_dimension_numbers<[1], [0], [0], [1], [0, 0, 1, 1], [], []>} : vector<16x16xbf16>, vector<16x16xbf16>, vector<16x16xf32> -> vector<16x16xf32>
    %79 = vector.extract_strided_slice %32 {offsets = [0, 32], sizes = [16, 16], strides = [1, 1]} : vector<16x192xf32> to vector<16x16xf32>
    %80 = arith.truncf %79 : vector<16x16xf32> to vector<16x16xbf16>
    %81 = vector.extract_strided_slice %32 {offsets = [0, 96], sizes = [16, 16], strides = [1, 1]} : vector<16x192xf32> to vector<16x16xf32>
    %82 = arith.truncf %81 : vector<16x16xf32> to vector<16x16xbf16>
    %83 = vector.extract_strided_slice %32 {offsets = [0, 160], sizes = [16, 16], strides = [1, 1]} : vector<16x192xf32> to vector<16x16xf32>
    %84 = arith.truncf %83 : vector<16x16xf32> to vector<16x16xbf16>
    %85 = tpu.transpose %82, [1, 0] : vector<16x16xbf16> -> vector<16x16xbf16>
    %cst_28 = arith.constant dense<0.000000e+00> : vector<16x16xf32>
    %86 = tpu.matmul %80, %85, %cst_28 {dimension_numbers = #tpu.dot_dimension_numbers<[1], [0], [0], [1], [0, 0, 1, 1], [], []>} : vector<16x16xbf16>, vector<16x16xbf16>, vector<16x16xf32> -> vector<16x16xf32>
    %c2 = arith.constant 2 : index
    %c0_29 = arith.constant 0 : index
    %c0_30 = arith.constant 0 : index
    %87 = vector.load %arg2[%c2, %c0_29, %c0_30] : memref<4x16x16xf32, #tpu.memory_space<vmem>>, vector<1x16x16xf32>
    %88 = vector.shape_cast %87 : vector<1x16x16xf32> to vector<16x16xf32>
    %89 = arith.addf %86, %88 : vector<16x16xf32>
    %cst_31 = arith.constant dense<0xFF800000> : vector<16xf32>
    %90 = vector.multi_reduction <maximumf>, %89, %cst_31 [1] : vector<16x16xf32> to vector<16xf32>
    %91 = vector.shape_cast %90 : vector<16xf32> to vector<16x1xf32>
    %92 = vector.broadcast %91 : vector<16x1xf32> to vector<16x16xf32>
    %93 = arith.subf %89, %92 : vector<16x16xf32>
    %94 = math.exp %93 : vector<16x16xf32>
    %cst_32 = arith.constant dense<0.000000e+00> : vector<16xf32>
    %95 = vector.multi_reduction <add>, %94, %cst_32 [1] : vector<16x16xf32> to vector<16xf32>
    %96 = vector.shape_cast %95 : vector<16xf32> to vector<16x1xf32>
    %97 = tpu.reciprocal %96 {approx = true} : vector<16x1xf32> -> vector<16x1xf32>
    %98 = vector.broadcast %97 : vector<16x1xf32> to vector<16x16xf32>
    %99 = arith.mulf %94, %98 : vector<16x16xf32>
    %100 = arith.truncf %99 : vector<16x16xf32> to vector<16x16xbf16>
    %cst_33 = arith.constant dense<0.000000e+00> : vector<16x16xf32>
    %101 = tpu.matmul %100, %84, %cst_33 {dimension_numbers = #tpu.dot_dimension_numbers<[1], [0], [0], [1], [0, 0, 1, 1], [], []>} : vector<16x16xbf16>, vector<16x16xbf16>, vector<16x16xf32> -> vector<16x16xf32>
    %102 = vector.extract_strided_slice %32 {offsets = [0, 48], sizes = [16, 16], strides = [1, 1]} : vector<16x192xf32> to vector<16x16xf32>
    %103 = arith.truncf %102 : vector<16x16xf32> to vector<16x16xbf16>
    %104 = vector.extract_strided_slice %32 {offsets = [0, 112], sizes = [16, 16], strides = [1, 1]} : vector<16x192xf32> to vector<16x16xf32>
    %105 = arith.truncf %104 : vector<16x16xf32> to vector<16x16xbf16>
    %106 = vector.extract_strided_slice %32 {offsets = [0, 176], sizes = [16, 16], strides = [1, 1]} : vector<16x192xf32> to vector<16x16xf32>
    %107 = arith.truncf %106 : vector<16x16xf32> to vector<16x16xbf16>
    %108 = tpu.transpose %105, [1, 0] : vector<16x16xbf16> -> vector<16x16xbf16>
    %cst_34 = arith.constant dense<0.000000e+00> : vector<16x16xf32>
    %109 = tpu.matmul %103, %108, %cst_34 {dimension_numbers = #tpu.dot_dimension_numbers<[1], [0], [0], [1], [0, 0, 1, 1], [], []>} : vector<16x16xbf16>, vector<16x16xbf16>, vector<16x16xf32> -> vector<16x16xf32>
    %c3 = arith.constant 3 : index
    %c0_35 = arith.constant 0 : index
    %c0_36 = arith.constant 0 : index
    %110 = vector.load %arg2[%c3, %c0_35, %c0_36] : memref<4x16x16xf32, #tpu.memory_space<vmem>>, vector<1x16x16xf32>
    %111 = vector.shape_cast %110 : vector<1x16x16xf32> to vector<16x16xf32>
    %112 = arith.addf %109, %111 : vector<16x16xf32>
    %cst_37 = arith.constant dense<0xFF800000> : vector<16xf32>
    %113 = vector.multi_reduction <maximumf>, %112, %cst_37 [1] : vector<16x16xf32> to vector<16xf32>
    %114 = vector.shape_cast %113 : vector<16xf32> to vector<16x1xf32>
    %115 = vector.broadcast %114 : vector<16x1xf32> to vector<16x16xf32>
    %116 = arith.subf %112, %115 : vector<16x16xf32>
    %117 = math.exp %116 : vector<16x16xf32>
    %cst_38 = arith.constant dense<0.000000e+00> : vector<16xf32>
    %118 = vector.multi_reduction <add>, %117, %cst_38 [1] : vector<16x16xf32> to vector<16xf32>
    %119 = vector.shape_cast %118 : vector<16xf32> to vector<16x1xf32>
    %120 = tpu.reciprocal %119 {approx = true} : vector<16x1xf32> -> vector<16x1xf32>
    %121 = vector.broadcast %120 : vector<16x1xf32> to vector<16x16xf32>
    %122 = arith.mulf %117, %121 : vector<16x16xf32>
    %123 = arith.truncf %122 : vector<16x16xf32> to vector<16x16xbf16>
    %cst_39 = arith.constant dense<0.000000e+00> : vector<16x16xf32>
    %124 = tpu.matmul %123, %107, %cst_39 {dimension_numbers = #tpu.dot_dimension_numbers<[1], [0], [0], [1], [0, 0, 1, 1], [], []>} : vector<16x16xbf16>, vector<16x16xbf16>, vector<16x16xf32> -> vector<16x16xf32>
    %125 = tpu.concatenate %55, %78, %101, %124 in 1 : vector<16x16xf32>, vector<16x16xf32>, vector<16x16xf32>, vector<16x16xf32> -> vector<16x64xf32>
    %126 = arith.truncf %125 : vector<16x64xf32> to vector<16x64xbf16>
    %c0_40 = arith.constant 0 : index
    %c0_41 = arith.constant 0 : index
    %127 = vector.load %arg7[%c0_40, %c0_41] : memref<64x64xbf16, #tpu.memory_space<vmem>>, vector<64x64xbf16>
    %cst_42 = arith.constant dense<0.000000e+00> : vector<16x64xf32>
    %128 = tpu.matmul %126, %127, %cst_42 {dimension_numbers = #tpu.dot_dimension_numbers<[1], [0], [0], [1], [0, 0, 1, 1], [], []>} : vector<16x64xbf16>, vector<64x64xbf16>, vector<16x64xf32> -> vector<16x64xf32>
    %c0_43 = arith.constant 0 : index
    %c0_44 = arith.constant 0 : index
    %129 = vector.load %arg8[%c0_43, %c0_44] : memref<1x64xf32, #tpu.memory_space<vmem>>, vector<1x64xf32>
    %130 = vector.broadcast %129 : vector<1x64xf32> to vector<16x64xf32>
    %131 = arith.addf %128, %130 : vector<16x64xf32>
    %132 = arith.addf %2, %131 : vector<16x64xf32>
    %c0_45 = arith.constant 0 : index
    %c0_46 = arith.constant 0 : index
    %133 = vector.load %arg9[%c0_45, %c0_46] : memref<1x64xf32, #tpu.memory_space<vmem>>, vector<1x64xf32>
    %c0_47 = arith.constant 0 : index
    %c0_48 = arith.constant 0 : index
    %134 = vector.load %arg10[%c0_47, %c0_48] : memref<1x64xf32, #tpu.memory_space<vmem>>, vector<1x64xf32>
    %cst_49 = arith.constant dense<0.000000e+00> : vector<16xf32>
    %135 = vector.multi_reduction <add>, %132, %cst_49 [1] : vector<16x64xf32> to vector<16xf32>
    %136 = vector.shape_cast %135 : vector<16xf32> to vector<16x1xf32>
    %cst_50 = arith.constant 6.400000e+01 : f32
    %137 = vector.broadcast %cst_50 : f32 to vector<16x1xf32>
    %138 = arith.divf %136, %137 : vector<16x1xf32>
    %139 = vector.broadcast %138 : vector<16x1xf32> to vector<16x64xf32>
    %140 = arith.subf %132, %139 : vector<16x64xf32>
    %141 = arith.mulf %140, %140 : vector<16x64xf32>
    %cst_51 = arith.constant dense<0.000000e+00> : vector<16xf32>
    %142 = vector.multi_reduction <add>, %141, %cst_51 [1] : vector<16x64xf32> to vector<16xf32>
    %143 = vector.shape_cast %142 : vector<16xf32> to vector<16x1xf32>
    %cst_52 = arith.constant 6.400000e+01 : f32
    %144 = vector.broadcast %cst_52 : f32 to vector<16x1xf32>
    %145 = arith.divf %143, %144 : vector<16x1xf32>
    %146 = vector.broadcast %138 : vector<16x1xf32> to vector<16x64xf32>
    %147 = arith.subf %132, %146 : vector<16x64xf32>
    %cst_53 = arith.constant 9.99999974E-6 : f32
    %148 = vector.broadcast %cst_53 : f32 to vector<16x1xf32>
    %149 = arith.addf %145, %148 : vector<16x1xf32>
    %150 = math.rsqrt %149 : vector<16x1xf32>
    %151 = vector.broadcast %150 : vector<16x1xf32> to vector<16x64xf32>
    %152 = arith.mulf %147, %151 : vector<16x64xf32>
    %153 = vector.broadcast %133 : vector<1x64xf32> to vector<16x64xf32>
    %154 = arith.mulf %152, %153 : vector<16x64xf32>
    %155 = vector.broadcast %134 : vector<1x64xf32> to vector<16x64xf32>
    %156 = arith.addf %154, %155 : vector<16x64xf32>
    %157 = arith.truncf %156 : vector<16x64xf32> to vector<16x64xbf16>
    %c0_54 = arith.constant 0 : index
    %c0_55 = arith.constant 0 : index
    %158 = vector.load %arg11[%c0_54, %c0_55] : memref<64x256xbf16, #tpu.memory_space<vmem>>, vector<64x256xbf16>
    %cst_56 = arith.constant dense<0.000000e+00> : vector<16x256xf32>
    %159 = tpu.matmul %157, %158, %cst_56 {dimension_numbers = #tpu.dot_dimension_numbers<[1], [0], [0], [1], [0, 0, 1, 1], [], []>} : vector<16x64xbf16>, vector<64x256xbf16>, vector<16x256xf32> -> vector<16x256xf32>
    %c0_57 = arith.constant 0 : index
    %c0_58 = arith.constant 0 : index
    %160 = vector.load %arg12[%c0_57, %c0_58] : memref<1x256xf32, #tpu.memory_space<vmem>>, vector<1x256xf32>
    %161 = vector.broadcast %160 : vector<1x256xf32> to vector<16x256xf32>
    %162 = arith.addf %159, %161 : vector<16x256xf32>
    %163 = arith.mulf %162, %162 : vector<16x256xf32>
    %164 = arith.mulf %162, %163 : vector<16x256xf32>
    %cst_59 = arith.constant 4.471500e-02 : f32
    %165 = vector.broadcast %cst_59 : f32 to vector<16x256xf32>
    %166 = arith.mulf %165, %164 : vector<16x256xf32>
    %167 = arith.addf %162, %166 : vector<16x256xf32>
    %cst_60 = arith.constant 0.797884583 : f32
    %168 = vector.broadcast %cst_60 : f32 to vector<16x256xf32>
    %169 = arith.mulf %168, %167 : vector<16x256xf32>
    %170 = math.tanh %169 : vector<16x256xf32>
    %cst_61 = arith.constant 1.000000e+00 : f32
    %171 = vector.broadcast %cst_61 : f32 to vector<16x256xf32>
    %172 = arith.addf %171, %170 : vector<16x256xf32>
    %cst_62 = arith.constant 5.000000e-01 : f32
    %173 = vector.broadcast %cst_62 : f32 to vector<16x256xf32>
    %174 = arith.mulf %173, %172 : vector<16x256xf32>
    %175 = arith.mulf %162, %174 : vector<16x256xf32>
    %176 = arith.truncf %175 : vector<16x256xf32> to vector<16x256xbf16>
    %c0_63 = arith.constant 0 : index
    %c0_64 = arith.constant 0 : index
    %177 = vector.load %arg13[%c0_63, %c0_64] : memref<256x64xbf16, #tpu.memory_space<vmem>>, vector<256x64xbf16>
    %cst_65 = arith.constant dense<0.000000e+00> : vector<16x64xf32>
    %178 = tpu.matmul %176, %177, %cst_65 {dimension_numbers = #tpu.dot_dimension_numbers<[1], [0], [0], [1], [0, 0, 1, 1], [], []>} : vector<16x256xbf16>, vector<256x64xbf16>, vector<16x64xf32> -> vector<16x64xf32>
    %c0_66 = arith.constant 0 : index
    %c0_67 = arith.constant 0 : index
    %179 = vector.load %arg14[%c0_66, %c0_67] : memref<1x64xf32, #tpu.memory_space<vmem>>, vector<1x64xf32>
    %180 = vector.broadcast %179 : vector<1x64xf32> to vector<16x64xf32>
    %181 = arith.addf %178, %180 : vector<16x64xf32>
    %182 = arith.addf %132, %181 : vector<16x64xf32>
    %c0_68 = arith.constant 0 : index
    %c0_69 = arith.constant 0 : index
    %183 = vector.load %arg15[%c0_68, %c0_69] : memref<1x64xf32, #tpu.memory_space<vmem>>, vector<1x64xf32>
    %c0_70 = arith.constant 0 : index
    %c0_71 = arith.constant 0 : index
    %184 = vector.load %arg16[%c0_70, %c0_71] : memref<1x64xf32, #tpu.memory_space<vmem>>, vector<1x64xf32>
    %cst_72 = arith.constant dense<0.000000e+00> : vector<16xf32>
    %185 = vector.multi_reduction <add>, %182, %cst_72 [1] : vector<16x64xf32> to vector<16xf32>
    %186 = vector.shape_cast %185 : vector<16xf32> to vector<16x1xf32>
    %cst_73 = arith.constant 6.400000e+01 : f32
    %187 = vector.broadcast %cst_73 : f32 to vector<16x1xf32>
    %188 = arith.divf %186, %187 : vector<16x1xf32>
    %189 = vector.broadcast %188 : vector<16x1xf32> to vector<16x64xf32>
    %190 = arith.subf %182, %189 : vector<16x64xf32>
    %191 = arith.mulf %190, %190 : vector<16x64xf32>
    %cst_74 = arith.constant dense<0.000000e+00> : vector<16xf32>
    %192 = vector.multi_reduction <add>, %191, %cst_74 [1] : vector<16x64xf32> to vector<16xf32>
    %193 = vector.shape_cast %192 : vector<16xf32> to vector<16x1xf32>
    %cst_75 = arith.constant 6.400000e+01 : f32
    %194 = vector.broadcast %cst_75 : f32 to vector<16x1xf32>
    %195 = arith.divf %193, %194 : vector<16x1xf32>
    %196 = vector.broadcast %188 : vector<16x1xf32> to vector<16x64xf32>
    %197 = arith.subf %182, %196 : vector<16x64xf32>
    %cst_76 = arith.constant 9.99999974E-6 : f32
    %198 = vector.broadcast %cst_76 : f32 to vector<16x1xf32>
    %199 = arith.addf %195, %198 : vector<16x1xf32>
    %200 = math.rsqrt %199 : vector<16x1xf32>
    %201 = vector.broadcast %200 : vector<16x1xf32> to vector<16x64xf32>
    %202 = arith.mulf %197, %201 : vector<16x64xf32>
    %203 = vector.broadcast %183 : vector<1x64xf32> to vector<16x64xf32>
    %204 = arith.mulf %202, %203 : vector<16x64xf32>
    %205 = vector.broadcast %184 : vector<1x64xf32> to vector<16x64xf32>
    %206 = arith.addf %204, %205 : vector<16x64xf32>
    %cst_77 = arith.constant dense<0.000000e+00> : vector<64xf32>
    %207 = vector.multi_reduction <add>, %206, %cst_77 [0] : vector<16x64xf32> to vector<64xf32>
    %208 = vector.shape_cast %207 : vector<64xf32> to vector<1x64xf32>
    %cst_78 = arith.constant 1.600000e+01 : f32
    %209 = vector.broadcast %cst_78 : f32 to vector<1x64xf32>
    %210 = arith.divf %208, %209 : vector<1x64xf32>
    %211 = arith.truncf %210 : vector<1x64xf32> to vector<1x64xbf16>
    %c0_79 = arith.constant 0 : index
    %c0_80 = arith.constant 0 : index
    %212 = vector.load %arg17[%c0_79, %c0_80] : memref<64x2xbf16, #tpu.memory_space<vmem>>, vector<64x2xbf16>
    %cst_81 = arith.constant dense<0.000000e+00> : vector<1x2xf32>
    %213 = tpu.matmul %211, %212, %cst_81 {dimension_numbers = #tpu.dot_dimension_numbers<[1], [0], [0], [1], [0, 0, 1, 1], [], []>} : vector<1x64xbf16>, vector<64x2xbf16>, vector<1x2xf32> -> vector<1x2xf32>
    %c0_82 = arith.constant 0 : index
    %c0_83 = arith.constant 0 : index
    %214 = vector.load %arg18[%c0_82, %c0_83] : memref<1x2xf32, #tpu.memory_space<vmem>>, vector<1x2xf32>
    %215 = arith.addf %213, %214 : vector<1x2xf32>
    %c0_84 = arith.constant 0 : index
    %c0_85 = arith.constant 0 : index
    %c0_86 = arith.constant 0 : index
    %216 = vector.load %arg19[%c0_84, %c0_85, %c0_86] : memref<1x1x2xf32, #tpu.memory_space<vmem>>, vector<1x1x2xf32>
    %217 = vector.shape_cast %216 : vector<1x1x2xf32> to vector<1x2xf32>
    %218 = vector.shape_cast %215 : vector<1x2xf32> to vector<1x1x2xf32>
    tpu.vector_store %arg19[%c0_84, %c0_85, %c0_86], %218 {strides = array<i32>} : memref<1x1x2xf32, #tpu.memory_space<vmem>>, vector<1x1x2xf32>,
    return
  }
  func.func @transform_0(%arg0: i32) -> (i32, i32, i32) {
    %c0_i32 = arith.constant 0 : i32
    %c0_i32_0 = arith.constant 0 : i32
    %c0_i32_1 = arith.constant 0 : i32
    return %arg0, %c0_i32, %c0_i32_0 : i32, i32, i32
  }
  func.func @transform_1(%arg0: i32) -> (i32, i32, i32) {
    %c0_i32 = arith.constant 0 : i32
    %c0_i32_0 = arith.constant 0 : i32
    %c0_i32_1 = arith.constant 0 : i32
    %c0_i32_2 = arith.constant 0 : i32
    return %c0_i32, %c0_i32_0, %c0_i32_1 : i32, i32, i32
  }
  func.func @transform_2(%arg0: i32) -> (i32, i32) {
    %c0_i32 = arith.constant 0 : i32
    %c0_i32_0 = arith.constant 0 : i32
    %c0_i32_1 = arith.constant 0 : i32
    return %c0_i32, %c0_i32_0 : i32, i32
  }
  func.func @transform_3(%arg0: i32) -> (i32, i32) {
    %c0_i32 = arith.constant 0 : i32
    %c0_i32_0 = arith.constant 0 : i32
    %c0_i32_1 = arith.constant 0 : i32
    return %c0_i32, %c0_i32_0 : i32, i32
  }
  func.func @transform_4(%arg0: i32) -> (i32, i32) {
    %c0_i32 = arith.constant 0 : i32
    %c0_i32_0 = arith.constant 0 : i32
    %c0_i32_1 = arith.constant 0 : i32
    return %c0_i32, %c0_i32_0 : i32, i32
  }
  func.func @transform_5(%arg0: i32) -> (i32, i32) {
    %c0_i32 = arith.constant 0 : i32
    %c0_i32_0 = arith.constant 0 : i32
    %c0_i32_1 = arith.constant 0 : i32
    return %c0_i32, %c0_i32_0 : i32, i32
  }
  func.func @transform_6(%arg0: i32) -> (i32, i32) {
    %c0_i32 = arith.constant 0 : i32
    %c0_i32_0 = arith.constant 0 : i32
    %c0_i32_1 = arith.constant 0 : i32
    return %c0_i32, %c0_i32_0 : i32, i32
  }
  func.func @transform_7(%arg0: i32) -> (i32, i32) {
    %c0_i32 = arith.constant 0 : i32
    %c0_i32_0 = arith.constant 0 : i32
    %c0_i32_1 = arith.constant 0 : i32
    return %c0_i32, %c0_i32_0 : i32, i32
  }
  func.func @transform_8(%arg0: i32) -> (i32, i32) {
    %c0_i32 = arith.constant 0 : i32
    %c0_i32_0 = arith.constant 0 : i32
    %c0_i32_1 = arith.constant 0 : i32
    return %c0_i32, %c0_i32_0 : i32, i32
  }
  func.func @transform_9(%arg0: i32) -> (i32, i32) {
    %c0_i32 = arith.constant 0 : i32
    %c0_i32_0 = arith.constant 0 : i32
    %c0_i32_1 = arith.constant 0 : i32
    return %c0_i32, %c0_i32_0 : i32, i32
  }
  func.func @transform_10(%arg0: i32) -> (i32, i32) {
    %c0_i32 = arith.constant 0 : i32
    %c0_i32_0 = arith.constant 0 : i32
    %c0_i32_1 = arith.constant 0 : i32
    return %c0_i32, %c0_i32_0 : i32, i32
  }
  func.func @transform_11(%arg0: i32) -> (i32, i32) {
    %c0_i32 = arith.constant 0 : i32
    %c0_i32_0 = arith.constant 0 : i32
    %c0_i32_1 = arith.constant 0 : i32
    return %c0_i32, %c0_i32_0 : i32, i32
  }
  func.func @transform_12(%arg0: i32) -> (i32, i32) {
    %c0_i32 = arith.constant 0 : i32
    %c0_i32_0 = arith.constant 0 : i32
    %c0_i32_1 = arith.constant 0 : i32
    return %c0_i32, %c0_i32_0 : i32, i32
  }
  func.func @transform_13(%arg0: i32) -> (i32, i32) {
    %c0_i32 = arith.constant 0 : i32
    %c0_i32_0 = arith.constant 0 : i32
    %c0_i32_1 = arith.constant 0 : i32
    return %c0_i32, %c0_i32_0 : i32, i32
  }
  func.func @transform_14(%arg0: i32) -> (i32, i32) {
    %c0_i32 = arith.constant 0 : i32
    %c0_i32_0 = arith.constant 0 : i32
    %c0_i32_1 = arith.constant 0 : i32
    return %c0_i32, %c0_i32_0 : i32, i32
  }
  func.func @transform_15(%arg0: i32) -> (i32, i32) {
    %c0_i32 = arith.constant 0 : i32
    %c0_i32_0 = arith.constant 0 : i32
    %c0_i32_1 = arith.constant 0 : i32
    return %c0_i32, %c0_i32_0 : i32, i32
  }
  func.func @transform_16(%arg0: i32) -> (i32, i32) {
    %c0_i32 = arith.constant 0 : i32
    %c0_i32_0 = arith.constant 0 : i32
    %c0_i32_1 = arith.constant 0 : i32
    return %c0_i32, %c0_i32_0 : i32, i32
  }
  func.func @transform_17(%arg0: i32) -> (i32, i32) {
    %c0_i32 = arith.constant 0 : i32
    %c0_i32_0 = arith.constant 0 : i32
    %c0_i32_1 = arith.constant 0 : i32
    return %c0_i32, %c0_i32_0 : i32, i32
  }
  func.func @transform_18(%arg0: i32) -> (i32, i32, i32) {
    %c0_i32 = arith.constant 0 : i32
    %c0_i32_0 = arith.constant 0 : i32
    %c0_i32_1 = arith.constant 0 : i32
    return %arg0, %c0_i32, %c0_i32_0 : i32, i32, i32
  }
}

module attributes {stable_mosaic.version = 11 : i64} {
  func.func @_block_merge_kernel(%arg0: i32, %arg1: memref<1x16x128xbf16, #tpu.memory_space<vmem>>, %arg2: memref<1x128xf32, #tpu.memory_space<vmem>>, %arg3: memref<1x128xf32, #tpu.memory_space<vmem>>, %arg4: memref<128x64xbf16, #tpu.memory_space<vmem>>, %arg5: memref<4x16x16xf32, #tpu.memory_space<vmem>>, %arg6: memref<1x64xf32, #tpu.memory_space<vmem>>, %arg7: memref<1x64xf32, #tpu.memory_space<vmem>>, %arg8: memref<64x192xbf16, #tpu.memory_space<vmem>>, %arg9: memref<1x192xf32, #tpu.memory_space<vmem>>, %arg10: memref<64x64xbf16, #tpu.memory_space<vmem>>, %arg11: memref<1x64xf32, #tpu.memory_space<vmem>>, %arg12: memref<1x64xf32, #tpu.memory_space<vmem>>, %arg13: memref<1x64xf32, #tpu.memory_space<vmem>>, %arg14: memref<64x256xbf16, #tpu.memory_space<vmem>>, %arg15: memref<1x256xf32, #tpu.memory_space<vmem>>, %arg16: memref<256x64xbf16, #tpu.memory_space<vmem>>, %arg17: memref<1x64xf32, #tpu.memory_space<vmem>>, %arg18: memref<1x16x64xbf16, #tpu.memory_space<vmem>>) attributes {dimension_semantics = [#tpu.dimension_semantics<parallel>], iteration_bounds = array<i64: 2>, scalar_prefetch = 0 : i64, scratch_operands = 0 : i64, tpu.core_type = #tpu.core_type<tc>, window_params = [{transform_indices = @transform_0, window_bounds = array<i64: 1, 16, 128>}, {pipeline_mode = #tpu.pipeline_mode<synchronous>, transform_indices = @transform_1, window_bounds = array<i64: 1, 128>}, {pipeline_mode = #tpu.pipeline_mode<synchronous>, transform_indices = @transform_2, window_bounds = array<i64: 1, 128>}, {pipeline_mode = #tpu.pipeline_mode<synchronous>, transform_indices = @transform_3, window_bounds = array<i64: 128, 64>}, {pipeline_mode = #tpu.pipeline_mode<synchronous>, transform_indices = @transform_4, window_bounds = array<i64: 4, 16, 16>}, {pipeline_mode = #tpu.pipeline_mode<synchronous>, transform_indices = @transform_5, window_bounds = array<i64: 1, 64>}, {pipeline_mode = #tpu.pipeline_mode<synchronous>, transform_indices = @transform_6, window_bounds = array<i64: 1, 64>}, {pipeline_mode = #tpu.pipeline_mode<synchronous>, transform_indices = @transform_7, window_bounds = array<i64: 64, 192>}, {pipeline_mode = #tpu.pipeline_mode<synchronous>, transform_indices = @transform_8, window_bounds = array<i64: 1, 192>}, {pipeline_mode = #tpu.pipeline_mode<synchronous>, transform_indices = @transform_9, window_bounds = array<i64: 64, 64>}, {pipeline_mode = #tpu.pipeline_mode<synchronous>, transform_indices = @transform_10, window_bounds = array<i64: 1, 64>}, {pipeline_mode = #tpu.pipeline_mode<synchronous>, transform_indices = @transform_11, window_bounds = array<i64: 1, 64>}, {pipeline_mode = #tpu.pipeline_mode<synchronous>, transform_indices = @transform_12, window_bounds = array<i64: 1, 64>}, {pipeline_mode = #tpu.pipeline_mode<synchronous>, transform_indices = @transform_13, window_bounds = array<i64: 64, 256>}, {pipeline_mode = #tpu.pipeline_mode<synchronous>, transform_indices = @transform_14, window_bounds = array<i64: 1, 256>}, {pipeline_mode = #tpu.pipeline_mode<synchronous>, transform_indices = @transform_15, window_bounds = array<i64: 256, 64>}, {pipeline_mode = #tpu.pipeline_mode<synchronous>, transform_indices = @transform_16, window_bounds = array<i64: 1, 64>}, {transform_indices = @transform_17, window_bounds = array<i64: 1, 16, 64>}]} {
    %c0 = arith.constant 0 : index
    %c0_0 = arith.constant 0 : index
    %c0_1 = arith.constant 0 : index
    %0 = vector.load %arg1[%c0, %c0_0, %c0_1] : memref<1x16x128xbf16, #tpu.memory_space<vmem>>, vector<1x16x128xbf16>
    %1 = vector.shape_cast %0 : vector<1x16x128xbf16> to vector<16x128xbf16>
    %2 = arith.extf %1 : vector<16x128xbf16> to vector<16x128xf32>
    %c0_2 = arith.constant 0 : index
    %c0_3 = arith.constant 0 : index
    %3 = vector.load %arg2[%c0_2, %c0_3] : memref<1x128xf32, #tpu.memory_space<vmem>>, vector<1x128xf32>
    %c0_4 = arith.constant 0 : index
    %c0_5 = arith.constant 0 : index
    %4 = vector.load %arg3[%c0_4, %c0_5] : memref<1x128xf32, #tpu.memory_space<vmem>>, vector<1x128xf32>
    %cst = arith.constant dense<0.000000e+00> : vector<16xf32>
    %5 = vector.multi_reduction <add>, %2, %cst [1] : vector<16x128xf32> to vector<16xf32>
    %6 = vector.shape_cast %5 : vector<16xf32> to vector<16x1xf32>
    %cst_6 = arith.constant 1.280000e+02 : f32
    %7 = vector.broadcast %cst_6 : f32 to vector<16x1xf32>
    %8 = arith.divf %6, %7 : vector<16x1xf32>
    %9 = vector.broadcast %8 : vector<16x1xf32> to vector<16x128xf32>
    %10 = arith.subf %2, %9 : vector<16x128xf32>
    %11 = arith.mulf %10, %10 : vector<16x128xf32>
    %cst_7 = arith.constant dense<0.000000e+00> : vector<16xf32>
    %12 = vector.multi_reduction <add>, %11, %cst_7 [1] : vector<16x128xf32> to vector<16xf32>
    %13 = vector.shape_cast %12 : vector<16xf32> to vector<16x1xf32>
    %cst_8 = arith.constant 1.280000e+02 : f32
    %14 = vector.broadcast %cst_8 : f32 to vector<16x1xf32>
    %15 = arith.divf %13, %14 : vector<16x1xf32>
    %16 = vector.broadcast %8 : vector<16x1xf32> to vector<16x128xf32>
    %17 = arith.subf %2, %16 : vector<16x128xf32>
    %cst_9 = arith.constant 9.99999974E-6 : f32
    %18 = vector.broadcast %cst_9 : f32 to vector<16x1xf32>
    %19 = arith.addf %15, %18 : vector<16x1xf32>
    %20 = math.rsqrt %19 : vector<16x1xf32>
    %21 = vector.broadcast %20 : vector<16x1xf32> to vector<16x128xf32>
    %22 = arith.mulf %17, %21 : vector<16x128xf32>
    %23 = vector.broadcast %3 : vector<1x128xf32> to vector<16x128xf32>
    %24 = arith.mulf %22, %23 : vector<16x128xf32>
    %25 = vector.broadcast %4 : vector<1x128xf32> to vector<16x128xf32>
    %26 = arith.addf %24, %25 : vector<16x128xf32>
    %27 = arith.truncf %26 : vector<16x128xf32> to vector<16x128xbf16>
    %c0_10 = arith.constant 0 : index
    %c0_11 = arith.constant 0 : index
    %28 = vector.load %arg4[%c0_10, %c0_11] : memref<128x64xbf16, #tpu.memory_space<vmem>>, vector<128x64xbf16>
    %cst_12 = arith.constant dense<0.000000e+00> : vector<16x64xf32>
    %29 = tpu.matmul %27, %28, %cst_12 {dimension_numbers = #tpu.dot_dimension_numbers<[1], [0], [0], [1], [0, 0, 1, 1], [], []>} : vector<16x128xbf16>, vector<128x64xbf16>, vector<16x64xf32> -> vector<16x64xf32>
    %c0_13 = arith.constant 0 : index
    %c0_14 = arith.constant 0 : index
    %30 = vector.load %arg6[%c0_13, %c0_14] : memref<1x64xf32, #tpu.memory_space<vmem>>, vector<1x64xf32>
    %c0_15 = arith.constant 0 : index
    %c0_16 = arith.constant 0 : index
    %31 = vector.load %arg7[%c0_15, %c0_16] : memref<1x64xf32, #tpu.memory_space<vmem>>, vector<1x64xf32>
    %cst_17 = arith.constant dense<0.000000e+00> : vector<16xf32>
    %32 = vector.multi_reduction <add>, %29, %cst_17 [1] : vector<16x64xf32> to vector<16xf32>
    %33 = vector.shape_cast %32 : vector<16xf32> to vector<16x1xf32>
    %cst_18 = arith.constant 6.400000e+01 : f32
    %34 = vector.broadcast %cst_18 : f32 to vector<16x1xf32>
    %35 = arith.divf %33, %34 : vector<16x1xf32>
    %36 = vector.broadcast %35 : vector<16x1xf32> to vector<16x64xf32>
    %37 = arith.subf %29, %36 : vector<16x64xf32>
    %38 = arith.mulf %37, %37 : vector<16x64xf32>
    %cst_19 = arith.constant dense<0.000000e+00> : vector<16xf32>
    %39 = vector.multi_reduction <add>, %38, %cst_19 [1] : vector<16x64xf32> to vector<16xf32>
    %40 = vector.shape_cast %39 : vector<16xf32> to vector<16x1xf32>
    %cst_20 = arith.constant 6.400000e+01 : f32
    %41 = vector.broadcast %cst_20 : f32 to vector<16x1xf32>
    %42 = arith.divf %40, %41 : vector<16x1xf32>
    %43 = vector.broadcast %35 : vector<16x1xf32> to vector<16x64xf32>
    %44 = arith.subf %29, %43 : vector<16x64xf32>
    %cst_21 = arith.constant 9.99999974E-6 : f32
    %45 = vector.broadcast %cst_21 : f32 to vector<16x1xf32>
    %46 = arith.addf %42, %45 : vector<16x1xf32>
    %47 = math.rsqrt %46 : vector<16x1xf32>
    %48 = vector.broadcast %47 : vector<16x1xf32> to vector<16x64xf32>
    %49 = arith.mulf %44, %48 : vector<16x64xf32>
    %50 = vector.broadcast %30 : vector<1x64xf32> to vector<16x64xf32>
    %51 = arith.mulf %49, %50 : vector<16x64xf32>
    %52 = vector.broadcast %31 : vector<1x64xf32> to vector<16x64xf32>
    %53 = arith.addf %51, %52 : vector<16x64xf32>
    %54 = arith.truncf %53 : vector<16x64xf32> to vector<16x64xbf16>
    %c0_22 = arith.constant 0 : index
    %c0_23 = arith.constant 0 : index
    %55 = vector.load %arg8[%c0_22, %c0_23] : memref<64x192xbf16, #tpu.memory_space<vmem>>, vector<64x192xbf16>
    %cst_24 = arith.constant dense<0.000000e+00> : vector<16x192xf32>
    %56 = tpu.matmul %54, %55, %cst_24 {dimension_numbers = #tpu.dot_dimension_numbers<[1], [0], [0], [1], [0, 0, 1, 1], [], []>} : vector<16x64xbf16>, vector<64x192xbf16>, vector<16x192xf32> -> vector<16x192xf32>
    %c0_25 = arith.constant 0 : index
    %c0_26 = arith.constant 0 : index
    %57 = vector.load %arg9[%c0_25, %c0_26] : memref<1x192xf32, #tpu.memory_space<vmem>>, vector<1x192xf32>
    %58 = vector.broadcast %57 : vector<1x192xf32> to vector<16x192xf32>
    %59 = arith.addf %56, %58 : vector<16x192xf32>
    %60 = vector.extract_strided_slice %59 {offsets = [0, 0], sizes = [16, 16], strides = [1, 1]} : vector<16x192xf32> to vector<16x16xf32>
    %61 = arith.truncf %60 : vector<16x16xf32> to vector<16x16xbf16>
    %62 = vector.extract_strided_slice %59 {offsets = [0, 64], sizes = [16, 16], strides = [1, 1]} : vector<16x192xf32> to vector<16x16xf32>
    %63 = arith.truncf %62 : vector<16x16xf32> to vector<16x16xbf16>
    %64 = vector.extract_strided_slice %59 {offsets = [0, 128], sizes = [16, 16], strides = [1, 1]} : vector<16x192xf32> to vector<16x16xf32>
    %65 = arith.truncf %64 : vector<16x16xf32> to vector<16x16xbf16>
    %66 = tpu.transpose %63, [1, 0] : vector<16x16xbf16> -> vector<16x16xbf16>
    %cst_27 = arith.constant dense<0.000000e+00> : vector<16x16xf32>
    %67 = tpu.matmul %61, %66, %cst_27 {dimension_numbers = #tpu.dot_dimension_numbers<[1], [0], [0], [1], [0, 0, 1, 1], [], []>} : vector<16x16xbf16>, vector<16x16xbf16>, vector<16x16xf32> -> vector<16x16xf32>
    %c0_28 = arith.constant 0 : index
    %c0_29 = arith.constant 0 : index
    %c0_30 = arith.constant 0 : index
    %68 = vector.load %arg5[%c0_28, %c0_29, %c0_30] : memref<4x16x16xf32, #tpu.memory_space<vmem>>, vector<1x16x16xf32>
    %69 = vector.shape_cast %68 : vector<1x16x16xf32> to vector<16x16xf32>
    %70 = arith.addf %67, %69 : vector<16x16xf32>
    %cst_31 = arith.constant dense<0xFF800000> : vector<16xf32>
    %71 = vector.multi_reduction <maximumf>, %70, %cst_31 [1] : vector<16x16xf32> to vector<16xf32>
    %72 = vector.shape_cast %71 : vector<16xf32> to vector<16x1xf32>
    %73 = vector.broadcast %72 : vector<16x1xf32> to vector<16x16xf32>
    %74 = arith.subf %70, %73 : vector<16x16xf32>
    %75 = math.exp %74 : vector<16x16xf32>
    %cst_32 = arith.constant dense<0.000000e+00> : vector<16xf32>
    %76 = vector.multi_reduction <add>, %75, %cst_32 [1] : vector<16x16xf32> to vector<16xf32>
    %77 = vector.shape_cast %76 : vector<16xf32> to vector<16x1xf32>
    %78 = tpu.reciprocal %77 {approx = true} : vector<16x1xf32> -> vector<16x1xf32>
    %79 = vector.broadcast %78 : vector<16x1xf32> to vector<16x16xf32>
    %80 = arith.mulf %75, %79 : vector<16x16xf32>
    %81 = arith.truncf %80 : vector<16x16xf32> to vector<16x16xbf16>
    %cst_33 = arith.constant dense<0.000000e+00> : vector<16x16xf32>
    %82 = tpu.matmul %81, %65, %cst_33 {dimension_numbers = #tpu.dot_dimension_numbers<[1], [0], [0], [1], [0, 0, 1, 1], [], []>} : vector<16x16xbf16>, vector<16x16xbf16>, vector<16x16xf32> -> vector<16x16xf32>
    %83 = vector.extract_strided_slice %59 {offsets = [0, 16], sizes = [16, 16], strides = [1, 1]} : vector<16x192xf32> to vector<16x16xf32>
    %84 = arith.truncf %83 : vector<16x16xf32> to vector<16x16xbf16>
    %85 = vector.extract_strided_slice %59 {offsets = [0, 80], sizes = [16, 16], strides = [1, 1]} : vector<16x192xf32> to vector<16x16xf32>
    %86 = arith.truncf %85 : vector<16x16xf32> to vector<16x16xbf16>
    %87 = vector.extract_strided_slice %59 {offsets = [0, 144], sizes = [16, 16], strides = [1, 1]} : vector<16x192xf32> to vector<16x16xf32>
    %88 = arith.truncf %87 : vector<16x16xf32> to vector<16x16xbf16>
    %89 = tpu.transpose %86, [1, 0] : vector<16x16xbf16> -> vector<16x16xbf16>
    %cst_34 = arith.constant dense<0.000000e+00> : vector<16x16xf32>
    %90 = tpu.matmul %84, %89, %cst_34 {dimension_numbers = #tpu.dot_dimension_numbers<[1], [0], [0], [1], [0, 0, 1, 1], [], []>} : vector<16x16xbf16>, vector<16x16xbf16>, vector<16x16xf32> -> vector<16x16xf32>
    %c1 = arith.constant 1 : index
    %c0_35 = arith.constant 0 : index
    %c0_36 = arith.constant 0 : index
    %91 = vector.load %arg5[%c1, %c0_35, %c0_36] : memref<4x16x16xf32, #tpu.memory_space<vmem>>, vector<1x16x16xf32>
    %92 = vector.shape_cast %91 : vector<1x16x16xf32> to vector<16x16xf32>
    %93 = arith.addf %90, %92 : vector<16x16xf32>
    %cst_37 = arith.constant dense<0xFF800000> : vector<16xf32>
    %94 = vector.multi_reduction <maximumf>, %93, %cst_37 [1] : vector<16x16xf32> to vector<16xf32>
    %95 = vector.shape_cast %94 : vector<16xf32> to vector<16x1xf32>
    %96 = vector.broadcast %95 : vector<16x1xf32> to vector<16x16xf32>
    %97 = arith.subf %93, %96 : vector<16x16xf32>
    %98 = math.exp %97 : vector<16x16xf32>
    %cst_38 = arith.constant dense<0.000000e+00> : vector<16xf32>
    %99 = vector.multi_reduction <add>, %98, %cst_38 [1] : vector<16x16xf32> to vector<16xf32>
    %100 = vector.shape_cast %99 : vector<16xf32> to vector<16x1xf32>
    %101 = tpu.reciprocal %100 {approx = true} : vector<16x1xf32> -> vector<16x1xf32>
    %102 = vector.broadcast %101 : vector<16x1xf32> to vector<16x16xf32>
    %103 = arith.mulf %98, %102 : vector<16x16xf32>
    %104 = arith.truncf %103 : vector<16x16xf32> to vector<16x16xbf16>
    %cst_39 = arith.constant dense<0.000000e+00> : vector<16x16xf32>
    %105 = tpu.matmul %104, %88, %cst_39 {dimension_numbers = #tpu.dot_dimension_numbers<[1], [0], [0], [1], [0, 0, 1, 1], [], []>} : vector<16x16xbf16>, vector<16x16xbf16>, vector<16x16xf32> -> vector<16x16xf32>
    %106 = vector.extract_strided_slice %59 {offsets = [0, 32], sizes = [16, 16], strides = [1, 1]} : vector<16x192xf32> to vector<16x16xf32>
    %107 = arith.truncf %106 : vector<16x16xf32> to vector<16x16xbf16>
    %108 = vector.extract_strided_slice %59 {offsets = [0, 96], sizes = [16, 16], strides = [1, 1]} : vector<16x192xf32> to vector<16x16xf32>
    %109 = arith.truncf %108 : vector<16x16xf32> to vector<16x16xbf16>
    %110 = vector.extract_strided_slice %59 {offsets = [0, 160], sizes = [16, 16], strides = [1, 1]} : vector<16x192xf32> to vector<16x16xf32>
    %111 = arith.truncf %110 : vector<16x16xf32> to vector<16x16xbf16>
    %112 = tpu.transpose %109, [1, 0] : vector<16x16xbf16> -> vector<16x16xbf16>
    %cst_40 = arith.constant dense<0.000000e+00> : vector<16x16xf32>
    %113 = tpu.matmul %107, %112, %cst_40 {dimension_numbers = #tpu.dot_dimension_numbers<[1], [0], [0], [1], [0, 0, 1, 1], [], []>} : vector<16x16xbf16>, vector<16x16xbf16>, vector<16x16xf32> -> vector<16x16xf32>
    %c2 = arith.constant 2 : index
    %c0_41 = arith.constant 0 : index
    %c0_42 = arith.constant 0 : index
    %114 = vector.load %arg5[%c2, %c0_41, %c0_42] : memref<4x16x16xf32, #tpu.memory_space<vmem>>, vector<1x16x16xf32>
    %115 = vector.shape_cast %114 : vector<1x16x16xf32> to vector<16x16xf32>
    %116 = arith.addf %113, %115 : vector<16x16xf32>
    %cst_43 = arith.constant dense<0xFF800000> : vector<16xf32>
    %117 = vector.multi_reduction <maximumf>, %116, %cst_43 [1] : vector<16x16xf32> to vector<16xf32>
    %118 = vector.shape_cast %117 : vector<16xf32> to vector<16x1xf32>
    %119 = vector.broadcast %118 : vector<16x1xf32> to vector<16x16xf32>
    %120 = arith.subf %116, %119 : vector<16x16xf32>
    %121 = math.exp %120 : vector<16x16xf32>
    %cst_44 = arith.constant dense<0.000000e+00> : vector<16xf32>
    %122 = vector.multi_reduction <add>, %121, %cst_44 [1] : vector<16x16xf32> to vector<16xf32>
    %123 = vector.shape_cast %122 : vector<16xf32> to vector<16x1xf32>
    %124 = tpu.reciprocal %123 {approx = true} : vector<16x1xf32> -> vector<16x1xf32>
    %125 = vector.broadcast %124 : vector<16x1xf32> to vector<16x16xf32>
    %126 = arith.mulf %121, %125 : vector<16x16xf32>
    %127 = arith.truncf %126 : vector<16x16xf32> to vector<16x16xbf16>
    %cst_45 = arith.constant dense<0.000000e+00> : vector<16x16xf32>
    %128 = tpu.matmul %127, %111, %cst_45 {dimension_numbers = #tpu.dot_dimension_numbers<[1], [0], [0], [1], [0, 0, 1, 1], [], []>} : vector<16x16xbf16>, vector<16x16xbf16>, vector<16x16xf32> -> vector<16x16xf32>
    %129 = vector.extract_strided_slice %59 {offsets = [0, 48], sizes = [16, 16], strides = [1, 1]} : vector<16x192xf32> to vector<16x16xf32>
    %130 = arith.truncf %129 : vector<16x16xf32> to vector<16x16xbf16>
    %131 = vector.extract_strided_slice %59 {offsets = [0, 112], sizes = [16, 16], strides = [1, 1]} : vector<16x192xf32> to vector<16x16xf32>
    %132 = arith.truncf %131 : vector<16x16xf32> to vector<16x16xbf16>
    %133 = vector.extract_strided_slice %59 {offsets = [0, 176], sizes = [16, 16], strides = [1, 1]} : vector<16x192xf32> to vector<16x16xf32>
    %134 = arith.truncf %133 : vector<16x16xf32> to vector<16x16xbf16>
    %135 = tpu.transpose %132, [1, 0] : vector<16x16xbf16> -> vector<16x16xbf16>
    %cst_46 = arith.constant dense<0.000000e+00> : vector<16x16xf32>
    %136 = tpu.matmul %130, %135, %cst_46 {dimension_numbers = #tpu.dot_dimension_numbers<[1], [0], [0], [1], [0, 0, 1, 1], [], []>} : vector<16x16xbf16>, vector<16x16xbf16>, vector<16x16xf32> -> vector<16x16xf32>
    %c3 = arith.constant 3 : index
    %c0_47 = arith.constant 0 : index
    %c0_48 = arith.constant 0 : index
    %137 = vector.load %arg5[%c3, %c0_47, %c0_48] : memref<4x16x16xf32, #tpu.memory_space<vmem>>, vector<1x16x16xf32>
    %138 = vector.shape_cast %137 : vector<1x16x16xf32> to vector<16x16xf32>
    %139 = arith.addf %136, %138 : vector<16x16xf32>
    %cst_49 = arith.constant dense<0xFF800000> : vector<16xf32>
    %140 = vector.multi_reduction <maximumf>, %139, %cst_49 [1] : vector<16x16xf32> to vector<16xf32>
    %141 = vector.shape_cast %140 : vector<16xf32> to vector<16x1xf32>
    %142 = vector.broadcast %141 : vector<16x1xf32> to vector<16x16xf32>
    %143 = arith.subf %139, %142 : vector<16x16xf32>
    %144 = math.exp %143 : vector<16x16xf32>
    %cst_50 = arith.constant dense<0.000000e+00> : vector<16xf32>
    %145 = vector.multi_reduction <add>, %144, %cst_50 [1] : vector<16x16xf32> to vector<16xf32>
    %146 = vector.shape_cast %145 : vector<16xf32> to vector<16x1xf32>
    %147 = tpu.reciprocal %146 {approx = true} : vector<16x1xf32> -> vector<16x1xf32>
    %148 = vector.broadcast %147 : vector<16x1xf32> to vector<16x16xf32>
    %149 = arith.mulf %144, %148 : vector<16x16xf32>
    %150 = arith.truncf %149 : vector<16x16xf32> to vector<16x16xbf16>
    %cst_51 = arith.constant dense<0.000000e+00> : vector<16x16xf32>
    %151 = tpu.matmul %150, %134, %cst_51 {dimension_numbers = #tpu.dot_dimension_numbers<[1], [0], [0], [1], [0, 0, 1, 1], [], []>} : vector<16x16xbf16>, vector<16x16xbf16>, vector<16x16xf32> -> vector<16x16xf32>
    %152 = tpu.concatenate %82, %105, %128, %151 in 1 : vector<16x16xf32>, vector<16x16xf32>, vector<16x16xf32>, vector<16x16xf32> -> vector<16x64xf32>
    %153 = arith.truncf %152 : vector<16x64xf32> to vector<16x64xbf16>
    %c0_52 = arith.constant 0 : index
    %c0_53 = arith.constant 0 : index
    %154 = vector.load %arg10[%c0_52, %c0_53] : memref<64x64xbf16, #tpu.memory_space<vmem>>, vector<64x64xbf16>
    %cst_54 = arith.constant dense<0.000000e+00> : vector<16x64xf32>
    %155 = tpu.matmul %153, %154, %cst_54 {dimension_numbers = #tpu.dot_dimension_numbers<[1], [0], [0], [1], [0, 0, 1, 1], [], []>} : vector<16x64xbf16>, vector<64x64xbf16>, vector<16x64xf32> -> vector<16x64xf32>
    %c0_55 = arith.constant 0 : index
    %c0_56 = arith.constant 0 : index
    %156 = vector.load %arg11[%c0_55, %c0_56] : memref<1x64xf32, #tpu.memory_space<vmem>>, vector<1x64xf32>
    %157 = vector.broadcast %156 : vector<1x64xf32> to vector<16x64xf32>
    %158 = arith.addf %155, %157 : vector<16x64xf32>
    %159 = arith.addf %29, %158 : vector<16x64xf32>
    %c0_57 = arith.constant 0 : index
    %c0_58 = arith.constant 0 : index
    %160 = vector.load %arg12[%c0_57, %c0_58] : memref<1x64xf32, #tpu.memory_space<vmem>>, vector<1x64xf32>
    %c0_59 = arith.constant 0 : index
    %c0_60 = arith.constant 0 : index
    %161 = vector.load %arg13[%c0_59, %c0_60] : memref<1x64xf32, #tpu.memory_space<vmem>>, vector<1x64xf32>
    %cst_61 = arith.constant dense<0.000000e+00> : vector<16xf32>
    %162 = vector.multi_reduction <add>, %159, %cst_61 [1] : vector<16x64xf32> to vector<16xf32>
    %163 = vector.shape_cast %162 : vector<16xf32> to vector<16x1xf32>
    %cst_62 = arith.constant 6.400000e+01 : f32
    %164 = vector.broadcast %cst_62 : f32 to vector<16x1xf32>
    %165 = arith.divf %163, %164 : vector<16x1xf32>
    %166 = vector.broadcast %165 : vector<16x1xf32> to vector<16x64xf32>
    %167 = arith.subf %159, %166 : vector<16x64xf32>
    %168 = arith.mulf %167, %167 : vector<16x64xf32>
    %cst_63 = arith.constant dense<0.000000e+00> : vector<16xf32>
    %169 = vector.multi_reduction <add>, %168, %cst_63 [1] : vector<16x64xf32> to vector<16xf32>
    %170 = vector.shape_cast %169 : vector<16xf32> to vector<16x1xf32>
    %cst_64 = arith.constant 6.400000e+01 : f32
    %171 = vector.broadcast %cst_64 : f32 to vector<16x1xf32>
    %172 = arith.divf %170, %171 : vector<16x1xf32>
    %173 = vector.broadcast %165 : vector<16x1xf32> to vector<16x64xf32>
    %174 = arith.subf %159, %173 : vector<16x64xf32>
    %cst_65 = arith.constant 9.99999974E-6 : f32
    %175 = vector.broadcast %cst_65 : f32 to vector<16x1xf32>
    %176 = arith.addf %172, %175 : vector<16x1xf32>
    %177 = math.rsqrt %176 : vector<16x1xf32>
    %178 = vector.broadcast %177 : vector<16x1xf32> to vector<16x64xf32>
    %179 = arith.mulf %174, %178 : vector<16x64xf32>
    %180 = vector.broadcast %160 : vector<1x64xf32> to vector<16x64xf32>
    %181 = arith.mulf %179, %180 : vector<16x64xf32>
    %182 = vector.broadcast %161 : vector<1x64xf32> to vector<16x64xf32>
    %183 = arith.addf %181, %182 : vector<16x64xf32>
    %184 = arith.truncf %183 : vector<16x64xf32> to vector<16x64xbf16>
    %c0_66 = arith.constant 0 : index
    %c0_67 = arith.constant 0 : index
    %185 = vector.load %arg14[%c0_66, %c0_67] : memref<64x256xbf16, #tpu.memory_space<vmem>>, vector<64x256xbf16>
    %cst_68 = arith.constant dense<0.000000e+00> : vector<16x256xf32>
    %186 = tpu.matmul %184, %185, %cst_68 {dimension_numbers = #tpu.dot_dimension_numbers<[1], [0], [0], [1], [0, 0, 1, 1], [], []>} : vector<16x64xbf16>, vector<64x256xbf16>, vector<16x256xf32> -> vector<16x256xf32>
    %c0_69 = arith.constant 0 : index
    %c0_70 = arith.constant 0 : index
    %187 = vector.load %arg15[%c0_69, %c0_70] : memref<1x256xf32, #tpu.memory_space<vmem>>, vector<1x256xf32>
    %188 = vector.broadcast %187 : vector<1x256xf32> to vector<16x256xf32>
    %189 = arith.addf %186, %188 : vector<16x256xf32>
    %190 = arith.mulf %189, %189 : vector<16x256xf32>
    %191 = arith.mulf %189, %190 : vector<16x256xf32>
    %cst_71 = arith.constant 4.471500e-02 : f32
    %192 = vector.broadcast %cst_71 : f32 to vector<16x256xf32>
    %193 = arith.mulf %192, %191 : vector<16x256xf32>
    %194 = arith.addf %189, %193 : vector<16x256xf32>
    %cst_72 = arith.constant 0.797884583 : f32
    %195 = vector.broadcast %cst_72 : f32 to vector<16x256xf32>
    %196 = arith.mulf %195, %194 : vector<16x256xf32>
    %197 = math.tanh %196 : vector<16x256xf32>
    %cst_73 = arith.constant 1.000000e+00 : f32
    %198 = vector.broadcast %cst_73 : f32 to vector<16x256xf32>
    %199 = arith.addf %198, %197 : vector<16x256xf32>
    %cst_74 = arith.constant 5.000000e-01 : f32
    %200 = vector.broadcast %cst_74 : f32 to vector<16x256xf32>
    %201 = arith.mulf %200, %199 : vector<16x256xf32>
    %202 = arith.mulf %189, %201 : vector<16x256xf32>
    %203 = arith.truncf %202 : vector<16x256xf32> to vector<16x256xbf16>
    %c0_75 = arith.constant 0 : index
    %c0_76 = arith.constant 0 : index
    %204 = vector.load %arg16[%c0_75, %c0_76] : memref<256x64xbf16, #tpu.memory_space<vmem>>, vector<256x64xbf16>
    %cst_77 = arith.constant dense<0.000000e+00> : vector<16x64xf32>
    %205 = tpu.matmul %203, %204, %cst_77 {dimension_numbers = #tpu.dot_dimension_numbers<[1], [0], [0], [1], [0, 0, 1, 1], [], []>} : vector<16x256xbf16>, vector<256x64xbf16>, vector<16x64xf32> -> vector<16x64xf32>
    %c0_78 = arith.constant 0 : index
    %c0_79 = arith.constant 0 : index
    %206 = vector.load %arg17[%c0_78, %c0_79] : memref<1x64xf32, #tpu.memory_space<vmem>>, vector<1x64xf32>
    %207 = vector.broadcast %206 : vector<1x64xf32> to vector<16x64xf32>
    %208 = arith.addf %205, %207 : vector<16x64xf32>
    %209 = arith.addf %159, %208 : vector<16x64xf32>
    %210 = arith.truncf %209 : vector<16x64xf32> to vector<16x64xbf16>
    %c0_80 = arith.constant 0 : index
    %c0_81 = arith.constant 0 : index
    %c0_82 = arith.constant 0 : index
    %211 = vector.load %arg18[%c0_80, %c0_81, %c0_82] : memref<1x16x64xbf16, #tpu.memory_space<vmem>>, vector<1x16x64xbf16>
    %212 = vector.shape_cast %211 : vector<1x16x64xbf16> to vector<16x64xbf16>
    %213 = vector.shape_cast %210 : vector<16x64xbf16> to vector<1x16x64xbf16>
    tpu.vector_store %arg18[%c0_80, %c0_81, %c0_82], %213 {strides = array<i32>} : memref<1x16x64xbf16, #tpu.memory_space<vmem>>, vector<1x16x64xbf16>,
    return
  }
  func.func @transform_0(%arg0: i32) -> (i32, i32, i32) {
    %c0_i32 = arith.constant 0 : i32
    %c0_i32_0 = arith.constant 0 : i32
    %c0_i32_1 = arith.constant 0 : i32
    return %arg0, %c0_i32, %c0_i32_0 : i32, i32, i32
  }
  func.func @transform_1(%arg0: i32) -> (i32, i32) {
    %c0_i32 = arith.constant 0 : i32
    %c0_i32_0 = arith.constant 0 : i32
    %c0_i32_1 = arith.constant 0 : i32
    return %c0_i32, %c0_i32_0 : i32, i32
  }
  func.func @transform_2(%arg0: i32) -> (i32, i32) {
    %c0_i32 = arith.constant 0 : i32
    %c0_i32_0 = arith.constant 0 : i32
    %c0_i32_1 = arith.constant 0 : i32
    return %c0_i32, %c0_i32_0 : i32, i32
  }
  func.func @transform_3(%arg0: i32) -> (i32, i32) {
    %c0_i32 = arith.constant 0 : i32
    %c0_i32_0 = arith.constant 0 : i32
    %c0_i32_1 = arith.constant 0 : i32
    return %c0_i32, %c0_i32_0 : i32, i32
  }
  func.func @transform_4(%arg0: i32) -> (i32, i32, i32) {
    %c0_i32 = arith.constant 0 : i32
    %c0_i32_0 = arith.constant 0 : i32
    %c0_i32_1 = arith.constant 0 : i32
    %c0_i32_2 = arith.constant 0 : i32
    return %c0_i32, %c0_i32_0, %c0_i32_1 : i32, i32, i32
  }
  func.func @transform_5(%arg0: i32) -> (i32, i32) {
    %c0_i32 = arith.constant 0 : i32
    %c0_i32_0 = arith.constant 0 : i32
    %c0_i32_1 = arith.constant 0 : i32
    return %c0_i32, %c0_i32_0 : i32, i32
  }
  func.func @transform_6(%arg0: i32) -> (i32, i32) {
    %c0_i32 = arith.constant 0 : i32
    %c0_i32_0 = arith.constant 0 : i32
    %c0_i32_1 = arith.constant 0 : i32
    return %c0_i32, %c0_i32_0 : i32, i32
  }
  func.func @transform_7(%arg0: i32) -> (i32, i32) {
    %c0_i32 = arith.constant 0 : i32
    %c0_i32_0 = arith.constant 0 : i32
    %c0_i32_1 = arith.constant 0 : i32
    return %c0_i32, %c0_i32_0 : i32, i32
  }
  func.func @transform_8(%arg0: i32) -> (i32, i32) {
    %c0_i32 = arith.constant 0 : i32
    %c0_i32_0 = arith.constant 0 : i32
    %c0_i32_1 = arith.constant 0 : i32
    return %c0_i32, %c0_i32_0 : i32, i32
  }
  func.func @transform_9(%arg0: i32) -> (i32, i32) {
    %c0_i32 = arith.constant 0 : i32
    %c0_i32_0 = arith.constant 0 : i32
    %c0_i32_1 = arith.constant 0 : i32
    return %c0_i32, %c0_i32_0 : i32, i32
  }
  func.func @transform_10(%arg0: i32) -> (i32, i32) {
    %c0_i32 = arith.constant 0 : i32
    %c0_i32_0 = arith.constant 0 : i32
    %c0_i32_1 = arith.constant 0 : i32
    return %c0_i32, %c0_i32_0 : i32, i32
  }
  func.func @transform_11(%arg0: i32) -> (i32, i32) {
    %c0_i32 = arith.constant 0 : i32
    %c0_i32_0 = arith.constant 0 : i32
    %c0_i32_1 = arith.constant 0 : i32
    return %c0_i32, %c0_i32_0 : i32, i32
  }
  func.func @transform_12(%arg0: i32) -> (i32, i32) {
    %c0_i32 = arith.constant 0 : i32
    %c0_i32_0 = arith.constant 0 : i32
    %c0_i32_1 = arith.constant 0 : i32
    return %c0_i32, %c0_i32_0 : i32, i32
  }
  func.func @transform_13(%arg0: i32) -> (i32, i32) {
    %c0_i32 = arith.constant 0 : i32
    %c0_i32_0 = arith.constant 0 : i32
    %c0_i32_1 = arith.constant 0 : i32
    return %c0_i32, %c0_i32_0 : i32, i32
  }
  func.func @transform_14(%arg0: i32) -> (i32, i32) {
    %c0_i32 = arith.constant 0 : i32
    %c0_i32_0 = arith.constant 0 : i32
    %c0_i32_1 = arith.constant 0 : i32
    return %c0_i32, %c0_i32_0 : i32, i32
  }
  func.func @transform_15(%arg0: i32) -> (i32, i32) {
    %c0_i32 = arith.constant 0 : i32
    %c0_i32_0 = arith.constant 0 : i32
    %c0_i32_1 = arith.constant 0 : i32
    return %c0_i32, %c0_i32_0 : i32, i32
  }
  func.func @transform_16(%arg0: i32) -> (i32, i32) {
    %c0_i32 = arith.constant 0 : i32
    %c0_i32_0 = arith.constant 0 : i32
    %c0_i32_1 = arith.constant 0 : i32
    return %c0_i32, %c0_i32_0 : i32, i32
  }
  func.func @transform_17(%arg0: i32) -> (i32, i32, i32) {
    %c0_i32 = arith.constant 0 : i32
    %c0_i32_0 = arith.constant 0 : i32
    %c0_i32_1 = arith.constant 0 : i32
    return %arg0, %c0_i32, %c0_i32_0 : i32, i32, i32
  }
}

</mosaic_0001>

<llo_original>
// kernel: swin_forward.4
$region0: #{swin_forward.4}
  #allocation0 [shape = 'u32[]', space=smem, size = 0x4, offset = 0x4, fixed_abs, tag = 'smem constant byte address 0x4 - core index']
  #allocation1 [shape = 'u32[144,128]{1,0:T(1,128)}', space=vmem, size = 0x12000, scoped, tag = 'internal scratch']
  %s0 = inlined_call_operand.vmem [shape: f32[2,64,48], index: 0, kind: input, shape index: {}]
  %s1 = inlined_call_operand.vmem [shape: bf16[48,32], index: 1, kind: input, shape index: {}]
  %s2 = inlined_call_operand.vmem [shape: f32[1,32], index: 2, kind: input, shape index: {}]
  %s3 = inlined_call_operand.vmem [shape: f32[1,32], index: 3, kind: input, shape index: {}]
  %s4 = inlined_call_operand.vmem [shape: f32[1,32], index: 4, kind: input, shape index: {}]
  %s5 = inlined_call_operand.vmem [shape: f32[2,64,64], index: 5, kind: input, shape index: {}]
  %s6 = inlined_call_operand.vmem [shape: f32[1,32], index: 6, kind: input, shape index: {}]
  %s7 = inlined_call_operand.vmem [shape: f32[1,32], index: 7, kind: input, shape index: {}]
  %s8 = inlined_call_operand.vmem [shape: bf16[32,96], index: 8, kind: input, shape index: {}]
  %s9 = inlined_call_operand.vmem [shape: f32[1,96], index: 9, kind: input, shape index: {}]
  %s10 = inlined_call_operand.vmem [shape: bf16[32,32], index: 10, kind: input, shape index: {}]
  %s11 = inlined_call_operand.vmem [shape: f32[1,32], index: 11, kind: input, shape index: {}]
  %s12 = inlined_call_operand.vmem [shape: f32[1,32], index: 12, kind: input, shape index: {}]
  %s13 = inlined_call_operand.vmem [shape: f32[1,32], index: 13, kind: input, shape index: {}]
  %s14 = inlined_call_operand.vmem [shape: bf16[32,128], index: 14, kind: input, shape index: {}]
  %s15 = inlined_call_operand.vmem [shape: f32[1,128], index: 15, kind: input, shape index: {}]
  %s16 = inlined_call_operand.vmem [shape: bf16[128,32], index: 16, kind: input, shape index: {}]
  %s17 = inlined_call_operand.vmem [shape: f32[1,32], index: 17, kind: input, shape index: {}]
  %s18 = inlined_call_operand.vmem [shape: bf16[2,64,32], index: 18, kind: output, shape index: {}]
  %s19 = sld [smem:[#allocation0]]
  $region105: #{swin_forward.4} parent=0
    _
  %s21 = ssub.s32 1, %s19
  %s22 = scalar_select 0, %s21, %s19
  loop: start=0, step=1, limit=4
  $region2: #{swin_forward.4} parent=0 // loop_pre_header
    _
  $region3: #{swin_forward.4} parent=0 // loop_header
    %s24 = sphi 0, %s28
    %p25 = scmp.ge.s32.totalorder %s24, 4
    %s34 = sphi 0, %s36
    %s37 = sphi 0, %s34
    %s38 = sphi 0, %s37
    %s54 = sphi 0, %s38
    %s58 = sphi 0, %s58
    %s60 = sphi 0, %s58
    %s61 = sphi 0, %s60
    %s75 = sphi 0, %s61
    %s79 = sphi 0, %s79
    %s81 = sphi 0, %s79
    %s82 = sphi 0, %s81
    %s96 = sphi 0, %s82
    %s100 = sphi 0, %s100
    %s102 = sphi 0, %s100
    %s103 = sphi 0, %s102
    %s117 = sphi 0, %s103
    %s121 = sphi 0, %s121
    %s123 = sphi 0, %s121
    %s124 = sphi 0, %s123
    %s138 = sphi 0, %s124
    %s142 = sphi 0, %s142
    %s144 = sphi 0, %s142
    %s145 = sphi 0, %s144
    %s159 = sphi 0, %s145
    %s163 = sphi 0, %s163
    %s165 = sphi 0, %s163
    %s166 = sphi 0, %s165
    %s180 = sphi 0, %s166
    %s184 = sphi 0, %s184
    %s186 = sphi 0, %s184
    %s187 = sphi 0, %s186
    %s201 = sphi 0, %s187
    %s205 = sphi 0, %s205
    %s207 = sphi 0, %s205
    %s208 = sphi 0, %s207
    %s222 = sphi 0, %s208
    %s226 = sphi 0, %s226
    %s228 = sphi 0, %s226
    %s229 = sphi 0, %s228
    %s243 = sphi 0, %s229
    %s247 = sphi 0, %s247
    %s249 = sphi 0, %s247
    %s250 = sphi 0, %s249
    %s264 = sphi 0, %s250
    %s268 = sphi 0, %s268
    %s270 = sphi 0, %s268
    %s271 = sphi 0, %s270
    %s285 = sphi 0, %s271
    %s289 = sphi 0, %s289
    %s291 = sphi 0, %s289
    %s292 = sphi 0, %s291
    %s306 = sphi 0, %s292
    %s310 = sphi 0, %s310
    %s312 = sphi 0, %s310
    %s313 = sphi 0, %s312
    %s327 = sphi 0, %s313
    %s331 = sphi 0, %s331
    %s333 = sphi 0, %s331
    %s334 = sphi 0, %s333
    %s348 = sphi 0, %s334
    %s352 = sphi 0, %s352
    %s354 = sphi 0, %s352
    %s355 = sphi 0, %s354
    %s369 = sphi 0, %s355
    %s373 = sphi 0, %s373
    %s375 = sphi 0, %s373
    %s376 = sphi 0, %s375
    %s390 = sphi 0, %s376
    %s394 = sphi 0, %s394
    %s396 = sphi 0, %s394
    %s397 = sphi 0, %s396
    %s411 = sphi 0, %s397
    %s417 = sphi 0, %s419
    %s420 = sphi 0, %s417
    %s421 = sphi 0, %s420
    %s437 = sphi 0, %s421
  $region4: #{swin_forward.4} parent=0 // loop_header_branch
    %27 = sbr.rel (%p25) target = $region8
  $region5: #{swin_forward.4} parent=0 // loop_body
    %s29 = ssub.s32 %s24, 1
    %s30 = ssub.s32 %s24, 2
    %s31 = sadd.s32 %s24, 1
    %s32 = ssub.s32 %s24, %s31
    %p33 = scmp.eq.s32.totalorder %s32, 0
    %s35 = sadd.s32 %s34, 1
    %s36 = scalar_select %p33, %s34, %s35
    %p39 = pneg %p33
    %p40 = scmp.eq.s32.totalorder %s24, 1
    %p41 = por %p39, %p40
    %p42 = scmp.ne.s32.totalorder %s34, %s37
    %p43 = scmp.eq.s32.totalorder %s24, 0
    %p44 = por %p42, %p43
    %p45 = scmp.ne.s32.totalorder %s34, %s37
    %p46 = scmp.eq.s32.totalorder %s29, 1
    %p47 = por %p45, %p46
    %p48 = scmp.ne.s32.totalorder %s37, %s38
    %p49 = scmp.eq.s32.totalorder %s29, 0
    %p50 = por %p48, %p49
    %p51 = scmp.ne.s32.totalorder %s37, %s38
    %p52 = scmp.eq.s32.totalorder %s30, 1
    %p53 = por %p51, %p52
    %p55 = scmp.ne.s32.totalorder %s38, %s54
    %p56 = scmp.eq.s32.totalorder %s30, 0
    %p57 = por %p55, %p56
    %s59 = sadd.s32 %s58, 1
    %p62 = scmp.eq.s32.totalorder %s24, 1
    %p63 = scmp.ne.s32.totalorder %s58, %s60
    %p64 = scmp.eq.s32.totalorder %s24, 0
    %p65 = por %p63, %p64
    %p66 = scmp.ne.s32.totalorder %s58, %s60
    %p67 = scmp.eq.s32.totalorder %s29, 1
    %p68 = por %p66, %p67
    %p69 = scmp.ne.s32.totalorder %s60, %s61
    %p70 = scmp.eq.s32.totalorder %s29, 0
    %p71 = por %p69, %p70
    %p72 = scmp.ne.s32.totalorder %s60, %s61
    %p73 = scmp.eq.s32.totalorder %s30, 1
    %p74 = por %p72, %p73
    %p76 = scmp.ne.s32.totalorder %s61, %s75
    %p77 = scmp.eq.s32.totalorder %s30, 0
    %p78 = por %p76, %p77
    %s80 = sadd.s32 %s79, 1
    %p83 = scmp.eq.s32.totalorder %s24, 1
    %p84 = scmp.ne.s32.totalorder %s79, %s81
    %p85 = scmp.eq.s32.totalorder %s24, 0
    %p86 = por %p84, %p85
    %p87 = scmp.ne.s32.totalorder %s79, %s81
    %p88 = scmp.eq.s32.totalorder %s29, 1
    %p89 = por %p87, %p88
    %p90 = scmp.ne.s32.totalorder %s81, %s82
    %p91 = scmp.eq.s32.totalorder %s29, 0
    %p92 = por %p90, %p91
    %p93 = scmp.ne.s32.totalorder %s81, %s82
    %p94 = scmp.eq.s32.totalorder %s30, 1
    %p95 = por %p93, %p94
    %p97 = scmp.ne.s32.totalorder %s82, %s96
    %p98 = scmp.eq.s32.totalorder %s30, 0
    %p99 = por %p97, %p98
    %s101 = sadd.s32 %s100, 1
    %p104 = scmp.eq.s32.totalorder %s24, 1
    %p105 = scmp.ne.s32.totalorder %s100, %s102
    %p106 = scmp.eq.s32.totalorder %s24, 0
    %p107 = por %p105, %p106
    %p108 = scmp.ne.s32.totalorder %s100, %s102
    %p109 = scmp.eq.s32.totalorder %s29, 1
    %p110 = por %p108, %p109
    %p111 = scmp.ne.s32.totalorder %s102, %s103
    %p112 = scmp.eq.s32.totalorder %s29, 0
    %p113 = por %p111, %p112
    %p114 = scmp.ne.s32.totalorder %s102, %s103
    %p115 = scmp.eq.s32.totalorder %s30, 1
    %p116 = por %p114, %p115
    %p118 = scmp.ne.s32.totalorder %s103, %s117
    %p119 = scmp.eq.s32.totalorder %s30, 0
    %p120 = por %p118, %p119
    %s122 = sadd.s32 %s121, 1
    %p125 = scmp.eq.s32.totalorder %s24, 1
    %p126 = scmp.ne.s32.totalorder %s121, %s123
    %p127 = scmp.eq.s32.totalorder %s24, 0
    %p128 = por %p126, %p127
    %p129 = scmp.ne.s32.totalorder %s121, %s123
    %p130 = scmp.eq.s32.totalorder %s29, 1
    %p131 = por %p129, %p130
    %p132 = scmp.ne.s32.totalorder %s123, %s124
    %p133 = scmp.eq.s32.totalorder %s29, 0
    %p134 = por %p132, %p133
    %p135 = scmp.ne.s32.totalorder %s123, %s124
    %p136 = scmp.eq.s32.totalorder %s30, 1
    %p137 = por %p135, %p136
    %p139 = scmp.ne.s32.totalorder %s124, %s138
    %p140 = scmp.eq.s32.totalorder %s30, 0
    %p141 = por %p139, %p140
    %s143 = sadd.s32 %s142, 1
    %p146 = scmp.eq.s32.totalorder %s24, 1
    %p147 = scmp.ne.s32.totalorder %s142, %s144
    %p148 = scmp.eq.s32.totalorder %s24, 0
    %p149 = por %p147, %p148
    %p150 = scmp.ne.s32.totalorder %s142, %s144
    %p151 = scmp.eq.s32.totalorder %s29, 1
    %p152 = por %p150, %p151
    %p153 = scmp.ne.s32.totalorder %s144, %s145
    %p154 = scmp.eq.s32.totalorder %s29, 0
    %p155 = por %p153, %p154
    %p156 = scmp.ne.s32.totalorder %s144, %s145
    %p157 = scmp.eq.s32.totalorder %s30, 1
    %p158 = por %p156, %p157
    %p160 = scmp.ne.s32.totalorder %s145, %s159
    %p161 = scmp.eq.s32.totalorder %s30, 0
    %p162 = por %p160, %p161
    %s164 = sadd.s32 %s163, 1
    %p167 = scmp.eq.s32.totalorder %s24, 1
    %p168 = scmp.ne.s32.totalorder %s163, %s165
    %p169 = scmp.eq.s32.totalorder %s24, 0
    %p170 = por %p168, %p169
    %p171 = scmp.ne.s32.totalorder %s163, %s165
    %p172 = scmp.eq.s32.totalorder %s29, 1
    %p173 = por %p171, %p172
    %p174 = scmp.ne.s32.totalorder %s165, %s166
    %p175 = scmp.eq.s32.totalorder %s29, 0
    %p176 = por %p174, %p175
    %p177 = scmp.ne.s32.totalorder %s165, %s166
    %p178 = scmp.eq.s32.totalorder %s30, 1
    %p179 = por %p177, %p178
    %p181 = scmp.ne.s32.totalorder %s166, %s180
    %p182 = scmp.eq.s32.totalorder %s30, 0
    %p183 = por %p181, %p182
    %s185 = sadd.s32 %s184, 1
    %p188 = scmp.eq.s32.totalorder %s24, 1
    %p189 = scmp.ne.s32.totalorder %s184, %s186
    %p190 = scmp.eq.s32.totalorder %s24, 0
    %p191 = por %p189, %p190
    %p192 = scmp.ne.s32.totalorder %s184, %s186
    %p193 = scmp.eq.s32.totalorder %s29, 1
    %p194 = por %p192, %p193
    %p195 = scmp.ne.s32.totalorder %s186, %s187
    %p196 = scmp.eq.s32.totalorder %s29, 0
    %p197 = por %p195, %p196
    %p198 = scmp.ne.s32.totalorder %s186, %s187
    %p199 = scmp.eq.s32.totalorder %s30, 1
    %p200 = por %p198, %p199
    %p202 = scmp.ne.s32.totalorder %s187, %s201
    %p203 = scmp.eq.s32.totalorder %s30, 0
    %p204 = por %p202, %p203
    %s206 = sadd.s32 %s205, 1
    %p209 = scmp.eq.s32.totalorder %s24, 1
    %p210 = scmp.ne.s32.totalorder %s205, %s207
    %p211 = scmp.eq.s32.totalorder %s24, 0
    %p212 = por %p210, %p211
    %p213 = scmp.ne.s32.totalorder %s205, %s207
    %p214 = scmp.eq.s32.totalorder %s29, 1
    %p215 = por %p213, %p214
    %p216 = scmp.ne.s32.totalorder %s207, %s208
    %p217 = scmp.eq.s32.totalorder %s29, 0
    %p218 = por %p216, %p217
    %p219 = scmp.ne.s32.totalorder %s207, %s208
    %p220 = scmp.eq.s32.totalorder %s30, 1
    %p221 = por %p219, %p220
    %p223 = scmp.ne.s32.totalorder %s208, %s222
    %p224 = scmp.eq.s32.totalorder %s30, 0
    %p225 = por %p223, %p224
    %s227 = sadd.s32 %s226, 1
    %p230 = scmp.eq.s32.totalorder %s24, 1
    %p231 = scmp.ne.s32.totalorder %s226, %s228
    %p232 = scmp.eq.s32.totalorder %s24, 0
    %p233 = por %p231, %p232
    %p234 = scmp.ne.s32.totalorder %s226, %s228
    %p235 = scmp.eq.s32.totalorder %s29, 1
    %p236 = por %p234, %p235
    %p237 = scmp.ne.s32.totalorder %s228, %s229
    %p238 = scmp.eq.s32.totalorder %s29, 0
    %p239 = por %p237, %p238
    %p240 = scmp.ne.s32.totalorder %s228, %s229
    %p241 = scmp.eq.s32.totalorder %s30, 1
    %p242 = por %p240, %p241
    %p244 = scmp.ne.s32.totalorder %s229, %s243
    %p245 = scmp.eq.s32.totalorder %s30, 0
    %p246 = por %p244, %p245
    %s248 = sadd.s32 %s247, 1
    %p251 = scmp.eq.s32.totalorder %s24, 1
    %p252 = scmp.ne.s32.totalorder %s247, %s249
    %p253 = scmp.eq.s32.totalorder %s24, 0
    %p254 = por %p252, %p253
    %p255 = scmp.ne.s32.totalorder %s247, %s249
    %p256 = scmp.eq.s32.totalorder %s29, 1
    %p257 = por %p255, %p256
    %p258 = scmp.ne.s32.totalorder %s249, %s250
    %p259 = scmp.eq.s32.totalorder %s29, 0
    %p260 = por %p258, %p259
    %p261 = scmp.ne.s32.totalorder %s249, %s250
    %p262 = scmp.eq.s32.totalorder %s30, 1
    %p263 = por %p261, %p262
    %p265 = scmp.ne.s32.totalorder %s250, %s264
    %p266 = scmp.eq.s32.totalorder %s30, 0
    %p267 = por %p265, %p266
    %s269 = sadd.s32 %s268, 1
    %p272 = scmp.eq.s32.totalorder %s24, 1
    %p273 = scmp.ne.s32.totalorder %s268, %s270
    %p274 = scmp.eq.s32.totalorder %s24, 0
    %p275 = por %p273, %p274
    %p276 = scmp.ne.s32.totalorder %s268, %s270
    %p277 = scmp.eq.s32.totalorder %s29, 1
    %p278 = por %p276, %p277
    %p279 = scmp.ne.s32.totalorder %s270, %s271
    %p280 = scmp.eq.s32.totalorder %s29, 0
    %p281 = por %p279, %p280
    %p282 = scmp.ne.s32.totalorder %s270, %s271
    %p283 = scmp.eq.s32.totalorder %s30, 1
    %p284 = por %p282, %p283
    %p286 = scmp.ne.s32.totalorder %s271, %s285
    %p287 = scmp.eq.s32.totalorder %s30, 0
    %p288 = por %p286, %p287
    %s290 = sadd.s32 %s289, 1
    %p293 = scmp.eq.s32.totalorder %s24, 1
    %p294 = scmp.ne.s32.totalorder %s289, %s291
    %p295 = scmp.eq.s32.totalorder %s24, 0
    %p296 = por %p294, %p295
    %p297 = scmp.ne.s32.totalorder %s289, %s291
    %p298 = scmp.eq.s32.totalorder %s29, 1
    %p299 = por %p297, %p298
    %p300 = scmp.ne.s32.totalorder %s291, %s292
    %p301 = scmp.eq.s32.totalorder %s29, 0
    %p302 = por %p300, %p301
    %p303 = scmp.ne.s32.totalorder %s291, %s292
    %p304 = scmp.eq.s32.totalorder %s30, 1
    %p305 = por %p303, %p304
    %p307 = scmp.ne.s32.totalorder %s292, %s306
    %p308 = scmp.eq.s32.totalorder %s30, 0
    %p309 = por %p307, %p308
    %s311 = sadd.s32 %s310, 1
    %p314 = scmp.eq.s32.totalorder %s24, 1
    %p315 = scmp.ne.s32.totalorder %s310, %s312
    %p316 = scmp.eq.s32.totalorder %s24, 0
    %p317 = por %p315, %p316
    %p318 = scmp.ne.s32.totalorder %s310, %s312
    %p319 = scmp.eq.s32.totalorder %s29, 1
    %p320 = por %p318, %p319
    %p321 = scmp.ne.s32.totalorder %s312, %s313
    %p322 = scmp.eq.s32.totalorder %s29, 0
    %p323 = por %p321, %p322
    %p324 = scmp.ne.s32.totalorder %s312, %s313
    %p325 = scmp.eq.s32.totalorder %s30, 1
    %p326 = por %p324, %p325
    %p328 = scmp.ne.s32.totalorder %s313, %s327
    %p329 = scmp.eq.s32.totalorder %s30, 0
    %p330 = por %p328, %p329
    %s332 = sadd.s32 %s331, 1
    %p335 = scmp.eq.s32.totalorder %s24, 1
    %p336 = scmp.ne.s32.totalorder %s331, %s333
    %p337 = scmp.eq.s32.totalorder %s24, 0
    %p338 = por %p336, %p337
    %p339 = scmp.ne.s32.totalorder %s331, %s333
    %p340 = scmp.eq.s32.totalorder %s29, 1
    %p341 = por %p339, %p340
    %p342 = scmp.ne.s32.totalorder %s333, %s334
    %p343 = scmp.eq.s32.totalorder %s29, 0
    %p344 = por %p342, %p343
    %p345 = scmp.ne.s32.totalorder %s333, %s334
    %p346 = scmp.eq.s32.totalorder %s30, 1
    %p347 = por %p345, %p346
    %p349 = scmp.ne.s32.totalorder %s334, %s348
    %p350 = scmp.eq.s32.totalorder %s30, 0
    %p351 = por %p349, %p350
    %s353 = sadd.s32 %s352, 1
    %p356 = scmp.eq.s32.totalorder %s24, 1
    %p357 = scmp.ne.s32.totalorder %s352, %s354
    %p358 = scmp.eq.s32.totalorder %s24, 0
    %p359 = por %p357, %p358
    %p360 = scmp.ne.s32.totalorder %s352, %s354
    %p361 = scmp.eq.s32.totalorder %s29, 1
    %p362 = por %p360, %p361
    %p363 = scmp.ne.s32.totalorder %s354, %s355
    %p364 = scmp.eq.s32.totalorder %s29, 0
    %p365 = por %p363, %p364
    %p366 = scmp.ne.s32.totalorder %s354, %s355
    %p367 = scmp.eq.s32.totalorder %s30, 1
    %p368 = por %p366, %p367
    %p370 = scmp.ne.s32.totalorder %s355, %s369
    %p371 = scmp.eq.s32.totalorder %s30, 0
    %p372 = por %p370, %p371
    %s374 = sadd.s32 %s373, 1
    %p377 = scmp.eq.s32.totalorder %s24, 1
    %p378 = scmp.ne.s32.totalorder %s373, %s375
    %p379 = scmp.eq.s32.totalorder %s24, 0
    %p380 = por %p378, %p379
    %p381 = scmp.ne.s32.totalorder %s373, %s375
    %p382 = scmp.eq.s32.totalorder %s29, 1
    %p383 = por %p381, %p382
    %p384 = scmp.ne.s32.totalorder %s375, %s376
    %p385 = scmp.eq.s32.totalorder %s29, 0
    %p386 = por %p384, %p385
    %p387 = scmp.ne.s32.totalorder %s375, %s376
    %p388 = scmp.eq.s32.totalorder %s30, 1
    %p389 = por %p387, %p388
    %p391 = scmp.ne.s32.totalorder %s376, %s390
    %p392 = scmp.eq.s32.totalorder %s30, 0
    %p393 = por %p391, %p392
    %s395 = sadd.s32 %s394, 1
    %p398 = scmp.eq.s32.totalorder %s24, 1
    %p399 = scmp.ne.s32.totalorder %s394, %s396
    %p400 = scmp.eq.s32.totalorder %s24, 0
    %p401 = por %p399, %p400
    %p402 = scmp.ne.s32.totalorder %s394, %s396
    %p403 = scmp.eq.s32.totalorder %s29, 1
    %p404 = por %p402, %p403
    %p405 = scmp.ne.s32.totalorder %s396, %s397
    %p406 = scmp.eq.s32.totalorder %s29, 0
    %p407 = por %p405, %p406
    %p408 = scmp.ne.s32.totalorder %s396, %s397
    %p409 = scmp.eq.s32.totalorder %s30, 1
    %p410 = por %p408, %p409
    %p412 = scmp.ne.s32.totalorder %s397, %s411
    %p413 = scmp.eq.s32.totalorder %s30, 0
    %p414 = por %p412, %p413
    %s415 = ssub.s32 %s24, %s31
    %p416 = scmp.eq.s32.totalorder %s415, 0
    %s418 = sadd.s32 %s417, 1
    %s419 = scalar_select %p416, %s417, %s418
    %p422 = pneg %p416
    %p423 = scmp.eq.s32.totalorder %s24, 1
    %p424 = por %p422, %p423
    %p425 = scmp.ne.s32.totalorder %s417, %s420
    %p426 = scmp.eq.s32.totalorder %s24, 0
    %p427 = por %p425, %p426
    %p428 = scmp.ne.s32.totalorder %s417, %s420
    %p429 = scmp.eq.s32.totalorder %s29, 1
    %p430 = por %p428, %p429
    %p431 = scmp.ne.s32.totalorder %s420, %s421
    %p432 = scmp.eq.s32.totalorder %s29, 0
    %p433 = por %p431, %p432
    %p434 = scmp.ne.s32.totalorder %s420, %s421
    %p435 = scmp.eq.s32.totalorder %s30, 1
    %p436 = por %p434, %p435
    %p438 = scmp.ne.s32.totalorder %s421, %s437
    %p439 = scmp.eq.s32.totalorder %s30, 0
    %p440 = por %p438, %p439
    %p441 = scmp.le.s32.totalorder 1, %s24
    %p442 = scmp.lt.s32.totalorder %s24, 3
    %p443 = pnand %p441, %p442
    %p444 = pneg %p443
    // Predicated region
    $region9: #{swin_forward.4} parent=5 // pred_check
      _
    $region10: #{swin_forward.4} parent=5 // pred_check_branch
      %446 = sbr.rel (%p443) target = $region12
    $region11: #{swin_forward.4} parent=5 // pred_region
      %s447 = ssub.s32 %s24, 1
      // Predicated region
      $region13: #{swin_forward.4} parent=11 // pred_check
        %p448 = pneg %p71
      $region14: #{swin_forward.4} parent=11 // pred_check_branch
        %450 = sbr.rel (%p448) target = $region16
      $region15: #{swin_forward.4} parent=11 // pred_region
        _
      $region16: #{swin_forward.4} parent=11 // pred_fallthru
        _
      // Predicated region
      $region17: #{swin_forward.4} parent=11 // pred_check
        %p451 = pneg %p92
      $region18: #{swin_forward.4} parent=11 // pred_check_branch
        %453 = sbr.rel (%p451) target = $region20
      $region19: #{swin_forward.4} parent=11 // pred_region
        _
      $region20: #{swin_forward.4} parent=11 // pred_fallthru
        _
      // Predicated region
      $region21: #{swin_forward.4} parent=11 // pred_check
        %p454 = pneg %p113
      $region22: #{swin_forward.4} parent=11 // pred_check_branch
        %456 = sbr.rel (%p454) target = $region24
      $region23: #{swin_forward.4} parent=11 // pred_region
        _
      $region24: #{swin_forward.4} parent=11 // pred_fallthru
        _
      // Predicated region
      $region25: #{swin_forward.4} parent=11 // pred_check
        %p457 = pneg %p134
      $region26: #{swin_forward.4} parent=11 // pred_check_branch
        %459 = sbr.rel (%p457) target = $region28
      $region27: #{swin_forward.4} parent=11 // pred_region
        _
      $region28: #{swin_forward.4} parent=11 // pred_fallthru
        _
      // Predicated region
      $region29: #{swin_forward.4} parent=11 // pred_check
        %p460 = pneg %p155
      $region30: #{swin_forward.4} parent=11 // pred_check_branch
        %462 = sbr.rel (%p460) target = $region32
      $region31: #{swin_forward.4} parent=11 // pred_region
        _
      $region32: #{swin_forward.4} parent=11 // pred_fallthru
        _
      // Predicated region
      $region33: #{swin_forward.4} parent=11 // pred_check
        %p463 = pneg %p176
      $region34: #{swin_forward.4} parent=11 // pred_check_branch
        %465 = sbr.rel (%p463) target = $region36
      $region35: #{swin_forward.4} parent=11 // pred_region
        _
      $region36: #{swin_forward.4} parent=11 // pred_fallthru
        _
      // Predicated region
      $region37: #{swin_forward.4} parent=11 // pred_check
        %p466 = pneg %p197
      $region38: #{swin_forward.4} parent=11 // pred_check_branch
        %468 = sbr.rel (%p466) target = $region40
      $region39: #{swin_forward.4} parent=11 // pred_region
        _
      $region40: #{swin_forward.4} parent=11 // pred_fallthru
        _
      // Predicated region
      $region41: #{swin_forward.4} parent=11 // pred_check
        %p469 = pneg %p218
      $region42: #{swin_forward.4} parent=11 // pred_check_branch
        %471 = sbr.rel (%p469) target = $region44
      $region43: #{swin_forward.4} parent=11 // pred_region
        _
      $region44: #{swin_forward.4} parent=11 // pred_fallthru
        _
      // Predicated region
      $region45: #{swin_forward.4} parent=11 // pred_check
        %p472 = pneg %p239
      $region46: #{swin_forward.4} parent=11 // pred_check_branch
        %474 = sbr.rel (%p472) target = $region48
      $region47: #{swin_forward.4} parent=11 // pred_region
        _
      $region48: #{swin_forward.4} parent=11 // pred_fallthru
        _
      // Predicated region
      $region49: #{swin_forward.4} parent=11 // pred_check
        %p475 = pneg %p260
      $region50: #{swin_forward.4} parent=11 // pred_check_branch
        %477 = sbr.rel (%p475) target = $region52
      $region51: #{swin_forward.4} parent=11 // pred_region
        _
      $region52: #{swin_forward.4} parent=11 // pred_fallthru
        _
      // Predicated region
      $region53: #{swin_forward.4} parent=11 // pred_check
        %p478 = pneg %p281
      $region54: #{swin_forward.4} parent=11 // pred_check_branch
        %480 = sbr.rel (%p478) target = $region56
      $region55: #{swin_forward.4} parent=11 // pred_region
        _
      $region56: #{swin_forward.4} parent=11 // pred_fallthru
        _
      // Predicated region
      $region57: #{swin_forward.4} parent=11 // pred_check
        %p481 = pneg %p302
      $region58: #{swin_forward.4} parent=11 // pred_check_branch
        %483 = sbr.rel (%p481) target = $region60
      $region59: #{swin_forward.4} parent=11 // pred_region
        _
      $region60: #{swin_forward.4} parent=11 // pred_fallthru
        _
      // Predicated region
      $region61: #{swin_forward.4} parent=11 // pred_check
        %p484 = pneg %p323
      $region62: #{swin_forward.4} parent=11 // pred_check_branch
        %486 = sbr.rel (%p484) target = $region64
      $region63: #{swin_forward.4} parent=11 // pred_region
        _
      $region64: #{swin_forward.4} parent=11 // pred_fallthru
        _
      // Predicated region
      $region65: #{swin_forward.4} parent=11 // pred_check
        %p487 = pneg %p344
      $region66: #{swin_forward.4} parent=11 // pred_check_branch
        %489 = sbr.rel (%p487) target = $region68
      $region67: #{swin_forward.4} parent=11 // pred_region
        _
      $region68: #{swin_forward.4} parent=11 // pred_fallthru
        _
      // Predicated region
      $region69: #{swin_forward.4} parent=11 // pred_check
        %p490 = pneg %p365
      $region70: #{swin_forward.4} parent=11 // pred_check_branch
        %492 = sbr.rel (%p490) target = $region72
      $region71: #{swin_forward.4} parent=11 // pred_region
        _
      $region72: #{swin_forward.4} parent=11 // pred_fallthru
        _
      // Predicated region
      $region73: #{swin_forward.4} parent=11 // pred_check
        %p493 = pneg %p386
      $region74: #{swin_forward.4} parent=11 // pred_check_branch
        %495 = sbr.rel (%p493) target = $region76
      $region75: #{swin_forward.4} parent=11 // pred_region
        _
      $region76: #{swin_forward.4} parent=11 // pred_fallthru
        _
      // Predicated region
      $region77: #{swin_forward.4} parent=11 // pred_check
        %p496 = pneg %p407
      $region78: #{swin_forward.4} parent=11 // pred_check_branch
        %498 = sbr.rel (%p496) target = $region80
      $region79: #{swin_forward.4} parent=11 // pred_region
        _
      $region80: #{swin_forward.4} parent=11 // pred_fallthru
        _
    $region12: #{swin_forward.4} parent=5 // pred_fallthru
      _
    %p499 = scmp.lt.s32.totalorder %s24, 2
    // Predicated region
    $region81: #{swin_forward.4} parent=5 // pred_check
      %p500 = pneg %p499
    $region82: #{swin_forward.4} parent=5 // pred_check_branch
      %502 = sbr.rel (%p500) target = $region84
    $region83: #{swin_forward.4} parent=5 // pred_region
      // Predicated region
      $region85: #{swin_forward.4} parent=83 // pred_check
        %p503 = pneg %p44
      $region86: #{swin_forward.4} parent=83 // pred_check_branch
        %505 = sbr.rel (%p503) target = $region88
      $region87: #{swin_forward.4} parent=83 // pred_region
        %p506 = scmp.lt.s32.totalorder %s24, 1
        %s507 = scalar_select %p506, %s24, 1
        %s508 = smul.addr %s507, 8
        %s509 = smul.addr %s508, 8
        %s510 = scalar_lea.vmem %s0, %s509
      $region88: #{swin_forward.4} parent=83 // pred_fallthru
        _
    $region84: #{swin_forward.4} parent=5 // pred_fallthru
      _
    %p511 = scmp.le.s32.totalorder 1, %s24
    %p512 = scmp.lt.s32.totalorder %s24, 3
    %p513 = pnand %p511, %p512
    %p514 = pneg %p513
    // Predicated region
    $region89: #{swin_forward.4} parent=5 // pred_check
      _
    $region90: #{swin_forward.4} parent=5 // pred_check_branch
      %516 = sbr.rel (%p513) target = $region92
    $region91: #{swin_forward.4} parent=5 // pred_region
      %s517 = ssub.s32 %s24, 1
      %p518 = scmp.lt.s32.totalorder %s29, 1
      %s519 = scalar_select %p518, %s29, 1
      %s520 = smul.addr %s519, 8
      %s521 = smul.addr %s520, 8
      %s522 = scalar_lea.vmem %s0, %s521
      %p523 = pneg %p50
      %p524 = pneg %p47
      %p525 = pneg %p71
      %p526 = pneg %p68
      %p527 = pneg %p92
      %p528 = pneg %p89
      %p529 = pneg %p113
      %p530 = pneg %p110
      %p531 = pneg %p134
      %p532 = pneg %p131
      %p533 = pneg %p155
      %p534 = pneg %p152
      %p535 = pneg %p176
      %p536 = pneg %p173
      %p537 = pneg %p197
      %p538 = pneg %p194
      %p539 = pneg %p218
      %p540 = pneg %p215
      %p541 = pneg %p239
      %p542 = pneg %p236
      %p543 = pneg %p260
      %p544 = pneg %p257
      %p545 = pneg %p281
      %p546 = pneg %p278
      %p547 = pneg %p302
      %p548 = pneg %p299
      %p549 = pneg %p323
      %p550 = pneg %p320
      %p551 = pneg %p344
      %p552 = pneg %p341
      %p553 = pneg %p365
      %p554 = pneg %p362
      %p555 = pneg %p386
      %p556 = pneg %p383
      %p557 = pneg %p407
      %p558 = pneg %p404
      %p559 = pneg %p433
      %p560 = pneg %p430
      %p561 = scmp.lt.s32.totalorder %s29, 1
      %s562 = scalar_select %p561, %s29, 1
      %s563 = smul.addr %s562, 8
      %s564 = smul.addr %s563, 4
      %s565 = scalar_lea.vmem %s18, %s564
      %p566 = scmp.lt.s32.totalorder %s29, 1
      %s567 = scalar_select %p566, %s29, 1
      %s568 = smul.addr %s567, 8
      %s569 = smul.addr %s568, 8
      %s570 = scalar_lea.vmem %s0, %s569
      %p571 = scmp.lt.s32.totalorder %s29, 1
      %s572 = scalar_select %p571, %s29, 1
      %s573 = smul.addr %s572, 8
      %s574 = smul.addr %s573, 4
      %s575 = scalar_lea.vmem %s18, %s574
      %v577 = vld [vmem:[%s570] sm:$0xff]
      %v578 = vld [vmem:[%s570 + $0x8] sm:$0xff]
      %v579 = vld [vmem:[%s570 + $0x10] sm:$0xff]
      %v580 = vld [vmem:[%s570 + $0x18] sm:$0xff]
      %v581 = vld [vmem:[%s570 + $0x20] sm:$0xff]
      %v582 = vld [vmem:[%s570 + $0x28] sm:$0xff]
      %v583 = vld [vmem:[%s570 + $0x30] sm:$0xff]
      %v584 = vld [vmem:[%s570 + $0x38] sm:$0xff]
      %v585 = vpack.c.bf16 %v578, %v577
      %v586 = vpack.c.bf16 %v580, %v579
      %v587 = vpack.c.bf16 %v582, %v581
      %v588 = vpack.c.bf16 %v584, %v583
      %v589 = vld [vmem:[%s1] sm:$0xf]
      %v590 = vld [vmem:[%s1 + $0x4] sm:$0xf]
      %v591 = vld [vmem:[%s1 + $0x8] sm:$0xf]
      %v592 = vld [vmem:[%s1 + $0xc] sm:$0xf]
      %v593 = vld [vmem:[%s1 + $0x10] sm:$0xf]
      %v594 = vld [vmem:[%s1 + $0x14] sm:$0xf]
      %v595 = vld [vmem:[%s2] sm:$0x1]
      %v597 = vlaneseq
      %v598 = vshrl.u32 %v597, 7
      %v599 = vsub.s32 0, %v598
      %v600 = vrot.slane %v595, %v599
      %v608 = vunpack.c.l.b16 %v589
      %v609 = vunpack.c.l.b16 %v590
      %v610 = vunpack.c.l.b16 %v591
      %v611 = vunpack.c.l.b16 %v592
      %v612 = vunpack.c.l.b16 %v593
      %v613 = vunpack.c.l.b16 %v594
      %v614 = vpack.c.b16 %v609, %v608
      %v615 = vpack.c.b16 %v611, %v610
      %v616 = vpack.c.b16 %v613, %v612
      %vm620 = vcmask 392192
      %v622 = vsel %vm620, %v585, 0
      %v625 = vsel %vm620, %v586, 0
      %v628 = vsel %vm620, %v587, 0
      %v631 = vsel %vm620, %v588, 0
      %633 = vmatprep.subr.bf16.mxu0 0
      %634 = vmatpush1.bf16.msra.mxu0 0
      %635 = vmatprep.subr.bf16.mxu0 0
      %636 = vmatpush1.bf16.msra.mxu0 0
      %637 = vmatprep.subr.bf16.mxu0 0
      %638 = vmatpush1.bf16.msra.mxu0 0
      %639 = vmatprep.subr.bf16.mxu0 0
      %640 = vmatpush1.bf16.msra.mxu0 0
      %641 = vmatprep.subr.bf16.mxu0 0
      %642 = vmatpush1.bf16.msra.mxu0 0
      %643 = vmatprep.subr.bf16.mxu0 0
      %644 = vmatpush1.bf16.msra.mxu0 %v616
      %645 = vmatprep.subr.bf16.mxu0 0
      %646 = vmatpush1.bf16.msra.mxu0 %v615
      %647 = vmatprep.subr.bf16.mxu0 0
      %648 = vmatpush1.bf16.msra.mxu0 %v614
      %649 = vmatprep.subr.bf16.mxu0 0
      %650 = vmatpush2.bf16.msra.mxu0 0
      %651 = vmatprep.subr.bf16.mxu0 0
      %652 = vmatpush2.bf16.msra.mxu0 0
      %653 = vmatprep.subr.bf16.mxu0 0
      %654 = vmatpush2.bf16.msra.mxu0 0
      %655 = vmatprep.subr.bf16.mxu0 0
      %656 = vmatpush2.bf16.msra.mxu0 0
      %657 = vmatprep.subr.bf16.mxu0 0
      %658 = vmatpush2.bf16.msra.mxu0 0
      %659 = vmatprep.subr.bf16.mxu0 0
      %660 = vmatpush2.bf16.msra.mxu0 0
      %661 = vmatprep.subr.bf16.mxu0 0
      %662 = vmatpush2.bf16.msra.mxu0 0
      %663 = vmatprep.subr.bf16.mxu0 0
      %664 = vmatpush2.bf16.msra.mxu0 0
      %665 = vmatprep.mubr.bf16.mxu0 0
      %666 = vmatmul.mubr.bf16.gmra.mxu0 %v622
      %v667 = vpop.f32.mrf.mxu0
      %v668 = vadd.f32 %v600, %v667
      %v669 = vpop.f32.mrf.mxu0
      %v670 = vpop.f32.mrf.mxu0
      %v671 = vadd.f32 %v600, %v670
      %v672 = vpop.f32.mrf.mxu0
      %673 = vmatprep.mubr.bf16.mxu0 0
      %674 = vmatmul.mubr.bf16.gmra.mxu0 %v625
      %v675 = vpop.f32.mrf.mxu0
      %v676 = vadd.f32 %v600, %v675
      %v677 = vpop.f32.mrf.mxu0
      %v678 = vpop.f32.mrf.mxu0
      %v679 = vadd.f32 %v600, %v678
      %v680 = vpop.f32.mrf.mxu0
      %681 = vmatprep.mubr.bf16.mxu0 0
      %682 = vmatmul.mubr.bf16.gmra.mxu0 %v628
      %v683 = vpop.f32.mrf.mxu0
      %v684 = vadd.f32 %v600, %v683
      %v685 = vpop.f32.mrf.mxu0
      %v686 = vpop.f32.mrf.mxu0
      %v687 = vadd.f32 %v600, %v686
      %v688 = vpop.f32.mrf.mxu0
      %689 = vmatprep.mubr.bf16.mxu0 0
      %690 = vmatmul.mubr.bf16.gmra.mxu0 %v631
      %v691 = vpop.f32.mrf.mxu0
      %v692 = vadd.f32 %v600, %v691
      %v693 = vpop.f32.mrf.mxu0
      %v694 = vpop.f32.mrf.mxu0
      %v695 = vadd.f32 %v600, %v694
      %v696 = vpop.f32.mrf.mxu0
      %697 = vdwg.mxu0
      %v698 = vld [vmem:[%s3] sm:$0x1]
      %v699 = vld [vmem:[%s4] sm:$0x1]
      %vm700 = vcmask 261120
      %v701 = vsel %vm700, %v668, 0.0
      %702 = vadd.xlane.f32.xlu0 %v701
      %v703 = vpop.xlane.xlu0 %702
      %v704 = vsel %vm700, %v671, 0.0
      %705 = vadd.xlane.f32.xlu0 %v704
      %v706 = vpop.xlane.xlu0 %705
      %v707 = vsel %vm700, %v676, 0.0
      %708 = vadd.xlane.f32.xlu0 %v707
      %v709 = vpop.xlane.xlu0 %708
      %v710 = vsel %vm700, %v679, 0.0
      %711 = vadd.xlane.f32.xlu0 %v710
      %v712 = vpop.xlane.xlu0 %711
      %v713 = vsel %vm700, %v684, 0.0
      %714 = vadd.xlane.f32.xlu0 %v713
      %v715 = vpop.xlane.xlu0 %714
      %v716 = vsel %vm700, %v687, 0.0
      %717 = vadd.xlane.f32.xlu0 %v716
      %v718 = vpop.xlane.xlu0 %717
      %v719 = vsel %vm700, %v692, 0.0
      %720 = vadd.xlane.f32.xlu0 %v719
      %v721 = vpop.xlane.xlu0 %720
      %v722 = vsel %vm700, %v695, 0.0
      %723 = vadd.xlane.f32.xlu0 %v722
      %v724 = vpop.xlane.xlu0 %723
      %v725 = vrcp.pop 32.0
      %v726 = vmul.f32 %v703, %v725
      %v727 = vmul.f32 %v706, %v725
      %v728 = vmul.f32 %v709, %v725
      %v729 = vmul.f32 %v712, %v725
      %v730 = vmul.f32 %v715, %v725
      %v731 = vmul.f32 %v718, %v725
      %v732 = vmul.f32 %v721, %v725
      %v733 = vmul.f32 %v724, %v725
      %v734 = vsub.f32 %v668, %v726
      %v735 = vsub.f32 %v671, %v727
      %v736 = vsub.f32 %v676, %v728
      %v737 = vsub.f32 %v679, %v729
      %v738 = vsub.f32 %v684, %v730
      %v739 = vsub.f32 %v687, %v731
      %v740 = vsub.f32 %v692, %v732
      %v741 = vsub.f32 %v695, %v733
      %v742 = vmul.f32 %v734, %v734
      %v743 = vmul.f32 %v735, %v735
      %v744 = vmul.f32 %v736, %v736
      %v745 = vmul.f32 %v737, %v737
      %v746 = vmul.f32 %v738, %v738
      %v747 = vmul.f32 %v739, %v739
      %v748 = vmul.f32 %v740, %v740
      %v749 = vmul.f32 %v741, %v741
      %v750 = vsel %vm700, %v742, 0.0
      %751 = vadd.xlane.f32.xlu0 %v750
      %v752 = vpop.xlane.xlu0 %751
      %v753 = vsel %vm700, %v743, 0.0
      %754 = vadd.xlane.f32.xlu0 %v753
      %v755 = vpop.xlane.xlu0 %754
      %v756 = vsel %vm700, %v744, 0.0
      %757 = vadd.xlane.f32.xlu0 %v756
      %v758 = vpop.xlane.xlu0 %757
      %v759 = vsel %vm700, %v745, 0.0
      %760 = vadd.xlane.f32.xlu0 %v759
      %v761 = vpop.xlane.xlu0 %760
      %v762 = vsel %vm700, %v746, 0.0
      %763 = vadd.xlane.f32.xlu0 %v762
      %v764 = vpop.xlane.xlu0 %763
      %v765 = vsel %vm700, %v747, 0.0
      %766 = vadd.xlane.f32.xlu0 %v765
      %v767 = vpop.xlane.xlu0 %766
      %v768 = vsel %vm700, %v748, 0.0
      %769 = vadd.xlane.f32.xlu0 %v768
      %v770 = vpop.xlane.xlu0 %769
      %v771 = vsel %vm700, %v749, 0.0
      %772 = vadd.xlane.f32.xlu0 %v771
      %v773 = vpop.xlane.xlu0 %772
      %v774 = vmul.f32 %v752, %v725
      %v775 = vmul.f32 %v755, %v725
      %v776 = vmul.f32 %v758, %v725
      %v777 = vmul.f32 %v761, %v725
      %v778 = vmul.f32 %v764, %v725
      %v779 = vmul.f32 %v767, %v725
      %v780 = vmul.f32 %v770, %v725
      %v781 = vmul.f32 %v773, %v725
      %v782 = vadd.f32 %v774, 1e-05
      %v783 = vadd.f32 %v775, 1e-05
      %v784 = vadd.f32 %v776, 1e-05
      %v785 = vadd.f32 %v777, 1e-05
      %v786 = vadd.f32 %v778, 1e-05
      %v787 = vadd.f32 %v779, 1e-05
      %v788 = vadd.f32 %v780, 1e-05
      %v789 = vadd.f32 %v781, 1e-05
      %v790 = vrsqrt.pop %v782
      %v791 = vrsqrt.pop %v783
      %v792 = vrsqrt.pop %v784
      %v793 = vrsqrt.pop %v785
      %v794 = vrsqrt.pop %v786
      %v795 = vrsqrt.pop %v787
      %v796 = vrsqrt.pop %v788
      %v797 = vrsqrt.pop %v789
      %v798 = vmul.f32 %v734, %v790
      %v799 = vmul.f32 %v735, %v791
      %v800 = vmul.f32 %v736, %v792
      %v801 = vmul.f32 %v737, %v793
      %v802 = vmul.f32 %v738, %v794
      %v803 = vmul.f32 %v739, %v795
      %v804 = vmul.f32 %v740, %v796
      %v805 = vmul.f32 %v741, %v797
      %v807 = vlaneseq
      %v808 = vshrl.u32 %v807, 7
      %v809 = vsub.s32 0, %v808
      %v810 = vrot.slane %v698, %v809
      %v812 = vmul.f32 %v798, %v810
      %v813 = vmul.f32 %v799, %v810
      %v814 = vmul.f32 %v800, %v810
      %v815 = vmul.f32 %v801, %v810
      %v816 = vmul.f32 %v802, %v810
      %v817 = vmul.f32 %v803, %v810
      %v818 = vmul.f32 %v804, %v810
      %v819 = vmul.f32 %v805, %v810
      %v821 = vlaneseq
      %v822 = vshrl.u32 %v821, 7
      %v823 = vsub.s32 0, %v822
      %v824 = vrot.slane %v699, %v823
      %v826 = vadd.f32 %v812, %v824
      %v827 = vadd.f32 %v813, %v824
      %v828 = vadd.f32 %v814, %v824
      %v829 = vadd.f32 %v815, %v824
      %v830 = vadd.f32 %v816, %v824
      %v831 = vadd.f32 %v817, %v824
      %v832 = vadd.f32 %v818, %v824
      %v833 = vadd.f32 %v819, %v824
      %v834 = vld [vmem:[%s6] sm:$0x1]
      %v835 = vld [vmem:[%s7] sm:$0x1]
      %v836 = vsel %vm700, %v826, 0.0
      %837 = vadd.xlane.f32.xlu0 %v836
      %v838 = vpop.xlane.xlu0 %837
      %v839 = vsel %vm700, %v827, 0.0
      %840 = vadd.xlane.f32.xlu0 %v839
      %v841 = vpop.xlane.xlu0 %840
      %v842 = vsel %vm700, %v828, 0.0
      %843 = vadd.xlane.f32.xlu0 %v842
      %v844 = vpop.xlane.xlu0 %843
      %v845 = vsel %vm700, %v829, 0.0
      %846 = vadd.xlane.f32.xlu0 %v845
      %v847 = vpop.xlane.xlu0 %846
      %v848 = vsel %vm700, %v830, 0.0
      %849 = vadd.xlane.f32.xlu0 %v848
      %v850 = vpop.xlane.xlu0 %849
      %v851 = vsel %vm700, %v831, 0.0
      %852 = vadd.xlane.f32.xlu0 %v851
      %v853 = vpop.xlane.xlu0 %852
      %v854 = vsel %vm700, %v832, 0.0
      %855 = vadd.xlane.f32.xlu0 %v854
      %v856 = vpop.xlane.xlu0 %855
      %v857 = vsel %vm700, %v833, 0.0
      %858 = vadd.xlane.f32.xlu0 %v857
      %v859 = vpop.xlane.xlu0 %858
      %v860 = vmul.f32 %v838, %v725
      %v861 = vmul.f32 %v841, %v725
      %v862 = vmul.f32 %v844, %v725
      %v863 = vmul.f32 %v847, %v725
      %v864 = vmul.f32 %v850, %v725
      %v865 = vmul.f32 %v853, %v725
      %v866 = vmul.f32 %v856, %v725
      %v867 = vmul.f32 %v859, %v725
      %v868 = vsub.f32 %v826, %v860
      %v869 = vsub.f32 %v827, %v861
      %v870 = vsub.f32 %v828, %v862
      %v871 = vsub.f32 %v829, %v863
      %v872 = vsub.f32 %v830, %v864
      %v873 = vsub.f32 %v831, %v865
      %v874 = vsub.f32 %v832, %v866
      %v875 = vsub.f32 %v833, %v867
      %v876 = vmul.f32 %v868, %v868
      %v877 = vmul.f32 %v869, %v869
      %v878 = vmul.f32 %v870, %v870
      %v879 = vmul.f32 %v871, %v871
      %v880 = vmul.f32 %v872, %v872
      %v881 = vmul.f32 %v873, %v873
      %v882 = vmul.f32 %v874, %v874
      %v883 = vmul.f32 %v875, %v875
      %v884 = vsel %vm700, %v876, 0.0
      %885 = vadd.xlane.f32.xlu0 %v884
      %v886 = vpop.xlane.xlu0 %885
      %v887 = vsel %vm700, %v877, 0.0
      %888 = vadd.xlane.f32.xlu0 %v887
      %v889 = vpop.xlane.xlu0 %888
      %v890 = vsel %vm700, %v878, 0.0
      %891 = vadd.xlane.f32.xlu0 %v890
      %v892 = vpop.xlane.xlu0 %891
      %v893 = vsel %vm700, %v879, 0.0
      %894 = vadd.xlane.f32.xlu0 %v893
      %v895 = vpop.xlane.xlu0 %894
      %v896 = vsel %vm700, %v880, 0.0
      %897 = vadd.xlane.f32.xlu0 %v896
      %v898 = vpop.xlane.xlu0 %897
      %v899 = vsel %vm700, %v881, 0.0
      %900 = vadd.xlane.f32.xlu0 %v899
      %v901 = vpop.xlane.xlu0 %900
      %v902 = vsel %vm700, %v882, 0.0
      %903 = vadd.xlane.f32.xlu0 %v902
      %v904 = vpop.xlane.xlu0 %903
      %v905 = vsel %vm700, %v883, 0.0
      %906 = vadd.xlane.f32.xlu0 %v905
      %v907 = vpop.xlane.xlu0 %906
      %v908 = vmul.f32 %v886, %v725
      %v909 = vmul.f32 %v889, %v725
      %v910 = vmul.f32 %v892, %v725
      %v911 = vmul.f32 %v895, %v725
      %v912 = vmul.f32 %v898, %v725
      %v913 = vmul.f32 %v901, %v725
      %v914 = vmul.f32 %v904, %v725
      %v915 = vmul.f32 %v907, %v725
      %v916 = vadd.f32 %v908, 1e-05
      %v917 = vadd.f32 %v909, 1e-05
      %v918 = vadd.f32 %v910, 1e-05
      %v919 = vadd.f32 %v911, 1e-05
      %v920 = vadd.f32 %v912, 1e-05
      %v921 = vadd.f32 %v913, 1e-05
      %v922 = vadd.f32 %v914, 1e-05
      %v923 = vadd.f32 %v915, 1e-05
      %v924 = vrsqrt.pop %v916
      %v925 = vrsqrt.pop %v917
      %v926 = vrsqrt.pop %v918
      %v927 = vrsqrt.pop %v919
      %v928 = vrsqrt.pop %v920
      %v929 = vrsqrt.pop %v921
      %v930 = vrsqrt.pop %v922
      %v931 = vrsqrt.pop %v923
      %v932 = vmul.f32 %v868, %v924
      %v933 = vmul.f32 %v869, %v925
      %v934 = vmul.f32 %v870, %v926
      %v935 = vmul.f32 %v871, %v927
      %v936 = vmul.f32 %v872, %v928
      %v937 = vmul.f32 %v873, %v929
      %v938 = vmul.f32 %v874, %v930
      %v939 = vmul.f32 %v875, %v931
      %v941 = vlaneseq
      %v942 = vshrl.u32 %v941, 7
      %v943 = vsub.s32 0, %v942
      %v944 = vrot.slane %v834, %v943
      %v946 = vmul.f32 %v932, %v944
      %v947 = vmul.f32 %v933, %v944
      %v948 = vmul.f32 %v934, %v944
      %v949 = vmul.f32 %v935, %v944
      %v950 = vmul.f32 %v936, %v944
      %v951 = vmul.f32 %v937, %v944
      %v952 = vmul.f32 %v938, %v944
      %v953 = vmul.f32 %v939, %v944
      %v955 = vlaneseq
      %v956 = vshrl.u32 %v955, 7
      %v957 = vsub.s32 0, %v956
      %v958 = vrot.slane %v835, %v957
      %v960 = vadd.f32 %v946, %v958
      %v961 = vadd.f32 %v947, %v958
      %v962 = vadd.f32 %v948, %v958
      %v963 = vadd.f32 %v949, %v958
      %v964 = vadd.f32 %v950, %v958
      %v965 = vadd.f32 %v951, %v958
      %v966 = vadd.f32 %v952, %v958
      %v967 = vadd.f32 %v953, %v958
      %v968 = vpack.c.bf16 %v961, %v960
      %v969 = vpack.c.bf16 %v963, %v962
      %v970 = vpack.c.bf16 %v965, %v964
      %v971 = vpack.c.bf16 %v967, %v966
      %v972 = vld [vmem:[%s8] sm:$0xf]
      %v973 = vld [vmem:[%s8 + $0x4] sm:$0xf]
      %v974 = vld [vmem:[%s8 + $0x8] sm:$0xf]
      %v975 = vld [vmem:[%s8 + $0xc] sm:$0xf]
      %v976 = vld [vmem:[%s9] sm:$0x1]
      %v978 = vlaneseq
      %v979 = vshrl.u32 %v978, 7
      %v980 = vsub.s32 0, %v979
      %v981 = vrot.slane %v976, %v980
      %v987 = vunpack.c.l.b16 %v972
      %v988 = vunpack.c.l.b16 %v973
      %v989 = vunpack.c.l.b16 %v974
      %v990 = vunpack.c.l.b16 %v975
      %v991 = vpack.c.b16 %v988, %v987
      %v992 = vpack.c.b16 %v990, %v989
      %v996 = vsel %vm700, %v968, 0
      %v999 = vsel %vm700, %v969, 0
      %v1002 = vsel %vm700, %v970, 0
      %v1005 = vsel %vm700, %v971, 0
      %1007 = vmatprep.subr.bf16.mxu0 0
      %1008 = vmatpush1.bf16.msra.mxu0 0
      %1009 = vmatprep.subr.bf16.mxu0 0
      %1010 = vmatpush1.bf16.msra.mxu0 0
      %1011 = vmatprep.subr.bf16.mxu0 0
      %1012 = vmatpush1.bf16.msra.mxu0 0
      %1013 = vmatprep.subr.bf16.mxu0 0
      %1014 = vmatpush1.bf16.msra.mxu0 0
      %1015 = vmatprep.subr.bf16.mxu0 0
      %1016 = vmatpush1.bf16.msra.mxu0 0
      %1017 = vmatprep.subr.bf16.mxu0 0
      %1018 = vmatpush1.bf16.msra.mxu0 0
      %1019 = vmatprep.subr.bf16.mxu0 0
      %1020 = vmatpush1.bf16.msra.mxu0 %v992
      %1021 = vmatprep.subr.bf16.mxu0 0
      %1022 = vmatpush1.bf16.msra.mxu0 %v991
      %1023 = vmatprep.subr.bf16.mxu0 0
      %1024 = vmatpush2.bf16.msra.mxu0 0
      %1025 = vmatprep.subr.bf16.mxu0 0
      %1026 = vmatpush2.bf16.msra.mxu0 0
      %1027 = vmatprep.subr.bf16.mxu0 0
      %1028 = vmatpush2.bf16.msra.mxu0 0
      %1029 = vmatprep.subr.bf16.mxu0 0
      %1030 = vmatpush2.bf16.msra.mxu0 0
      %1031 = vmatprep.subr.bf16.mxu0 0
      %1032 = vmatpush2.bf16.msra.mxu0 0
      %1033 = vmatprep.subr.bf16.mxu0 0
      %1034 = vmatpush2.bf16.msra.mxu0 0
      %1035 = vmatprep.subr.bf16.mxu0 0
      %1036 = vmatpush2.bf16.msra.mxu0 0
      %1037 = vmatprep.subr.bf16.mxu0 0
      %1038 = vmatpush2.bf16.msra.mxu0 0
      %1039 = vmatprep.mubr.bf16.mxu0 0
      %1040 = vmatmul.mubr.bf16.gmra.mxu0 %v996
      %v1041 = vpop.f32.mrf.mxu0
      %v1042 = vadd.f32 %v981, %v1041
      %v1043 = vpop.f32.mrf.mxu0
      %v1044 = vpop.f32.mrf.mxu0
      %v1045 = vadd.f32 %v981, %v1044
      %v1046 = vpop.f32.mrf.mxu0
      %1047 = vmatprep.mubr.bf16.mxu0 0
      %1048 = vmatmul.mubr.bf16.gmra.mxu0 %v999
      %v1049 = vpop.f32.mrf.mxu0
      %v1050 = vadd.f32 %v981, %v1049
      %v1051 = vpop.f32.mrf.mxu0
      %v1052 = vpop.f32.mrf.mxu0
      %v1053 = vadd.f32 %v981, %v1052
      %v1054 = vpop.f32.mrf.mxu0
      %1055 = vmatprep.mubr.bf16.mxu0 0
      %1056 = vmatmul.mubr.bf16.gmra.mxu0 %v1002
      %v1057 = vpop.f32.mrf.mxu0
      %v1058 = vadd.f32 %v981, %v1057
      %v1059 = vpop.f32.mrf.mxu0
      %v1060 = vpop.f32.mrf.mxu0
      %v1061 = vadd.f32 %v981, %v1060
      %v1062 = vpop.f32.mrf.mxu0
      %1063 = vmatprep.mubr.bf16.mxu0 0
      %1064 = vmatmul.mubr.bf16.gmra.mxu0 %v1005
      %v1065 = vpop.f32.mrf.mxu0
      %v1066 = vadd.f32 %v981, %v1065
      %v1067 = vpop.f32.mrf.mxu0
      %v1068 = vpop.f32.mrf.mxu0
      %v1069 = vadd.f32 %v981, %v1068
      %v1070 = vpop.f32.mrf.mxu0
      %1071 = vdwg.mxu0
      %v1072 = vpack.c.bf16 %v1045, %v1042
      %v1073 = vpack.c.bf16 %v1053, %v1050
      %v1074 = vpack.c.bf16 %v1061, %v1058
      %v1075 = vpack.c.bf16 %v1069, %v1066
      %v1076 = vld [vmem:[%s5] sm:$0xff]
      %v1077 = vld [vmem:[%s5 + $0x8] sm:$0xff]
      %v1078 = vld [vmem:[%s5 + $0x10] sm:$0xff]
      %v1079 = vld [vmem:[%s5 + $0x18] sm:$0xff]
      %v1080 = vld [vmem:[%s5 + $0x20] sm:$0xff]
      %v1081 = vld [vmem:[%s5 + $0x28] sm:$0xff]
      %v1082 = vld [vmem:[%s5 + $0x30] sm:$0xff]
      %v1083 = vld [vmem:[%s5 + $0x38] sm:$0xff]
      %1088 = vrot.lane.b32.xlu0 %v1072, 96
      %v1089 = vpop.permute.xlu0 %1088
      %1090 = vrot.lane.b32.xlu0 %v1073, 96
      %v1091 = vpop.permute.xlu0 %1090
      %1092 = vrot.lane.b32.xlu0 %v1074, 96
      %v1093 = vpop.permute.xlu0 %1092
      %1094 = vrot.lane.b32.xlu0 %v1075, 96
      %v1095 = vpop.permute.xlu0 %1094
      %vm1096 = vcmask 130048
      %v1098 = vsel %vm1096, %v1072, 0
      %v1101 = vsel %vm1096, %v1073, 0
      %v1104 = vsel %vm1096, %v1074, 0
      %v1107 = vsel %vm1096, %v1075, 0
      %v1110 = vsel %vm1096, %v1089, 0
      %v1113 = vsel %vm1096, %v1091, 0
      %v1116 = vsel %vm1096, %v1093, 0
      %v1119 = vsel %vm1096, %v1095, 0
      %1121 = vmatprep.subr.bf16.mxu0 0
      %1122 = vmatpush1.bf16.xpose.msra.mxu0 0
      %1123 = vmatprep.subr.bf16.mxu0 0
      %1124 = vmatpush1.bf16.xpose.msra.mxu0 0
      %1125 = vmatprep.subr.bf16.mxu0 0
      %1126 = vmatpush1.bf16.xpose.msra.mxu0 0
      %1127 = vmatprep.subr.bf16.mxu0 0
      %1128 = vmatpush1.bf16.xpose.msra.mxu0 0
      %1129 = vmatprep.subr.bf16.mxu0 0
      %1130 = vmatpush1.bf16.xpose.msra.mxu0 %v1119
      %1131 = vmatprep.subr.bf16.mxu0 0
      %1132 = vmatpush1.bf16.xpose.msra.mxu0 %v1116
      %1133 = vmatprep.subr.bf16.mxu0 0
      %1134 = vmatpush1.bf16.xpose.msra.mxu0 %v1113
      %1135 = vmatprep.subr.bf16.mxu0 0
      %1136 = vmatpush1.bf16.xpose.msra.mxu0 %v1110
      %1137 = vmatprep.subr.bf16.mxu0 0
      %1138 = vmatpush2.bf16.xpose.msra.mxu0 0
      %1139 = vmatprep.subr.bf16.mxu0 0
      %1140 = vmatpush2.bf16.xpose.msra.mxu0 0
      %1141 = vmatprep.subr.bf16.mxu0 0
      %1142 = vmatpush2.bf16.xpose.msra.mxu0 0
      %1143 = vmatprep.subr.bf16.mxu0 0
      %1144 = vmatpush2.bf16.xpose.msra.mxu0 0
      %1145 = vmatprep.subr.bf16.mxu0 0
      %1146 = vmatpush2.bf16.xpose.msra.mxu0 0
      %1147 = vmatprep.subr.bf16.mxu0 0
      %1148 = vmatpush2.bf16.xpose.msra.mxu0 0
      %1149 = vmatprep.subr.bf16.mxu0 0
      %1150 = vmatpush2.bf16.xpose.msra.mxu0 0
      %1151 = vmatprep.subr.bf16.mxu0 0
      %1152 = vmatpush2.bf16.xpose.msra.mxu0 0
      %1153 = vmatprep.mubr.bf16.mxu0 0
      %1154 = vmatmul.mubr.bf16.gmra.mxu0 %v1098
      %v1155 = vpop.f32.mrf.mxu0
      %v1156 = vadd.f32 %v1076, %v1155
      %v1157 = vpop.f32.mrf.mxu0
      %v1158 = vpop.f32.mrf.mxu0
      %v1159 = vadd.f32 %v1077, %v1158
      %v1160 = vpop.f32.mrf.mxu0
      %1161 = vmatprep.mubr.bf16.mxu0 0
      %1162 = vmatmul.mubr.bf16.gmra.mxu0 %v1101
      %v1163 = vpop.f32.mrf.mxu0
      %v1164 = vadd.f32 %v1078, %v1163
      %v1165 = vpop.f32.mrf.mxu0
      %v1166 = vpop.f32.mrf.mxu0
      %v1167 = vadd.f32 %v1079, %v1166
      %v1168 = vpop.f32.mrf.mxu0
      %1169 = vmatprep.mubr.bf16.mxu0 0
      %1170 = vmatmul.mubr.bf16.gmra.mxu0 %v1104
      %v1171 = vpop.f32.mrf.mxu0
      %v1172 = vadd.f32 %v1080, %v1171
      %v1173 = vpop.f32.mrf.mxu0
      %v1174 = vpop.f32.mrf.mxu0
      %v1175 = vadd.f32 %v1081, %v1174
      %v1176 = vpop.f32.mrf.mxu0
      %1177 = vmatprep.mubr.bf16.mxu0 0
      %1178 = vmatmul.mubr.bf16.gmra.mxu0 %v1107
      %v1179 = vpop.f32.mrf.mxu0
      %v1180 = vadd.f32 %v1082, %v1179
      %v1181 = vpop.f32.mrf.mxu0
      %v1182 = vpop.f32.mrf.mxu0
      %v1183 = vadd.f32 %v1083, %v1182
      %v1184 = vpop.f32.mrf.mxu0
      %1185 = vdwg.mxu0
      %vm1186 = vcmask 523264
      %v1187 = vsel %vm1186, %v1156, -inf
      %1188 = vmax.xlane.f32.xlu0 %v1187
      %v1189 = vpop.xlane.xlu0 %1188
      %v1190 = vsel %vm1186, %v1159, -inf
      %1191 = vmax.xlane.f32.xlu0 %v1190
      %v1192 = vpop.xlane.xlu0 %1191
      %v1193 = vsel %vm1186, %v1164, -inf
      %1194 = vmax.xlane.f32.xlu0 %v1193
      %v1195 = vpop.xlane.xlu0 %1194
      %v1196 = vsel %vm1186, %v1167, -inf
      %1197 = vmax.xlane.f32.xlu0 %v1196
      %v1198 = vpop.xlane.xlu0 %1197
      %v1199 = vsel %vm1186, %v1172, -inf
      %1200 = vmax.xlane.f32.xlu0 %v1199
      %v1201 = vpop.xlane.xlu0 %1200
      %v1202 = vsel %vm1186, %v1175, -inf
      %1203 = vmax.xlane.f32.xlu0 %v1202
      %v1204 = vpop.xlane.xlu0 %1203
      %v1205 = vsel %vm1186, %v1180, -inf
      %1206 = vmax.xlane.f32.xlu0 %v1205
      %v1207 = vpop.xlane.xlu0 %1206
      %v1208 = vsel %vm1186, %v1183, -inf
      %1209 = vmax.xlane.f32.xlu0 %v1208
      %v1210 = vpop.xlane.xlu0 %1209
      %v1211 = vsub.f32 %v1156, %v1189
      %v1212 = vsub.f32 %v1159, %v1192
      %v1213 = vsub.f32 %v1164, %v1195
      %v1214 = vsub.f32 %v1167, %v1198
      %v1215 = vsub.f32 %v1172, %v1201
      %v1216 = vsub.f32 %v1175, %v1204
      %v1217 = vsub.f32 %v1180, %v1207
      %v1218 = vsub.f32 %v1183, %v1210
      %v1219 = vmul.f32 %v1211, 1.442695
      %v1220 = vpow.pop %v1219
      %v1221 = vmul.f32 %v1212, 1.442695
      %v1222 = vpow.pop %v1221
      %v1223 = vmul.f32 %v1213, 1.442695
      %v1224 = vpow.pop %v1223
      %v1225 = vmul.f32 %v1214, 1.442695
      %v1226 = vpow.pop %v1225
      %v1227 = vmul.f32 %v1215, 1.442695
      %v1228 = vpow.pop %v1227
      %v1229 = vmul.f32 %v1216, 1.442695
      %v1230 = vpow.pop %v1229
      %v1231 = vmul.f32 %v1217, 1.442695
      %v1232 = vpow.pop %v1231
      %v1233 = vmul.f32 %v1218, 1.442695
      %v1234 = vpow.pop %v1233
      %v1235 = vsel %vm1186, %v1220, 0.0
      %1236 = vadd.xlane.f32.xlu0 %v1235
      %v1237 = vpop.xlane.xlu0 %1236
      %v1238 = vsel %vm1186, %v1222, 0.0
      %1239 = vadd.xlane.f32.xlu0 %v1238
      %v1240 = vpop.xlane.xlu0 %1239
      %v1241 = vsel %vm1186, %v1224, 0.0
      %1242 = vadd.xlane.f32.xlu0 %v1241
      %v1243 = vpop.xlane.xlu0 %1242
      %v1244 = vsel %vm1186, %v1226, 0.0
      %1245 = vadd.xlane.f32.xlu0 %v1244
      %v1246 = vpop.xlane.xlu0 %1245
      %v1247 = vsel %vm1186, %v1228, 0.0
      %1248 = vadd.xlane.f32.xlu0 %v1247
      %v1249 = vpop.xlane.xlu0 %1248
      %v1250 = vsel %vm1186, %v1230, 0.0
      %1251 = vadd.xlane.f32.xlu0 %v1250
      %v1252 = vpop.xlane.xlu0 %1251
      %v1253 = vsel %vm1186, %v1232, 0.0
      %1254 = vadd.xlane.f32.xlu0 %v1253
      %v1255 = vpop.xlane.xlu0 %1254
      %v1256 = vsel %vm1186, %v1234, 0.0
      %1257 = vadd.xlane.f32.xlu0 %v1256
      %v1258 = vpop.xlane.xlu0 %1257
      %v1259 = vrcp.pop %v1237
      %v1260 = vrcp.pop %v1240
      %v1261 = vrcp.pop %v1243
      %v1262 = vrcp.pop %v1246
      %v1263 = vrcp.pop %v1249
      %v1264 = vrcp.pop %v1252
      %v1265 = vrcp.pop %v1255
      %v1266 = vrcp.pop %v1258
      %v1267 = vmul.f32 %v1220, %v1259
      %v1268 = vmul.f32 %v1222, %v1260
      %v1269 = vmul.f32 %v1224, %v1261
      %v1270 = vmul.f32 %v1226, %v1262
      %v1271 = vmul.f32 %v1228, %v1263
      %v1272 = vmul.f32 %v1230, %v1264
      %v1273 = vmul.f32 %v1232, %v1265
      %v1274 = vmul.f32 %v1234, %v1266
      %v1275 = vpack.c.bf16 %v1268, %v1267
      %v1276 = vpack.c.bf16 %v1270, %v1269
      %v1277 = vpack.c.bf16 %v1272, %v1271
      %v1278 = vpack.c.bf16 %v1274, %v1273
      %1279 = vrot.lane.b32.xlu0 %v1072, 64
      %v1280 = vpop.permute.xlu0 %1279
      %1281 = vrot.lane.b32.xlu0 %v1073, 64
      %v1282 = vpop.permute.xlu0 %1281
      %1283 = vrot.lane.b32.xlu0 %v1074, 64
      %v1284 = vpop.permute.xlu0 %1283
      %1285 = vrot.lane.b32.xlu0 %v1075, 64
      %v1286 = vpop.permute.xlu0 %1285
      %v1292 = vsel %vm1186, %v1275, 0
      %v1295 = vsel %vm1186, %v1276, 0
      %v1298 = vsel %vm1186, %v1277, 0
      %v1301 = vsel %vm1186, %v1278, 0
      %1303 = vmatprep.subr.bf16.mxu0 0
      %1304 = vmatpush1.bf16.msra.mxu0 0
      %1305 = vmatprep.subr.bf16.mxu0 0
      %1306 = vmatpush1.bf16.msra.mxu0 0
      %1307 = vmatprep.subr.bf16.mxu0 0
      %1308 = vmatpush1.bf16.msra.mxu0 0
      %1309 = vmatprep.subr.bf16.mxu0 0
      %1310 = vmatpush1.bf16.msra.mxu0 0
      %1311 = vmatprep.subr.bf16.mxu0 0
      %1312 = vmatpush1.bf16.msra.mxu0 %v1286
      %1313 = vmatprep.subr.bf16.mxu0 0
      %1314 = vmatpush1.bf16.msra.mxu0 %v1284
      %1315 = vmatprep.subr.bf16.mxu0 0
      %1316 = vmatpush1.bf16.msra.mxu0 %v1282
      %1317 = vmatprep.subr.bf16.mxu0 0
      %1318 = vmatpush1.bf16.msra.mxu0 %v1280
      %1319 = vmatprep.subr.bf16.mxu0 0
      %1320 = vmatpush2.bf16.msra.mxu0 0
      %1321 = vmatprep.subr.bf16.mxu0 0
      %1322 = vmatpush2.bf16.msra.mxu0 0
      %1323 = vmatprep.subr.bf16.mxu0 0
      %1324 = vmatpush2.bf16.msra.mxu0 0
      %1325 = vmatprep.subr.bf16.mxu0 0
      %1326 = vmatpush2.bf16.msra.mxu0 0
      %1327 = vmatprep.subr.bf16.mxu0 0
      %1328 = vmatpush2.bf16.msra.mxu0 0
      %1329 = vmatprep.subr.bf16.mxu0 0
      %1330 = vmatpush2.bf16.msra.mxu0 0
      %1331 = vmatprep.subr.bf16.mxu0 0
      %1332 = vmatpush2.bf16.msra.mxu0 0
      %1333 = vmatprep.subr.bf16.mxu0 0
      %1334 = vmatpush2.bf16.msra.mxu0 0
      %1335 = vmatprep.mubr.bf16.mxu0 0
      %1336 = vmatmul.mubr.bf16.gmra.mxu0 %v1292
      %v1337 = vpop.f32.mrf.mxu0
      %v1338 = vadd.f32 0.0, %v1337
      %v1339 = vpop.f32.mrf.mxu0
      %v1340 = vpop.f32.mrf.mxu0
      %v1341 = vadd.f32 0.0, %v1340
      %v1342 = vpop.f32.mrf.mxu0
      %1343 = vmatprep.mubr.bf16.mxu0 0
      %1344 = vmatmul.mubr.bf16.gmra.mxu0 %v1295
      %v1345 = vpop.f32.mrf.mxu0
      %v1346 = vadd.f32 0.0, %v1345
      %v1347 = vpop.f32.mrf.mxu0
      %v1348 = vpop.f32.mrf.mxu0
      %v1349 = vadd.f32 0.0, %v1348
      %v1350 = vpop.f32.mrf.mxu0
      %1351 = vmatprep.mubr.bf16.mxu0 0
      %1352 = vmatmul.mubr.bf16.gmra.mxu0 %v1298
      %v1353 = vpop.f32.mrf.mxu0
      %v1354 = vadd.f32 0.0, %v1353
      %v1355 = vpop.f32.mrf.mxu0
      %v1356 = vpop.f32.mrf.mxu0
      %v1357 = vadd.f32 0.0, %v1356
      %v1358 = vpop.f32.mrf.mxu0
      %1359 = vmatprep.mubr.bf16.mxu0 0
      %1360 = vmatmul.mubr.bf16.gmra.mxu0 %v1301
      %v1361 = vpop.f32.mrf.mxu0
      %v1362 = vadd.f32 0.0, %v1361
      %v1363 = vpop.f32.mrf.mxu0
      %v1364 = vpop.f32.mrf.mxu0
      %v1365 = vadd.f32 0.0, %v1364
      %v1366 = vpop.f32.mrf.mxu0
      %1367 = vdwg.mxu0
      %s1368 = scalar_lea.vmem %s5, 64
      %v1369 = vld [vmem:[%s1368] sm:$0xff]
      %v1370 = vld [vmem:[%s1368 + $0x8] sm:$0xff]
      %v1371 = vld [vmem:[%s1368 + $0x10] sm:$0xff]
      %v1372 = vld [vmem:[%s1368 + $0x18] sm:$0xff]
      %v1373 = vld [vmem:[%s1368 + $0x20] sm:$0xff]
      %v1374 = vld [vmem:[%s1368 + $0x28] sm:$0xff]
      %v1375 = vld [vmem:[%s1368 + $0x30] sm:$0xff]
      %v1376 = vld [vmem:[%s1368 + $0x38] sm:$0xff]
      %1377 = vrot.lane.b32.xlu0 %v1072, 112
      %v1378 = vpop.permute.xlu0 %1377
      %1379 = vrot.lane.b32.xlu0 %v1073, 112
      %v1380 = vpop.permute.xlu0 %1379
      %1381 = vrot.lane.b32.xlu0 %v1074, 112
      %v1382 = vpop.permute.xlu0 %1381
      %1383 = vrot.lane.b32.xlu0 %v1075, 112
      %v1384 = vpop.permute.xlu0 %1383
      %1385 = vrot.lane.b32.xlu0 %v1072, 80
      %v1386 = vpop.permute.xlu0 %1385
      %1387 = vrot.lane.b32.xlu0 %v1073, 80
      %v1388 = vpop.permute.xlu0 %1387
      %1389 = vrot.lane.b32.xlu0 %v1074, 80
      %v1390 = vpop.permute.xlu0 %1389
      %1391 = vrot.lane.b32.xlu0 %v1075, 80
      %v1392 = vpop.permute.xlu0 %1391
      %v1394 = vsel %vm1096, %v1378, 0
      %v1397 = vsel %vm1096, %v1380, 0
      %v1400 = vsel %vm1096, %v1382, 0
      %v1403 = vsel %vm1096, %v1384, 0
      %v1406 = vsel %vm1096, %v1386, 0
      %v1409 = vsel %vm1096, %v1388, 0
      %v1412 = vsel %vm1096, %v1390, 0
      %v1415 = vsel %vm1096, %v1392, 0
      %1417 = vmatprep.subr.bf16.mxu0 0
      %1418 = vmatpush1.bf16.xpose.msra.mxu0 0
      %1419 = vmatprep.subr.bf16.mxu0 0
      %1420 = vmatpush1.bf16.xpose.msra.mxu0 0
      %1421 = vmatprep.subr.bf16.mxu0 0
      %1422 = vmatpush1.bf16.xpose.msra.mxu0 0
      %1423 = vmatprep.subr.bf16.mxu0 0
      %1424 = vmatpush1.bf16.xpose.msra.mxu0 0
      %1425 = vmatprep.subr.bf16.mxu0 0
      %1426 = vmatpush1.bf16.xpose.msra.mxu0 %v1415
      %1427 = vmatprep.subr.bf16.mxu0 0
      %1428 = vmatpush1.bf16.xpose.msra.mxu0 %v1412
      %1429 = vmatprep.subr.bf16.mxu0 0
      %1430 = vmatpush1.bf16.xpose.msra.mxu0 %v1409
      %1431 = vmatprep.subr.bf16.mxu0 0
      %1432 = vmatpush1.bf16.xpose.msra.mxu0 %v1406
      %1433 = vmatprep.subr.bf16.mxu0 0
      %1434 = vmatpush2.bf16.xpose.msra.mxu0 0
      %1435 = vmatprep.subr.bf16.mxu0 0
      %1436 = vmatpush2.bf16.xpose.msra.mxu0 0
      %1437 = vmatprep.subr.bf16.mxu0 0
      %1438 = vmatpush2.bf16.xpose.msra.mxu0 0
      %1439 = vmatprep.subr.bf16.mxu0 0
      %1440 = vmatpush2.bf16.xpose.msra.mxu0 0
      %1441 = vmatprep.subr.bf16.mxu0 0
      %1442 = vmatpush2.bf16.xpose.msra.mxu0 0
      %1443 = vmatprep.subr.bf16.mxu0 0
      %1444 = vmatpush2.bf16.xpose.msra.mxu0 0
      %1445 = vmatprep.subr.bf16.mxu0 0
      %1446 = vmatpush2.bf16.xpose.msra.mxu0 0
      %1447 = vmatprep.subr.bf16.mxu0 0
      %1448 = vmatpush2.bf16.xpose.msra.mxu0 0
      %1449 = vmatprep.mubr.bf16.mxu0 0
      %1450 = vmatmul.mubr.bf16.gmra.mxu0 %v1394
      %v1451 = vpop.f32.mrf.mxu0
      %v1452 = vadd.f32 %v1369, %v1451
      %v1453 = vpop.f32.mrf.mxu0
      %v1454 = vpop.f32.mrf.mxu0
      %v1455 = vadd.f32 %v1370, %v1454
      %v1456 = vpop.f32.mrf.mxu0
      %1457 = vmatprep.mubr.bf16.mxu0 0
      %1458 = vmatmul.mubr.bf16.gmra.mxu0 %v1397
      %v1459 = vpop.f32.mrf.mxu0
      %v1460 = vadd.f32 %v1371, %v1459
      %v1461 = vpop.f32.mrf.mxu0
      %v1462 = vpop.f32.mrf.mxu0
      %v1463 = vadd.f32 %v1372, %v1462
      %v1464 = vpop.f32.mrf.mxu0
      %1465 = vmatprep.mubr.bf16.mxu0 0
      %1466 = vmatmul.mubr.bf16.gmra.mxu0 %v1400
      %v1467 = vpop.f32.mrf.mxu0
      %v1468 = vadd.f32 %v1373, %v1467
      %v1469 = vpop.f32.mrf.mxu0
      %v1470 = vpop.f32.mrf.mxu0
      %v1471 = vadd.f32 %v1374, %v1470
      %v1472 = vpop.f32.mrf.mxu0
      %1473 = vmatprep.mubr.bf16.mxu0 0
      %1474 = vmatmul.mubr.bf16.gmra.mxu0 %v1403
      %v1475 = vpop.f32.mrf.mxu0
      %v1476 = vadd.f32 %v1375, %v1475
      %v1477 = vpop.f32.mrf.mxu0
      %v1478 = vpop.f32.mrf.mxu0
      %v1479 = vadd.f32 %v1376, %v1478
      %v1480 = vpop.f32.mrf.mxu0
      %1481 = vdwg.mxu0
      %v1482 = vsel %vm1186, %v1452, -inf
      %1483 = vmax.xlane.f32.xlu0 %v1482
      %v1484 = vpop.xlane.xlu0 %1483
      %v1485 = vsel %vm1186, %v1455, -inf
      %1486 = vmax.xlane.f32.xlu0 %v1485
      %v1487 = vpop.xlane.xlu0 %1486
      %v1488 = vsel %vm1186, %v1460, -inf
      %1489 = vmax.xlane.f32.xlu0 %v1488
      %v1490 = vpop.xlane.xlu0 %1489
      %v1491 = vsel %vm1186, %v1463, -inf
      %1492 = vmax.xlane.f32.xlu0 %v1491
      %v1493 = vpop.xlane.xlu0 %1492
      %v1494 = vsel %vm1186, %v1468, -inf
      %1495 = vmax.xlane.f32.xlu0 %v1494
      %v1496 = vpop.xlane.xlu0 %1495
      %v1497 = vsel %vm1186, %v1471, -inf
      %1498 = vmax.xlane.f32.xlu0 %v1497
      %v1499 = vpop.xlane.xlu0 %1498
      %v1500 = vsel %vm1186, %v1476, -inf
      %1501 = vmax.xlane.f32.xlu0 %v1500
      %v1502 = vpop.xlane.xlu0 %1501
      %v1503 = vsel %vm1186, %v1479, -inf
      %1504 = vmax.xlane.f32.xlu0 %v1503
      %v1505 = vpop.xlane.xlu0 %1504
      %v1506 = vsub.f32 %v1452, %v1484
      %v1507 = vsub.f32 %v1455, %v1487
      %v1508 = vsub.f32 %v1460, %v1490
      %v1509 = vsub.f32 %v1463, %v1493
      %v1510 = vsub.f32 %v1468, %v1496
      %v1511 = vsub.f32 %v1471, %v1499
      %v1512 = vsub.f32 %v1476, %v1502
      %v1513 = vsub.f32 %v1479, %v1505
      %v1514 = vmul.f32 %v1506, 1.442695
      %v1515 = vpow.pop %v1514
      %v1516 = vmul.f32 %v1507, 1.442695
      %v1517 = vpow.pop %v1516
      %v1518 = vmul.f32 %v1508, 1.442695
      %v1519 = vpow.pop %v1518
      %v1520 = vmul.f32 %v1509, 1.442695
      %v1521 = vpow.pop %v1520
      %v1522 = vmul.f32 %v1510, 1.442695
      %v1523 = vpow.pop %v1522
      %v1524 = vmul.f32 %v1511, 1.442695
      %v1525 = vpow.pop %v1524
      %v1526 = vmul.f32 %v1512, 1.442695
      %v1527 = vpow.pop %v1526
      %v1528 = vmul.f32 %v1513, 1.442695
      %v1529 = vpow.pop %v1528
      %v1530 = vsel %vm1186, %v1515, 0.0
      %1531 = vadd.xlane.f32.xlu0 %v1530
      %v1532 = vpop.xlane.xlu0 %1531
      %v1533 = vsel %vm1186, %v1517, 0.0
      %1534 = vadd.xlane.f32.xlu0 %v1533
      %v1535 = vpop.xlane.xlu0 %1534
      %v1536 = vsel %vm1186, %v1519, 0.0
      %1537 = vadd.xlane.f32.xlu0 %v1536
      %v1538 = vpop.xlane.xlu0 %1537
      %v1539 = vsel %vm1186, %v1521, 0.0
      %1540 = vadd.xlane.f32.xlu0 %v1539
      %v1541 = vpop.xlane.xlu0 %1540
      %v1542 = vsel %vm1186, %v1523, 0.0
      %1543 = vadd.xlane.f32.xlu0 %v1542
      %v1544 = vpop.xlane.xlu0 %1543
      %v1545 = vsel %vm1186, %v1525, 0.0
      %1546 = vadd.xlane.f32.xlu0 %v1545
      %v1547 = vpop.xlane.xlu0 %1546
      %v1548 = vsel %vm1186, %v1527, 0.0
      %1549 = vadd.xlane.f32.xlu0 %v1548
      %v1550 = vpop.xlane.xlu0 %1549
      %v1551 = vsel %vm1186, %v1529, 0.0
      %1552 = vadd.xlane.f32.xlu0 %v1551
      %v1553 = vpop.xlane.xlu0 %1552
      %v1554 = vrcp.pop %v1532
      %v1555 = vrcp.pop %v1535
      %v1556 = vrcp.pop %v1538
      %v1557 = vrcp.pop %v1541
      %v1558 = vrcp.pop %v1544
      %v1559 = vrcp.pop %v1547
      %v1560 = vrcp.pop %v1550
      %v1561 = vrcp.pop %v1553
      %v1562 = vmul.f32 %v1515, %v1554
      %v1563 = vmul.f32 %v1517, %v1555
      %v1564 = vmul.f32 %v1519, %v1556
      %v1565 = vmul.f32 %v1521, %v1557
      %v1566 = vmul.f32 %v1523, %v1558
      %v1567 = vmul.f32 %v1525, %v1559
      %v1568 = vmul.f32 %v1527, %v1560
      %v1569 = vmul.f32 %v1529, %v1561
      %v1570 = vpack.c.bf16 %v1563, %v1562
      %v1571 = vpack.c.bf16 %v1565, %v1564
      %v1572 = vpack.c.bf16 %v1567, %v1566
      %v1573 = vpack.c.bf16 %v1569, %v1568
      %1574 = vrot.lane.b32.xlu0 %v1072, 48
      %v1575 = vpop.permute.xlu0 %1574
      %1576 = vrot.lane.b32.xlu0 %v1073, 48
      %v1577 = vpop.permute.xlu0 %1576
      %1578 = vrot.lane.b32.xlu0 %v1074, 48
      %v1579 = vpop.permute.xlu0 %1578
      %1580 = vrot.lane.b32.xlu0 %v1075, 48
      %v1581 = vpop.permute.xlu0 %1580
      %v1587 = vsel %vm1186, %v1570, 0
      %v1590 = vsel %vm1186, %v1571, 0
      %v1593 = vsel %vm1186, %v1572, 0
      %v1596 = vsel %vm1186, %v1573, 0
      %1598 = vmatprep.subr.bf16.mxu0 0
      %1599 = vmatpush1.bf16.msra.mxu0 0
      %1600 = vmatprep.subr.bf16.mxu0 0
      %1601 = vmatpush1.bf16.msra.mxu0 0
      %1602 = vmatprep.subr.bf16.mxu0 0
      %1603 = vmatpush1.bf16.msra.mxu0 0
      %1604 = vmatprep.subr.bf16.mxu0 0
      %1605 = vmatpush1.bf16.msra.mxu0 0
      %1606 = vmatprep.subr.bf16.mxu0 0
      %1607 = vmatpush1.bf16.msra.mxu0 %v1581
      %1608 = vmatprep.subr.bf16.mxu0 0
      %1609 = vmatpush1.bf16.msra.mxu0 %v1579
      %1610 = vmatprep.subr.bf16.mxu0 0
      %1611 = vmatpush1.bf16.msra.mxu0 %v1577
      %1612 = vmatprep.subr.bf16.mxu0 0
      %1613 = vmatpush1.bf16.msra.mxu0 %v1575
      %1614 = vmatprep.subr.bf16.mxu0 0
      %1615 = vmatpush2.bf16.msra.mxu0 0
      %1616 = vmatprep.subr.bf16.mxu0 0
      %1617 = vmatpush2.bf16.msra.mxu0 0
      %1618 = vmatprep.subr.bf16.mxu0 0
      %1619 = vmatpush2.bf16.msra.mxu0 0
      %1620 = vmatprep.subr.bf16.mxu0 0
      %1621 = vmatpush2.bf16.msra.mxu0 0
      %1622 = vmatprep.subr.bf16.mxu0 0
      %1623 = vmatpush2.bf16.msra.mxu0 0
      %1624 = vmatprep.subr.bf16.mxu0 0
      %1625 = vmatpush2.bf16.msra.mxu0 0
      %1626 = vmatprep.subr.bf16.mxu0 0
      %1627 = vmatpush2.bf16.msra.mxu0 0
      %1628 = vmatprep.subr.bf16.mxu0 0
      %1629 = vmatpush2.bf16.msra.mxu0 0
      %1630 = vmatprep.mubr.bf16.mxu0 0
      %1631 = vmatmul.mubr.bf16.gmra.mxu0 %v1587
      %v1632 = vpop.f32.mrf.mxu0
      %v1633 = vadd.f32 0.0, %v1632
      %v1634 = vpop.f32.mrf.mxu0
      %v1635 = vpop.f32.mrf.mxu0
      %v1636 = vadd.f32 0.0, %v1635
      %v1637 = vpop.f32.mrf.mxu0
      %1638 = vmatprep.mubr.bf16.mxu0 0
      %1639 = vmatmul.mubr.bf16.gmra.mxu0 %v1590
      %v1640 = vpop.f32.mrf.mxu0
      %v1641 = vadd.f32 0.0, %v1640
      %v1642 = vpop.f32.mrf.mxu0
      %v1643 = vpop.f32.mrf.mxu0
      %v1644 = vadd.f32 0.0, %v1643
      %v1645 = vpop.f32.mrf.mxu0
      %1646 = vmatprep.mubr.bf16.mxu0 0
      %1647 = vmatmul.mubr.bf16.gmra.mxu0 %v1593
      %v1648 = vpop.f32.mrf.mxu0
      %v1649 = vadd.f32 0.0, %v1648
      %v1650 = vpop.f32.mrf.mxu0
      %v1651 = vpop.f32.mrf.mxu0
      %v1652 = vadd.f32 0.0, %v1651
      %v1653 = vpop.f32.mrf.mxu0
      %1654 = vmatprep.mubr.bf16.mxu0 0
      %1655 = vmatmul.mubr.bf16.gmra.mxu0 %v1596
      %v1656 = vpop.f32.mrf.mxu0
      %v1657 = vadd.f32 0.0, %v1656
      %v1658 = vpop.f32.mrf.mxu0
      %v1659 = vpop.f32.mrf.mxu0
      %v1660 = vadd.f32 0.0, %v1659
      %v1661 = vpop.f32.mrf.mxu0
      %1662 = vdwg.mxu0
      %1671 = vrot.lane.b32.xlu0 %v1633, 16
      %v1672 = vpop.permute.xlu0 %1671
      %1673 = vrot.lane.b32.xlu0 %v1636, 16
      %v1674 = vpop.permute.xlu0 %1673
      %1675 = vrot.lane.b32.xlu0 %v1641, 16
      %v1676 = vpop.permute.xlu0 %1675
      %1677 = vrot.lane.b32.xlu0 %v1644, 16
      %v1678 = vpop.permute.xlu0 %1677
      %1679 = vrot.lane.b32.xlu0 %v1649, 16
      %v1680 = vpop.permute.xlu0 %1679
      %1681 = vrot.lane.b32.xlu0 %v1652, 16
      %v1682 = vpop.permute.xlu0 %1681
      %1683 = vrot.lane.b32.xlu0 %v1657, 16
      %v1684 = vpop.permute.xlu0 %1683
      %1685 = vrot.lane.b32.xlu0 %v1660, 16
      %v1686 = vpop.permute.xlu0 %1685
      %v1695 = vsel %vm1096, %v1338, %v1672
      %v1696 = vsel %vm1096, %v1341, %v1674
      %v1697 = vsel %vm1096, %v1346, %v1676
      %v1698 = vsel %vm1096, %v1349, %v1678
      %v1699 = vsel %vm1096, %v1354, %v1680
      %v1700 = vsel %vm1096, %v1357, %v1682
      %v1701 = vsel %vm1096, %v1362, %v1684
      %v1702 = vsel %vm1096, %v1365, %v1686
      %v1703 = vpack.c.bf16 %v1696, %v1695
      %v1704 = vpack.c.bf16 %v1698, %v1697
      %v1705 = vpack.c.bf16 %v1700, %v1699
      %v1706 = vpack.c.bf16 %v1702, %v1701
      %v1707 = vld [vmem:[%s10] sm:$0xf]
      %v1708 = vld [vmem:[%s10 + $0x4] sm:$0xf]
      %v1709 = vld [vmem:[%s10 + $0x8] sm:$0xf]
      %v1710 = vld [vmem:[%s10 + $0xc] sm:$0xf]
      %v1711 = vld [vmem:[%s11] sm:$0x1]
      %v1713 = vlaneseq
      %v1714 = vshrl.u32 %v1713, 7
      %v1715 = vsub.s32 0, %v1714
      %v1716 = vrot.slane %v1711, %v1715
      %v1722 = vunpack.c.l.b16 %v1707
      %v1723 = vunpack.c.l.b16 %v1708
      %v1724 = vunpack.c.l.b16 %v1709
      %v1725 = vunpack.c.l.b16 %v1710
      %v1726 = vpack.c.b16 %v1723, %v1722
      %v1727 = vpack.c.b16 %v1725, %v1724
      %v1731 = vsel %vm700, %v1703, 0
      %v1734 = vsel %vm700, %v1704, 0
      %v1737 = vsel %vm700, %v1705, 0
      %v1740 = vsel %vm700, %v1706, 0
      %1742 = vmatprep.subr.bf16.mxu0 0
      %1743 = vmatpush1.bf16.msra.mxu0 0
      %1744 = vmatprep.subr.bf16.mxu0 0
      %1745 = vmatpush1.bf16.msra.mxu0 0
      %1746 = vmatprep.subr.bf16.mxu0 0
      %1747 = vmatpush1.bf16.msra.mxu0 0
      %1748 = vmatprep.subr.bf16.mxu0 0
      %1749 = vmatpush1.bf16.msra.mxu0 0
      %1750 = vmatprep.subr.bf16.mxu0 0
      %1751 = vmatpush1.bf16.msra.mxu0 0
      %1752 = vmatprep.subr.bf16.mxu0 0
      %1753 = vmatpush1.bf16.msra.mxu0 0
      %1754 = vmatprep.subr.bf16.mxu0 0
      %1755 = vmatpush1.bf16.msra.mxu0 %v1727
      %1756 = vmatprep.subr.bf16.mxu0 0
      %1757 = vmatpush1.bf16.msra.mxu0 %v1726
      %1758 = vmatprep.subr.bf16.mxu0 0
      %1759 = vmatpush2.bf16.msra.mxu0 0
      %1760 = vmatprep.subr.bf16.mxu0 0
      %1761 = vmatpush2.bf16.msra.mxu0 0
      %1762 = vmatprep.subr.bf16.mxu0 0
      %1763 = vmatpush2.bf16.msra.mxu0 0
      %1764 = vmatprep.subr.bf16.mxu0 0
      %1765 = vmatpush2.bf16.msra.mxu0 0
      %1766 = vmatprep.subr.bf16.mxu0 0
      %1767 = vmatpush2.bf16.msra.mxu0 0
      %1768 = vmatprep.subr.bf16.mxu0 0
      %1769 = vmatpush2.bf16.msra.mxu0 0
      %1770 = vmatprep.subr.bf16.mxu0 0
      %1771 = vmatpush2.bf16.msra.mxu0 0
      %1772 = vmatprep.subr.bf16.mxu0 0
      %1773 = vmatpush2.bf16.msra.mxu0 0
      %1774 = vmatprep.mubr.bf16.mxu0 0
      %1775 = vmatmul.mubr.bf16.gmra.mxu0 %v1731
      %v1776 = vpop.f32.mrf.mxu0
      %v1777 = vadd.f32 %v1716, %v1776
      %v1778 = vpop.f32.mrf.mxu0
      %v1779 = vpop.f32.mrf.mxu0
      %v1780 = vadd.f32 %v1716, %v1779
      %v1781 = vpop.f32.mrf.mxu0
      %1782 = vmatprep.mubr.bf16.mxu0 0
      %1783 = vmatmul.mubr.bf16.gmra.mxu0 %v1734
      %v1784 = vpop.f32.mrf.mxu0
      %v1785 = vadd.f32 %v1716, %v1784
      %v1786 = vpop.f32.mrf.mxu0
      %v1787 = vpop.f32.mrf.mxu0
      %v1788 = vadd.f32 %v1716, %v1787
      %v1789 = vpop.f32.mrf.mxu0
      %1790 = vmatprep.mubr.bf16.mxu0 0
      %1791 = vmatmul.mubr.bf16.gmra.mxu0 %v1737
      %v1792 = vpop.f32.mrf.mxu0
      %v1793 = vadd.f32 %v1716, %v1792
      %v1794 = vpop.f32.mrf.mxu0
      %v1795 = vpop.f32.mrf.mxu0
      %v1796 = vadd.f32 %v1716, %v1795
      %v1797 = vpop.f32.mrf.mxu0
      %1798 = vmatprep.mubr.bf16.mxu0 0
      %1799 = vmatmul.mubr.bf16.gmra.mxu0 %v1740
      %v1800 = vpop.f32.mrf.mxu0
      %v1801 = vadd.f32 %v1716, %v1800
      %v1802 = vpop.f32.mrf.mxu0
      %v1803 = vpop.f32.mrf.mxu0
      %v1804 = vadd.f32 %v1716, %v1803
      %v1805 = vpop.f32.mrf.mxu0
      %1806 = vdwg.mxu0
      %v1807 = vadd.f32 %v826, %v1777
      %v1808 = vadd.f32 %v827, %v1780
      %v1809 = vadd.f32 %v828, %v1785
      %v1810 = vadd.f32 %v829, %v1788
      %v1811 = vadd.f32 %v830, %v1793
      %v1812 = vadd.f32 %v831, %v1796
      %v1813 = vadd.f32 %v832, %v1801
      %v1814 = vadd.f32 %v833, %v1804
      %v1815 = vld [vmem:[%s12] sm:$0x1]
      %v1816 = vld [vmem:[%s13] sm:$0x1]
      %v1817 = vsel %vm700, %v1807, 0.0
      %1818 = vadd.xlane.f32.xlu0 %v1817
      %v1819 = vpop.xlane.xlu0 %1818
      %v1820 = vsel %vm700, %v1808, 0.0
      %1821 = vadd.xlane.f32.xlu0 %v1820
      %v1822 = vpop.xlane.xlu0 %1821
      %v1823 = vsel %vm700, %v1809, 0.0
      %1824 = vadd.xlane.f32.xlu0 %v1823
      %v1825 = vpop.xlane.xlu0 %1824
      %v1826 = vsel %vm700, %v1810, 0.0
      %1827 = vadd.xlane.f32.xlu0 %v1826
      %v1828 = vpop.xlane.xlu0 %1827
      %v1829 = vsel %vm700, %v1811, 0.0
      %1830 = vadd.xlane.f32.xlu0 %v1829
      %v1831 = vpop.xlane.xlu0 %1830
      %v1832 = vsel %vm700, %v1812, 0.0
      %1833 = vadd.xlane.f32.xlu0 %v1832
      %v1834 = vpop.xlane.xlu0 %1833
      %v1835 = vsel %vm700, %v1813, 0.0
      %1836 = vadd.xlane.f32.xlu0 %v1835
      %v1837 = vpop.xlane.xlu0 %1836
      %v1838 = vsel %vm700, %v1814, 0.0
      %1839 = vadd.xlane.f32.xlu0 %v1838
      %v1840 = vpop.xlane.xlu0 %1839
      %v1841 = vmul.f32 %v1819, %v725
      %v1842 = vmul.f32 %v1822, %v725
      %v1843 = vmul.f32 %v1825, %v725
      %v1844 = vmul.f32 %v1828, %v725
      %v1845 = vmul.f32 %v1831, %v725
      %v1846 = vmul.f32 %v1834, %v725
      %v1847 = vmul.f32 %v1837, %v725
      %v1848 = vmul.f32 %v1840, %v725
      %v1849 = vsub.f32 %v1807, %v1841
      %v1850 = vsub.f32 %v1808, %v1842
      %v1851 = vsub.f32 %v1809, %v1843
      %v1852 = vsub.f32 %v1810, %v1844
      %v1853 = vsub.f32 %v1811, %v1845
      %v1854 = vsub.f32 %v1812, %v1846
      %v1855 = vsub.f32 %v1813, %v1847
      %v1856 = vsub.f32 %v1814, %v1848
      %v1857 = vmul.f32 %v1849, %v1849
      %v1858 = vmul.f32 %v1850, %v1850
      %v1859 = vmul.f32 %v1851, %v1851
      %v1860 = vmul.f32 %v1852, %v1852
      %v1861 = vmul.f32 %v1853, %v1853
      %v1862 = vmul.f32 %v1854, %v1854
      %v1863 = vmul.f32 %v1855, %v1855
      %v1864 = vmul.f32 %v1856, %v1856
      %v1865 = vsel %vm700, %v1857, 0.0
      %1866 = vadd.xlane.f32.xlu0 %v1865
      %v1867 = vpop.xlane.xlu0 %1866
      %v1868 = vsel %vm700, %v1858, 0.0
      %1869 = vadd.xlane.f32.xlu0 %v1868
      %v1870 = vpop.xlane.xlu0 %1869
      %v1871 = vsel %vm700, %v1859, 0.0
      %1872 = vadd.xlane.f32.xlu0 %v1871
      %v1873 = vpop.xlane.xlu0 %1872
      %v1874 = vsel %vm700, %v1860, 0.0
      %1875 = vadd.xlane.f32.xlu0 %v1874
      %v1876 = vpop.xlane.xlu0 %1875
      %v1877 = vsel %vm700, %v1861, 0.0
      %1878 = vadd.xlane.f32.xlu0 %v1877
      %v1879 = vpop.xlane.xlu0 %1878
      %v1880 = vsel %vm700, %v1862, 0.0
      %1881 = vadd.xlane.f32.xlu0 %v1880
      %v1882 = vpop.xlane.xlu0 %1881
      %v1883 = vsel %vm700, %v1863, 0.0
      %1884 = vadd.xlane.f32.xlu0 %v1883
      %v1885 = vpop.xlane.xlu0 %1884
      %v1886 = vsel %vm700, %v1864, 0.0
      %1887 = vadd.xlane.f32.xlu0 %v1886
      %v1888 = vpop.xlane.xlu0 %1887
      %v1889 = vmul.f32 %v1867, %v725
      %v1890 = vmul.f32 %v1870, %v725
      %v1891 = vmul.f32 %v1873, %v725
      %v1892 = vmul.f32 %v1876, %v725
      %v1893 = vmul.f32 %v1879, %v725
      %v1894 = vmul.f32 %v1882, %v725
      %v1895 = vmul.f32 %v1885, %v725
      %v1896 = vmul.f32 %v1888, %v725
      %v1897 = vadd.f32 %v1889, 1e-05
      %v1898 = vadd.f32 %v1890, 1e-05
      %v1899 = vadd.f32 %v1891, 1e-05
      %v1900 = vadd.f32 %v1892, 1e-05
      %v1901 = vadd.f32 %v1893, 1e-05
      %v1902 = vadd.f32 %v1894, 1e-05
      %v1903 = vadd.f32 %v1895, 1e-05
      %v1904 = vadd.f32 %v1896, 1e-05
      %v1905 = vrsqrt.pop %v1897
      %v1906 = vrsqrt.pop %v1898
      %v1907 = vrsqrt.pop %v1899
      %v1908 = vrsqrt.pop %v1900
      %v1909 = vrsqrt.pop %v1901
      %v1910 = vrsqrt.pop %v1902
      %v1911 = vrsqrt.pop %v1903
      %v1912 = vrsqrt.pop %v1904
      %v1913 = vmul.f32 %v1849, %v1905
      %v1914 = vmul.f32 %v1850, %v1906
      %v1915 = vmul.f32 %v1851, %v1907
      %v1916 = vmul.f32 %v1852, %v1908
      %v1917 = vmul.f32 %v1853, %v1909
      %v1918 = vmul.f32 %v1854, %v1910
      %v1919 = vmul.f32 %v1855, %v1911
      %v1920 = vmul.f32 %v1856, %v1912
      %v1922 = vlaneseq
      %v1923 = vshrl.u32 %v1922, 7
      %v1924 = vsub.s32 0, %v1923
      %v1925 = vrot.slane %v1815, %v1924
      %v1927 = vmul.f32 %v1913, %v1925
      %v1928 = vmul.f32 %v1914, %v1925
      %v1929 = vmul.f32 %v1915, %v1925
      %v1930 = vmul.f32 %v1916, %v1925
      %v1931 = vmul.f32 %v1917, %v1925
      %v1932 = vmul.f32 %v1918, %v1925
      %v1933 = vmul.f32 %v1919, %v1925
      %v1934 = vmul.f32 %v1920, %v1925
      %v1936 = vlaneseq
      %v1937 = vshrl.u32 %v1936, 7
      %v1938 = vsub.s32 0, %v1937
      %v1939 = vrot.slane %v1816, %v1938
      %v1941 = vadd.f32 %v1927, %v1939
      %v1942 = vadd.f32 %v1928, %v1939
      %v1943 = vadd.f32 %v1929, %v1939
      %v1944 = vadd.f32 %v1930, %v1939
      %v1945 = vadd.f32 %v1931, %v1939
      %v1946 = vadd.f32 %v1932, %v1939
      %v1947 = vadd.f32 %v1933, %v1939
      %v1948 = vadd.f32 %v1934, %v1939
      %v1949 = vpack.c.bf16 %v1942, %v1941
      %v1950 = vpack.c.bf16 %v1944, %v1943
      %v1951 = vpack.c.bf16 %v1946, %v1945
      %v1952 = vpack.c.bf16 %v1948, %v1947
      %v1953 = vld [vmem:[%s14] sm:$0xf]
      %v1954 = vld [vmem:[%s14 + $0x4] sm:$0xf]
      %v1955 = vld [vmem:[%s14 + $0x8] sm:$0xf]
      %v1956 = vld [vmem:[%s14 + $0xc] sm:$0xf]
      %v1957 = vld [vmem:[%s15] sm:$0x1]
      %v1959 = vlaneseq
      %v1960 = vshrl.u32 %v1959, 7
      %v1961 = vsub.s32 0, %v1960
      %v1962 = vrot.slane %v1957, %v1961
      %v1968 = vunpack.c.l.b16 %v1953
      %v1969 = vunpack.c.l.b16 %v1954
      %v1970 = vunpack.c.l.b16 %v1955
      %v1971 = vunpack.c.l.b16 %v1956
      %v1972 = vpack.c.b16 %v1969, %v1968
      %v1973 = vpack.c.b16 %v1971, %v1970
      %v1977 = vsel %vm700, %v1949, 0
      %v1980 = vsel %vm700, %v1950, 0
      %v1983 = vsel %vm700, %v1951, 0
      %v1986 = vsel %vm700, %v1952, 0
      %1988 = vmatprep.subr.bf16.mxu0 0
      %1989 = vmatpush1.bf16.msra.mxu0 0
      %1990 = vmatprep.subr.bf16.mxu0 0
      %1991 = vmatpush1.bf16.msra.mxu0 0
      %1992 = vmatprep.subr.bf16.mxu0 0
      %1993 = vmatpush1.bf16.msra.mxu0 0
      %1994 = vmatprep.subr.bf16.mxu0 0
      %1995 = vmatpush1.bf16.msra.mxu0 0
      %1996 = vmatprep.subr.bf16.mxu0 0
      %1997 = vmatpush1.bf16.msra.mxu0 0
      %1998 = vmatprep.subr.bf16.mxu0 0
      %1999 = vmatpush1.bf16.msra.mxu0 0
      %2000 = vmatprep.subr.bf16.mxu0 0
      %2001 = vmatpush1.bf16.msra.mxu0 %v1973
      %2002 = vmatprep.subr.bf16.mxu0 0
      %2003 = vmatpush1.bf16.msra.mxu0 %v1972
      %2004 = vmatprep.subr.bf16.mxu0 0
      %2005 = vmatpush2.bf16.msra.mxu0 0
      %2006 = vmatprep.subr.bf16.mxu0 0
      %2007 = vmatpush2.bf16.msra.mxu0 0
      %2008 = vmatprep.subr.bf16.mxu0 0
      %2009 = vmatpush2.bf16.msra.mxu0 0
      %2010 = vmatprep.subr.bf16.mxu0 0
      %2011 = vmatpush2.bf16.msra.mxu0 0
      %2012 = vmatprep.subr.bf16.mxu0 0
      %2013 = vmatpush2.bf16.msra.mxu0 0
      %2014 = vmatprep.subr.bf16.mxu0 0
      %2015 = vmatpush2.bf16.msra.mxu0 0
      %2016 = vmatprep.subr.bf16.mxu0 0
      %2017 = vmatpush2.bf16.msra.mxu0 0
      %2018 = vmatprep.subr.bf16.mxu0 0
      %2019 = vmatpush2.bf16.msra.mxu0 0
      %2020 = vmatprep.mubr.bf16.mxu0 0
      %2021 = vmatmul.mubr.bf16.gmra.mxu0 %v1977
      %v2022 = vpop.f32.mrf.mxu0
      %v2023 = vadd.f32 %v1962, %v2022
      %v2024 = vpop.f32.mrf.mxu0
      %v2025 = vpop.f32.mrf.mxu0
      %v2026 = vadd.f32 %v1962, %v2025
      %v2027 = vpop.f32.mrf.mxu0
      %2028 = vmatprep.mubr.bf16.mxu0 0
      %2029 = vmatmul.mubr.bf16.gmra.mxu0 %v1980
      %v2030 = vpop.f32.mrf.mxu0
      %v2031 = vadd.f32 %v1962, %v2030
      %v2032 = vpop.f32.mrf.mxu0
      %v2033 = vpop.f32.mrf.mxu0
      %v2034 = vadd.f32 %v1962, %v2033
      %v2035 = vpop.f32.mrf.mxu0
      %2036 = vmatprep.mubr.bf16.mxu0 0
      %2037 = vmatmul.mubr.bf16.gmra.mxu0 %v1983
      %v2038 = vpop.f32.mrf.mxu0
      %v2039 = vadd.f32 %v1962, %v2038
      %v2040 = vpop.f32.mrf.mxu0
      %v2041 = vpop.f32.mrf.mxu0
      %v2042 = vadd.f32 %v1962, %v2041
      %v2043 = vpop.f32.mrf.mxu0
      %2044 = vmatprep.mubr.bf16.mxu0 0
      %2045 = vmatmul.mubr.bf16.gmra.mxu0 %v1986
      %v2046 = vpop.f32.mrf.mxu0
      %v2047 = vadd.f32 %v1962, %v2046
      %v2048 = vpop.f32.mrf.mxu0
      %v2049 = vpop.f32.mrf.mxu0
      %v2050 = vadd.f32 %v1962, %v2049
      %v2051 = vpop.f32.mrf.mxu0
      %2052 = vdwg.mxu0
      %v2053 = vmul.f32 %v2023, %v2023
      %v2054 = vmul.f32 %v2026, %v2026
      %v2055 = vmul.f32 %v2031, %v2031
      %v2056 = vmul.f32 %v2034, %v2034
      %v2057 = vmul.f32 %v2039, %v2039
      %v2058 = vmul.f32 %v2042, %v2042
      %v2059 = vmul.f32 %v2047, %v2047
      %v2060 = vmul.f32 %v2050, %v2050
      %v2061 = vmul.f32 %v2023, %v2053
      %v2062 = vmul.f32 %v2026, %v2054
      %v2063 = vmul.f32 %v2031, %v2055
      %v2064 = vmul.f32 %v2034, %v2056
      %v2065 = vmul.f32 %v2039, %v2057
      %v2066 = vmul.f32 %v2042, %v2058
      %v2067 = vmul.f32 %v2047, %v2059
      %v2068 = vmul.f32 %v2050, %v2060
      %v2069 = vmul.f32 %v2061, 0.044715
      %v2070 = vmul.f32 %v2062, 0.044715
      %v2071 = vmul.f32 %v2063, 0.044715
      %v2072 = vmul.f32 %v2064, 0.044715
      %v2073 = vmul.f32 %v2065, 0.044715
      %v2074 = vmul.f32 %v2066, 0.044715
      %v2075 = vmul.f32 %v2067, 0.044715
      %v2076 = vmul.f32 %v2068, 0.044715
      %v2077 = vadd.f32 %v2023, %v2069
      %v2078 = vadd.f32 %v2026, %v2070
      %v2079 = vadd.f32 %v2031, %v2071
      %v2080 = vadd.f32 %v2034, %v2072
      %v2081 = vadd.f32 %v2039, %v2073
      %v2082 = vadd.f32 %v2042, %v2074
      %v2083 = vadd.f32 %v2047, %v2075
      %v2084 = vadd.f32 %v2050, %v2076
      %v2085 = vmul.f32 %v2077, 0.7978846
      %v2086 = vmul.f32 %v2078, 0.7978846
      %v2087 = vmul.f32 %v2079, 0.7978846
      %v2088 = vmul.f32 %v2080, 0.7978846
      %v2089 = vmul.f32 %v2081, 0.7978846
      %v2090 = vmul.f32 %v2082, 0.7978846
      %v2091 = vmul.f32 %v2083, 0.7978846
      %v2092 = vmul.f32 %v2084, 0.7978846
      %v2093 = vtanh.pop %v2085
      %v2094 = vtanh.pop %v2086
      %v2095 = vtanh.pop %v2087
      %v2096 = vtanh.pop %v2088
      %v2097 = vtanh.pop %v2089
      %v2098 = vtanh.pop %v2090
      %v2099 = vtanh.pop %v2091
      %v2100 = vtanh.pop %v2092
      %v2101 = vadd.f32 %v2093, 1.0
      %v2102 = vadd.f32 %v2094, 1.0
      %v2103 = vadd.f32 %v2095, 1.0
      %v2104 = vadd.f32 %v2096, 1.0
      %v2105 = vadd.f32 %v2097, 1.0
      %v2106 = vadd.f32 %v2098, 1.0
      %v2107 = vadd.f32 %v2099, 1.0
      %v2108 = vadd.f32 %v2100, 1.0
      %v2109 = vmul.f32 %v2101, 0.5
      %v2110 = vmul.f32 %v2102, 0.5
      %v2111 = vmul.f32 %v2103, 0.5
      %v2112 = vmul.f32 %v2104, 0.5
      %v2113 = vmul.f32 %v2105, 0.5
      %v2114 = vmul.f32 %v2106, 0.5
      %v2115 = vmul.f32 %v2107, 0.5
      %v2116 = vmul.f32 %v2108, 0.5
      %v2117 = vmul.f32 %v2023, %v2109
      %v2118 = vmul.f32 %v2026, %v2110
      %v2119 = vmul.f32 %v2031, %v2111
      %v2120 = vmul.f32 %v2034, %v2112
      %v2121 = vmul.f32 %v2039, %v2113
      %v2122 = vmul.f32 %v2042, %v2114
      %v2123 = vmul.f32 %v2047, %v2115
      %v2124 = vmul.f32 %v2050, %v2116
      %v2125 = vpack.c.bf16 %v2118, %v2117
      %v2126 = vpack.c.bf16 %v2120, %v2119
      %v2127 = vpack.c.bf16 %v2122, %v2121
      %v2128 = vpack.c.bf16 %v2124, %v2123
      %v2129 = vld [vmem:[%s16] sm:$0xf]
      %v2130 = vld [vmem:[%s16 + $0x4] sm:$0xf]
      %v2131 = vld [vmem:[%s16 + $0x8] sm:$0xf]
      %v2132 = vld [vmem:[%s16 + $0xc] sm:$0xf]
      %v2133 = vld [vmem:[%s16 + $0x10] sm:$0xf]
      %v2134 = vld [vmem:[%s16 + $0x14] sm:$0xf]
      %v2135 = vld [vmem:[%s16 + $0x18] sm:$0xf]
      %v2136 = vld [vmem:[%s16 + $0x1c] sm:$0xf]
      %v2137 = vld [vmem:[%s16 + $0x20] sm:$0xf]
      %v2138 = vld [vmem:[%s16 + $0x24] sm:$0xf]
      %v2139 = vld [vmem:[%s16 + $0x28] sm:$0xf]
      %v2140 = vld [vmem:[%s16 + $0x2c] sm:$0xf]
      %v2141 = vld [vmem:[%s16 + $0x30] sm:$0xf]
      %v2142 = vld [vmem:[%s16 + $0x34] sm:$0xf]
      %v2143 = vld [vmem:[%s16 + $0x38] sm:$0xf]
      %v2144 = vld [vmem:[%s16 + $0x3c] sm:$0xf]
      %v2145 = vld [vmem:[%s17] sm:$0x1]
      %v2147 = vlaneseq
      %v2148 = vshrl.u32 %v2147, 7
      %v2149 = vsub.s32 0, %v2148
      %v2150 = vrot.slane %v2145, %v2149
      %v2168 = vunpack.c.l.b16 %v2129
      %v2169 = vunpack.c.l.b16 %v2130
      %v2170 = vunpack.c.l.b16 %v2131
      %v2171 = vunpack.c.l.b16 %v2132
      %v2172 = vunpack.c.l.b16 %v2133
      %v2173 = vunpack.c.l.b16 %v2134
      %v2174 = vunpack.c.l.b16 %v2135
      %v2175 = vunpack.c.l.b16 %v2136
      %v2176 = vunpack.c.l.b16 %v2137
      %v2177 = vunpack.c.l.b16 %v2138
      %v2178 = vunpack.c.l.b16 %v2139
      %v2179 = vunpack.c.l.b16 %v2140
      %v2180 = vunpack.c.l.b16 %v2141
      %v2181 = vunpack.c.l.b16 %v2142
      %v2182 = vunpack.c.l.b16 %v2143
      %v2183 = vunpack.c.l.b16 %v2144
      %v2184 = vpack.c.b16 %v2169, %v2168
      %v2185 = vpack.c.b16 %v2171, %v2170
      %v2186 = vpack.c.b16 %v2173, %v2172
      %v2187 = vpack.c.b16 %v2175, %v2174
      %v2188 = vpack.c.b16 %v2177, %v2176
      %v2189 = vpack.c.b16 %v2179, %v2178
      %v2190 = vpack.c.b16 %v2181, %v2180
      %v2191 = vpack.c.b16 %v2183, %v2182
      %2200 = vmatprep.subr.bf16.mxu0 0
      %2201 = vmatpush1.bf16.msra.mxu0 %v2191
      %2202 = vmatprep.subr.bf16.mxu0 0
      %2203 = vmatpush1.bf16.msra.mxu0 %v2190
      %2204 = vmatprep.subr.bf16.mxu0 0
      %2205 = vmatpush1.bf16.msra.mxu0 %v2189
      %2206 = vmatprep.subr.bf16.mxu0 0
      %2207 = vmatpush1.bf16.msra.mxu0 %v2188
      %2208 = vmatprep.subr.bf16.mxu0 0
      %2209 = vmatpush1.bf16.msra.mxu0 %v2187
      %2210 = vmatprep.subr.bf16.mxu0 0
      %2211 = vmatpush1.bf16.msra.mxu0 %v2186
      %2212 = vmatprep.subr.bf16.mxu0 0
      %2213 = vmatpush1.bf16.msra.mxu0 %v2185
      %2214 = vmatprep.subr.bf16.mxu0 0
      %2215 = vmatpush1.bf16.msra.mxu0 %v2184
      %2216 = vmatprep.subr.bf16.mxu0 0
      %2217 = vmatpush2.bf16.msra.mxu0 0
      %2218 = vmatprep.subr.bf16.mxu0 0
      %2219 = vmatpush2.bf16.msra.mxu0 0
      %2220 = vmatprep.subr.bf16.mxu0 0
      %2221 = vmatpush2.bf16.msra.mxu0 0
      %2222 = vmatprep.subr.bf16.mxu0 0
      %2223 = vmatpush2.bf16.msra.mxu0 0
      %2224 = vmatprep.subr.bf16.mxu0 0
      %2225 = vmatpush2.bf16.msra.mxu0 0
      %2226 = vmatprep.subr.bf16.mxu0 0
      %2227 = vmatpush2.bf16.msra.mxu0 0
      %2228 = vmatprep.subr.bf16.mxu0 0
      %2229 = vmatpush2.bf16.msra.mxu0 0
      %2230 = vmatprep.subr.bf16.mxu0 0
      %2231 = vmatpush2.bf16.msra.mxu0 0
      %2232 = vmatprep.mubr.bf16.mxu0 0
      %2233 = vmatmul.mubr.bf16.gmra.mxu0 %v2125
      %v2234 = vpop.f32.mrf.mxu0
      %v2235 = vadd.f32 %v2150, %v2234
      %v2236 = vpop.f32.mrf.mxu0
      %v2237 = vpop.f32.mrf.mxu0
      %v2238 = vadd.f32 %v2150, %v2237
      %v2239 = vpop.f32.mrf.mxu0
      %2240 = vmatprep.mubr.bf16.mxu0 0
      %2241 = vmatmul.mubr.bf16.gmra.mxu0 %v2126
      %v2242 = vpop.f32.mrf.mxu0
      %v2243 = vadd.f32 %v2150, %v2242
      %v2244 = vpop.f32.mrf.mxu0
      %v2245 = vpop.f32.mrf.mxu0
      %v2246 = vadd.f32 %v2150, %v2245
      %v2247 = vpop.f32.mrf.mxu0
      %2248 = vmatprep.mubr.bf16.mxu0 0
      %2249 = vmatmul.mubr.bf16.gmra.mxu0 %v2127
      %v2250 = vpop.f32.mrf.mxu0
      %v2251 = vadd.f32 %v2150, %v2250
      %v2252 = vpop.f32.mrf.mxu0
      %v2253 = vpop.f32.mrf.mxu0
      %v2254 = vadd.f32 %v2150, %v2253
      %v2255 = vpop.f32.mrf.mxu0
      %2256 = vmatprep.mubr.bf16.mxu0 0
      %2257 = vmatmul.mubr.bf16.gmra.mxu0 %v2128
      %v2258 = vpop.f32.mrf.mxu0
      %v2259 = vadd.f32 %v2150, %v2258
      %v2260 = vpop.f32.mrf.mxu0
      %v2261 = vpop.f32.mrf.mxu0
      %v2262 = vadd.f32 %v2150, %v2261
      %v2263 = vpop.f32.mrf.mxu0
      %2264 = vdwg.mxu0
      %v2265 = vadd.f32 %v1807, %v2235
      %v2266 = vadd.f32 %v1808, %v2238
      %v2267 = vadd.f32 %v1809, %v2243
      %v2268 = vadd.f32 %v1810, %v2246
      %v2269 = vadd.f32 %v1811, %v2251
      %v2270 = vadd.f32 %v1812, %v2254
      %v2271 = vadd.f32 %v1813, %v2259
      %v2272 = vadd.f32 %v1814, %v2262
      %v2273 = vpack.c.bf16 %v2266, %v2265
      %v2274 = vpack.c.bf16 %v2268, %v2267
      %v2275 = vpack.c.bf16 %v2270, %v2269
      %v2276 = vpack.c.bf16 %v2272, %v2271
      %v2281 = vunpack.c.l.b16 %v2273
      %v2282 = vunpack.c.h.b16 %v2273
      %v2283 = vunpack.c.l.b16 %v2274
      %v2284 = vunpack.c.h.b16 %v2274
      %v2285 = vunpack.c.l.b16 %v2275
      %v2286 = vunpack.c.h.b16 %v2275
      %v2287 = vunpack.c.l.b16 %v2276
      %v2288 = vunpack.c.h.b16 %v2276
      %v2289 = vpack.c.b16 %v2281, %v2281
      %v2290 = vpack.c.b16 %v2282, %v2282
      %v2291 = vpack.c.b16 %v2283, %v2283
      %v2292 = vpack.c.b16 %v2284, %v2284
      %v2293 = vpack.c.b16 %v2285, %v2285
      %v2294 = vpack.c.b16 %v2286, %v2286
      %v2295 = vpack.c.b16 %v2287, %v2287
      %v2296 = vpack.c.b16 %v2288, %v2288
      %vm2305 = vcmask 257024
      %2306 = vst.msk [vmem:[%s575] sm:$0xf] %vm2305, %v2289
      %2307 = vst.msk [vmem:[%s575 + $0x4] sm:$0xf] %vm2305, %v2290
      %2308 = vst.msk [vmem:[%s575 + $0x8] sm:$0xf] %vm2305, %v2291
      %2309 = vst.msk [vmem:[%s575 + $0xc] sm:$0xf] %vm2305, %v2292
      %2310 = vst.msk [vmem:[%s575 + $0x10] sm:$0xf] %vm2305, %v2293
      %2311 = vst.msk [vmem:[%s575 + $0x14] sm:$0xf] %vm2305, %v2294
      %2312 = vst.msk [vmem:[%s575 + $0x18] sm:$0xf] %vm2305, %v2295
      %2313 = vst.msk [vmem:[%s575 + $0x1c] sm:$0xf] %vm2305, %v2296
      %p2314 = scmp.lt.s32.totalorder %s29, 1
      %s2315 = scalar_select %p2314, %s29, 1
      %s2316 = smul.addr %s2315, 8
      %s2317 = smul.addr %s2316, 4
      %s2318 = scalar_lea.vmem %s18, %s2317
      // Predicated region
      $region93: #{swin_forward.4} parent=91 // pred_check
        %p2319 = pneg %p430
      $region94: #{swin_forward.4} parent=91 // pred_check_branch
        %2321 = sbr.rel (%p2319) target = $region96
      $region95: #{swin_forward.4} parent=91 // pred_region
        _
      $region96: #{swin_forward.4} parent=91 // pred_fallthru
        _
    $region92: #{swin_forward.4} parent=5 // pred_fallthru
      _
    %p2322 = scmp.le.s32.totalorder 2, %s24
    // Predicated region
    $region97: #{swin_forward.4} parent=5 // pred_check
      %p2323 = pneg %p2322
    $region98: #{swin_forward.4} parent=5 // pred_check_branch
      %2325 = sbr.rel (%p2323) target = $region100
    $region99: #{swin_forward.4} parent=5 // pred_region
      %s2326 = ssub.s32 %s24, 2
      // Predicated region
      $region101: #{swin_forward.4} parent=99 // pred_check
        %p2327 = pneg %p436
      $region102: #{swin_forward.4} parent=99 // pred_check_branch
        %2329 = sbr.rel (%p2327) target = $region104
      $region103: #{swin_forward.4} parent=99 // pred_region
        %p2330 = scmp.lt.s32.totalorder %s30, 1
        %s2331 = scalar_select %p2330, %s30, 1
        %s2332 = smul.addr %s2331, 8
        %s2333 = smul.addr %s2332, 4
        %s2334 = scalar_lea.vmem %s18, %s2333
      $region104: #{swin_forward.4} parent=99 // pred_fallthru
        _
    $region100: #{swin_forward.4} parent=5 // pred_fallthru
      _
  $region6: #{swin_forward.4} parent=0 // loop_footer
    %s28 = sadd.s32 1, %s24
  $region7: #{swin_forward.4} parent=0 // loop_footer_branch
    %23 = sbr.rel target = $region3
  $region8: #{swin_forward.4} parent=0 // loop_exit
    _

// kernel: swin_forward.5
$region0: #{swin_forward.5}
  #allocation0 [shape = 'u32[]', space=smem, size = 0x4, offset = 0x4, fixed_abs, tag = 'smem constant byte address 0x4 - core index']
  #allocation1 [shape = 'u32[144,128]{1,0:T(1,128)}', space=vmem, size = 0x12000, scoped, tag = 'internal scratch']
  %s0 = inlined_call_operand.vmem [shape: bf16[2,64,32], index: 0, kind: input, shape index: {}]
  %s1 = inlined_call_operand.vmem [shape: f32[2,64,64], index: 1, kind: input, shape index: {}]
  %s2 = inlined_call_operand.vmem [shape: f32[1,32], index: 2, kind: input, shape index: {}]
  %s3 = inlined_call_operand.vmem [shape: f32[1,32], index: 3, kind: input, shape index: {}]
  %s4 = inlined_call_operand.vmem [shape: bf16[32,96], index: 4, kind: input, shape index: {}]
  %s5 = inlined_call_operand.vmem [shape: f32[1,96], index: 5, kind: input, shape index: {}]
  %s6 = inlined_call_operand.vmem [shape: bf16[32,32], index: 6, kind: input, shape index: {}]
  %s7 = inlined_call_operand.vmem [shape: f32[1,32], index: 7, kind: input, shape index: {}]
  %s8 = inlined_call_operand.vmem [shape: f32[1,32], index: 8, kind: input, shape index: {}]
  %s9 = inlined_call_operand.vmem [shape: f32[1,32], index: 9, kind: input, shape index: {}]
  %s10 = inlined_call_operand.vmem [shape: bf16[32,128], index: 10, kind: input, shape index: {}]
  %s11 = inlined_call_operand.vmem [shape: f32[1,128], index: 11, kind: input, shape index: {}]
  %s12 = inlined_call_operand.vmem [shape: bf16[128,32], index: 12, kind: input, shape index: {}]
  %s13 = inlined_call_operand.vmem [shape: f32[1,32], index: 13, kind: input, shape index: {}]
  %s14 = inlined_call_operand.vmem [shape: bf16[2,64,32], index: 14, kind: output, shape index: {}]
  %s15 = sld [smem:[#allocation0]]
  $region89: #{swin_forward.5} parent=0
    _
  %s17 = ssub.s32 1, %s15
  %s18 = scalar_select 0, %s17, %s15
  loop: start=0, step=1, limit=4
  $region2: #{swin_forward.5} parent=0 // loop_pre_header
    _
  $region3: #{swin_forward.5} parent=0 // loop_header
    %s20 = sphi 0, %s24
    %p21 = scmp.ge.s32.totalorder %s20, 4
    %s30 = sphi 0, %s32
    %s33 = sphi 0, %s30
    %s34 = sphi 0, %s33
    %s50 = sphi 0, %s34
    %s54 = sphi 0, %s54
    %s56 = sphi 0, %s54
    %s57 = sphi 0, %s56
    %s71 = sphi 0, %s57
    %s75 = sphi 0, %s75
    %s77 = sphi 0, %s75
    %s78 = sphi 0, %s77
    %s92 = sphi 0, %s78
    %s96 = sphi 0, %s96
    %s98 = sphi 0, %s96
    %s99 = sphi 0, %s98
    %s113 = sphi 0, %s99
    %s117 = sphi 0, %s117
    %s119 = sphi 0, %s117
    %s120 = sphi 0, %s119
    %s134 = sphi 0, %s120
    %s138 = sphi 0, %s138
    %s140 = sphi 0, %s138
    %s141 = sphi 0, %s140
    %s155 = sphi 0, %s141
    %s159 = sphi 0, %s159
    %s161 = sphi 0, %s159
    %s162 = sphi 0, %s161
    %s176 = sphi 0, %s162
    %s180 = sphi 0, %s180
    %s182 = sphi 0, %s180
    %s183 = sphi 0, %s182
    %s197 = sphi 0, %s183
    %s201 = sphi 0, %s201
    %s203 = sphi 0, %s201
    %s204 = sphi 0, %s203
    %s218 = sphi 0, %s204
    %s222 = sphi 0, %s222
    %s224 = sphi 0, %s222
    %s225 = sphi 0, %s224
    %s239 = sphi 0, %s225
    %s243 = sphi 0, %s243
    %s245 = sphi 0, %s243
    %s246 = sphi 0, %s245
    %s260 = sphi 0, %s246
    %s264 = sphi 0, %s264
    %s266 = sphi 0, %s264
    %s267 = sphi 0, %s266
    %s281 = sphi 0, %s267
    %s285 = sphi 0, %s285
    %s287 = sphi 0, %s285
    %s288 = sphi 0, %s287
    %s302 = sphi 0, %s288
    %s306 = sphi 0, %s306
    %s308 = sphi 0, %s306
    %s309 = sphi 0, %s308
    %s323 = sphi 0, %s309
    %s329 = sphi 0, %s331
    %s332 = sphi 0, %s329
    %s333 = sphi 0, %s332
    %s349 = sphi 0, %s333
  $region4: #{swin_forward.5} parent=0 // loop_header_branch
    %23 = sbr.rel (%p21) target = $region8
  $region5: #{swin_forward.5} parent=0 // loop_body
    %s25 = ssub.s32 %s20, 1
    %s26 = ssub.s32 %s20, 2
    %s27 = sadd.s32 %s20, 1
    %s28 = ssub.s32 %s20, %s27
    %p29 = scmp.eq.s32.totalorder %s28, 0
    %s31 = sadd.s32 %s30, 1
    %s32 = scalar_select %p29, %s30, %s31
    %p35 = pneg %p29
    %p36 = scmp.eq.s32.totalorder %s20, 1
    %p37 = por %p35, %p36
    %p38 = scmp.ne.s32.totalorder %s30, %s33
    %p39 = scmp.eq.s32.totalorder %s20, 0
    %p40 = por %p38, %p39
    %p41 = scmp.ne.s32.totalorder %s30, %s33
    %p42 = scmp.eq.s32.totalorder %s25, 1
    %p43 = por %p41, %p42
    %p44 = scmp.ne.s32.totalorder %s33, %s34
    %p45 = scmp.eq.s32.totalorder %s25, 0
    %p46 = por %p44, %p45
    %p47 = scmp.ne.s32.totalorder %s33, %s34
    %p48 = scmp.eq.s32.totalorder %s26, 1
    %p49 = por %p47, %p48
    %p51 = scmp.ne.s32.totalorder %s34, %s50
    %p52 = scmp.eq.s32.totalorder %s26, 0
    %p53 = por %p51, %p52
    %s55 = sadd.s32 %s54, 1
    %p58 = scmp.eq.s32.totalorder %s20, 1
    %p59 = scmp.ne.s32.totalorder %s54, %s56
    %p60 = scmp.eq.s32.totalorder %s20, 0
    %p61 = por %p59, %p60
    %p62 = scmp.ne.s32.totalorder %s54, %s56
    %p63 = scmp.eq.s32.totalorder %s25, 1
    %p64 = por %p62, %p63
    %p65 = scmp.ne.s32.totalorder %s56, %s57
    %p66 = scmp.eq.s32.totalorder %s25, 0
    %p67 = por %p65, %p66
    %p68 = scmp.ne.s32.totalorder %s56, %s57
    %p69 = scmp.eq.s32.totalorder %s26, 1
    %p70 = por %p68, %p69
    %p72 = scmp.ne.s32.totalorder %s57, %s71
    %p73 = scmp.eq.s32.totalorder %s26, 0
    %p74 = por %p72, %p73
    %s76 = sadd.s32 %s75, 1
    %p79 = scmp.eq.s32.totalorder %s20, 1
    %p80 = scmp.ne.s32.totalorder %s75, %s77
    %p81 = scmp.eq.s32.totalorder %s20, 0
    %p82 = por %p80, %p81
    %p83 = scmp.ne.s32.totalorder %s75, %s77
    %p84 = scmp.eq.s32.totalorder %s25, 1
    %p85 = por %p83, %p84
    %p86 = scmp.ne.s32.totalorder %s77, %s78
    %p87 = scmp.eq.s32.totalorder %s25, 0
    %p88 = por %p86, %p87
    %p89 = scmp.ne.s32.totalorder %s77, %s78
    %p90 = scmp.eq.s32.totalorder %s26, 1
    %p91 = por %p89, %p90
    %p93 = scmp.ne.s32.totalorder %s78, %s92
    %p94 = scmp.eq.s32.totalorder %s26, 0
    %p95 = por %p93, %p94
    %s97 = sadd.s32 %s96, 1
    %p100 = scmp.eq.s32.totalorder %s20, 1
    %p101 = scmp.ne.s32.totalorder %s96, %s98
    %p102 = scmp.eq.s32.totalorder %s20, 0
    %p103 = por %p101, %p102
    %p104 = scmp.ne.s32.totalorder %s96, %s98
    %p105 = scmp.eq.s32.totalorder %s25, 1
    %p106 = por %p104, %p105
    %p107 = scmp.ne.s32.totalorder %s98, %s99
    %p108 = scmp.eq.s32.totalorder %s25, 0
    %p109 = por %p107, %p108
    %p110 = scmp.ne.s32.totalorder %s98, %s99
    %p111 = scmp.eq.s32.totalorder %s26, 1
    %p112 = por %p110, %p111
    %p114 = scmp.ne.s32.totalorder %s99, %s113
    %p115 = scmp.eq.s32.totalorder %s26, 0
    %p116 = por %p114, %p115
    %s118 = sadd.s32 %s117, 1
    %p121 = scmp.eq.s32.totalorder %s20, 1
    %p122 = scmp.ne.s32.totalorder %s117, %s119
    %p123 = scmp.eq.s32.totalorder %s20, 0
    %p124 = por %p122, %p123
    %p125 = scmp.ne.s32.totalorder %s117, %s119
    %p126 = scmp.eq.s32.totalorder %s25, 1
    %p127 = por %p125, %p126
    %p128 = scmp.ne.s32.totalorder %s119, %s120
    %p129 = scmp.eq.s32.totalorder %s25, 0
    %p130 = por %p128, %p129
    %p131 = scmp.ne.s32.totalorder %s119, %s120
    %p132 = scmp.eq.s32.totalorder %s26, 1
    %p133 = por %p131, %p132
    %p135 = scmp.ne.s32.totalorder %s120, %s134
    %p136 = scmp.eq.s32.totalorder %s26, 0
    %p137 = por %p135, %p136
    %s139 = sadd.s32 %s138, 1
    %p142 = scmp.eq.s32.totalorder %s20, 1
    %p143 = scmp.ne.s32.totalorder %s138, %s140
    %p144 = scmp.eq.s32.totalorder %s20, 0
    %p145 = por %p143, %p144
    %p146 = scmp.ne.s32.totalorder %s138, %s140
    %p147 = scmp.eq.s32.totalorder %s25, 1
    %p148 = por %p146, %p147
    %p149 = scmp.ne.s32.totalorder %s140, %s141
    %p150 = scmp.eq.s32.totalorder %s25, 0
    %p151 = por %p149, %p150
    %p152 = scmp.ne.s32.totalorder %s140, %s141
    %p153 = scmp.eq.s32.totalorder %s26, 1
    %p154 = por %p152, %p153
    %p156 = scmp.ne.s32.totalorder %s141, %s155
    %p157 = scmp.eq.s32.totalorder %s26, 0
    %p158 = por %p156, %p157
    %s160 = sadd.s32 %s159, 1
    %p163 = scmp.eq.s32.totalorder %s20, 1
    %p164 = scmp.ne.s32.totalorder %s159, %s161
    %p165 = scmp.eq.s32.totalorder %s20, 0
    %p166 = por %p164, %p165
    %p167 = scmp.ne.s32.totalorder %s159, %s161
    %p168 = scmp.eq.s32.totalorder %s25, 1
    %p169 = por %p167, %p168
    %p170 = scmp.ne.s32.totalorder %s161, %s162
    %p171 = scmp.eq.s32.totalorder %s25, 0
    %p172 = por %p170, %p171
    %p173 = scmp.ne.s32.totalorder %s161, %s162
    %p174 = scmp.eq.s32.totalorder %s26, 1
    %p175 = por %p173, %p174
    %p177 = scmp.ne.s32.totalorder %s162, %s176
    %p178 = scmp.eq.s32.totalorder %s26, 0
    %p179 = por %p177, %p178
    %s181 = sadd.s32 %s180, 1
    %p184 = scmp.eq.s32.totalorder %s20, 1
    %p185 = scmp.ne.s32.totalorder %s180, %s182
    %p186 = scmp.eq.s32.totalorder %s20, 0
    %p187 = por %p185, %p186
    %p188 = scmp.ne.s32.totalorder %s180, %s182
    %p189 = scmp.eq.s32.totalorder %s25, 1
    %p190 = por %p188, %p189
    %p191 = scmp.ne.s32.totalorder %s182, %s183
    %p192 = scmp.eq.s32.totalorder %s25, 0
    %p193 = por %p191, %p192
    %p194 = scmp.ne.s32.totalorder %s182, %s183
    %p195 = scmp.eq.s32.totalorder %s26, 1
    %p196 = por %p194, %p195
    %p198 = scmp.ne.s32.totalorder %s183, %s197
    %p199 = scmp.eq.s32.totalorder %s26, 0
    %p200 = por %p198, %p199
    %s202 = sadd.s32 %s201, 1
    %p205 = scmp.eq.s32.totalorder %s20, 1
    %p206 = scmp.ne.s32.totalorder %s201, %s203
    %p207 = scmp.eq.s32.totalorder %s20, 0
    %p208 = por %p206, %p207
    %p209 = scmp.ne.s32.totalorder %s201, %s203
    %p210 = scmp.eq.s32.totalorder %s25, 1
    %p211 = por %p209, %p210
    %p212 = scmp.ne.s32.totalorder %s203, %s204
    %p213 = scmp.eq.s32.totalorder %s25, 0
    %p214 = por %p212, %p213
    %p215 = scmp.ne.s32.totalorder %s203, %s204
    %p216 = scmp.eq.s32.totalorder %s26, 1
    %p217 = por %p215, %p216
    %p219 = scmp.ne.s32.totalorder %s204, %s218
    %p220 = scmp.eq.s32.totalorder %s26, 0
    %p221 = por %p219, %p220
    %s223 = sadd.s32 %s222, 1
    %p226 = scmp.eq.s32.totalorder %s20, 1
    %p227 = scmp.ne.s32.totalorder %s222, %s224
    %p228 = scmp.eq.s32.totalorder %s20, 0
    %p229 = por %p227, %p228
    %p230 = scmp.ne.s32.totalorder %s222, %s224
    %p231 = scmp.eq.s32.totalorder %s25, 1
    %p232 = por %p230, %p231
    %p233 = scmp.ne.s32.totalorder %s224, %s225
    %p234 = scmp.eq.s32.totalorder %s25, 0
    %p235 = por %p233, %p234
    %p236 = scmp.ne.s32.totalorder %s224, %s225
    %p237 = scmp.eq.s32.totalorder %s26, 1
    %p238 = por %p236, %p237
    %p240 = scmp.ne.s32.totalorder %s225, %s239
    %p241 = scmp.eq.s32.totalorder %s26, 0
    %p242 = por %p240, %p241
    %s244 = sadd.s32 %s243, 1
    %p247 = scmp.eq.s32.totalorder %s20, 1
    %p248 = scmp.ne.s32.totalorder %s243, %s245
    %p249 = scmp.eq.s32.totalorder %s20, 0
    %p250 = por %p248, %p249
    %p251 = scmp.ne.s32.totalorder %s243, %s245
    %p252 = scmp.eq.s32.totalorder %s25, 1
    %p253 = por %p251, %p252
    %p254 = scmp.ne.s32.totalorder %s245, %s246
    %p255 = scmp.eq.s32.totalorder %s25, 0
    %p256 = por %p254, %p255
    %p257 = scmp.ne.s32.totalorder %s245, %s246
    %p258 = scmp.eq.s32.totalorder %s26, 1
    %p259 = por %p257, %p258
    %p261 = scmp.ne.s32.totalorder %s246, %s260
    %p262 = scmp.eq.s32.totalorder %s26, 0
    %p263 = por %p261, %p262
    %s265 = sadd.s32 %s264, 1
    %p268 = scmp.eq.s32.totalorder %s20, 1
    %p269 = scmp.ne.s32.totalorder %s264, %s266
    %p270 = scmp.eq.s32.totalorder %s20, 0
    %p271 = por %p269, %p270
    %p272 = scmp.ne.s32.totalorder %s264, %s266
    %p273 = scmp.eq.s32.totalorder %s25, 1
    %p274 = por %p272, %p273
    %p275 = scmp.ne.s32.totalorder %s266, %s267
    %p276 = scmp.eq.s32.totalorder %s25, 0
    %p277 = por %p275, %p276
    %p278 = scmp.ne.s32.totalorder %s266, %s267
    %p279 = scmp.eq.s32.totalorder %s26, 1
    %p280 = por %p278, %p279
    %p282 = scmp.ne.s32.totalorder %s267, %s281
    %p283 = scmp.eq.s32.totalorder %s26, 0
    %p284 = por %p282, %p283
    %s286 = sadd.s32 %s285, 1
    %p289 = scmp.eq.s32.totalorder %s20, 1
    %p290 = scmp.ne.s32.totalorder %s285, %s287
    %p291 = scmp.eq.s32.totalorder %s20, 0
    %p292 = por %p290, %p291
    %p293 = scmp.ne.s32.totalorder %s285, %s287
    %p294 = scmp.eq.s32.totalorder %s25, 1
    %p295 = por %p293, %p294
    %p296 = scmp.ne.s32.totalorder %s287, %s288
    %p297 = scmp.eq.s32.totalorder %s25, 0
    %p298 = por %p296, %p297
    %p299 = scmp.ne.s32.totalorder %s287, %s288
    %p300 = scmp.eq.s32.totalorder %s26, 1
    %p301 = por %p299, %p300
    %p303 = scmp.ne.s32.totalorder %s288, %s302
    %p304 = scmp.eq.s32.totalorder %s26, 0
    %p305 = por %p303, %p304
    %s307 = sadd.s32 %s306, 1
    %p310 = scmp.eq.s32.totalorder %s20, 1
    %p311 = scmp.ne.s32.totalorder %s306, %s308
    %p312 = scmp.eq.s32.totalorder %s20, 0
    %p313 = por %p311, %p312
    %p314 = scmp.ne.s32.totalorder %s306, %s308
    %p315 = scmp.eq.s32.totalorder %s25, 1
    %p316 = por %p314, %p315
    %p317 = scmp.ne.s32.totalorder %s308, %s309
    %p318 = scmp.eq.s32.totalorder %s25, 0
    %p319 = por %p317, %p318
    %p320 = scmp.ne.s32.totalorder %s308, %s309
    %p321 = scmp.eq.s32.totalorder %s26, 1
    %p322 = por %p320, %p321
    %p324 = scmp.ne.s32.totalorder %s309, %s323
    %p325 = scmp.eq.s32.totalorder %s26, 0
    %p326 = por %p324, %p325
    %s327 = ssub.s32 %s20, %s27
    %p328 = scmp.eq.s32.totalorder %s327, 0
    %s330 = sadd.s32 %s329, 1
    %s331 = scalar_select %p328, %s329, %s330
    %p334 = pneg %p328
    %p335 = scmp.eq.s32.totalorder %s20, 1
    %p336 = por %p334, %p335
    %p337 = scmp.ne.s32.totalorder %s329, %s332
    %p338 = scmp.eq.s32.totalorder %s20, 0
    %p339 = por %p337, %p338
    %p340 = scmp.ne.s32.totalorder %s329, %s332
    %p341 = scmp.eq.s32.totalorder %s25, 1
    %p342 = por %p340, %p341
    %p343 = scmp.ne.s32.totalorder %s332, %s333
    %p344 = scmp.eq.s32.totalorder %s25, 0
    %p345 = por %p343, %p344
    %p346 = scmp.ne.s32.totalorder %s332, %s333
    %p347 = scmp.eq.s32.totalorder %s26, 1
    %p348 = por %p346, %p347
    %p350 = scmp.ne.s32.totalorder %s333, %s349
    %p351 = scmp.eq.s32.totalorder %s26, 0
    %p352 = por %p350, %p351
    %p353 = scmp.le.s32.totalorder 1, %s20
    %p354 = scmp.lt.s32.totalorder %s20, 3
    %p355 = pnand %p353, %p354
    %p356 = pneg %p355
    // Predicated region
    $region9: #{swin_forward.5} parent=5 // pred_check
      _
    $region10: #{swin_forward.5} parent=5 // pred_check_branch
      %358 = sbr.rel (%p355) target = $region12
    $region11: #{swin_forward.5} parent=5 // pred_region
      %s359 = ssub.s32 %s20, 1
      // Predicated region
      $region13: #{swin_forward.5} parent=11 // pred_check
        %p360 = pneg %p67
      $region14: #{swin_forward.5} parent=11 // pred_check_branch
        %362 = sbr.rel (%p360) target = $region16
      $region15: #{swin_forward.5} parent=11 // pred_region
        _
      $region16: #{swin_forward.5} parent=11 // pred_fallthru
        _
      // Predicated region
      $region17: #{swin_forward.5} parent=11 // pred_check
        %p363 = pneg %p88
      $region18: #{swin_forward.5} parent=11 // pred_check_branch
        %365 = sbr.rel (%p363) target = $region20
      $region19: #{swin_forward.5} parent=11 // pred_region
        _
      $region20: #{swin_forward.5} parent=11 // pred_fallthru
        _
      // Predicated region
      $region21: #{swin_forward.5} parent=11 // pred_check
        %p366 = pneg %p109
      $region22: #{swin_forward.5} parent=11 // pred_check_branch
        %368 = sbr.rel (%p366) target = $region24
      $region23: #{swin_forward.5} parent=11 // pred_region
        _
      $region24: #{swin_forward.5} parent=11 // pred_fallthru
        _
      // Predicated region
      $region25: #{swin_forward.5} parent=11 // pred_check
        %p369 = pneg %p130
      $region26: #{swin_forward.5} parent=11 // pred_check_branch
        %371 = sbr.rel (%p369) target = $region28
      $region27: #{swin_forward.5} parent=11 // pred_region
        _
      $region28: #{swin_forward.5} parent=11 // pred_fallthru
        _
      // Predicated region
      $region29: #{swin_forward.5} parent=11 // pred_check
        %p372 = pneg %p151
      $region30: #{swin_forward.5} parent=11 // pred_check_branch
        %374 = sbr.rel (%p372) target = $region32
      $region31: #{swin_forward.5} parent=11 // pred_region
        _
      $region32: #{swin_forward.5} parent=11 // pred_fallthru
        _
      // Predicated region
      $region33: #{swin_forward.5} parent=11 // pred_check
        %p375 = pneg %p172
      $region34: #{swin_forward.5} parent=11 // pred_check_branch
        %377 = sbr.rel (%p375) target = $region36
      $region35: #{swin_forward.5} parent=11 // pred_region
        _
      $region36: #{swin_forward.5} parent=11 // pred_fallthru
        _
      // Predicated region
      $region37: #{swin_forward.5} parent=11 // pred_check
        %p378 = pneg %p193
      $region38: #{swin_forward.5} parent=11 // pred_check_branch
        %380 = sbr.rel (%p378) target = $region40
      $region39: #{swin_forward.5} parent=11 // pred_region
        _
      $region40: #{swin_forward.5} parent=11 // pred_fallthru
        _
      // Predicated region
      $region41: #{swin_forward.5} parent=11 // pred_check
        %p381 = pneg %p214
      $region42: #{swin_forward.5} parent=11 // pred_check_branch
        %383 = sbr.rel (%p381) target = $region44
      $region43: #{swin_forward.5} parent=11 // pred_region
        _
      $region44: #{swin_forward.5} parent=11 // pred_fallthru
        _
      // Predicated region
      $region45: #{swin_forward.5} parent=11 // pred_check
        %p384 = pneg %p235
      $region46: #{swin_forward.5} parent=11 // pred_check_branch
        %386 = sbr.rel (%p384) target = $region48
      $region47: #{swin_forward.5} parent=11 // pred_region
        _
      $region48: #{swin_forward.5} parent=11 // pred_fallthru
        _
      // Predicated region
      $region49: #{swin_forward.5} parent=11 // pred_check
        %p387 = pneg %p256
      $region50: #{swin_forward.5} parent=11 // pred_check_branch
        %389 = sbr.rel (%p387) target = $region52
      $region51: #{swin_forward.5} parent=11 // pred_region
        _
      $region52: #{swin_forward.5} parent=11 // pred_fallthru
        _
      // Predicated region
      $region53: #{swin_forward.5} parent=11 // pred_check
        %p390 = pneg %p277
      $region54: #{swin_forward.5} parent=11 // pred_check_branch
        %392 = sbr.rel (%p390) target = $region56
      $region55: #{swin_forward.5} parent=11 // pred_region
        _
      $region56: #{swin_forward.5} parent=11 // pred_fallthru
        _
      // Predicated region
      $region57: #{swin_forward.5} parent=11 // pred_check
        %p393 = pneg %p298
      $region58: #{swin_forward.5} parent=11 // pred_check_branch
        %395 = sbr.rel (%p393) target = $region60
      $region59: #{swin_forward.5} parent=11 // pred_region
        _
      $region60: #{swin_forward.5} parent=11 // pred_fallthru
        _
      // Predicated region
      $region61: #{swin_forward.5} parent=11 // pred_check
        %p396 = pneg %p319
      $region62: #{swin_forward.5} parent=11 // pred_check_branch
        %398 = sbr.rel (%p396) target = $region64
      $region63: #{swin_forward.5} parent=11 // pred_region
        _
      $region64: #{swin_forward.5} parent=11 // pred_fallthru
        _
    $region12: #{swin_forward.5} parent=5 // pred_fallthru
      _
    %p399 = scmp.lt.s32.totalorder %s20, 2
    // Predicated region
    $region65: #{swin_forward.5} parent=5 // pred_check
      %p400 = pneg %p399
    $region66: #{swin_forward.5} parent=5 // pred_check_branch
      %402 = sbr.rel (%p400) target = $region68
    $region67: #{swin_forward.5} parent=5 // pred_region
      // Predicated region
      $region69: #{swin_forward.5} parent=67 // pred_check
        %p403 = pneg %p40
      $region70: #{swin_forward.5} parent=67 // pred_check_branch
        %405 = sbr.rel (%p403) target = $region72
      $region71: #{swin_forward.5} parent=67 // pred_region
        %p406 = scmp.lt.s32.totalorder %s20, 1
        %s407 = scalar_select %p406, %s20, 1
        %s408 = smul.addr %s407, 8
        %s409 = smul.addr %s408, 4
        %s410 = scalar_lea.vmem %s0, %s409
      $region72: #{swin_forward.5} parent=67 // pred_fallthru
        _
    $region68: #{swin_forward.5} parent=5 // pred_fallthru
      _
    %p411 = scmp.le.s32.totalorder 1, %s20
    %p412 = scmp.lt.s32.totalorder %s20, 3
    %p413 = pnand %p411, %p412
    %p414 = pneg %p413
    // Predicated region
    $region73: #{swin_forward.5} parent=5 // pred_check
      _
    $region74: #{swin_forward.5} parent=5 // pred_check_branch
      %416 = sbr.rel (%p413) target = $region76
    $region75: #{swin_forward.5} parent=5 // pred_region
      %s417 = ssub.s32 %s20, 1
      %p418 = scmp.lt.s32.totalorder %s25, 1
      %s419 = scalar_select %p418, %s25, 1
      %s420 = smul.addr %s419, 8
      %s421 = smul.addr %s420, 4
      %s422 = scalar_lea.vmem %s0, %s421
      %p423 = pneg %p46
      %p424 = pneg %p43
      %p425 = pneg %p67
      %p426 = pneg %p64
      %p427 = pneg %p88
      %p428 = pneg %p85
      %p429 = pneg %p109
      %p430 = pneg %p106
      %p431 = pneg %p130
      %p432 = pneg %p127
      %p433 = pneg %p151
      %p434 = pneg %p148
      %p435 = pneg %p172
      %p436 = pneg %p169
      %p437 = pneg %p193
      %p438 = pneg %p190
      %p439 = pneg %p214
      %p440 = pneg %p211
      %p441 = pneg %p235
      %p442 = pneg %p232
      %p443 = pneg %p256
      %p444 = pneg %p253
      %p445 = pneg %p277
      %p446 = pneg %p274
      %p447 = pneg %p298
      %p448 = pneg %p295
      %p449 = pneg %p319
      %p450 = pneg %p316
      %p451 = pneg %p345
      %p452 = pneg %p342
      %p453 = scmp.lt.s32.totalorder %s25, 1
      %s454 = scalar_select %p453, %s25, 1
      %s455 = smul.addr %s454, 8
      %s456 = smul.addr %s455, 4
      %s457 = scalar_lea.vmem %s14, %s456
      %p458 = scmp.lt.s32.totalorder %s25, 1
      %s459 = scalar_select %p458, %s25, 1
      %s460 = smul.addr %s459, 8
      %s461 = smul.addr %s460, 4
      %s462 = scalar_lea.vmem %s0, %s461
      %p463 = scmp.lt.s32.totalorder %s25, 1
      %s464 = scalar_select %p463, %s25, 1
      %s465 = smul.addr %s464, 8
      %s466 = smul.addr %s465, 4
      %s467 = scalar_lea.vmem %s14, %s466
      %v469 = vld [vmem:[%s462] sm:$0xf]
      %v470 = vld [vmem:[%s462 + $0x4] sm:$0xf]
      %v471 = vld [vmem:[%s462 + $0x8] sm:$0xf]
      %v472 = vld [vmem:[%s462 + $0xc] sm:$0xf]
      %v473 = vld [vmem:[%s462 + $0x10] sm:$0xf]
      %v474 = vld [vmem:[%s462 + $0x14] sm:$0xf]
      %v475 = vld [vmem:[%s462 + $0x18] sm:$0xf]
      %v476 = vld [vmem:[%s462 + $0x1c] sm:$0xf]
      %v477 = vunpack.c.l.bf16 %v469
      %v478 = vunpack.c.l.bf16 %v470
      %v479 = vunpack.c.l.bf16 %v471
      %v480 = vunpack.c.l.bf16 %v472
      %v481 = vunpack.c.l.bf16 %v473
      %v482 = vunpack.c.l.bf16 %v474
      %v483 = vunpack.c.l.bf16 %v475
      %v484 = vunpack.c.l.bf16 %v476
      %v485 = vld [vmem:[%s2] sm:$0x1]
      %v486 = vld [vmem:[%s3] sm:$0x1]
      %vm487 = vcmask 261120
      %v488 = vsel %vm487, %v477, 0.0
      %489 = vadd.xlane.f32.xlu0 %v488
      %v490 = vpop.xlane.xlu0 %489
      %v491 = vsel %vm487, %v478, 0.0
      %492 = vadd.xlane.f32.xlu0 %v491
      %v493 = vpop.xlane.xlu0 %492
      %v494 = vsel %vm487, %v479, 0.0
      %495 = vadd.xlane.f32.xlu0 %v494
      %v496 = vpop.xlane.xlu0 %495
      %v497 = vsel %vm487, %v480, 0.0
      %498 = vadd.xlane.f32.xlu0 %v497
      %v499 = vpop.xlane.xlu0 %498
      %v500 = vsel %vm487, %v481, 0.0
      %501 = vadd.xlane.f32.xlu0 %v500
      %v502 = vpop.xlane.xlu0 %501
      %v503 = vsel %vm487, %v482, 0.0
      %504 = vadd.xlane.f32.xlu0 %v503
      %v505 = vpop.xlane.xlu0 %504
      %v506 = vsel %vm487, %v483, 0.0
      %507 = vadd.xlane.f32.xlu0 %v506
      %v508 = vpop.xlane.xlu0 %507
      %v509 = vsel %vm487, %v484, 0.0
      %510 = vadd.xlane.f32.xlu0 %v509
      %v511 = vpop.xlane.xlu0 %510
      %v512 = vrcp.pop 32.0
      %v513 = vmul.f32 %v490, %v512
      %v514 = vmul.f32 %v493, %v512
      %v515 = vmul.f32 %v496, %v512
      %v516 = vmul.f32 %v499, %v512
      %v517 = vmul.f32 %v502, %v512
      %v518 = vmul.f32 %v505, %v512
      %v519 = vmul.f32 %v508, %v512
      %v520 = vmul.f32 %v511, %v512
      %v521 = vsub.f32 %v477, %v513
      %v522 = vsub.f32 %v478, %v514
      %v523 = vsub.f32 %v479, %v515
      %v524 = vsub.f32 %v480, %v516
      %v525 = vsub.f32 %v481, %v517
      %v526 = vsub.f32 %v482, %v518
      %v527 = vsub.f32 %v483, %v519
      %v528 = vsub.f32 %v484, %v520
      %v529 = vmul.f32 %v521, %v521
      %v530 = vmul.f32 %v522, %v522
      %v531 = vmul.f32 %v523, %v523
      %v532 = vmul.f32 %v524, %v524
      %v533 = vmul.f32 %v525, %v525
      %v534 = vmul.f32 %v526, %v526
      %v535 = vmul.f32 %v527, %v527
      %v536 = vmul.f32 %v528, %v528
      %v537 = vsel %vm487, %v529, 0.0
      %538 = vadd.xlane.f32.xlu0 %v537
      %v539 = vpop.xlane.xlu0 %538
      %v540 = vsel %vm487, %v530, 0.0
      %541 = vadd.xlane.f32.xlu0 %v540
      %v542 = vpop.xlane.xlu0 %541
      %v543 = vsel %vm487, %v531, 0.0
      %544 = vadd.xlane.f32.xlu0 %v543
      %v545 = vpop.xlane.xlu0 %544
      %v546 = vsel %vm487, %v532, 0.0
      %547 = vadd.xlane.f32.xlu0 %v546
      %v548 = vpop.xlane.xlu0 %547
      %v549 = vsel %vm487, %v533, 0.0
      %550 = vadd.xlane.f32.xlu0 %v549
      %v551 = vpop.xlane.xlu0 %550
      %v552 = vsel %vm487, %v534, 0.0
      %553 = vadd.xlane.f32.xlu0 %v552
      %v554 = vpop.xlane.xlu0 %553
      %v555 = vsel %vm487, %v535, 0.0
      %556 = vadd.xlane.f32.xlu0 %v555
      %v557 = vpop.xlane.xlu0 %556
      %v558 = vsel %vm487, %v536, 0.0
      %559 = vadd.xlane.f32.xlu0 %v558
      %v560 = vpop.xlane.xlu0 %559
      %v561 = vmul.f32 %v539, %v512
      %v562 = vmul.f32 %v542, %v512
      %v563 = vmul.f32 %v545, %v512
      %v564 = vmul.f32 %v548, %v512
      %v565 = vmul.f32 %v551, %v512
      %v566 = vmul.f32 %v554, %v512
      %v567 = vmul.f32 %v557, %v512
      %v568 = vmul.f32 %v560, %v512
      %v569 = vadd.f32 %v561, 1e-05
      %v570 = vadd.f32 %v562, 1e-05
      %v571 = vadd.f32 %v563, 1e-05
      %v572 = vadd.f32 %v564, 1e-05
      %v573 = vadd.f32 %v565, 1e-05
      %v574 = vadd.f32 %v566, 1e-05
      %v575 = vadd.f32 %v567, 1e-05
      %v576 = vadd.f32 %v568, 1e-05
      %v577 = vrsqrt.pop %v569
      %v578 = vrsqrt.pop %v570
      %v579 = vrsqrt.pop %v571
      %v580 = vrsqrt.pop %v572
      %v581 = vrsqrt.pop %v573
      %v582 = vrsqrt.pop %v574
      %v583 = vrsqrt.pop %v575
      %v584 = vrsqrt.pop %v576
      %v585 = vmul.f32 %v521, %v577
      %v586 = vmul.f32 %v522, %v578
      %v587 = vmul.f32 %v523, %v579
      %v588 = vmul.f32 %v524, %v580
      %v589 = vmul.f32 %v525, %v581
      %v590 = vmul.f32 %v526, %v582
      %v591 = vmul.f32 %v527, %v583
      %v592 = vmul.f32 %v528, %v584
      %v594 = vlaneseq
      %v595 = vshrl.u32 %v594, 7
      %v596 = vsub.s32 0, %v595
      %v597 = vrot.slane %v485, %v596
      %v599 = vmul.f32 %v585, %v597
      %v600 = vmul.f32 %v586, %v597
      %v601 = vmul.f32 %v587, %v597
      %v602 = vmul.f32 %v588, %v597
      %v603 = vmul.f32 %v589, %v597
      %v604 = vmul.f32 %v590, %v597
      %v605 = vmul.f32 %v591, %v597
      %v606 = vmul.f32 %v592, %v597
      %v608 = vlaneseq
      %v609 = vshrl.u32 %v608, 7
      %v610 = vsub.s32 0, %v609
      %v611 = vrot.slane %v486, %v610
      %v613 = vadd.f32 %v599, %v611
      %v614 = vadd.f32 %v600, %v611
      %v615 = vadd.f32 %v601, %v611
      %v616 = vadd.f32 %v602, %v611
      %v617 = vadd.f32 %v603, %v611
      %v618 = vadd.f32 %v604, %v611
      %v619 = vadd.f32 %v605, %v611
      %v620 = vadd.f32 %v606, %v611
      %v621 = vpack.c.bf16 %v614, %v613
      %v622 = vpack.c.bf16 %v616, %v615
      %v623 = vpack.c.bf16 %v618, %v617
      %v624 = vpack.c.bf16 %v620, %v619
      %v625 = vld [vmem:[%s4] sm:$0xf]
      %v626 = vld [vmem:[%s4 + $0x4] sm:$0xf]
      %v627 = vld [vmem:[%s4 + $0x8] sm:$0xf]
      %v628 = vld [vmem:[%s4 + $0xc] sm:$0xf]
      %v629 = vld [vmem:[%s5] sm:$0x1]
      %v631 = vlaneseq
      %v632 = vshrl.u32 %v631, 7
      %v633 = vsub.s32 0, %v632
      %v634 = vrot.slane %v629, %v633
      %v640 = vunpack.c.l.b16 %v625
      %v641 = vunpack.c.l.b16 %v626
      %v642 = vunpack.c.l.b16 %v627
      %v643 = vunpack.c.l.b16 %v628
      %v644 = vpack.c.b16 %v641, %v640
      %v645 = vpack.c.b16 %v643, %v642
      %v649 = vsel %vm487, %v621, 0
      %v652 = vsel %vm487, %v622, 0
      %v655 = vsel %vm487, %v623, 0
      %v658 = vsel %vm487, %v624, 0
      %660 = vmatprep.subr.bf16.mxu0 0
      %661 = vmatpush1.bf16.msra.mxu0 0
      %662 = vmatprep.subr.bf16.mxu0 0
      %663 = vmatpush1.bf16.msra.mxu0 0
      %664 = vmatprep.subr.bf16.mxu0 0
      %665 = vmatpush1.bf16.msra.mxu0 0
      %666 = vmatprep.subr.bf16.mxu0 0
      %667 = vmatpush1.bf16.msra.mxu0 0
      %668 = vmatprep.subr.bf16.mxu0 0
      %669 = vmatpush1.bf16.msra.mxu0 0
      %670 = vmatprep.subr.bf16.mxu0 0
      %671 = vmatpush1.bf16.msra.mxu0 0
      %672 = vmatprep.subr.bf16.mxu0 0
      %673 = vmatpush1.bf16.msra.mxu0 %v645
      %674 = vmatprep.subr.bf16.mxu0 0
      %675 = vmatpush1.bf16.msra.mxu0 %v644
      %676 = vmatprep.subr.bf16.mxu0 0
      %677 = vmatpush2.bf16.msra.mxu0 0
      %678 = vmatprep.subr.bf16.mxu0 0
      %679 = vmatpush2.bf16.msra.mxu0 0
      %680 = vmatprep.subr.bf16.mxu0 0
      %681 = vmatpush2.bf16.msra.mxu0 0
      %682 = vmatprep.subr.bf16.mxu0 0
      %683 = vmatpush2.bf16.msra.mxu0 0
      %684 = vmatprep.subr.bf16.mxu0 0
      %685 = vmatpush2.bf16.msra.mxu0 0
      %686 = vmatprep.subr.bf16.mxu0 0
      %687 = vmatpush2.bf16.msra.mxu0 0
      %688 = vmatprep.subr.bf16.mxu0 0
      %689 = vmatpush2.bf16.msra.mxu0 0
      %690 = vmatprep.subr.bf16.mxu0 0
      %691 = vmatpush2.bf16.msra.mxu0 0
      %692 = vmatprep.mubr.bf16.mxu0 0
      %693 = vmatmul.mubr.bf16.gmra.mxu0 %v649
      %v694 = vpop.f32.mrf.mxu0
      %v695 = vadd.f32 %v634, %v694
      %v696 = vpop.f32.mrf.mxu0
      %v697 = vpop.f32.mrf.mxu0
      %v698 = vadd.f32 %v634, %v697
      %v699 = vpop.f32.mrf.mxu0
      %700 = vmatprep.mubr.bf16.mxu0 0
      %701 = vmatmul.mubr.bf16.gmra.mxu0 %v652
      %v702 = vpop.f32.mrf.mxu0
      %v703 = vadd.f32 %v634, %v702
      %v704 = vpop.f32.mrf.mxu0
      %v705 = vpop.f32.mrf.mxu0
      %v706 = vadd.f32 %v634, %v705
      %v707 = vpop.f32.mrf.mxu0
      %708 = vmatprep.mubr.bf16.mxu0 0
      %709 = vmatmul.mubr.bf16.gmra.mxu0 %v655
      %v710 = vpop.f32.mrf.mxu0
      %v711 = vadd.f32 %v634, %v710
      %v712 = vpop.f32.mrf.mxu0
      %v713 = vpop.f32.mrf.mxu0
      %v714 = vadd.f32 %v634, %v713
      %v715 = vpop.f32.mrf.mxu0
      %716 = vmatprep.mubr.bf16.mxu0 0
      %717 = vmatmul.mubr.bf16.gmra.mxu0 %v658
      %v718 = vpop.f32.mrf.mxu0
      %v719 = vadd.f32 %v634, %v718
      %v720 = vpop.f32.mrf.mxu0
      %v721 = vpop.f32.mrf.mxu0
      %v722 = vadd.f32 %v634, %v721
      %v723 = vpop.f32.mrf.mxu0
      %724 = vdwg.mxu0
      %v725 = vpack.c.bf16 %v698, %v695
      %v726 = vpack.c.bf16 %v706, %v703
      %v727 = vpack.c.bf16 %v714, %v711
      %v728 = vpack.c.bf16 %v722, %v719
      %v729 = vld [vmem:[%s1] sm:$0xff]
      %v730 = vld [vmem:[%s1 + $0x8] sm:$0xff]
      %v731 = vld [vmem:[%s1 + $0x10] sm:$0xff]
      %v732 = vld [vmem:[%s1 + $0x18] sm:$0xff]
      %v733 = vld [vmem:[%s1 + $0x20] sm:$0xff]
      %v734 = vld [vmem:[%s1 + $0x28] sm:$0xff]
      %v735 = vld [vmem:[%s1 + $0x30] sm:$0xff]
      %v736 = vld [vmem:[%s1 + $0x38] sm:$0xff]
      %741 = vrot.lane.b32.xlu0 %v725, 96
      %v742 = vpop.permute.xlu0 %741
      %743 = vrot.lane.b32.xlu0 %v726, 96
      %v744 = vpop.permute.xlu0 %743
      %745 = vrot.lane.b32.xlu0 %v727, 96
      %v746 = vpop.permute.xlu0 %745
      %747 = vrot.lane.b32.xlu0 %v728, 96
      %v748 = vpop.permute.xlu0 %747
      %vm749 = vcmask 130048
      %v751 = vsel %vm749, %v725, 0
      %v754 = vsel %vm749, %v726, 0
      %v757 = vsel %vm749, %v727, 0
      %v760 = vsel %vm749, %v728, 0
      %v763 = vsel %vm749, %v742, 0
      %v766 = vsel %vm749, %v744, 0
      %v769 = vsel %vm749, %v746, 0
      %v772 = vsel %vm749, %v748, 0
      %774 = vmatprep.subr.bf16.mxu0 0
      %775 = vmatpush1.bf16.xpose.msra.mxu0 0
      %776 = vmatprep.subr.bf16.mxu0 0
      %777 = vmatpush1.bf16.xpose.msra.mxu0 0
      %778 = vmatprep.subr.bf16.mxu0 0
      %779 = vmatpush1.bf16.xpose.msra.mxu0 0
      %780 = vmatprep.subr.bf16.mxu0 0
      %781 = vmatpush1.bf16.xpose.msra.mxu0 0
      %782 = vmatprep.subr.bf16.mxu0 0
      %783 = vmatpush1.bf16.xpose.msra.mxu0 %v772
      %784 = vmatprep.subr.bf16.mxu0 0
      %785 = vmatpush1.bf16.xpose.msra.mxu0 %v769
      %786 = vmatprep.subr.bf16.mxu0 0
      %787 = vmatpush1.bf16.xpose.msra.mxu0 %v766
      %788 = vmatprep.subr.bf16.mxu0 0
      %789 = vmatpush1.bf16.xpose.msra.mxu0 %v763
      %790 = vmatprep.subr.bf16.mxu0 0
      %791 = vmatpush2.bf16.xpose.msra.mxu0 0
      %792 = vmatprep.subr.bf16.mxu0 0
      %793 = vmatpush2.bf16.xpose.msra.mxu0 0
      %794 = vmatprep.subr.bf16.mxu0 0
      %795 = vmatpush2.bf16.xpose.msra.mxu0 0
      %796 = vmatprep.subr.bf16.mxu0 0
      %797 = vmatpush2.bf16.xpose.msra.mxu0 0
      %798 = vmatprep.subr.bf16.mxu0 0
      %799 = vmatpush2.bf16.xpose.msra.mxu0 0
      %800 = vmatprep.subr.bf16.mxu0 0
      %801 = vmatpush2.bf16.xpose.msra.mxu0 0
      %802 = vmatprep.subr.bf16.mxu0 0
      %803 = vmatpush2.bf16.xpose.msra.mxu0 0
      %804 = vmatprep.subr.bf16.mxu0 0
      %805 = vmatpush2.bf16.xpose.msra.mxu0 0
      %806 = vmatprep.mubr.bf16.mxu0 0
      %807 = vmatmul.mubr.bf16.gmra.mxu0 %v751
      %v808 = vpop.f32.mrf.mxu0
      %v809 = vadd.f32 %v729, %v808
      %v810 = vpop.f32.mrf.mxu0
      %v811 = vpop.f32.mrf.mxu0
      %v812 = vadd.f32 %v730, %v811
      %v813 = vpop.f32.mrf.mxu0
      %814 = vmatprep.mubr.bf16.mxu0 0
      %815 = vmatmul.mubr.bf16.gmra.mxu0 %v754
      %v816 = vpop.f32.mrf.mxu0
      %v817 = vadd.f32 %v731, %v816
      %v818 = vpop.f32.mrf.mxu0
      %v819 = vpop.f32.mrf.mxu0
      %v820 = vadd.f32 %v732, %v819
      %v821 = vpop.f32.mrf.mxu0
      %822 = vmatprep.mubr.bf16.mxu0 0
      %823 = vmatmul.mubr.bf16.gmra.mxu0 %v757
      %v824 = vpop.f32.mrf.mxu0
      %v825 = vadd.f32 %v733, %v824
      %v826 = vpop.f32.mrf.mxu0
      %v827 = vpop.f32.mrf.mxu0
      %v828 = vadd.f32 %v734, %v827
      %v829 = vpop.f32.mrf.mxu0
      %830 = vmatprep.mubr.bf16.mxu0 0
      %831 = vmatmul.mubr.bf16.gmra.mxu0 %v760
      %v832 = vpop.f32.mrf.mxu0
      %v833 = vadd.f32 %v735, %v832
      %v834 = vpop.f32.mrf.mxu0
      %v835 = vpop.f32.mrf.mxu0
      %v836 = vadd.f32 %v736, %v835
      %v837 = vpop.f32.mrf.mxu0
      %838 = vdwg.mxu0
      %vm839 = vcmask 523264
      %v840 = vsel %vm839, %v809, -inf
      %841 = vmax.xlane.f32.xlu0 %v840
      %v842 = vpop.xlane.xlu0 %841
      %v843 = vsel %vm839, %v812, -inf
      %844 = vmax.xlane.f32.xlu0 %v843
      %v845 = vpop.xlane.xlu0 %844
      %v846 = vsel %vm839, %v817, -inf
      %847 = vmax.xlane.f32.xlu0 %v846
      %v848 = vpop.xlane.xlu0 %847
      %v849 = vsel %vm839, %v820, -inf
      %850 = vmax.xlane.f32.xlu0 %v849
      %v851 = vpop.xlane.xlu0 %850
      %v852 = vsel %vm839, %v825, -inf
      %853 = vmax.xlane.f32.xlu0 %v852
      %v854 = vpop.xlane.xlu0 %853
      %v855 = vsel %vm839, %v828, -inf
      %856 = vmax.xlane.f32.xlu0 %v855
      %v857 = vpop.xlane.xlu0 %856
      %v858 = vsel %vm839, %v833, -inf
      %859 = vmax.xlane.f32.xlu0 %v858
      %v860 = vpop.xlane.xlu0 %859
      %v861 = vsel %vm839, %v836, -inf
      %862 = vmax.xlane.f32.xlu0 %v861
      %v863 = vpop.xlane.xlu0 %862
      %v864 = vsub.f32 %v809, %v842
      %v865 = vsub.f32 %v812, %v845
      %v866 = vsub.f32 %v817, %v848
      %v867 = vsub.f32 %v820, %v851
      %v868 = vsub.f32 %v825, %v854
      %v869 = vsub.f32 %v828, %v857
      %v870 = vsub.f32 %v833, %v860
      %v871 = vsub.f32 %v836, %v863
      %v872 = vmul.f32 %v864, 1.442695
      %v873 = vpow.pop %v872
      %v874 = vmul.f32 %v865, 1.442695
      %v875 = vpow.pop %v874
      %v876 = vmul.f32 %v866, 1.442695
      %v877 = vpow.pop %v876
      %v878 = vmul.f32 %v867, 1.442695
      %v879 = vpow.pop %v878
      %v880 = vmul.f32 %v868, 1.442695
      %v881 = vpow.pop %v880
      %v882 = vmul.f32 %v869, 1.442695
      %v883 = vpow.pop %v882
      %v884 = vmul.f32 %v870, 1.442695
      %v885 = vpow.pop %v884
      %v886 = vmul.f32 %v871, 1.442695
      %v887 = vpow.pop %v886
      %v888 = vsel %vm839, %v873, 0.0
      %889 = vadd.xlane.f32.xlu0 %v888
      %v890 = vpop.xlane.xlu0 %889
      %v891 = vsel %vm839, %v875, 0.0
      %892 = vadd.xlane.f32.xlu0 %v891
      %v893 = vpop.xlane.xlu0 %892
      %v894 = vsel %vm839, %v877, 0.0
      %895 = vadd.xlane.f32.xlu0 %v894
      %v896 = vpop.xlane.xlu0 %895
      %v897 = vsel %vm839, %v879, 0.0
      %898 = vadd.xlane.f32.xlu0 %v897
      %v899 = vpop.xlane.xlu0 %898
      %v900 = vsel %vm839, %v881, 0.0
      %901 = vadd.xlane.f32.xlu0 %v900
      %v902 = vpop.xlane.xlu0 %901
      %v903 = vsel %vm839, %v883, 0.0
      %904 = vadd.xlane.f32.xlu0 %v903
      %v905 = vpop.xlane.xlu0 %904
      %v906 = vsel %vm839, %v885, 0.0
      %907 = vadd.xlane.f32.xlu0 %v906
      %v908 = vpop.xlane.xlu0 %907
      %v909 = vsel %vm839, %v887, 0.0
      %910 = vadd.xlane.f32.xlu0 %v909
      %v911 = vpop.xlane.xlu0 %910
      %v912 = vrcp.pop %v890
      %v913 = vrcp.pop %v893
      %v914 = vrcp.pop %v896
      %v915 = vrcp.pop %v899
      %v916 = vrcp.pop %v902
      %v917 = vrcp.pop %v905
      %v918 = vrcp.pop %v908
      %v919 = vrcp.pop %v911
      %v920 = vmul.f32 %v873, %v912
      %v921 = vmul.f32 %v875, %v913
      %v922 = vmul.f32 %v877, %v914
      %v923 = vmul.f32 %v879, %v915
      %v924 = vmul.f32 %v881, %v916
      %v925 = vmul.f32 %v883, %v917
      %v926 = vmul.f32 %v885, %v918
      %v927 = vmul.f32 %v887, %v919
      %v928 = vpack.c.bf16 %v921, %v920
      %v929 = vpack.c.bf16 %v923, %v922
      %v930 = vpack.c.bf16 %v925, %v924
      %v931 = vpack.c.bf16 %v927, %v926
      %932 = vrot.lane.b32.xlu0 %v725, 64
      %v933 = vpop.permute.xlu0 %932
      %934 = vrot.lane.b32.xlu0 %v726, 64
      %v935 = vpop.permute.xlu0 %934
      %936 = vrot.lane.b32.xlu0 %v727, 64
      %v937 = vpop.permute.xlu0 %936
      %938 = vrot.lane.b32.xlu0 %v728, 64
      %v939 = vpop.permute.xlu0 %938
      %v945 = vsel %vm839, %v928, 0
      %v948 = vsel %vm839, %v929, 0
      %v951 = vsel %vm839, %v930, 0
      %v954 = vsel %vm839, %v931, 0
      %956 = vmatprep.subr.bf16.mxu0 0
      %957 = vmatpush1.bf16.msra.mxu0 0
      %958 = vmatprep.subr.bf16.mxu0 0
      %959 = vmatpush1.bf16.msra.mxu0 0
      %960 = vmatprep.subr.bf16.mxu0 0
      %961 = vmatpush1.bf16.msra.mxu0 0
      %962 = vmatprep.subr.bf16.mxu0 0
      %963 = vmatpush1.bf16.msra.mxu0 0
      %964 = vmatprep.subr.bf16.mxu0 0
      %965 = vmatpush1.bf16.msra.mxu0 %v939
      %966 = vmatprep.subr.bf16.mxu0 0
      %967 = vmatpush1.bf16.msra.mxu0 %v937
      %968 = vmatprep.subr.bf16.mxu0 0
      %969 = vmatpush1.bf16.msra.mxu0 %v935
      %970 = vmatprep.subr.bf16.mxu0 0
      %971 = vmatpush1.bf16.msra.mxu0 %v933
      %972 = vmatprep.subr.bf16.mxu0 0
      %973 = vmatpush2.bf16.msra.mxu0 0
      %974 = vmatprep.subr.bf16.mxu0 0
      %975 = vmatpush2.bf16.msra.mxu0 0
      %976 = vmatprep.subr.bf16.mxu0 0
      %977 = vmatpush2.bf16.msra.mxu0 0
      %978 = vmatprep.subr.bf16.mxu0 0
      %979 = vmatpush2.bf16.msra.mxu0 0
      %980 = vmatprep.subr.bf16.mxu0 0
      %981 = vmatpush2.bf16.msra.mxu0 0
      %982 = vmatprep.subr.bf16.mxu0 0
      %983 = vmatpush2.bf16.msra.mxu0 0
      %984 = vmatprep.subr.bf16.mxu0 0
      %985 = vmatpush2.bf16.msra.mxu0 0
      %986 = vmatprep.subr.bf16.mxu0 0
      %987 = vmatpush2.bf16.msra.mxu0 0
      %988 = vmatprep.mubr.bf16.mxu0 0
      %989 = vmatmul.mubr.bf16.gmra.mxu0 %v945
      %v990 = vpop.f32.mrf.mxu0
      %v991 = vadd.f32 0.0, %v990
      %v992 = vpop.f32.mrf.mxu0
      %v993 = vpop.f32.mrf.mxu0
      %v994 = vadd.f32 0.0, %v993
      %v995 = vpop.f32.mrf.mxu0
      %996 = vmatprep.mubr.bf16.mxu0 0
      %997 = vmatmul.mubr.bf16.gmra.mxu0 %v948
      %v998 = vpop.f32.mrf.mxu0
      %v999 = vadd.f32 0.0, %v998
      %v1000 = vpop.f32.mrf.mxu0
      %v1001 = vpop.f32.mrf.mxu0
      %v1002 = vadd.f32 0.0, %v1001
      %v1003 = vpop.f32.mrf.mxu0
      %1004 = vmatprep.mubr.bf16.mxu0 0
      %1005 = vmatmul.mubr.bf16.gmra.mxu0 %v951
      %v1006 = vpop.f32.mrf.mxu0
      %v1007 = vadd.f32 0.0, %v1006
      %v1008 = vpop.f32.mrf.mxu0
      %v1009 = vpop.f32.mrf.mxu0
      %v1010 = vadd.f32 0.0, %v1009
      %v1011 = vpop.f32.mrf.mxu0
      %1012 = vmatprep.mubr.bf16.mxu0 0
      %1013 = vmatmul.mubr.bf16.gmra.mxu0 %v954
      %v1014 = vpop.f32.mrf.mxu0
      %v1015 = vadd.f32 0.0, %v1014
      %v1016 = vpop.f32.mrf.mxu0
      %v1017 = vpop.f32.mrf.mxu0
      %v1018 = vadd.f32 0.0, %v1017
      %v1019 = vpop.f32.mrf.mxu0
      %1020 = vdwg.mxu0
      %s1021 = scalar_lea.vmem %s1, 64
      %v1022 = vld [vmem:[%s1021] sm:$0xff]
      %v1023 = vld [vmem:[%s1021 + $0x8] sm:$0xff]
      %v1024 = vld [vmem:[%s1021 + $0x10] sm:$0xff]
      %v1025 = vld [vmem:[%s1021 + $0x18] sm:$0xff]
      %v1026 = vld [vmem:[%s1021 + $0x20] sm:$0xff]
      %v1027 = vld [vmem:[%s1021 + $0x28] sm:$0xff]
      %v1028 = vld [vmem:[%s1021 + $0x30] sm:$0xff]
      %v1029 = vld [vmem:[%s1021 + $0x38] sm:$0xff]
      %1030 = vrot.lane.b32.xlu0 %v725, 112
      %v1031 = vpop.permute.xlu0 %1030
      %1032 = vrot.lane.b32.xlu0 %v726, 112
      %v1033 = vpop.permute.xlu0 %1032
      %1034 = vrot.lane.b32.xlu0 %v727, 112
      %v1035 = vpop.permute.xlu0 %1034
      %1036 = vrot.lane.b32.xlu0 %v728, 112
      %v1037 = vpop.permute.xlu0 %1036
      %1038 = vrot.lane.b32.xlu0 %v725, 80
      %v1039 = vpop.permute.xlu0 %1038
      %1040 = vrot.lane.b32.xlu0 %v726, 80
      %v1041 = vpop.permute.xlu0 %1040
      %1042 = vrot.lane.b32.xlu0 %v727, 80
      %v1043 = vpop.permute.xlu0 %1042
      %1044 = vrot.lane.b32.xlu0 %v728, 80
      %v1045 = vpop.permute.xlu0 %1044
      %v1047 = vsel %vm749, %v1031, 0
      %v1050 = vsel %vm749, %v1033, 0
      %v1053 = vsel %vm749, %v1035, 0
      %v1056 = vsel %vm749, %v1037, 0
      %v1059 = vsel %vm749, %v1039, 0
      %v1062 = vsel %vm749, %v1041, 0
      %v1065 = vsel %vm749, %v1043, 0
      %v1068 = vsel %vm749, %v1045, 0
      %1070 = vmatprep.subr.bf16.mxu0 0
      %1071 = vmatpush1.bf16.xpose.msra.mxu0 0
      %1072 = vmatprep.subr.bf16.mxu0 0
      %1073 = vmatpush1.bf16.xpose.msra.mxu0 0
      %1074 = vmatprep.subr.bf16.mxu0 0
      %1075 = vmatpush1.bf16.xpose.msra.mxu0 0
      %1076 = vmatprep.subr.bf16.mxu0 0
      %1077 = vmatpush1.bf16.xpose.msra.mxu0 0
      %1078 = vmatprep.subr.bf16.mxu0 0
      %1079 = vmatpush1.bf16.xpose.msra.mxu0 %v1068
      %1080 = vmatprep.subr.bf16.mxu0 0
      %1081 = vmatpush1.bf16.xpose.msra.mxu0 %v1065
      %1082 = vmatprep.subr.bf16.mxu0 0
      %1083 = vmatpush1.bf16.xpose.msra.mxu0 %v1062
      %1084 = vmatprep.subr.bf16.mxu0 0
      %1085 = vmatpush1.bf16.xpose.msra.mxu0 %v1059
      %1086 = vmatprep.subr.bf16.mxu0 0
      %1087 = vmatpush2.bf16.xpose.msra.mxu0 0
      %1088 = vmatprep.subr.bf16.mxu0 0
      %1089 = vmatpush2.bf16.xpose.msra.mxu0 0
      %1090 = vmatprep.subr.bf16.mxu0 0
      %1091 = vmatpush2.bf16.xpose.msra.mxu0 0
      %1092 = vmatprep.subr.bf16.mxu0 0
      %1093 = vmatpush2.bf16.xpose.msra.mxu0 0
      %1094 = vmatprep.subr.bf16.mxu0 0
      %1095 = vmatpush2.bf16.xpose.msra.mxu0 0
      %1096 = vmatprep.subr.bf16.mxu0 0
      %1097 = vmatpush2.bf16.xpose.msra.mxu0 0
      %1098 = vmatprep.subr.bf16.mxu0 0
      %1099 = vmatpush2.bf16.xpose.msra.mxu0 0
      %1100 = vmatprep.subr.bf16.mxu0 0
      %1101 = vmatpush2.bf16.xpose.msra.mxu0 0
      %1102 = vmatprep.mubr.bf16.mxu0 0
      %1103 = vmatmul.mubr.bf16.gmra.mxu0 %v1047
      %v1104 = vpop.f32.mrf.mxu0
      %v1105 = vadd.f32 %v1022, %v1104
      %v1106 = vpop.f32.mrf.mxu0
      %v1107 = vpop.f32.mrf.mxu0
      %v1108 = vadd.f32 %v1023, %v1107
      %v1109 = vpop.f32.mrf.mxu0
      %1110 = vmatprep.mubr.bf16.mxu0 0
      %1111 = vmatmul.mubr.bf16.gmra.mxu0 %v1050
      %v1112 = vpop.f32.mrf.mxu0
      %v1113 = vadd.f32 %v1024, %v1112
      %v1114 = vpop.f32.mrf.mxu0
      %v1115 = vpop.f32.mrf.mxu0
      %v1116 = vadd.f32 %v1025, %v1115
      %v1117 = vpop.f32.mrf.mxu0
      %1118 = vmatprep.mubr.bf16.mxu0 0
      %1119 = vmatmul.mubr.bf16.gmra.mxu0 %v1053
      %v1120 = vpop.f32.mrf.mxu0
      %v1121 = vadd.f32 %v1026, %v1120
      %v1122 = vpop.f32.mrf.mxu0
      %v1123 = vpop.f32.mrf.mxu0
      %v1124 = vadd.f32 %v1027, %v1123
      %v1125 = vpop.f32.mrf.mxu0
      %1126 = vmatprep.mubr.bf16.mxu0 0
      %1127 = vmatmul.mubr.bf16.gmra.mxu0 %v1056
      %v1128 = vpop.f32.mrf.mxu0
      %v1129 = vadd.f32 %v1028, %v1128
      %v1130 = vpop.f32.mrf.mxu0
      %v1131 = vpop.f32.mrf.mxu0
      %v1132 = vadd.f32 %v1029, %v1131
      %v1133 = vpop.f32.mrf.mxu0
      %1134 = vdwg.mxu0
      %v1135 = vsel %vm839, %v1105, -inf
      %1136 = vmax.xlane.f32.xlu0 %v1135
      %v1137 = vpop.xlane.xlu0 %1136
      %v1138 = vsel %vm839, %v1108, -inf
      %1139 = vmax.xlane.f32.xlu0 %v1138
      %v1140 = vpop.xlane.xlu0 %1139
      %v1141 = vsel %vm839, %v1113, -inf
      %1142 = vmax.xlane.f32.xlu0 %v1141
      %v1143 = vpop.xlane.xlu0 %1142
      %v1144 = vsel %vm839, %v1116, -inf
      %1145 = vmax.xlane.f32.xlu0 %v1144
      %v1146 = vpop.xlane.xlu0 %1145
      %v1147 = vsel %vm839, %v1121, -inf
      %1148 = vmax.xlane.f32.xlu0 %v1147
      %v1149 = vpop.xlane.xlu0 %1148
      %v1150 = vsel %vm839, %v1124, -inf
      %1151 = vmax.xlane.f32.xlu0 %v1150
      %v1152 = vpop.xlane.xlu0 %1151
      %v1153 = vsel %vm839, %v1129, -inf
      %1154 = vmax.xlane.f32.xlu0 %v1153
      %v1155 = vpop.xlane.xlu0 %1154
      %v1156 = vsel %vm839, %v1132, -inf
      %1157 = vmax.xlane.f32.xlu0 %v1156
      %v1158 = vpop.xlane.xlu0 %1157
      %v1159 = vsub.f32 %v1105, %v1137
      %v1160 = vsub.f32 %v1108, %v1140
      %v1161 = vsub.f32 %v1113, %v1143
      %v1162 = vsub.f32 %v1116, %v1146
      %v1163 = vsub.f32 %v1121, %v1149
      %v1164 = vsub.f32 %v1124, %v1152
      %v1165 = vsub.f32 %v1129, %v1155
      %v1166 = vsub.f32 %v1132, %v1158
      %v1167 = vmul.f32 %v1159, 1.442695
      %v1168 = vpow.pop %v1167
      %v1169 = vmul.f32 %v1160, 1.442695
      %v1170 = vpow.pop %v1169
      %v1171 = vmul.f32 %v1161, 1.442695
      %v1172 = vpow.pop %v1171
      %v1173 = vmul.f32 %v1162, 1.442695
      %v1174 = vpow.pop %v1173
      %v1175 = vmul.f32 %v1163, 1.442695
      %v1176 = vpow.pop %v1175
      %v1177 = vmul.f32 %v1164, 1.442695
      %v1178 = vpow.pop %v1177
      %v1179 = vmul.f32 %v1165, 1.442695
      %v1180 = vpow.pop %v1179
      %v1181 = vmul.f32 %v1166, 1.442695
      %v1182 = vpow.pop %v1181
      %v1183 = vsel %vm839, %v1168, 0.0
      %1184 = vadd.xlane.f32.xlu0 %v1183
      %v1185 = vpop.xlane.xlu0 %1184
      %v1186 = vsel %vm839, %v1170, 0.0
      %1187 = vadd.xlane.f32.xlu0 %v1186
      %v1188 = vpop.xlane.xlu0 %1187
      %v1189 = vsel %vm839, %v1172, 0.0
      %1190 = vadd.xlane.f32.xlu0 %v1189
      %v1191 = vpop.xlane.xlu0 %1190
      %v1192 = vsel %vm839, %v1174, 0.0
      %1193 = vadd.xlane.f32.xlu0 %v1192
      %v1194 = vpop.xlane.xlu0 %1193
      %v1195 = vsel %vm839, %v1176, 0.0
      %1196 = vadd.xlane.f32.xlu0 %v1195
      %v1197 = vpop.xlane.xlu0 %1196
      %v1198 = vsel %vm839, %v1178, 0.0
      %1199 = vadd.xlane.f32.xlu0 %v1198
      %v1200 = vpop.xlane.xlu0 %1199
      %v1201 = vsel %vm839, %v1180, 0.0
      %1202 = vadd.xlane.f32.xlu0 %v1201
      %v1203 = vpop.xlane.xlu0 %1202
      %v1204 = vsel %vm839, %v1182, 0.0
      %1205 = vadd.xlane.f32.xlu0 %v1204
      %v1206 = vpop.xlane.xlu0 %1205
      %v1207 = vrcp.pop %v1185
      %v1208 = vrcp.pop %v1188
      %v1209 = vrcp.pop %v1191
      %v1210 = vrcp.pop %v1194
      %v1211 = vrcp.pop %v1197
      %v1212 = vrcp.pop %v1200
      %v1213 = vrcp.pop %v1203
      %v1214 = vrcp.pop %v1206
      %v1215 = vmul.f32 %v1168, %v1207
      %v1216 = vmul.f32 %v1170, %v1208
      %v1217 = vmul.f32 %v1172, %v1209
      %v1218 = vmul.f32 %v1174, %v1210
      %v1219 = vmul.f32 %v1176, %v1211
      %v1220 = vmul.f32 %v1178, %v1212
      %v1221 = vmul.f32 %v1180, %v1213
      %v1222 = vmul.f32 %v1182, %v1214
      %v1223 = vpack.c.bf16 %v1216, %v1215
      %v1224 = vpack.c.bf16 %v1218, %v1217
      %v1225 = vpack.c.bf16 %v1220, %v1219
      %v1226 = vpack.c.bf16 %v1222, %v1221
      %1227 = vrot.lane.b32.xlu0 %v725, 48
      %v1228 = vpop.permute.xlu0 %1227
      %1229 = vrot.lane.b32.xlu0 %v726, 48
      %v1230 = vpop.permute.xlu0 %1229
      %1231 = vrot.lane.b32.xlu0 %v727, 48
      %v1232 = vpop.permute.xlu0 %1231
      %1233 = vrot.lane.b32.xlu0 %v728, 48
      %v1234 = vpop.permute.xlu0 %1233
      %v1240 = vsel %vm839, %v1223, 0
      %v1243 = vsel %vm839, %v1224, 0
      %v1246 = vsel %vm839, %v1225, 0
      %v1249 = vsel %vm839, %v1226, 0
      %1251 = vmatprep.subr.bf16.mxu0 0
      %1252 = vmatpush1.bf16.msra.mxu0 0
      %1253 = vmatprep.subr.bf16.mxu0 0
      %1254 = vmatpush1.bf16.msra.mxu0 0
      %1255 = vmatprep.subr.bf16.mxu0 0
      %1256 = vmatpush1.bf16.msra.mxu0 0
      %1257 = vmatprep.subr.bf16.mxu0 0
      %1258 = vmatpush1.bf16.msra.mxu0 0
      %1259 = vmatprep.subr.bf16.mxu0 0
      %1260 = vmatpush1.bf16.msra.mxu0 %v1234
      %1261 = vmatprep.subr.bf16.mxu0 0
      %1262 = vmatpush1.bf16.msra.mxu0 %v1232
      %1263 = vmatprep.subr.bf16.mxu0 0
      %1264 = vmatpush1.bf16.msra.mxu0 %v1230
      %1265 = vmatprep.subr.bf16.mxu0 0
      %1266 = vmatpush1.bf16.msra.mxu0 %v1228
      %1267 = vmatprep.subr.bf16.mxu0 0
      %1268 = vmatpush2.bf16.msra.mxu0 0
      %1269 = vmatprep.subr.bf16.mxu0 0
      %1270 = vmatpush2.bf16.msra.mxu0 0
      %1271 = vmatprep.subr.bf16.mxu0 0
      %1272 = vmatpush2.bf16.msra.mxu0 0
      %1273 = vmatprep.subr.bf16.mxu0 0
      %1274 = vmatpush2.bf16.msra.mxu0 0
      %1275 = vmatprep.subr.bf16.mxu0 0
      %1276 = vmatpush2.bf16.msra.mxu0 0
      %1277 = vmatprep.subr.bf16.mxu0 0
      %1278 = vmatpush2.bf16.msra.mxu0 0
      %1279 = vmatprep.subr.bf16.mxu0 0
      %1280 = vmatpush2.bf16.msra.mxu0 0
      %1281 = vmatprep.subr.bf16.mxu0 0
      %1282 = vmatpush2.bf16.msra.mxu0 0
      %1283 = vmatprep.mubr.bf16.mxu0 0
      %1284 = vmatmul.mubr.bf16.gmra.mxu0 %v1240
      %v1285 = vpop.f32.mrf.mxu0
      %v1286 = vadd.f32 0.0, %v1285
      %v1287 = vpop.f32.mrf.mxu0
      %v1288 = vpop.f32.mrf.mxu0
      %v1289 = vadd.f32 0.0, %v1288
      %v1290 = vpop.f32.mrf.mxu0
      %1291 = vmatprep.mubr.bf16.mxu0 0
      %1292 = vmatmul.mubr.bf16.gmra.mxu0 %v1243
      %v1293 = vpop.f32.mrf.mxu0
      %v1294 = vadd.f32 0.0, %v1293
      %v1295 = vpop.f32.mrf.mxu0
      %v1296 = vpop.f32.mrf.mxu0
      %v1297 = vadd.f32 0.0, %v1296
      %v1298 = vpop.f32.mrf.mxu0
      %1299 = vmatprep.mubr.bf16.mxu0 0
      %1300 = vmatmul.mubr.bf16.gmra.mxu0 %v1246
      %v1301 = vpop.f32.mrf.mxu0
      %v1302 = vadd.f32 0.0, %v1301
      %v1303 = vpop.f32.mrf.mxu0
      %v1304 = vpop.f32.mrf.mxu0
      %v1305 = vadd.f32 0.0, %v1304
      %v1306 = vpop.f32.mrf.mxu0
      %1307 = vmatprep.mubr.bf16.mxu0 0
      %1308 = vmatmul.mubr.bf16.gmra.mxu0 %v1249
      %v1309 = vpop.f32.mrf.mxu0
      %v1310 = vadd.f32 0.0, %v1309
      %v1311 = vpop.f32.mrf.mxu0
      %v1312 = vpop.f32.mrf.mxu0
      %v1313 = vadd.f32 0.0, %v1312
      %v1314 = vpop.f32.mrf.mxu0
      %1315 = vdwg.mxu0
      %1324 = vrot.lane.b32.xlu0 %v1286, 16
      %v1325 = vpop.permute.xlu0 %1324
      %1326 = vrot.lane.b32.xlu0 %v1289, 16
      %v1327 = vpop.permute.xlu0 %1326
      %1328 = vrot.lane.b32.xlu0 %v1294, 16
      %v1329 = vpop.permute.xlu0 %1328
      %1330 = vrot.lane.b32.xlu0 %v1297, 16
      %v1331 = vpop.permute.xlu0 %1330
      %1332 = vrot.lane.b32.xlu0 %v1302, 16
      %v1333 = vpop.permute.xlu0 %1332
      %1334 = vrot.lane.b32.xlu0 %v1305, 16
      %v1335 = vpop.permute.xlu0 %1334
      %1336 = vrot.lane.b32.xlu0 %v1310, 16
      %v1337 = vpop.permute.xlu0 %1336
      %1338 = vrot.lane.b32.xlu0 %v1313, 16
      %v1339 = vpop.permute.xlu0 %1338
      %v1348 = vsel %vm749, %v991, %v1325
      %v1349 = vsel %vm749, %v994, %v1327
      %v1350 = vsel %vm749, %v999, %v1329
      %v1351 = vsel %vm749, %v1002, %v1331
      %v1352 = vsel %vm749, %v1007, %v1333
      %v1353 = vsel %vm749, %v1010, %v1335
      %v1354 = vsel %vm749, %v1015, %v1337
      %v1355 = vsel %vm749, %v1018, %v1339
      %v1356 = vpack.c.bf16 %v1349, %v1348
      %v1357 = vpack.c.bf16 %v1351, %v1350
      %v1358 = vpack.c.bf16 %v1353, %v1352
      %v1359 = vpack.c.bf16 %v1355, %v1354
      %v1360 = vld [vmem:[%s6] sm:$0xf]
      %v1361 = vld [vmem:[%s6 + $0x4] sm:$0xf]
      %v1362 = vld [vmem:[%s6 + $0x8] sm:$0xf]
      %v1363 = vld [vmem:[%s6 + $0xc] sm:$0xf]
      %v1364 = vld [vmem:[%s7] sm:$0x1]
      %v1366 = vlaneseq
      %v1367 = vshrl.u32 %v1366, 7
      %v1368 = vsub.s32 0, %v1367
      %v1369 = vrot.slane %v1364, %v1368
      %v1375 = vunpack.c.l.b16 %v1360
      %v1376 = vunpack.c.l.b16 %v1361
      %v1377 = vunpack.c.l.b16 %v1362
      %v1378 = vunpack.c.l.b16 %v1363
      %v1379 = vpack.c.b16 %v1376, %v1375
      %v1380 = vpack.c.b16 %v1378, %v1377
      %v1384 = vsel %vm487, %v1356, 0
      %v1387 = vsel %vm487, %v1357, 0
      %v1390 = vsel %vm487, %v1358, 0
      %v1393 = vsel %vm487, %v1359, 0
      %1395 = vmatprep.subr.bf16.mxu0 0
      %1396 = vmatpush1.bf16.msra.mxu0 0
      %1397 = vmatprep.subr.bf16.mxu0 0
      %1398 = vmatpush1.bf16.msra.mxu0 0
      %1399 = vmatprep.subr.bf16.mxu0 0
      %1400 = vmatpush1.bf16.msra.mxu0 0
      %1401 = vmatprep.subr.bf16.mxu0 0
      %1402 = vmatpush1.bf16.msra.mxu0 0
      %1403 = vmatprep.subr.bf16.mxu0 0
      %1404 = vmatpush1.bf16.msra.mxu0 0
      %1405 = vmatprep.subr.bf16.mxu0 0
      %1406 = vmatpush1.bf16.msra.mxu0 0
      %1407 = vmatprep.subr.bf16.mxu0 0
      %1408 = vmatpush1.bf16.msra.mxu0 %v1380
      %1409 = vmatprep.subr.bf16.mxu0 0
      %1410 = vmatpush1.bf16.msra.mxu0 %v1379
      %1411 = vmatprep.subr.bf16.mxu0 0
      %1412 = vmatpush2.bf16.msra.mxu0 0
      %1413 = vmatprep.subr.bf16.mxu0 0
      %1414 = vmatpush2.bf16.msra.mxu0 0
      %1415 = vmatprep.subr.bf16.mxu0 0
      %1416 = vmatpush2.bf16.msra.mxu0 0
      %1417 = vmatprep.subr.bf16.mxu0 0
      %1418 = vmatpush2.bf16.msra.mxu0 0
      %1419 = vmatprep.subr.bf16.mxu0 0
      %1420 = vmatpush2.bf16.msra.mxu0 0
      %1421 = vmatprep.subr.bf16.mxu0 0
      %1422 = vmatpush2.bf16.msra.mxu0 0
      %1423 = vmatprep.subr.bf16.mxu0 0
      %1424 = vmatpush2.bf16.msra.mxu0 0
      %1425 = vmatprep.subr.bf16.mxu0 0
      %1426 = vmatpush2.bf16.msra.mxu0 0
      %1427 = vmatprep.mubr.bf16.mxu0 0
      %1428 = vmatmul.mubr.bf16.gmra.mxu0 %v1384
      %v1429 = vpop.f32.mrf.mxu0
      %v1430 = vadd.f32 %v1369, %v1429
      %v1431 = vpop.f32.mrf.mxu0
      %v1432 = vpop.f32.mrf.mxu0
      %v1433 = vadd.f32 %v1369, %v1432
      %v1434 = vpop.f32.mrf.mxu0
      %1435 = vmatprep.mubr.bf16.mxu0 0
      %1436 = vmatmul.mubr.bf16.gmra.mxu0 %v1387
      %v1437 = vpop.f32.mrf.mxu0
      %v1438 = vadd.f32 %v1369, %v1437
      %v1439 = vpop.f32.mrf.mxu0
      %v1440 = vpop.f32.mrf.mxu0
      %v1441 = vadd.f32 %v1369, %v1440
      %v1442 = vpop.f32.mrf.mxu0
      %1443 = vmatprep.mubr.bf16.mxu0 0
      %1444 = vmatmul.mubr.bf16.gmra.mxu0 %v1390
      %v1445 = vpop.f32.mrf.mxu0
      %v1446 = vadd.f32 %v1369, %v1445
      %v1447 = vpop.f32.mrf.mxu0
      %v1448 = vpop.f32.mrf.mxu0
      %v1449 = vadd.f32 %v1369, %v1448
      %v1450 = vpop.f32.mrf.mxu0
      %1451 = vmatprep.mubr.bf16.mxu0 0
      %1452 = vmatmul.mubr.bf16.gmra.mxu0 %v1393
      %v1453 = vpop.f32.mrf.mxu0
      %v1454 = vadd.f32 %v1369, %v1453
      %v1455 = vpop.f32.mrf.mxu0
      %v1456 = vpop.f32.mrf.mxu0
      %v1457 = vadd.f32 %v1369, %v1456
      %v1458 = vpop.f32.mrf.mxu0
      %1459 = vdwg.mxu0
      %v1460 = vadd.f32 %v477, %v1430
      %v1461 = vadd.f32 %v478, %v1433
      %v1462 = vadd.f32 %v479, %v1438
      %v1463 = vadd.f32 %v480, %v1441
      %v1464 = vadd.f32 %v481, %v1446
      %v1465 = vadd.f32 %v482, %v1449
      %v1466 = vadd.f32 %v483, %v1454
      %v1467 = vadd.f32 %v484, %v1457
      %v1468 = vld [vmem:[%s8] sm:$0x1]
      %v1469 = vld [vmem:[%s9] sm:$0x1]
      %v1470 = vsel %vm487, %v1460, 0.0
      %1471 = vadd.xlane.f32.xlu0 %v1470
      %v1472 = vpop.xlane.xlu0 %1471
      %v1473 = vsel %vm487, %v1461, 0.0
      %1474 = vadd.xlane.f32.xlu0 %v1473
      %v1475 = vpop.xlane.xlu0 %1474
      %v1476 = vsel %vm487, %v1462, 0.0
      %1477 = vadd.xlane.f32.xlu0 %v1476
      %v1478 = vpop.xlane.xlu0 %1477
      %v1479 = vsel %vm487, %v1463, 0.0
      %1480 = vadd.xlane.f32.xlu0 %v1479
      %v1481 = vpop.xlane.xlu0 %1480
      %v1482 = vsel %vm487, %v1464, 0.0
      %1483 = vadd.xlane.f32.xlu0 %v1482
      %v1484 = vpop.xlane.xlu0 %1483
      %v1485 = vsel %vm487, %v1465, 0.0
      %1486 = vadd.xlane.f32.xlu0 %v1485
      %v1487 = vpop.xlane.xlu0 %1486
      %v1488 = vsel %vm487, %v1466, 0.0
      %1489 = vadd.xlane.f32.xlu0 %v1488
      %v1490 = vpop.xlane.xlu0 %1489
      %v1491 = vsel %vm487, %v1467, 0.0
      %1492 = vadd.xlane.f32.xlu0 %v1491
      %v1493 = vpop.xlane.xlu0 %1492
      %v1494 = vmul.f32 %v1472, %v512
      %v1495 = vmul.f32 %v1475, %v512
      %v1496 = vmul.f32 %v1478, %v512
      %v1497 = vmul.f32 %v1481, %v512
      %v1498 = vmul.f32 %v1484, %v512
      %v1499 = vmul.f32 %v1487, %v512
      %v1500 = vmul.f32 %v1490, %v512
      %v1501 = vmul.f32 %v1493, %v512
      %v1502 = vsub.f32 %v1460, %v1494
      %v1503 = vsub.f32 %v1461, %v1495
      %v1504 = vsub.f32 %v1462, %v1496
      %v1505 = vsub.f32 %v1463, %v1497
      %v1506 = vsub.f32 %v1464, %v1498
      %v1507 = vsub.f32 %v1465, %v1499
      %v1508 = vsub.f32 %v1466, %v1500
      %v1509 = vsub.f32 %v1467, %v1501
      %v1510 = vmul.f32 %v1502, %v1502
      %v1511 = vmul.f32 %v1503, %v1503
      %v1512 = vmul.f32 %v1504, %v1504
      %v1513 = vmul.f32 %v1505, %v1505
      %v1514 = vmul.f32 %v1506, %v1506
      %v1515 = vmul.f32 %v1507, %v1507
      %v1516 = vmul.f32 %v1508, %v1508
      %v1517 = vmul.f32 %v1509, %v1509
      %v1518 = vsel %vm487, %v1510, 0.0
      %1519 = vadd.xlane.f32.xlu0 %v1518
      %v1520 = vpop.xlane.xlu0 %1519
      %v1521 = vsel %vm487, %v1511, 0.0
      %1522 = vadd.xlane.f32.xlu0 %v1521
      %v1523 = vpop.xlane.xlu0 %1522
      %v1524 = vsel %vm487, %v1512, 0.0
      %1525 = vadd.xlane.f32.xlu0 %v1524
      %v1526 = vpop.xlane.xlu0 %1525
      %v1527 = vsel %vm487, %v1513, 0.0
      %1528 = vadd.xlane.f32.xlu0 %v1527
      %v1529 = vpop.xlane.xlu0 %1528
      %v1530 = vsel %vm487, %v1514, 0.0
      %1531 = vadd.xlane.f32.xlu0 %v1530
      %v1532 = vpop.xlane.xlu0 %1531
      %v1533 = vsel %vm487, %v1515, 0.0
      %1534 = vadd.xlane.f32.xlu0 %v1533
      %v1535 = vpop.xlane.xlu0 %1534
      %v1536 = vsel %vm487, %v1516, 0.0
      %1537 = vadd.xlane.f32.xlu0 %v1536
      %v1538 = vpop.xlane.xlu0 %1537
      %v1539 = vsel %vm487, %v1517, 0.0
      %1540 = vadd.xlane.f32.xlu0 %v1539
      %v1541 = vpop.xlane.xlu0 %1540
      %v1542 = vmul.f32 %v1520, %v512
      %v1543 = vmul.f32 %v1523, %v512
      %v1544 = vmul.f32 %v1526, %v512
      %v1545 = vmul.f32 %v1529, %v512
      %v1546 = vmul.f32 %v1532, %v512
      %v1547 = vmul.f32 %v1535, %v512
      %v1548 = vmul.f32 %v1538, %v512
      %v1549 = vmul.f32 %v1541, %v512
      %v1550 = vadd.f32 %v1542, 1e-05
      %v1551 = vadd.f32 %v1543, 1e-05
      %v1552 = vadd.f32 %v1544, 1e-05
      %v1553 = vadd.f32 %v1545, 1e-05
      %v1554 = vadd.f32 %v1546, 1e-05
      %v1555 = vadd.f32 %v1547, 1e-05
      %v1556 = vadd.f32 %v1548, 1e-05
      %v1557 = vadd.f32 %v1549, 1e-05
      %v1558 = vrsqrt.pop %v1550
      %v1559 = vrsqrt.pop %v1551
      %v1560 = vrsqrt.pop %v1552
      %v1561 = vrsqrt.pop %v1553
      %v1562 = vrsqrt.pop %v1554
      %v1563 = vrsqrt.pop %v1555
      %v1564 = vrsqrt.pop %v1556
      %v1565 = vrsqrt.pop %v1557
      %v1566 = vmul.f32 %v1502, %v1558
      %v1567 = vmul.f32 %v1503, %v1559
      %v1568 = vmul.f32 %v1504, %v1560
      %v1569 = vmul.f32 %v1505, %v1561
      %v1570 = vmul.f32 %v1506, %v1562
      %v1571 = vmul.f32 %v1507, %v1563
      %v1572 = vmul.f32 %v1508, %v1564
      %v1573 = vmul.f32 %v1509, %v1565
      %v1575 = vlaneseq
      %v1576 = vshrl.u32 %v1575, 7
      %v1577 = vsub.s32 0, %v1576
      %v1578 = vrot.slane %v1468, %v1577
      %v1580 = vmul.f32 %v1566, %v1578
      %v1581 = vmul.f32 %v1567, %v1578
      %v1582 = vmul.f32 %v1568, %v1578
      %v1583 = vmul.f32 %v1569, %v1578
      %v1584 = vmul.f32 %v1570, %v1578
      %v1585 = vmul.f32 %v1571, %v1578
      %v1586 = vmul.f32 %v1572, %v1578
      %v1587 = vmul.f32 %v1573, %v1578
      %v1589 = vlaneseq
      %v1590 = vshrl.u32 %v1589, 7
      %v1591 = vsub.s32 0, %v1590
      %v1592 = vrot.slane %v1469, %v1591
      %v1594 = vadd.f32 %v1580, %v1592
      %v1595 = vadd.f32 %v1581, %v1592
      %v1596 = vadd.f32 %v1582, %v1592
      %v1597 = vadd.f32 %v1583, %v1592
      %v1598 = vadd.f32 %v1584, %v1592
      %v1599 = vadd.f32 %v1585, %v1592
      %v1600 = vadd.f32 %v1586, %v1592
      %v1601 = vadd.f32 %v1587, %v1592
      %v1602 = vpack.c.bf16 %v1595, %v1594
      %v1603 = vpack.c.bf16 %v1597, %v1596
      %v1604 = vpack.c.bf16 %v1599, %v1598
      %v1605 = vpack.c.bf16 %v1601, %v1600
      %v1606 = vld [vmem:[%s10] sm:$0xf]
      %v1607 = vld [vmem:[%s10 + $0x4] sm:$0xf]
      %v1608 = vld [vmem:[%s10 + $0x8] sm:$0xf]
      %v1609 = vld [vmem:[%s10 + $0xc] sm:$0xf]
      %v1610 = vld [vmem:[%s11] sm:$0x1]
      %v1612 = vlaneseq
      %v1613 = vshrl.u32 %v1612, 7
      %v1614 = vsub.s32 0, %v1613
      %v1615 = vrot.slane %v1610, %v1614
      %v1621 = vunpack.c.l.b16 %v1606
      %v1622 = vunpack.c.l.b16 %v1607
      %v1623 = vunpack.c.l.b16 %v1608
      %v1624 = vunpack.c.l.b16 %v1609
      %v1625 = vpack.c.b16 %v1622, %v1621
      %v1626 = vpack.c.b16 %v1624, %v1623
      %v1630 = vsel %vm487, %v1602, 0
      %v1633 = vsel %vm487, %v1603, 0
      %v1636 = vsel %vm487, %v1604, 0
      %v1639 = vsel %vm487, %v1605, 0
      %1641 = vmatprep.subr.bf16.mxu0 0
      %1642 = vmatpush1.bf16.msra.mxu0 0
      %1643 = vmatprep.subr.bf16.mxu0 0
      %1644 = vmatpush1.bf16.msra.mxu0 0
      %1645 = vmatprep.subr.bf16.mxu0 0
      %1646 = vmatpush1.bf16.msra.mxu0 0
      %1647 = vmatprep.subr.bf16.mxu0 0
      %1648 = vmatpush1.bf16.msra.mxu0 0
      %1649 = vmatprep.subr.bf16.mxu0 0
      %1650 = vmatpush1.bf16.msra.mxu0 0
      %1651 = vmatprep.subr.bf16.mxu0 0
      %1652 = vmatpush1.bf16.msra.mxu0 0
      %1653 = vmatprep.subr.bf16.mxu0 0
      %1654 = vmatpush1.bf16.msra.mxu0 %v1626
      %1655 = vmatprep.subr.bf16.mxu0 0
      %1656 = vmatpush1.bf16.msra.mxu0 %v1625
      %1657 = vmatprep.subr.bf16.mxu0 0
      %1658 = vmatpush2.bf16.msra.mxu0 0
      %1659 = vmatprep.subr.bf16.mxu0 0
      %1660 = vmatpush2.bf16.msra.mxu0 0
      %1661 = vmatprep.subr.bf16.mxu0 0
      %1662 = vmatpush2.bf16.msra.mxu0 0
      %1663 = vmatprep.subr.bf16.mxu0 0
      %1664 = vmatpush2.bf16.msra.mxu0 0
      %1665 = vmatprep.subr.bf16.mxu0 0
      %1666 = vmatpush2.bf16.msra.mxu0 0
      %1667 = vmatprep.subr.bf16.mxu0 0
      %1668 = vmatpush2.bf16.msra.mxu0 0
      %1669 = vmatprep.subr.bf16.mxu0 0
      %1670 = vmatpush2.bf16.msra.mxu0 0
      %1671 = vmatprep.subr.bf16.mxu0 0
      %1672 = vmatpush2.bf16.msra.mxu0 0
      %1673 = vmatprep.mubr.bf16.mxu0 0
      %1674 = vmatmul.mubr.bf16.gmra.mxu0 %v1630
      %v1675 = vpop.f32.mrf.mxu0
      %v1676 = vadd.f32 %v1615, %v1675
      %v1677 = vpop.f32.mrf.mxu0
      %v1678 = vpop.f32.mrf.mxu0
      %v1679 = vadd.f32 %v1615, %v1678
      %v1680 = vpop.f32.mrf.mxu0
      %1681 = vmatprep.mubr.bf16.mxu0 0
      %1682 = vmatmul.mubr.bf16.gmra.mxu0 %v1633
      %v1683 = vpop.f32.mrf.mxu0
      %v1684 = vadd.f32 %v1615, %v1683
      %v1685 = vpop.f32.mrf.mxu0
      %v1686 = vpop.f32.mrf.mxu0
      %v1687 = vadd.f32 %v1615, %v1686
      %v1688 = vpop.f32.mrf.mxu0
      %1689 = vmatprep.mubr.bf16.mxu0 0
      %1690 = vmatmul.mubr.bf16.gmra.mxu0 %v1636
      %v1691 = vpop.f32.mrf.mxu0
      %v1692 = vadd.f32 %v1615, %v1691
      %v1693 = vpop.f32.mrf.mxu0
      %v1694 = vpop.f32.mrf.mxu0
      %v1695 = vadd.f32 %v1615, %v1694
      %v1696 = vpop.f32.mrf.mxu0
      %1697 = vmatprep.mubr.bf16.mxu0 0
      %1698 = vmatmul.mubr.bf16.gmra.mxu0 %v1639
      %v1699 = vpop.f32.mrf.mxu0
      %v1700 = vadd.f32 %v1615, %v1699
      %v1701 = vpop.f32.mrf.mxu0
      %v1702 = vpop.f32.mrf.mxu0
      %v1703 = vadd.f32 %v1615, %v1702
      %v1704 = vpop.f32.mrf.mxu0
      %1705 = vdwg.mxu0
      %v1706 = vmul.f32 %v1676, %v1676
      %v1707 = vmul.f32 %v1679, %v1679
      %v1708 = vmul.f32 %v1684, %v1684
      %v1709 = vmul.f32 %v1687, %v1687
      %v1710 = vmul.f32 %v1692, %v1692
      %v1711 = vmul.f32 %v1695, %v1695
      %v1712 = vmul.f32 %v1700, %v1700
      %v1713 = vmul.f32 %v1703, %v1703
      %v1714 = vmul.f32 %v1676, %v1706
      %v1715 = vmul.f32 %v1679, %v1707
      %v1716 = vmul.f32 %v1684, %v1708
      %v1717 = vmul.f32 %v1687, %v1709
      %v1718 = vmul.f32 %v1692, %v1710
      %v1719 = vmul.f32 %v1695, %v1711
      %v1720 = vmul.f32 %v1700, %v1712
      %v1721 = vmul.f32 %v1703, %v1713
      %v1722 = vmul.f32 %v1714, 0.044715
      %v1723 = vmul.f32 %v1715, 0.044715
      %v1724 = vmul.f32 %v1716, 0.044715
      %v1725 = vmul.f32 %v1717, 0.044715
      %v1726 = vmul.f32 %v1718, 0.044715
      %v1727 = vmul.f32 %v1719, 0.044715
      %v1728 = vmul.f32 %v1720, 0.044715
      %v1729 = vmul.f32 %v1721, 0.044715
      %v1730 = vadd.f32 %v1676, %v1722
      %v1731 = vadd.f32 %v1679, %v1723
      %v1732 = vadd.f32 %v1684, %v1724
      %v1733 = vadd.f32 %v1687, %v1725
      %v1734 = vadd.f32 %v1692, %v1726
      %v1735 = vadd.f32 %v1695, %v1727
      %v1736 = vadd.f32 %v1700, %v1728
      %v1737 = vadd.f32 %v1703, %v1729
      %v1738 = vmul.f32 %v1730, 0.7978846
      %v1739 = vmul.f32 %v1731, 0.7978846
      %v1740 = vmul.f32 %v1732, 0.7978846
      %v1741 = vmul.f32 %v1733, 0.7978846
      %v1742 = vmul.f32 %v1734, 0.7978846
      %v1743 = vmul.f32 %v1735, 0.7978846
      %v1744 = vmul.f32 %v1736, 0.7978846
      %v1745 = vmul.f32 %v1737, 0.7978846
      %v1746 = vtanh.pop %v1738
      %v1747 = vtanh.pop %v1739
      %v1748 = vtanh.pop %v1740
      %v1749 = vtanh.pop %v1741
      %v1750 = vtanh.pop %v1742
      %v1751 = vtanh.pop %v1743
      %v1752 = vtanh.pop %v1744
      %v1753 = vtanh.pop %v1745
      %v1754 = vadd.f32 %v1746, 1.0
      %v1755 = vadd.f32 %v1747, 1.0
      %v1756 = vadd.f32 %v1748, 1.0
      %v1757 = vadd.f32 %v1749, 1.0
      %v1758 = vadd.f32 %v1750, 1.0
      %v1759 = vadd.f32 %v1751, 1.0
      %v1760 = vadd.f32 %v1752, 1.0
      %v1761 = vadd.f32 %v1753, 1.0
      %v1762 = vmul.f32 %v1754, 0.5
      %v1763 = vmul.f32 %v1755, 0.5
      %v1764 = vmul.f32 %v1756, 0.5
      %v1765 = vmul.f32 %v1757, 0.5
      %v1766 = vmul.f32 %v1758, 0.5
      %v1767 = vmul.f32 %v1759, 0.5
      %v1768 = vmul.f32 %v1760, 0.5
      %v1769 = vmul.f32 %v1761, 0.5
      %v1770 = vmul.f32 %v1676, %v1762
      %v1771 = vmul.f32 %v1679, %v1763
      %v1772 = vmul.f32 %v1684, %v1764
      %v1773 = vmul.f32 %v1687, %v1765
      %v1774 = vmul.f32 %v1692, %v1766
      %v1775 = vmul.f32 %v1695, %v1767
      %v1776 = vmul.f32 %v1700, %v1768
      %v1777 = vmul.f32 %v1703, %v1769
      %v1778 = vpack.c.bf16 %v1771, %v1770
      %v1779 = vpack.c.bf16 %v1773, %v1772
      %v1780 = vpack.c.bf16 %v1775, %v1774
      %v1781 = vpack.c.bf16 %v1777, %v1776
      %v1782 = vld [vmem:[%s12] sm:$0xf]
      %v1783 = vld [vmem:[%s12 + $0x4] sm:$0xf]
      %v1784 = vld [vmem:[%s12 + $0x8] sm:$0xf]
      %v1785 = vld [vmem:[%s12 + $0xc] sm:$0xf]
      %v1786 = vld [vmem:[%s12 + $0x10] sm:$0xf]
      %v1787 = vld [vmem:[%s12 + $0x14] sm:$0xf]
      %v1788 = vld [vmem:[%s12 + $0x18] sm:$0xf]
      %v1789 = vld [vmem:[%s12 + $0x1c] sm:$0xf]
      %v1790 = vld [vmem:[%s12 + $0x20] sm:$0xf]
      %v1791 = vld [vmem:[%s12 + $0x24] sm:$0xf]
      %v1792 = vld [vmem:[%s12 + $0x28] sm:$0xf]
      %v1793 = vld [vmem:[%s12 + $0x2c] sm:$0xf]
      %v1794 = vld [vmem:[%s12 + $0x30] sm:$0xf]
      %v1795 = vld [vmem:[%s12 + $0x34] sm:$0xf]
      %v1796 = vld [vmem:[%s12 + $0x38] sm:$0xf]
      %v1797 = vld [vmem:[%s12 + $0x3c] sm:$0xf]
      %v1798 = vld [vmem:[%s13] sm:$0x1]
      %v1800 = vlaneseq
      %v1801 = vshrl.u32 %v1800, 7
      %v1802 = vsub.s32 0, %v1801
      %v1803 = vrot.slane %v1798, %v1802
      %v1821 = vunpack.c.l.b16 %v1782
      %v1822 = vunpack.c.l.b16 %v1783
      %v1823 = vunpack.c.l.b16 %v1784
      %v1824 = vunpack.c.l.b16 %v1785
      %v1825 = vunpack.c.l.b16 %v1786
      %v1826 = vunpack.c.l.b16 %v1787
      %v1827 = vunpack.c.l.b16 %v1788
      %v1828 = vunpack.c.l.b16 %v1789
      %v1829 = vunpack.c.l.b16 %v1790
      %v1830 = vunpack.c.l.b16 %v1791
      %v1831 = vunpack.c.l.b16 %v1792
      %v1832 = vunpack.c.l.b16 %v1793
      %v1833 = vunpack.c.l.b16 %v1794
      %v1834 = vunpack.c.l.b16 %v1795
      %v1835 = vunpack.c.l.b16 %v1796
      %v1836 = vunpack.c.l.b16 %v1797
      %v1837 = vpack.c.b16 %v1822, %v1821
      %v1838 = vpack.c.b16 %v1824, %v1823
      %v1839 = vpack.c.b16 %v1826, %v1825
      %v1840 = vpack.c.b16 %v1828, %v1827
      %v1841 = vpack.c.b16 %v1830, %v1829
      %v1842 = vpack.c.b16 %v1832, %v1831
      %v1843 = vpack.c.b16 %v1834, %v1833
      %v1844 = vpack.c.b16 %v1836, %v1835
      %1853 = vmatprep.subr.bf16.mxu0 0
      %1854 = vmatpush1.bf16.msra.mxu0 %v1844
      %1855 = vmatprep.subr.bf16.mxu0 0
      %1856 = vmatpush1.bf16.msra.mxu0 %v1843
      %1857 = vmatprep.subr.bf16.mxu0 0
      %1858 = vmatpush1.bf16.msra.mxu0 %v1842
      %1859 = vmatprep.subr.bf16.mxu0 0
      %1860 = vmatpush1.bf16.msra.mxu0 %v1841
      %1861 = vmatprep.subr.bf16.mxu0 0
      %1862 = vmatpush1.bf16.msra.mxu0 %v1840
      %1863 = vmatprep.subr.bf16.mxu0 0
      %1864 = vmatpush1.bf16.msra.mxu0 %v1839
      %1865 = vmatprep.subr.bf16.mxu0 0
      %1866 = vmatpush1.bf16.msra.mxu0 %v1838
      %1867 = vmatprep.subr.bf16.mxu0 0
      %1868 = vmatpush1.bf16.msra.mxu0 %v1837
      %1869 = vmatprep.subr.bf16.mxu0 0
      %1870 = vmatpush2.bf16.msra.mxu0 0
      %1871 = vmatprep.subr.bf16.mxu0 0
      %1872 = vmatpush2.bf16.msra.mxu0 0
      %1873 = vmatprep.subr.bf16.mxu0 0
      %1874 = vmatpush2.bf16.msra.mxu0 0
      %1875 = vmatprep.subr.bf16.mxu0 0
      %1876 = vmatpush2.bf16.msra.mxu0 0
      %1877 = vmatprep.subr.bf16.mxu0 0
      %1878 = vmatpush2.bf16.msra.mxu0 0
      %1879 = vmatprep.subr.bf16.mxu0 0
      %1880 = vmatpush2.bf16.msra.mxu0 0
      %1881 = vmatprep.subr.bf16.mxu0 0
      %1882 = vmatpush2.bf16.msra.mxu0 0
      %1883 = vmatprep.subr.bf16.mxu0 0
      %1884 = vmatpush2.bf16.msra.mxu0 0
      %1885 = vmatprep.mubr.bf16.mxu0 0
      %1886 = vmatmul.mubr.bf16.gmra.mxu0 %v1778
      %v1887 = vpop.f32.mrf.mxu0
      %v1888 = vadd.f32 %v1803, %v1887
      %v1889 = vpop.f32.mrf.mxu0
      %v1890 = vpop.f32.mrf.mxu0
      %v1891 = vadd.f32 %v1803, %v1890
      %v1892 = vpop.f32.mrf.mxu0
      %1893 = vmatprep.mubr.bf16.mxu0 0
      %1894 = vmatmul.mubr.bf16.gmra.mxu0 %v1779
      %v1895 = vpop.f32.mrf.mxu0
      %v1896 = vadd.f32 %v1803, %v1895
      %v1897 = vpop.f32.mrf.mxu0
      %v1898 = vpop.f32.mrf.mxu0
      %v1899 = vadd.f32 %v1803, %v1898
      %v1900 = vpop.f32.mrf.mxu0
      %1901 = vmatprep.mubr.bf16.mxu0 0
      %1902 = vmatmul.mubr.bf16.gmra.mxu0 %v1780
      %v1903 = vpop.f32.mrf.mxu0
      %v1904 = vadd.f32 %v1803, %v1903
      %v1905 = vpop.f32.mrf.mxu0
      %v1906 = vpop.f32.mrf.mxu0
      %v1907 = vadd.f32 %v1803, %v1906
      %v1908 = vpop.f32.mrf.mxu0
      %1909 = vmatprep.mubr.bf16.mxu0 0
      %1910 = vmatmul.mubr.bf16.gmra.mxu0 %v1781
      %v1911 = vpop.f32.mrf.mxu0
      %v1912 = vadd.f32 %v1803, %v1911
      %v1913 = vpop.f32.mrf.mxu0
      %v1914 = vpop.f32.mrf.mxu0
      %v1915 = vadd.f32 %v1803, %v1914
      %v1916 = vpop.f32.mrf.mxu0
      %1917 = vdwg.mxu0
      %v1918 = vadd.f32 %v1460, %v1888
      %v1919 = vadd.f32 %v1461, %v1891
      %v1920 = vadd.f32 %v1462, %v1896
      %v1921 = vadd.f32 %v1463, %v1899
      %v1922 = vadd.f32 %v1464, %v1904
      %v1923 = vadd.f32 %v1465, %v1907
      %v1924 = vadd.f32 %v1466, %v1912
      %v1925 = vadd.f32 %v1467, %v1915
      %v1926 = vpack.c.bf16 %v1919, %v1918
      %v1927 = vpack.c.bf16 %v1921, %v1920
      %v1928 = vpack.c.bf16 %v1923, %v1922
      %v1929 = vpack.c.bf16 %v1925, %v1924
      %v1934 = vunpack.c.l.b16 %v1926
      %v1935 = vunpack.c.h.b16 %v1926
      %v1936 = vunpack.c.l.b16 %v1927
      %v1937 = vunpack.c.h.b16 %v1927
      %v1938 = vunpack.c.l.b16 %v1928
      %v1939 = vunpack.c.h.b16 %v1928
      %v1940 = vunpack.c.l.b16 %v1929
      %v1941 = vunpack.c.h.b16 %v1929
      %v1942 = vpack.c.b16 %v1934, %v1934
      %v1943 = vpack.c.b16 %v1935, %v1935
      %v1944 = vpack.c.b16 %v1936, %v1936
      %v1945 = vpack.c.b16 %v1937, %v1937
      %v1946 = vpack.c.b16 %v1938, %v1938
      %v1947 = vpack.c.b16 %v1939, %v1939
      %v1948 = vpack.c.b16 %v1940, %v1940
      %v1949 = vpack.c.b16 %v1941, %v1941
      %vm1958 = vcmask 257024
      %1959 = vst.msk [vmem:[%s467] sm:$0xf] %vm1958, %v1942
      %1960 = vst.msk [vmem:[%s467 + $0x4] sm:$0xf] %vm1958, %v1943
      %1961 = vst.msk [vmem:[%s467 + $0x8] sm:$0xf] %vm1958, %v1944
      %1962 = vst.msk [vmem:[%s467 + $0xc] sm:$0xf] %vm1958, %v1945
      %1963 = vst.msk [vmem:[%s467 + $0x10] sm:$0xf] %vm1958, %v1946
      %1964 = vst.msk [vmem:[%s467 + $0x14] sm:$0xf] %vm1958, %v1947
      %1965 = vst.msk [vmem:[%s467 + $0x18] sm:$0xf] %vm1958, %v1948
      %1966 = vst.msk [vmem:[%s467 + $0x1c] sm:$0xf] %vm1958, %v1949
      %p1967 = scmp.lt.s32.totalorder %s25, 1
      %s1968 = scalar_select %p1967, %s25, 1
      %s1969 = smul.addr %s1968, 8
      %s1970 = smul.addr %s1969, 4
      %s1971 = scalar_lea.vmem %s14, %s1970
      // Predicated region
      $region77: #{swin_forward.5} parent=75 // pred_check
        %p1972 = pneg %p342
      $region78: #{swin_forward.5} parent=75 // pred_check_branch
        %1974 = sbr.rel (%p1972) target = $region80
      $region79: #{swin_forward.5} parent=75 // pred_region
        _
      $region80: #{swin_forward.5} parent=75 // pred_fallthru
        _
    $region76: #{swin_forward.5} parent=5 // pred_fallthru
      _
    %p1975 = scmp.le.s32.totalorder 2, %s20
    // Predicated region
    $region81: #{swin_forward.5} parent=5 // pred_check
      %p1976 = pneg %p1975
    $region82: #{swin_forward.5} parent=5 // pred_check_branch
      %1978 = sbr.rel (%p1976) target = $region84
    $region83: #{swin_forward.5} parent=5 // pred_region
      %s1979 = ssub.s32 %s20, 2
      // Predicated region
      $region85: #{swin_forward.5} parent=83 // pred_check
        %p1980 = pneg %p348
      $region86: #{swin_forward.5} parent=83 // pred_check_branch
        %1982 = sbr.rel (%p1980) target = $region88
      $region87: #{swin_forward.5} parent=83 // pred_region
        %p1983 = scmp.lt.s32.totalorder %s26, 1
        %s1984 = scalar_select %p1983, %s26, 1
        %s1985 = smul.addr %s1984, 8
        %s1986 = smul.addr %s1985, 4
        %s1987 = scalar_lea.vmem %s14, %s1986
      $region88: #{swin_forward.5} parent=83 // pred_fallthru
        _
    $region84: #{swin_forward.5} parent=5 // pred_fallthru
      _
  $region6: #{swin_forward.5} parent=0 // loop_footer
    %s24 = sadd.s32 1, %s20
  $region7: #{swin_forward.5} parent=0 // loop_footer_branch
    %19 = sbr.rel target = $region3
  $region8: #{swin_forward.5} parent=0 // loop_exit
    _

// kernel: swin_forward.7
$region0: #{swin_forward.7}
  #allocation0 [shape = 'u32[]', space=smem, size = 0x4, offset = 0x4, fixed_abs, tag = 'smem constant byte address 0x4 - core index']
  #allocation1 [shape = 'u32[144,128]{1,0:T(1,128)}', space=vmem, size = 0x12000, scoped, tag = 'internal scratch']
  %s0 = inlined_call_operand.vmem [shape: bf16[2,16,64], index: 0, kind: input, shape index: {}]
  %s1 = inlined_call_operand.vmem [shape: f32[4,16,16], index: 1, kind: input, shape index: {}]
  %s2 = inlined_call_operand.vmem [shape: f32[1,64], index: 2, kind: input, shape index: {}]
  %s3 = inlined_call_operand.vmem [shape: f32[1,64], index: 3, kind: input, shape index: {}]
  %s4 = inlined_call_operand.vmem [shape: bf16[64,192], index: 4, kind: input, shape index: {}]
  %s5 = inlined_call_operand.vmem [shape: f32[1,192], index: 5, kind: input, shape index: {}]
  %s6 = inlined_call_operand.vmem [shape: bf16[64,64], index: 6, kind: input, shape index: {}]
  %s7 = inlined_call_operand.vmem [shape: f32[1,64], index: 7, kind: input, shape index: {}]
  %s8 = inlined_call_operand.vmem [shape: f32[1,64], index: 8, kind: input, shape index: {}]
  %s9 = inlined_call_operand.vmem [shape: f32[1,64], index: 9, kind: input, shape index: {}]
  %s10 = inlined_call_operand.vmem [shape: bf16[64,256], index: 10, kind: input, shape index: {}]
  %s11 = inlined_call_operand.vmem [shape: f32[1,256], index: 11, kind: input, shape index: {}]
  %s12 = inlined_call_operand.vmem [shape: bf16[256,64], index: 12, kind: input, shape index: {}]
  %s13 = inlined_call_operand.vmem [shape: f32[1,64], index: 13, kind: input, shape index: {}]
  %s14 = inlined_call_operand.vmem [shape: f32[1,64], index: 14, kind: input, shape index: {}]
  %s15 = inlined_call_operand.vmem [shape: f32[1,64], index: 15, kind: input, shape index: {}]
  %s16 = inlined_call_operand.vmem [shape: bf16[64,2], index: 16, kind: input, shape index: {}]
  %s17 = inlined_call_operand.vmem [shape: f32[1,2], index: 17, kind: input, shape index: {}]
  %s18 = inlined_call_operand.hbm [shape: f32[2,1,2], index: 18, kind: output, shape index: {}]
  %s19 = sld [smem:[#allocation0]]
  $region105: #{swin_forward.7} parent=0
    _
  %s21 = ssub.s32 1, %s19
  %s22 = scalar_select 0, %s21, %s19
  $region1: #{swin_forward.7} parent=0
    #allocation2 [shape = 'u8[1024]{0}', space=vmem, size = 0x400, scoped, tag = 'output window, operand 0']
    #allocation3 [shape = 's32[2]{0}', space=sflag, size = 0x8, scoped, tag = 'scoped memory for swin_forward.7']
    %23 = vsyncpa [#allocation3], 0
    %s24 = scalar_lea.sflag [#allocation3], 1
    %25 = vsyncpa %s24, 0
    loop: start=0, step=1, limit=4
    $region2: #{swin_forward.7} parent=1 // loop_pre_header
      _
    $region3: #{swin_forward.7} parent=1 // loop_header
      %s27 = sphi 0, %s31
      %p28 = scmp.ge.s32.totalorder %s27, 4
      %s37 = sphi 0, %s39
      %s40 = sphi 0, %s37
      %s41 = sphi 0, %s40
      %s57 = sphi 0, %s41
      %s61 = sphi 0, %s61
      %s63 = sphi 0, %s61
      %s64 = sphi 0, %s63
      %s78 = sphi 0, %s64
      %s82 = sphi 0, %s82
      %s84 = sphi 0, %s82
      %s85 = sphi 0, %s84
      %s99 = sphi 0, %s85
      %s103 = sphi 0, %s103
      %s105 = sphi 0, %s103
      %s106 = sphi 0, %s105
      %s120 = sphi 0, %s106
      %s124 = sphi 0, %s124
      %s126 = sphi 0, %s124
      %s127 = sphi 0, %s126
      %s141 = sphi 0, %s127
      %s145 = sphi 0, %s145
      %s147 = sphi 0, %s145
      %s148 = sphi 0, %s147
      %s162 = sphi 0, %s148
      %s166 = sphi 0, %s166
      %s168 = sphi 0, %s166
      %s169 = sphi 0, %s168
      %s183 = sphi 0, %s169
      %s187 = sphi 0, %s187
      %s189 = sphi 0, %s187
      %s190 = sphi 0, %s189
      %s204 = sphi 0, %s190
      %s208 = sphi 0, %s208
      %s210 = sphi 0, %s208
      %s211 = sphi 0, %s210
      %s225 = sphi 0, %s211
      %s229 = sphi 0, %s229
      %s231 = sphi 0, %s229
      %s232 = sphi 0, %s231
      %s246 = sphi 0, %s232
      %s250 = sphi 0, %s250
      %s252 = sphi 0, %s250
      %s253 = sphi 0, %s252
      %s267 = sphi 0, %s253
      %s271 = sphi 0, %s271
      %s273 = sphi 0, %s271
      %s274 = sphi 0, %s273
      %s288 = sphi 0, %s274
      %s292 = sphi 0, %s292
      %s294 = sphi 0, %s292
      %s295 = sphi 0, %s294
      %s309 = sphi 0, %s295
      %s313 = sphi 0, %s313
      %s315 = sphi 0, %s313
      %s316 = sphi 0, %s315
      %s330 = sphi 0, %s316
      %s334 = sphi 0, %s334
      %s336 = sphi 0, %s334
      %s337 = sphi 0, %s336
      %s351 = sphi 0, %s337
      %s355 = sphi 0, %s355
      %s357 = sphi 0, %s355
      %s358 = sphi 0, %s357
      %s372 = sphi 0, %s358
      %s376 = sphi 0, %s376
      %s378 = sphi 0, %s376
      %s379 = sphi 0, %s378
      %s393 = sphi 0, %s379
      %s397 = sphi 0, %s397
      %s399 = sphi 0, %s397
      %s400 = sphi 0, %s399
      %s414 = sphi 0, %s400
      %s420 = sphi 0, %s422
      %s423 = sphi 0, %s420
      %s424 = sphi 0, %s423
      %s440 = sphi 0, %s424
    $region4: #{swin_forward.7} parent=1 // loop_header_branch
      %30 = sbr.rel (%p28) target = $region8
    $region5: #{swin_forward.7} parent=1 // loop_body
      %s32 = ssub.s32 %s27, 1
      %s33 = ssub.s32 %s27, 2
      %s34 = sadd.s32 %s27, 1
      %s35 = ssub.s32 %s27, %s34
      %p36 = scmp.eq.s32.totalorder %s35, 0
      %s38 = sadd.s32 %s37, 1
      %s39 = scalar_select %p36, %s37, %s38
      %p42 = pneg %p36
      %p43 = scmp.eq.s32.totalorder %s27, 1
      %p44 = por %p42, %p43
      %p45 = scmp.ne.s32.totalorder %s37, %s40
      %p46 = scmp.eq.s32.totalorder %s27, 0
      %p47 = por %p45, %p46
      %p48 = scmp.ne.s32.totalorder %s37, %s40
      %p49 = scmp.eq.s32.totalorder %s32, 1
      %p50 = por %p48, %p49
      %p51 = scmp.ne.s32.totalorder %s40, %s41
      %p52 = scmp.eq.s32.totalorder %s32, 0
      %p53 = por %p51, %p52
      %p54 = scmp.ne.s32.totalorder %s40, %s41
      %p55 = scmp.eq.s32.totalorder %s33, 1
      %p56 = por %p54, %p55
      %p58 = scmp.ne.s32.totalorder %s41, %s57
      %p59 = scmp.eq.s32.totalorder %s33, 0
      %p60 = por %p58, %p59
      %s62 = sadd.s32 %s61, 1
      %p65 = scmp.eq.s32.totalorder %s27, 1
      %p66 = scmp.ne.s32.totalorder %s61, %s63
      %p67 = scmp.eq.s32.totalorder %s27, 0
      %p68 = por %p66, %p67
      %p69 = scmp.ne.s32.totalorder %s61, %s63
      %p70 = scmp.eq.s32.totalorder %s32, 1
      %p71 = por %p69, %p70
      %p72 = scmp.ne.s32.totalorder %s63, %s64
      %p73 = scmp.eq.s32.totalorder %s32, 0
      %p74 = por %p72, %p73
      %p75 = scmp.ne.s32.totalorder %s63, %s64
      %p76 = scmp.eq.s32.totalorder %s33, 1
      %p77 = por %p75, %p76
      %p79 = scmp.ne.s32.totalorder %s64, %s78
      %p80 = scmp.eq.s32.totalorder %s33, 0
      %p81 = por %p79, %p80
      %s83 = sadd.s32 %s82, 1
      %p86 = scmp.eq.s32.totalorder %s27, 1
      %p87 = scmp.ne.s32.totalorder %s82, %s84
      %p88 = scmp.eq.s32.totalorder %s27, 0
      %p89 = por %p87, %p88
      %p90 = scmp.ne.s32.totalorder %s82, %s84
      %p91 = scmp.eq.s32.totalorder %s32, 1
      %p92 = por %p90, %p91
      %p93 = scmp.ne.s32.totalorder %s84, %s85
      %p94 = scmp.eq.s32.totalorder %s32, 0
      %p95 = por %p93, %p94
      %p96 = scmp.ne.s32.totalorder %s84, %s85
      %p97 = scmp.eq.s32.totalorder %s33, 1
      %p98 = por %p96, %p97
      %p100 = scmp.ne.s32.totalorder %s85, %s99
      %p101 = scmp.eq.s32.totalorder %s33, 0
      %p102 = por %p100, %p101
      %s104 = sadd.s32 %s103, 1
      %p107 = scmp.eq.s32.totalorder %s27, 1
      %p108 = scmp.ne.s32.totalorder %s103, %s105
      %p109 = scmp.eq.s32.totalorder %s27, 0
      %p110 = por %p108, %p109
      %p111 = scmp.ne.s32.totalorder %s103, %s105
      %p112 = scmp.eq.s32.totalorder %s32, 1
      %p113 = por %p111, %p112
      %p114 = scmp.ne.s32.totalorder %s105, %s106
      %p115 = scmp.eq.s32.totalorder %s32, 0
      %p116 = por %p114, %p115
      %p117 = scmp.ne.s32.totalorder %s105, %s106
      %p118 = scmp.eq.s32.totalorder %s33, 1
      %p119 = por %p117, %p118
      %p121 = scmp.ne.s32.totalorder %s106, %s120
      %p122 = scmp.eq.s32.totalorder %s33, 0
      %p123 = por %p121, %p122
      %s125 = sadd.s32 %s124, 1
      %p128 = scmp.eq.s32.totalorder %s27, 1
      %p129 = scmp.ne.s32.totalorder %s124, %s126
      %p130 = scmp.eq.s32.totalorder %s27, 0
      %p131 = por %p129, %p130
      %p132 = scmp.ne.s32.totalorder %s124, %s126
      %p133 = scmp.eq.s32.totalorder %s32, 1
      %p134 = por %p132, %p133
      %p135 = scmp.ne.s32.totalorder %s126, %s127
      %p136 = scmp.eq.s32.totalorder %s32, 0
      %p137 = por %p135, %p136
      %p138 = scmp.ne.s32.totalorder %s126, %s127
      %p139 = scmp.eq.s32.totalorder %s33, 1
      %p140 = por %p138, %p139
      %p142 = scmp.ne.s32.totalorder %s127, %s141
      %p143 = scmp.eq.s32.totalorder %s33, 0
      %p144 = por %p142, %p143
      %s146 = sadd.s32 %s145, 1
      %p149 = scmp.eq.s32.totalorder %s27, 1
      %p150 = scmp.ne.s32.totalorder %s145, %s147
      %p151 = scmp.eq.s32.totalorder %s27, 0
      %p152 = por %p150, %p151
      %p153 = scmp.ne.s32.totalorder %s145, %s147
      %p154 = scmp.eq.s32.totalorder %s32, 1
      %p155 = por %p153, %p154
      %p156 = scmp.ne.s32.totalorder %s147, %s148
      %p157 = scmp.eq.s32.totalorder %s32, 0
      %p158 = por %p156, %p157
      %p159 = scmp.ne.s32.totalorder %s147, %s148
      %p160 = scmp.eq.s32.totalorder %s33, 1
      %p161 = por %p159, %p160
      %p163 = scmp.ne.s32.totalorder %s148, %s162
      %p164 = scmp.eq.s32.totalorder %s33, 0
      %p165 = por %p163, %p164
      %s167 = sadd.s32 %s166, 1
      %p170 = scmp.eq.s32.totalorder %s27, 1
      %p171 = scmp.ne.s32.totalorder %s166, %s168
      %p172 = scmp.eq.s32.totalorder %s27, 0
      %p173 = por %p171, %p172
      %p174 = scmp.ne.s32.totalorder %s166, %s168
      %p175 = scmp.eq.s32.totalorder %s32, 1
      %p176 = por %p174, %p175
      %p177 = scmp.ne.s32.totalorder %s168, %s169
      %p178 = scmp.eq.s32.totalorder %s32, 0
      %p179 = por %p177, %p178
      %p180 = scmp.ne.s32.totalorder %s168, %s169
      %p181 = scmp.eq.s32.totalorder %s33, 1
      %p182 = por %p180, %p181
      %p184 = scmp.ne.s32.totalorder %s169, %s183
      %p185 = scmp.eq.s32.totalorder %s33, 0
      %p186 = por %p184, %p185
      %s188 = sadd.s32 %s187, 1
      %p191 = scmp.eq.s32.totalorder %s27, 1
      %p192 = scmp.ne.s32.totalorder %s187, %s189
      %p193 = scmp.eq.s32.totalorder %s27, 0
      %p194 = por %p192, %p193
      %p195 = scmp.ne.s32.totalorder %s187, %s189
      %p196 = scmp.eq.s32.totalorder %s32, 1
      %p197 = por %p195, %p196
      %p198 = scmp.ne.s32.totalorder %s189, %s190
      %p199 = scmp.eq.s32.totalorder %s32, 0
      %p200 = por %p198, %p199
      %p201 = scmp.ne.s32.totalorder %s189, %s190
      %p202 = scmp.eq.s32.totalorder %s33, 1
      %p203 = por %p201, %p202
      %p205 = scmp.ne.s32.totalorder %s190, %s204
      %p206 = scmp.eq.s32.totalorder %s33, 0
      %p207 = por %p205, %p206
      %s209 = sadd.s32 %s208, 1
      %p212 = scmp.eq.s32.totalorder %s27, 1
      %p213 = scmp.ne.s32.totalorder %s208, %s210
      %p214 = scmp.eq.s32.totalorder %s27, 0
      %p215 = por %p213, %p214
      %p216 = scmp.ne.s32.totalorder %s208, %s210
      %p217 = scmp.eq.s32.totalorder %s32, 1
      %p218 = por %p216, %p217
      %p219 = scmp.ne.s32.totalorder %s210, %s211
      %p220 = scmp.eq.s32.totalorder %s32, 0
      %p221 = por %p219, %p220
      %p222 = scmp.ne.s32.totalorder %s210, %s211
      %p223 = scmp.eq.s32.totalorder %s33, 1
      %p224 = por %p222, %p223
      %p226 = scmp.ne.s32.totalorder %s211, %s225
      %p227 = scmp.eq.s32.totalorder %s33, 0
      %p228 = por %p226, %p227
      %s230 = sadd.s32 %s229, 1
      %p233 = scmp.eq.s32.totalorder %s27, 1
      %p234 = scmp.ne.s32.totalorder %s229, %s231
      %p235 = scmp.eq.s32.totalorder %s27, 0
      %p236 = por %p234, %p235
      %p237 = scmp.ne.s32.totalorder %s229, %s231
      %p238 = scmp.eq.s32.totalorder %s32, 1
      %p239 = por %p237, %p238
      %p240 = scmp.ne.s32.totalorder %s231, %s232
      %p241 = scmp.eq.s32.totalorder %s32, 0
      %p242 = por %p240, %p241
      %p243 = scmp.ne.s32.totalorder %s231, %s232
      %p244 = scmp.eq.s32.totalorder %s33, 1
      %p245 = por %p243, %p244
      %p247 = scmp.ne.s32.totalorder %s232, %s246
      %p248 = scmp.eq.s32.totalorder %s33, 0
      %p249 = por %p247, %p248
      %s251 = sadd.s32 %s250, 1
      %p254 = scmp.eq.s32.totalorder %s27, 1
      %p255 = scmp.ne.s32.totalorder %s250, %s252
      %p256 = scmp.eq.s32.totalorder %s27, 0
      %p257 = por %p255, %p256
      %p258 = scmp.ne.s32.totalorder %s250, %s252
      %p259 = scmp.eq.s32.totalorder %s32, 1
      %p260 = por %p258, %p259
      %p261 = scmp.ne.s32.totalorder %s252, %s253
      %p262 = scmp.eq.s32.totalorder %s32, 0
      %p263 = por %p261, %p262
      %p264 = scmp.ne.s32.totalorder %s252, %s253
      %p265 = scmp.eq.s32.totalorder %s33, 1
      %p266 = por %p264, %p265
      %p268 = scmp.ne.s32.totalorder %s253, %s267
      %p269 = scmp.eq.s32.totalorder %s33, 0
      %p270 = por %p268, %p269
      %s272 = sadd.s32 %s271, 1
      %p275 = scmp.eq.s32.totalorder %s27, 1
      %p276 = scmp.ne.s32.totalorder %s271, %s273
      %p277 = scmp.eq.s32.totalorder %s27, 0
      %p278 = por %p276, %p277
      %p279 = scmp.ne.s32.totalorder %s271, %s273
      %p280 = scmp.eq.s32.totalorder %s32, 1
      %p281 = por %p279, %p280
      %p282 = scmp.ne.s32.totalorder %s273, %s274
      %p283 = scmp.eq.s32.totalorder %s32, 0
      %p284 = por %p282, %p283
      %p285 = scmp.ne.s32.totalorder %s273, %s274
      %p286 = scmp.eq.s32.totalorder %s33, 1
      %p287 = por %p285, %p286
      %p289 = scmp.ne.s32.totalorder %s274, %s288
      %p290 = scmp.eq.s32.totalorder %s33, 0
      %p291 = por %p289, %p290
      %s293 = sadd.s32 %s292, 1
      %p296 = scmp.eq.s32.totalorder %s27, 1
      %p297 = scmp.ne.s32.totalorder %s292, %s294
      %p298 = scmp.eq.s32.totalorder %s27, 0
      %p299 = por %p297, %p298
      %p300 = scmp.ne.s32.totalorder %s292, %s294
      %p301 = scmp.eq.s32.totalorder %s32, 1
      %p302 = por %p300, %p301
      %p303 = scmp.ne.s32.totalorder %s294, %s295
      %p304 = scmp.eq.s32.totalorder %s32, 0
      %p305 = por %p303, %p304
      %p306 = scmp.ne.s32.totalorder %s294, %s295
      %p307 = scmp.eq.s32.totalorder %s33, 1
      %p308 = por %p306, %p307
      %p310 = scmp.ne.s32.totalorder %s295, %s309
      %p311 = scmp.eq.s32.totalorder %s33, 0
      %p312 = por %p310, %p311
      %s314 = sadd.s32 %s313, 1
      %p317 = scmp.eq.s32.totalorder %s27, 1
      %p318 = scmp.ne.s32.totalorder %s313, %s315
      %p319 = scmp.eq.s32.totalorder %s27, 0
      %p320 = por %p318, %p319
      %p321 = scmp.ne.s32.totalorder %s313, %s315
      %p322 = scmp.eq.s32.totalorder %s32, 1
      %p323 = por %p321, %p322
      %p324 = scmp.ne.s32.totalorder %s315, %s316
      %p325 = scmp.eq.s32.totalorder %s32, 0
      %p326 = por %p324, %p325
      %p327 = scmp.ne.s32.totalorder %s315, %s316
      %p328 = scmp.eq.s32.totalorder %s33, 1
      %p329 = por %p327, %p328
      %p331 = scmp.ne.s32.totalorder %s316, %s330
      %p332 = scmp.eq.s32.totalorder %s33, 0
      %p333 = por %p331, %p332
      %s335 = sadd.s32 %s334, 1
      %p338 = scmp.eq.s32.totalorder %s27, 1
      %p339 = scmp.ne.s32.totalorder %s334, %s336
      %p340 = scmp.eq.s32.totalorder %s27, 0
      %p341 = por %p339, %p340
      %p342 = scmp.ne.s32.totalorder %s334, %s336
      %p343 = scmp.eq.s32.totalorder %s32, 1
      %p344 = por %p342, %p343
      %p345 = scmp.ne.s32.totalorder %s336, %s337
      %p346 = scmp.eq.s32.totalorder %s32, 0
      %p347 = por %p345, %p346
      %p348 = scmp.ne.s32.totalorder %s336, %s337
      %p349 = scmp.eq.s32.totalorder %s33, 1
      %p350 = por %p348, %p349
      %p352 = scmp.ne.s32.totalorder %s337, %s351
      %p353 = scmp.eq.s32.totalorder %s33, 0
      %p354 = por %p352, %p353
      %s356 = sadd.s32 %s355, 1
      %p359 = scmp.eq.s32.totalorder %s27, 1
      %p360 = scmp.ne.s32.totalorder %s355, %s357
      %p361 = scmp.eq.s32.totalorder %s27, 0
      %p362 = por %p360, %p361
      %p363 = scmp.ne.s32.totalorder %s355, %s357
      %p364 = scmp.eq.s32.totalorder %s32, 1
      %p365 = por %p363, %p364
      %p366 = scmp.ne.s32.totalorder %s357, %s358
      %p367 = scmp.eq.s32.totalorder %s32, 0
      %p368 = por %p366, %p367
      %p369 = scmp.ne.s32.totalorder %s357, %s358
      %p370 = scmp.eq.s32.totalorder %s33, 1
      %p371 = por %p369, %p370
      %p373 = scmp.ne.s32.totalorder %s358, %s372
      %p374 = scmp.eq.s32.totalorder %s33, 0
      %p375 = por %p373, %p374
      %s377 = sadd.s32 %s376, 1
      %p380 = scmp.eq.s32.totalorder %s27, 1
      %p381 = scmp.ne.s32.totalorder %s376, %s378
      %p382 = scmp.eq.s32.totalorder %s27, 0
      %p383 = por %p381, %p382
      %p384 = scmp.ne.s32.totalorder %s376, %s378
      %p385 = scmp.eq.s32.totalorder %s32, 1
      %p386 = por %p384, %p385
      %p387 = scmp.ne.s32.totalorder %s378, %s379
      %p388 = scmp.eq.s32.totalorder %s32, 0
      %p389 = por %p387, %p388
      %p390 = scmp.ne.s32.totalorder %s378, %s379
      %p391 = scmp.eq.s32.totalorder %s33, 1
      %p392 = por %p390, %p391
      %p394 = scmp.ne.s32.totalorder %s379, %s393
      %p395 = scmp.eq.s32.totalorder %s33, 0
      %p396 = por %p394, %p395
      %s398 = sadd.s32 %s397, 1
      %p401 = scmp.eq.s32.totalorder %s27, 1
      %p402 = scmp.ne.s32.totalorder %s397, %s399
      %p403 = scmp.eq.s32.totalorder %s27, 0
      %p404 = por %p402, %p403
      %p405 = scmp.ne.s32.totalorder %s397, %s399
      %p406 = scmp.eq.s32.totalorder %s32, 1
      %p407 = por %p405, %p406
      %p408 = scmp.ne.s32.totalorder %s399, %s400
      %p409 = scmp.eq.s32.totalorder %s32, 0
      %p410 = por %p408, %p409
      %p411 = scmp.ne.s32.totalorder %s399, %s400
      %p412 = scmp.eq.s32.totalorder %s33, 1
      %p413 = por %p411, %p412
      %p415 = scmp.ne.s32.totalorder %s400, %s414
      %p416 = scmp.eq.s32.totalorder %s33, 0
      %p417 = por %p415, %p416
      %s418 = ssub.s32 %s27, %s34
      %p419 = scmp.eq.s32.totalorder %s418, 0
      %s421 = sadd.s32 %s420, 1
      %s422 = scalar_select %p419, %s420, %s421
      %p425 = pneg %p419
      %p426 = scmp.eq.s32.totalorder %s27, 1
      %p427 = por %p425, %p426
      %p428 = scmp.ne.s32.totalorder %s420, %s423
      %p429 = scmp.eq.s32.totalorder %s27, 0
      %p430 = por %p428, %p429
      %p431 = scmp.ne.s32.totalorder %s420, %s423
      %p432 = scmp.eq.s32.totalorder %s32, 1
      %p433 = por %p431, %p432
      %p434 = scmp.ne.s32.totalorder %s423, %s424
      %p435 = scmp.eq.s32.totalorder %s32, 0
      %p436 = por %p434, %p435
      %p437 = scmp.ne.s32.totalorder %s423, %s424
      %p438 = scmp.eq.s32.totalorder %s33, 1
      %p439 = por %p437, %p438
      %p441 = scmp.ne.s32.totalorder %s424, %s440
      %p442 = scmp.eq.s32.totalorder %s33, 0
      %p443 = por %p441, %p442
      %p444 = scmp.le.s32.totalorder 1, %s27
      %p445 = scmp.lt.s32.totalorder %s27, 3
      %p446 = pnand %p444, %p445
      %p447 = pneg %p446
      // Predicated region
      $region9: #{swin_forward.7} parent=5 // pred_check
        _
      $region10: #{swin_forward.7} parent=5 // pred_check_branch
        %449 = sbr.rel (%p446) target = $region12
      $region11: #{swin_forward.7} parent=5 // pred_region
        %s450 = ssub.s32 %s27, 1
        // Predicated region
        $region13: #{swin_forward.7} parent=11 // pred_check
          %p451 = pneg %p74
        $region14: #{swin_forward.7} parent=11 // pred_check_branch
          %453 = sbr.rel (%p451) target = $region16
        $region15: #{swin_forward.7} parent=11 // pred_region
          _
        $region16: #{swin_forward.7} parent=11 // pred_fallthru
          _
        // Predicated region
        $region17: #{swin_forward.7} parent=11 // pred_check
          %p454 = pneg %p95
        $region18: #{swin_forward.7} parent=11 // pred_check_branch
          %456 = sbr.rel (%p454) target = $region20
        $region19: #{swin_forward.7} parent=11 // pred_region
          _
        $region20: #{swin_forward.7} parent=11 // pred_fallthru
          _
        // Predicated region
        $region21: #{swin_forward.7} parent=11 // pred_check
          %p457 = pneg %p116
        $region22: #{swin_forward.7} parent=11 // pred_check_branch
          %459 = sbr.rel (%p457) target = $region24
        $region23: #{swin_forward.7} parent=11 // pred_region
          _
        $region24: #{swin_forward.7} parent=11 // pred_fallthru
          _
        // Predicated region
        $region25: #{swin_forward.7} parent=11 // pred_check
          %p460 = pneg %p137
        $region26: #{swin_forward.7} parent=11 // pred_check_branch
          %462 = sbr.rel (%p460) target = $region28
        $region27: #{swin_forward.7} parent=11 // pred_region
          _
        $region28: #{swin_forward.7} parent=11 // pred_fallthru
          _
        // Predicated region
        $region29: #{swin_forward.7} parent=11 // pred_check
          %p463 = pneg %p158
        $region30: #{swin_forward.7} parent=11 // pred_check_branch
          %465 = sbr.rel (%p463) target = $region32
        $region31: #{swin_forward.7} parent=11 // pred_region
          _
        $region32: #{swin_forward.7} parent=11 // pred_fallthru
          _
        // Predicated region
        $region33: #{swin_forward.7} parent=11 // pred_check
          %p466 = pneg %p179
        $region34: #{swin_forward.7} parent=11 // pred_check_branch
          %468 = sbr.rel (%p466) target = $region36
        $region35: #{swin_forward.7} parent=11 // pred_region
          _
        $region36: #{swin_forward.7} parent=11 // pred_fallthru
          _
        // Predicated region
        $region37: #{swin_forward.7} parent=11 // pred_check
          %p469 = pneg %p200
        $region38: #{swin_forward.7} parent=11 // pred_check_branch
          %471 = sbr.rel (%p469) target = $region40
        $region39: #{swin_forward.7} parent=11 // pred_region
          _
        $region40: #{swin_forward.7} parent=11 // pred_fallthru
          _
        // Predicated region
        $region41: #{swin_forward.7} parent=11 // pred_check
          %p472 = pneg %p221
        $region42: #{swin_forward.7} parent=11 // pred_check_branch
          %474 = sbr.rel (%p472) target = $region44
        $region43: #{swin_forward.7} parent=11 // pred_region
          _
        $region44: #{swin_forward.7} parent=11 // pred_fallthru
          _
        // Predicated region
        $region45: #{swin_forward.7} parent=11 // pred_check
          %p475 = pneg %p242
        $region46: #{swin_forward.7} parent=11 // pred_check_branch
          %477 = sbr.rel (%p475) target = $region48
        $region47: #{swin_forward.7} parent=11 // pred_region
          _
        $region48: #{swin_forward.7} parent=11 // pred_fallthru
          _
        // Predicated region
        $region49: #{swin_forward.7} parent=11 // pred_check
          %p478 = pneg %p263
        $region50: #{swin_forward.7} parent=11 // pred_check_branch
          %480 = sbr.rel (%p478) target = $region52
        $region51: #{swin_forward.7} parent=11 // pred_region
          _
        $region52: #{swin_forward.7} parent=11 // pred_fallthru
          _
        // Predicated region
        $region53: #{swin_forward.7} parent=11 // pred_check
          %p481 = pneg %p284
        $region54: #{swin_forward.7} parent=11 // pred_check_branch
          %483 = sbr.rel (%p481) target = $region56
        $region55: #{swin_forward.7} parent=11 // pred_region
          _
        $region56: #{swin_forward.7} parent=11 // pred_fallthru
          _
        // Predicated region
        $region57: #{swin_forward.7} parent=11 // pred_check
          %p484 = pneg %p305
        $region58: #{swin_forward.7} parent=11 // pred_check_branch
          %486 = sbr.rel (%p484) target = $region60
        $region59: #{swin_forward.7} parent=11 // pred_region
          _
        $region60: #{swin_forward.7} parent=11 // pred_fallthru
          _
        // Predicated region
        $region61: #{swin_forward.7} parent=11 // pred_check
          %p487 = pneg %p326
        $region62: #{swin_forward.7} parent=11 // pred_check_branch
          %489 = sbr.rel (%p487) target = $region64
        $region63: #{swin_forward.7} parent=11 // pred_region
          _
        $region64: #{swin_forward.7} parent=11 // pred_fallthru
          _
        // Predicated region
        $region65: #{swin_forward.7} parent=11 // pred_check
          %p490 = pneg %p347
        $region66: #{swin_forward.7} parent=11 // pred_check_branch
          %492 = sbr.rel (%p490) target = $region68
        $region67: #{swin_forward.7} parent=11 // pred_region
          _
        $region68: #{swin_forward.7} parent=11 // pred_fallthru
          _
        // Predicated region
        $region69: #{swin_forward.7} parent=11 // pred_check
          %p493 = pneg %p368
        $region70: #{swin_forward.7} parent=11 // pred_check_branch
          %495 = sbr.rel (%p493) target = $region72
        $region71: #{swin_forward.7} parent=11 // pred_region
          _
        $region72: #{swin_forward.7} parent=11 // pred_fallthru
          _
        // Predicated region
        $region73: #{swin_forward.7} parent=11 // pred_check
          %p496 = pneg %p389
        $region74: #{swin_forward.7} parent=11 // pred_check_branch
          %498 = sbr.rel (%p496) target = $region76
        $region75: #{swin_forward.7} parent=11 // pred_region
          _
        $region76: #{swin_forward.7} parent=11 // pred_fallthru
          _
        // Predicated region
        $region77: #{swin_forward.7} parent=11 // pred_check
          %p499 = pneg %p410
        $region78: #{swin_forward.7} parent=11 // pred_check_branch
          %501 = sbr.rel (%p499) target = $region80
        $region79: #{swin_forward.7} parent=11 // pred_region
          _
        $region80: #{swin_forward.7} parent=11 // pred_fallthru
          _
      $region12: #{swin_forward.7} parent=5 // pred_fallthru
        _
      %p502 = scmp.lt.s32.totalorder %s27, 2
      // Predicated region
      $region81: #{swin_forward.7} parent=5 // pred_check
        %p503 = pneg %p502
      $region82: #{swin_forward.7} parent=5 // pred_check_branch
        %505 = sbr.rel (%p503) target = $region84
      $region83: #{swin_forward.7} parent=5 // pred_region
        // Predicated region
        $region85: #{swin_forward.7} parent=83 // pred_check
          %p506 = pneg %p47
        $region86: #{swin_forward.7} parent=83 // pred_check_branch
          %508 = sbr.rel (%p506) target = $region88
        $region87: #{swin_forward.7} parent=83 // pred_region
          %p509 = scmp.lt.s32.totalorder %s27, 1
          %s510 = scalar_select %p509, %s27, 1
          %s511 = smul.addr %s510, 2
          %s512 = smul.addr %s511, 4
          %s513 = scalar_lea.vmem %s0, %s512
        $region88: #{swin_forward.7} parent=83 // pred_fallthru
          _
      $region84: #{swin_forward.7} parent=5 // pred_fallthru
        _
      %p514 = scmp.le.s32.totalorder 1, %s27
      %p515 = scmp.lt.s32.totalorder %s27, 3
      %p516 = pnand %p514, %p515
      %p517 = pneg %p516
      // Predicated region
      $region89: #{swin_forward.7} parent=5 // pred_check
        _
      $region90: #{swin_forward.7} parent=5 // pred_check_branch
        %519 = sbr.rel (%p516) target = $region92
      $region91: #{swin_forward.7} parent=5 // pred_region
        %s520 = ssub.s32 %s27, 1
        %p521 = scmp.lt.s32.totalorder %s32, 1
        %s522 = scalar_select %p521, %s32, 1
        %s523 = smul.addr %s522, 2
        %s524 = smul.addr %s523, 4
        %s525 = scalar_lea.vmem %s0, %s524
        %p526 = pneg %p53
        %p527 = pneg %p50
        %p528 = pneg %p74
        %p529 = pneg %p71
        %p530 = pneg %p95
        %p531 = pneg %p92
        %p532 = pneg %p116
        %p533 = pneg %p113
        %p534 = pneg %p137
        %p535 = pneg %p134
        %p536 = pneg %p158
        %p537 = pneg %p155
        %p538 = pneg %p179
        %p539 = pneg %p176
        %p540 = pneg %p200
        %p541 = pneg %p197
        %p542 = pneg %p221
        %p543 = pneg %p218
        %p544 = pneg %p242
        %p545 = pneg %p239
        %p546 = pneg %p263
        %p547 = pneg %p260
        %p548 = pneg %p284
        %p549 = pneg %p281
        %p550 = pneg %p305
        %p551 = pneg %p302
        %p552 = pneg %p326
        %p553 = pneg %p323
        %p554 = pneg %p347
        %p555 = pneg %p344
        %p556 = pneg %p368
        %p557 = pneg %p365
        %p558 = pneg %p389
        %p559 = pneg %p386
        %p560 = pneg %p410
        %p561 = pneg %p407
        %p562 = pneg %p436
        %p563 = pneg %p433
        %s564 = sand.u32 %s423, 1
        %s565 = scalar_lea.sflag [#allocation3], %s564
        %s566 = sand.u32 %s423, 1
        %s567 = scalar_lea.vmem [#allocation2], %s566
        %p568 = scmp.lt.s32.totalorder %s32, 1
        %s569 = scalar_select %p568, %s32, 1
        %s570 = smul.addr %s569, 2
        %s571 = smul.addr %s570, 4
        %s572 = scalar_lea.vmem %s0, %s571
        %v574 = vld [vmem:[%s572] sm:$0xf]
        %v575 = vld [vmem:[%s572 + $0x4] sm:$0xf]
        %v576 = vunpack.c.l.bf16 %v574
        %v577 = vunpack.c.l.bf16 %v575
        %v578 = vld [vmem:[%s2] sm:$0x1]
        %v579 = vld [vmem:[%s3] sm:$0x1]
        %vm580 = vcmask 523264
        %v581 = vsel %vm580, %v576, 0.0
        %582 = vadd.xlane.f32.xlu0 %v581
        %v583 = vpop.xlane.xlu0 %582
        %v584 = vsel %vm580, %v577, 0.0
        %585 = vadd.xlane.f32.xlu0 %v584
        %v586 = vpop.xlane.xlu0 %585
        %v587 = vrcp.pop 64.0
        %v588 = vmul.f32 %v583, %v587
        %v589 = vmul.f32 %v586, %v587
        %v590 = vsub.f32 %v576, %v588
        %v591 = vsub.f32 %v577, %v589
        %v592 = vmul.f32 %v590, %v590
        %v593 = vmul.f32 %v591, %v591
        %v594 = vsel %vm580, %v592, 0.0
        %595 = vadd.xlane.f32.xlu0 %v594
        %v596 = vpop.xlane.xlu0 %595
        %v597 = vsel %vm580, %v593, 0.0
        %598 = vadd.xlane.f32.xlu0 %v597
        %v599 = vpop.xlane.xlu0 %598
        %v600 = vmul.f32 %v596, %v587
        %v601 = vmul.f32 %v599, %v587
        %v602 = vadd.f32 %v600, 1e-05
        %v603 = vadd.f32 %v601, 1e-05
        %v604 = vrsqrt.pop %v602
        %v605 = vrsqrt.pop %v603
        %v606 = vmul.f32 %v590, %v604
        %v607 = vmul.f32 %v591, %v605
        %v609 = vlaneseq
        %v610 = vshrl.u32 %v609, 7
        %v611 = vsub.s32 0, %v610
        %v612 = vrot.slane %v578, %v611
        %v614 = vmul.f32 %v606, %v612
        %v615 = vmul.f32 %v607, %v612
        %v617 = vlaneseq
        %v618 = vshrl.u32 %v617, 7
        %v619 = vsub.s32 0, %v618
        %v620 = vrot.slane %v579, %v619
        %v622 = vadd.f32 %v614, %v620
        %v623 = vadd.f32 %v615, %v620
        %v624 = vpack.c.bf16 %v623, %v622
        %v625 = vld [vmem:[%s4] sm:$0xff]
        %v626 = vld [vmem:[%s4 + $0x8] sm:$0xff]
        %v627 = vld [vmem:[%s4 + $0x10] sm:$0xff]
        %v628 = vld [vmem:[%s4 + $0x18] sm:$0xff]
        %v629 = vld [vmem:[%s4 + $0x20] sm:$0xff]
        %v630 = vld [vmem:[%s4 + $0x28] sm:$0xff]
        %v631 = vld [vmem:[%s4 + $0x30] sm:$0xff]
        %v632 = vld [vmem:[%s4 + $0x38] sm:$0xff]
        %v633 = vld [vmem:[%s5] sm:$0x3]
        %v635 = vlaneseq
        %v636 = vshrl.u32 %v635, 7
        %v637 = vsub.s32 0, %v636
        %v638 = vrot.slane %v633, %v637
        %v639 = vlaneseq
        %v640 = vshrl.u32 %v639, 7
        %v641 = vsub.s32 1, %v640
        %v642 = vrot.slane %v633, %v641
        %v653 = vunpack.c.l.b16 %v625
        %v654 = vunpack.c.h.b16 %v625
        %v655 = vunpack.c.l.b16 %v626
        %v656 = vunpack.c.h.b16 %v626
        %v657 = vunpack.c.l.b16 %v627
        %v658 = vunpack.c.h.b16 %v627
        %v659 = vunpack.c.l.b16 %v628
        %v660 = vunpack.c.h.b16 %v628
        %v661 = vunpack.c.l.b16 %v629
        %v662 = vunpack.c.h.b16 %v629
        %v663 = vunpack.c.l.b16 %v630
        %v664 = vunpack.c.h.b16 %v630
        %v665 = vunpack.c.l.b16 %v631
        %v666 = vunpack.c.h.b16 %v631
        %v667 = vunpack.c.l.b16 %v632
        %v668 = vunpack.c.h.b16 %v632
        %v669 = vpack.c.b16 %v655, %v653
        %v670 = vpack.c.b16 %v656, %v654
        %v671 = vpack.c.b16 %v659, %v657
        %v672 = vpack.c.b16 %v660, %v658
        %v673 = vpack.c.b16 %v663, %v661
        %v674 = vpack.c.b16 %v664, %v662
        %v675 = vpack.c.b16 %v667, %v665
        %v676 = vpack.c.b16 %v668, %v666
        %v686 = vsel %vm580, %v624, 0
        %688 = vmatprep.subr.bf16.mxu0 0
        %689 = vmatpush1.bf16.msra.mxu0 0
        %690 = vmatprep.subr.bf16.mxu0 0
        %691 = vmatpush1.bf16.msra.mxu0 0
        %692 = vmatprep.subr.bf16.mxu0 0
        %693 = vmatpush1.bf16.msra.mxu0 0
        %694 = vmatprep.subr.bf16.mxu0 0
        %695 = vmatpush1.bf16.msra.mxu0 0
        %696 = vmatprep.subr.bf16.mxu0 %v676
        %697 = vmatpush1.bf16.msra.mxu0 %v675
        %698 = vmatprep.subr.bf16.mxu0 %v674
        %699 = vmatpush1.bf16.msra.mxu0 %v673
        %700 = vmatprep.subr.bf16.mxu0 %v672
        %701 = vmatpush1.bf16.msra.mxu0 %v671
        %702 = vmatprep.subr.bf16.mxu0 %v670
        %703 = vmatpush1.bf16.msra.mxu0 %v669
        %704 = vmatprep.subr.bf16.mxu0 0
        %705 = vmatpush2.bf16.msra.mxu0 0
        %706 = vmatprep.subr.bf16.mxu0 0
        %707 = vmatpush2.bf16.msra.mxu0 0
        %708 = vmatprep.subr.bf16.mxu0 0
        %709 = vmatpush2.bf16.msra.mxu0 0
        %710 = vmatprep.subr.bf16.mxu0 0
        %711 = vmatpush2.bf16.msra.mxu0 0
        %712 = vmatprep.subr.bf16.mxu0 0
        %713 = vmatpush2.bf16.msra.mxu0 0
        %714 = vmatprep.subr.bf16.mxu0 0
        %715 = vmatpush2.bf16.msra.mxu0 0
        %716 = vmatprep.subr.bf16.mxu0 0
        %717 = vmatpush2.bf16.msra.mxu0 0
        %718 = vmatprep.subr.bf16.mxu0 0
        %719 = vmatpush2.bf16.msra.mxu0 0
        %720 = vmatprep.mubr.bf16.mxu0 0
        %721 = vmatmul.mubr.bf16.gmra.mxu0 %v686
        %v722 = vpop.f32.mrf.mxu0
        %v723 = vadd.f32 %v638, %v722
        %v724 = vpop.f32.mrf.mxu0
        %v725 = vadd.f32 %v642, %v724
        %v726 = vpop.f32.mrf.mxu0
        %v727 = vadd.f32 %v638, %v726
        %v728 = vpop.f32.mrf.mxu0
        %v729 = vadd.f32 %v642, %v728
        %730 = vdwg.mxu0
        %v731 = vpack.c.bf16 %v727, %v723
        %v732 = vpack.c.bf16 %v729, %v725
        %v733 = vld [vmem:[%s1] sm:$0xff]
        %v734 = vld [vmem:[%s1 + $0x8] sm:$0xff]
        %736 = vrot.lane.b32.xlu0 %v731, 64
        %v737 = vpop.permute.xlu0 %736
        %vm738 = vcmask 130048
        %v740 = vsel %vm738, %v731, 0
        %v743 = vsel %vm738, %v737, 0
        %745 = vmatprep.subr.bf16.mxu0 0
        %746 = vmatpush1.bf16.xpose.msra.mxu0 0
        %747 = vmatprep.subr.bf16.mxu0 0
        %748 = vmatpush1.bf16.xpose.msra.mxu0 0
        %749 = vmatprep.subr.bf16.mxu0 0
        %750 = vmatpush1.bf16.xpose.msra.mxu0 0
        %751 = vmatprep.subr.bf16.mxu0 0
        %752 = vmatpush1.bf16.xpose.msra.mxu0 0
        %753 = vmatprep.subr.bf16.mxu0 0
        %754 = vmatpush1.bf16.xpose.msra.mxu0 0
        %755 = vmatprep.subr.bf16.mxu0 0
        %756 = vmatpush1.bf16.xpose.msra.mxu0 0
        %757 = vmatprep.subr.bf16.mxu0 0
        %758 = vmatpush1.bf16.xpose.msra.mxu0 0
        %759 = vmatprep.subr.bf16.mxu0 0
        %760 = vmatpush1.bf16.xpose.msra.mxu0 %v743
        %761 = vmatprep.subr.bf16.mxu0 0
        %762 = vmatpush2.bf16.xpose.msra.mxu0 0
        %763 = vmatprep.subr.bf16.mxu0 0
        %764 = vmatpush2.bf16.xpose.msra.mxu0 0
        %765 = vmatprep.subr.bf16.mxu0 0
        %766 = vmatpush2.bf16.xpose.msra.mxu0 0
        %767 = vmatprep.subr.bf16.mxu0 0
        %768 = vmatpush2.bf16.xpose.msra.mxu0 0
        %769 = vmatprep.subr.bf16.mxu0 0
        %770 = vmatpush2.bf16.xpose.msra.mxu0 0
        %771 = vmatprep.subr.bf16.mxu0 0
        %772 = vmatpush2.bf16.xpose.msra.mxu0 0
        %773 = vmatprep.subr.bf16.mxu0 0
        %774 = vmatpush2.bf16.xpose.msra.mxu0 0
        %775 = vmatprep.subr.bf16.mxu0 0
        %776 = vmatpush2.bf16.xpose.msra.mxu0 0
        %777 = vmatprep.mubr.bf16.mxu0 0
        %778 = vmatmul.mubr.bf16.gmra.mxu0 %v740
        %v779 = vpop.f32.mrf.mxu0
        %v780 = vadd.f32 %v733, %v779
        %v781 = vpop.f32.mrf.mxu0
        %v782 = vpop.f32.mrf.mxu0
        %v783 = vadd.f32 %v734, %v782
        %v784 = vpop.f32.mrf.mxu0
        %785 = vdwg.mxu0
        %v786 = vsel %vm738, %v780, -inf
        %787 = vmax.xlane.f32.xlu0 %v786
        %v788 = vpop.xlane.xlu0 %787
        %v789 = vsel %vm738, %v783, -inf
        %790 = vmax.xlane.f32.xlu0 %v789
        %v791 = vpop.xlane.xlu0 %790
        %v792 = vsub.f32 %v780, %v788
        %v793 = vsub.f32 %v783, %v791
        %v794 = vmul.f32 %v792, 1.442695
        %v795 = vpow.pop %v794
        %v796 = vmul.f32 %v793, 1.442695
        %v797 = vpow.pop %v796
        %v798 = vsel %vm738, %v795, 0.0
        %799 = vadd.xlane.f32.xlu0 %v798
        %v800 = vpop.xlane.xlu0 %799
        %v801 = vsel %vm738, %v797, 0.0
        %802 = vadd.xlane.f32.xlu0 %v801
        %v803 = vpop.xlane.xlu0 %802
        %v804 = vrcp.pop %v800
        %v805 = vrcp.pop %v803
        %v806 = vmul.f32 %v795, %v804
        %v807 = vmul.f32 %v797, %v805
        %v808 = vpack.c.bf16 %v807, %v806
        %v810 = vsel %vm738, %v808, 0
        %812 = vmatprep.subr.bf16.mxu0 0
        %813 = vmatpush1.bf16.msra.mxu0 0
        %814 = vmatprep.subr.bf16.mxu0 0
        %815 = vmatpush1.bf16.msra.mxu0 0
        %816 = vmatprep.subr.bf16.mxu0 0
        %817 = vmatpush1.bf16.msra.mxu0 0
        %818 = vmatprep.subr.bf16.mxu0 0
        %819 = vmatpush1.bf16.msra.mxu0 0
        %820 = vmatprep.subr.bf16.mxu0 0
        %821 = vmatpush1.bf16.msra.mxu0 0
        %822 = vmatprep.subr.bf16.mxu0 0
        %823 = vmatpush1.bf16.msra.mxu0 0
        %824 = vmatprep.subr.bf16.mxu0 0
        %825 = vmatpush1.bf16.msra.mxu0 0
        %826 = vmatprep.subr.bf16.mxu0 0
        %827 = vmatpush1.bf16.msra.mxu0 %v732
        %828 = vmatprep.subr.bf16.mxu0 0
        %829 = vmatpush2.bf16.msra.mxu0 0
        %830 = vmatprep.subr.bf16.mxu0 0
        %831 = vmatpush2.bf16.msra.mxu0 0
        %832 = vmatprep.subr.bf16.mxu0 0
        %833 = vmatpush2.bf16.msra.mxu0 0
        %834 = vmatprep.subr.bf16.mxu0 0
        %835 = vmatpush2.bf16.msra.mxu0 0
        %836 = vmatprep.subr.bf16.mxu0 0
        %837 = vmatpush2.bf16.msra.mxu0 0
        %838 = vmatprep.subr.bf16.mxu0 0
        %839 = vmatpush2.bf16.msra.mxu0 0
        %840 = vmatprep.subr.bf16.mxu0 0
        %841 = vmatpush2.bf16.msra.mxu0 0
        %842 = vmatprep.subr.bf16.mxu0 0
        %843 = vmatpush2.bf16.msra.mxu0 0
        %844 = vmatprep.mubr.bf16.mxu0 0
        %845 = vmatmul.mubr.bf16.gmra.mxu0 %v810
        %v846 = vpop.f32.mrf.mxu0
        %v847 = vadd.f32 0.0, %v846
        %v848 = vpop.f32.mrf.mxu0
        %v849 = vpop.f32.mrf.mxu0
        %v850 = vadd.f32 0.0, %v849
        %v851 = vpop.f32.mrf.mxu0
        %852 = vdwg.mxu0
        %s853 = scalar_lea.vmem %s1, 16
        %v854 = vld [vmem:[%s853] sm:$0xff]
        %v855 = vld [vmem:[%s853 + $0x8] sm:$0xff]
        %856 = vrot.lane.b32.xlu0 %v731, 112
        %v857 = vpop.permute.xlu0 %856
        %858 = vrot.lane.b32.xlu0 %v731, 48
        %v859 = vpop.permute.xlu0 %858
        %v861 = vsel %vm738, %v857, 0
        %v864 = vsel %vm738, %v859, 0
        %866 = vmatprep.subr.bf16.mxu0 0
        %867 = vmatpush1.bf16.xpose.msra.mxu0 0
        %868 = vmatprep.subr.bf16.mxu0 0
        %869 = vmatpush1.bf16.xpose.msra.mxu0 0
        %870 = vmatprep.subr.bf16.mxu0 0
        %871 = vmatpush1.bf16.xpose.msra.mxu0 0
        %872 = vmatprep.subr.bf16.mxu0 0
        %873 = vmatpush1.bf16.xpose.msra.mxu0 0
        %874 = vmatprep.subr.bf16.mxu0 0
        %875 = vmatpush1.bf16.xpose.msra.mxu0 0
        %876 = vmatprep.subr.bf16.mxu0 0
        %877 = vmatpush1.bf16.xpose.msra.mxu0 0
        %878 = vmatprep.subr.bf16.mxu0 0
        %879 = vmatpush1.bf16.xpose.msra.mxu0 0
        %880 = vmatprep.subr.bf16.mxu0 0
        %881 = vmatpush1.bf16.xpose.msra.mxu0 %v864
        %882 = vmatprep.subr.bf16.mxu0 0
        %883 = vmatpush2.bf16.xpose.msra.mxu0 0
        %884 = vmatprep.subr.bf16.mxu0 0
        %885 = vmatpush2.bf16.xpose.msra.mxu0 0
        %886 = vmatprep.subr.bf16.mxu0 0
        %887 = vmatpush2.bf16.xpose.msra.mxu0 0
        %888 = vmatprep.subr.bf16.mxu0 0
        %889 = vmatpush2.bf16.xpose.msra.mxu0 0
        %890 = vmatprep.subr.bf16.mxu0 0
        %891 = vmatpush2.bf16.xpose.msra.mxu0 0
        %892 = vmatprep.subr.bf16.mxu0 0
        %893 = vmatpush2.bf16.xpose.msra.mxu0 0
        %894 = vmatprep.subr.bf16.mxu0 0
        %895 = vmatpush2.bf16.xpose.msra.mxu0 0
        %896 = vmatprep.subr.bf16.mxu0 0
        %897 = vmatpush2.bf16.xpose.msra.mxu0 0
        %898 = vmatprep.mubr.bf16.mxu0 0
        %899 = vmatmul.mubr.bf16.gmra.mxu0 %v861
        %v900 = vpop.f32.mrf.mxu0
        %v901 = vadd.f32 %v854, %v900
        %v902 = vpop.f32.mrf.mxu0
        %v903 = vpop.f32.mrf.mxu0
        %v904 = vadd.f32 %v855, %v903
        %v905 = vpop.f32.mrf.mxu0
        %906 = vdwg.mxu0
        %v907 = vsel %vm738, %v901, -inf
        %908 = vmax.xlane.f32.xlu0 %v907
        %v909 = vpop.xlane.xlu0 %908
        %v910 = vsel %vm738, %v904, -inf
        %911 = vmax.xlane.f32.xlu0 %v910
        %v912 = vpop.xlane.xlu0 %911
        %v913 = vsub.f32 %v901, %v909
        %v914 = vsub.f32 %v904, %v912
        %v915 = vmul.f32 %v913, 1.442695
        %v916 = vpow.pop %v915
        %v917 = vmul.f32 %v914, 1.442695
        %v918 = vpow.pop %v917
        %v919 = vsel %vm738, %v916, 0.0
        %920 = vadd.xlane.f32.xlu0 %v919
        %v921 = vpop.xlane.xlu0 %920
        %v922 = vsel %vm738, %v918, 0.0
        %923 = vadd.xlane.f32.xlu0 %v922
        %v924 = vpop.xlane.xlu0 %923
        %v925 = vrcp.pop %v921
        %v926 = vrcp.pop %v924
        %v927 = vmul.f32 %v916, %v925
        %v928 = vmul.f32 %v918, %v926
        %v929 = vpack.c.bf16 %v928, %v927
        %931 = vrot.lane.b32.xlu0 %v732, 112
        %v932 = vpop.permute.xlu0 %931
        %v935 = vsel %vm738, %v929, 0
        %937 = vmatprep.subr.bf16.mxu0 0
        %938 = vmatpush1.bf16.msra.mxu0 0
        %939 = vmatprep.subr.bf16.mxu0 0
        %940 = vmatpush1.bf16.msra.mxu0 0
        %941 = vmatprep.subr.bf16.mxu0 0
        %942 = vmatpush1.bf16.msra.mxu0 0
        %943 = vmatprep.subr.bf16.mxu0 0
        %944 = vmatpush1.bf16.msra.mxu0 0
        %945 = vmatprep.subr.bf16.mxu0 0
        %946 = vmatpush1.bf16.msra.mxu0 0
        %947 = vmatprep.subr.bf16.mxu0 0
        %948 = vmatpush1.bf16.msra.mxu0 0
        %949 = vmatprep.subr.bf16.mxu0 0
        %950 = vmatpush1.bf16.msra.mxu0 0
        %951 = vmatprep.subr.bf16.mxu0 0
        %952 = vmatpush1.bf16.msra.mxu0 %v932
        %953 = vmatprep.subr.bf16.mxu0 0
        %954 = vmatpush2.bf16.msra.mxu0 0
        %955 = vmatprep.subr.bf16.mxu0 0
        %956 = vmatpush2.bf16.msra.mxu0 0
        %957 = vmatprep.subr.bf16.mxu0 0
        %958 = vmatpush2.bf16.msra.mxu0 0
        %959 = vmatprep.subr.bf16.mxu0 0
        %960 = vmatpush2.bf16.msra.mxu0 0
        %961 = vmatprep.subr.bf16.mxu0 0
        %962 = vmatpush2.bf16.msra.mxu0 0
        %963 = vmatprep.subr.bf16.mxu0 0
        %964 = vmatpush2.bf16.msra.mxu0 0
        %965 = vmatprep.subr.bf16.mxu0 0
        %966 = vmatpush2.bf16.msra.mxu0 0
        %967 = vmatprep.subr.bf16.mxu0 0
        %968 = vmatpush2.bf16.msra.mxu0 0
        %969 = vmatprep.mubr.bf16.mxu0 0
        %970 = vmatmul.mubr.bf16.gmra.mxu0 %v935
        %v971 = vpop.f32.mrf.mxu0
        %v972 = vadd.f32 0.0, %v971
        %v973 = vpop.f32.mrf.mxu0
        %v974 = vpop.f32.mrf.mxu0
        %v975 = vadd.f32 0.0, %v974
        %v976 = vpop.f32.mrf.mxu0
        %977 = vdwg.mxu0
        %s978 = scalar_lea.vmem %s1, 32
        %v979 = vld [vmem:[%s978] sm:$0xff]
        %v980 = vld [vmem:[%s978 + $0x8] sm:$0xff]
        %981 = vrot.lane.b32.xlu0 %v731, 96
        %v982 = vpop.permute.xlu0 %981
        %983 = vrot.lane.b32.xlu0 %v731, 32
        %v984 = vpop.permute.xlu0 %983
        %v986 = vsel %vm738, %v982, 0
        %v989 = vsel %vm738, %v984, 0
        %991 = vmatprep.subr.bf16.mxu0 0
        %992 = vmatpush1.bf16.xpose.msra.mxu0 0
        %993 = vmatprep.subr.bf16.mxu0 0
        %994 = vmatpush1.bf16.xpose.msra.mxu0 0
        %995 = vmatprep.subr.bf16.mxu0 0
        %996 = vmatpush1.bf16.xpose.msra.mxu0 0
        %997 = vmatprep.subr.bf16.mxu0 0
        %998 = vmatpush1.bf16.xpose.msra.mxu0 0
        %999 = vmatprep.subr.bf16.mxu0 0
        %1000 = vmatpush1.bf16.xpose.msra.mxu0 0
        %1001 = vmatprep.subr.bf16.mxu0 0
        %1002 = vmatpush1.bf16.xpose.msra.mxu0 0
        %1003 = vmatprep.subr.bf16.mxu0 0
        %1004 = vmatpush1.bf16.xpose.msra.mxu0 0
        %1005 = vmatprep.subr.bf16.mxu0 0
        %1006 = vmatpush1.bf16.xpose.msra.mxu0 %v989
        %1007 = vmatprep.subr.bf16.mxu0 0
        %1008 = vmatpush2.bf16.xpose.msra.mxu0 0
        %1009 = vmatprep.subr.bf16.mxu0 0
        %1010 = vmatpush2.bf16.xpose.msra.mxu0 0
        %1011 = vmatprep.subr.bf16.mxu0 0
        %1012 = vmatpush2.bf16.xpose.msra.mxu0 0
        %1013 = vmatprep.subr.bf16.mxu0 0
        %1014 = vmatpush2.bf16.xpose.msra.mxu0 0
        %1015 = vmatprep.subr.bf16.mxu0 0
        %1016 = vmatpush2.bf16.xpose.msra.mxu0 0
        %1017 = vmatprep.subr.bf16.mxu0 0
        %1018 = vmatpush2.bf16.xpose.msra.mxu0 0
        %1019 = vmatprep.subr.bf16.mxu0 0
        %1020 = vmatpush2.bf16.xpose.msra.mxu0 0
        %1021 = vmatprep.subr.bf16.mxu0 0
        %1022 = vmatpush2.bf16.xpose.msra.mxu0 0
        %1023 = vmatprep.mubr.bf16.mxu0 0
        %1024 = vmatmul.mubr.bf16.gmra.mxu0 %v986
        %v1025 = vpop.f32.mrf.mxu0
        %v1026 = vadd.f32 %v979, %v1025
        %v1027 = vpop.f32.mrf.mxu0
        %v1028 = vpop.f32.mrf.mxu0
        %v1029 = vadd.f32 %v980, %v1028
        %v1030 = vpop.f32.mrf.mxu0
        %1031 = vdwg.mxu0
        %v1032 = vsel %vm738, %v1026, -inf
        %1033 = vmax.xlane.f32.xlu0 %v1032
        %v1034 = vpop.xlane.xlu0 %1033
        %v1035 = vsel %vm738, %v1029, -inf
        %1036 = vmax.xlane.f32.xlu0 %v1035
        %v1037 = vpop.xlane.xlu0 %1036
        %v1038 = vsub.f32 %v1026, %v1034
        %v1039 = vsub.f32 %v1029, %v1037
        %v1040 = vmul.f32 %v1038, 1.442695
        %v1041 = vpow.pop %v1040
        %v1042 = vmul.f32 %v1039, 1.442695
        %v1043 = vpow.pop %v1042
        %v1044 = vsel %vm738, %v1041, 0.0
        %1045 = vadd.xlane.f32.xlu0 %v1044
        %v1046 = vpop.xlane.xlu0 %1045
        %v1047 = vsel %vm738, %v1043, 0.0
        %1048 = vadd.xlane.f32.xlu0 %v1047
        %v1049 = vpop.xlane.xlu0 %1048
        %v1050 = vrcp.pop %v1046
        %v1051 = vrcp.pop %v1049
        %v1052 = vmul.f32 %v1041, %v1050
        %v1053 = vmul.f32 %v1043, %v1051
        %v1054 = vpack.c.bf16 %v1053, %v1052
        %1055 = vrot.lane.b32.xlu0 %v732, 96
        %v1056 = vpop.permute.xlu0 %1055
        %v1059 = vsel %vm738, %v1054, 0
        %1061 = vmatprep.subr.bf16.mxu0 0
        %1062 = vmatpush1.bf16.msra.mxu0 0
        %1063 = vmatprep.subr.bf16.mxu0 0
        %1064 = vmatpush1.bf16.msra.mxu0 0
        %1065 = vmatprep.subr.bf16.mxu0 0
        %1066 = vmatpush1.bf16.msra.mxu0 0
        %1067 = vmatprep.subr.bf16.mxu0 0
        %1068 = vmatpush1.bf16.msra.mxu0 0
        %1069 = vmatprep.subr.bf16.mxu0 0
        %1070 = vmatpush1.bf16.msra.mxu0 0
        %1071 = vmatprep.subr.bf16.mxu0 0
        %1072 = vmatpush1.bf16.msra.mxu0 0
        %1073 = vmatprep.subr.bf16.mxu0 0
        %1074 = vmatpush1.bf16.msra.mxu0 0
        %1075 = vmatprep.subr.bf16.mxu0 0
        %1076 = vmatpush1.bf16.msra.mxu0 %v1056
        %1077 = vmatprep.subr.bf16.mxu0 0
        %1078 = vmatpush2.bf16.msra.mxu0 0
        %1079 = vmatprep.subr.bf16.mxu0 0
        %1080 = vmatpush2.bf16.msra.mxu0 0
        %1081 = vmatprep.subr.bf16.mxu0 0
        %1082 = vmatpush2.bf16.msra.mxu0 0
        %1083 = vmatprep.subr.bf16.mxu0 0
        %1084 = vmatpush2.bf16.msra.mxu0 0
        %1085 = vmatprep.subr.bf16.mxu0 0
        %1086 = vmatpush2.bf16.msra.mxu0 0
        %1087 = vmatprep.subr.bf16.mxu0 0
        %1088 = vmatpush2.bf16.msra.mxu0 0
        %1089 = vmatprep.subr.bf16.mxu0 0
        %1090 = vmatpush2.bf16.msra.mxu0 0
        %1091 = vmatprep.subr.bf16.mxu0 0
        %1092 = vmatpush2.bf16.msra.mxu0 0
        %1093 = vmatprep.mubr.bf16.mxu0 0
        %1094 = vmatmul.mubr.bf16.gmra.mxu0 %v1059
        %v1095 = vpop.f32.mrf.mxu0
        %v1096 = vadd.f32 0.0, %v1095
        %v1097 = vpop.f32.mrf.mxu0
        %v1098 = vpop.f32.mrf.mxu0
        %v1099 = vadd.f32 0.0, %v1098
        %v1100 = vpop.f32.mrf.mxu0
        %1101 = vdwg.mxu0
        %s1102 = scalar_lea.vmem %s1, 48
        %v1103 = vld [vmem:[%s1102] sm:$0xff]
        %v1104 = vld [vmem:[%s1102 + $0x8] sm:$0xff]
        %1105 = vrot.lane.b32.xlu0 %v731, 80
        %v1106 = vpop.permute.xlu0 %1105
        %1107 = vrot.lane.b32.xlu0 %v731, 16
        %v1108 = vpop.permute.xlu0 %1107
        %v1110 = vsel %vm738, %v1106, 0
        %v1113 = vsel %vm738, %v1108, 0
        %1115 = vmatprep.subr.bf16.mxu0 0
        %1116 = vmatpush1.bf16.xpose.msra.mxu0 0
        %1117 = vmatprep.subr.bf16.mxu0 0
        %1118 = vmatpush1.bf16.xpose.msra.mxu0 0
        %1119 = vmatprep.subr.bf16.mxu0 0
        %1120 = vmatpush1.bf16.xpose.msra.mxu0 0
        %1121 = vmatprep.subr.bf16.mxu0 0
        %1122 = vmatpush1.bf16.xpose.msra.mxu0 0
        %1123 = vmatprep.subr.bf16.mxu0 0
        %1124 = vmatpush1.bf16.xpose.msra.mxu0 0
        %1125 = vmatprep.subr.bf16.mxu0 0
        %1126 = vmatpush1.bf16.xpose.msra.mxu0 0
        %1127 = vmatprep.subr.bf16.mxu0 0
        %1128 = vmatpush1.bf16.xpose.msra.mxu0 0
        %1129 = vmatprep.subr.bf16.mxu0 0
        %1130 = vmatpush1.bf16.xpose.msra.mxu0 %v1113
        %1131 = vmatprep.subr.bf16.mxu0 0
        %1132 = vmatpush2.bf16.xpose.msra.mxu0 0
        %1133 = vmatprep.subr.bf16.mxu0 0
        %1134 = vmatpush2.bf16.xpose.msra.mxu0 0
        %1135 = vmatprep.subr.bf16.mxu0 0
        %1136 = vmatpush2.bf16.xpose.msra.mxu0 0
        %1137 = vmatprep.subr.bf16.mxu0 0
        %1138 = vmatpush2.bf16.xpose.msra.mxu0 0
        %1139 = vmatprep.subr.bf16.mxu0 0
        %1140 = vmatpush2.bf16.xpose.msra.mxu0 0
        %1141 = vmatprep.subr.bf16.mxu0 0
        %1142 = vmatpush2.bf16.xpose.msra.mxu0 0
        %1143 = vmatprep.subr.bf16.mxu0 0
        %1144 = vmatpush2.bf16.xpose.msra.mxu0 0
        %1145 = vmatprep.subr.bf16.mxu0 0
        %1146 = vmatpush2.bf16.xpose.msra.mxu0 0
        %1147 = vmatprep.mubr.bf16.mxu0 0
        %1148 = vmatmul.mubr.bf16.gmra.mxu0 %v1110
        %v1149 = vpop.f32.mrf.mxu0
        %v1150 = vadd.f32 %v1103, %v1149
        %v1151 = vpop.f32.mrf.mxu0
        %v1152 = vpop.f32.mrf.mxu0
        %v1153 = vadd.f32 %v1104, %v1152
        %v1154 = vpop.f32.mrf.mxu0
        %1155 = vdwg.mxu0
        %v1156 = vsel %vm738, %v1150, -inf
        %1157 = vmax.xlane.f32.xlu0 %v1156
        %v1158 = vpop.xlane.xlu0 %1157
        %v1159 = vsel %vm738, %v1153, -inf
        %1160 = vmax.xlane.f32.xlu0 %v1159
        %v1161 = vpop.xlane.xlu0 %1160
        %v1162 = vsub.f32 %v1150, %v1158
        %v1163 = vsub.f32 %v1153, %v1161
        %v1164 = vmul.f32 %v1162, 1.442695
        %v1165 = vpow.pop %v1164
        %v1166 = vmul.f32 %v1163, 1.442695
        %v1167 = vpow.pop %v1166
        %v1168 = vsel %vm738, %v1165, 0.0
        %1169 = vadd.xlane.f32.xlu0 %v1168
        %v1170 = vpop.xlane.xlu0 %1169
        %v1171 = vsel %vm738, %v1167, 0.0
        %1172 = vadd.xlane.f32.xlu0 %v1171
        %v1173 = vpop.xlane.xlu0 %1172
        %v1174 = vrcp.pop %v1170
        %v1175 = vrcp.pop %v1173
        %v1176 = vmul.f32 %v1165, %v1174
        %v1177 = vmul.f32 %v1167, %v1175
        %v1178 = vpack.c.bf16 %v1177, %v1176
        %1179 = vrot.lane.b32.xlu0 %v732, 80
        %v1180 = vpop.permute.xlu0 %1179
        %v1183 = vsel %vm738, %v1178, 0
        %1185 = vmatprep.subr.bf16.mxu0 0
        %1186 = vmatpush1.bf16.msra.mxu0 0
        %1187 = vmatprep.subr.bf16.mxu0 0
        %1188 = vmatpush1.bf16.msra.mxu0 0
        %1189 = vmatprep.subr.bf16.mxu0 0
        %1190 = vmatpush1.bf16.msra.mxu0 0
        %1191 = vmatprep.subr.bf16.mxu0 0
        %1192 = vmatpush1.bf16.msra.mxu0 0
        %1193 = vmatprep.subr.bf16.mxu0 0
        %1194 = vmatpush1.bf16.msra.mxu0 0
        %1195 = vmatprep.subr.bf16.mxu0 0
        %1196 = vmatpush1.bf16.msra.mxu0 0
        %1197 = vmatprep.subr.bf16.mxu0 0
        %1198 = vmatpush1.bf16.msra.mxu0 0
        %1199 = vmatprep.subr.bf16.mxu0 0
        %1200 = vmatpush1.bf16.msra.mxu0 %v1180
        %1201 = vmatprep.subr.bf16.mxu0 0
        %1202 = vmatpush2.bf16.msra.mxu0 0
        %1203 = vmatprep.subr.bf16.mxu0 0
        %1204 = vmatpush2.bf16.msra.mxu0 0
        %1205 = vmatprep.subr.bf16.mxu0 0
        %1206 = vmatpush2.bf16.msra.mxu0 0
        %1207 = vmatprep.subr.bf16.mxu0 0
        %1208 = vmatpush2.bf16.msra.mxu0 0
        %1209 = vmatprep.subr.bf16.mxu0 0
        %1210 = vmatpush2.bf16.msra.mxu0 0
        %1211 = vmatprep.subr.bf16.mxu0 0
        %1212 = vmatpush2.bf16.msra.mxu0 0
        %1213 = vmatprep.subr.bf16.mxu0 0
        %1214 = vmatpush2.bf16.msra.mxu0 0
        %1215 = vmatprep.subr.bf16.mxu0 0
        %1216 = vmatpush2.bf16.msra.mxu0 0
        %1217 = vmatprep.mubr.bf16.mxu0 0
        %1218 = vmatmul.mubr.bf16.gmra.mxu0 %v1183
        %v1219 = vpop.f32.mrf.mxu0
        %v1220 = vadd.f32 0.0, %v1219
        %v1221 = vpop.f32.mrf.mxu0
        %v1222 = vpop.f32.mrf.mxu0
        %v1223 = vadd.f32 0.0, %v1222
        %v1224 = vpop.f32.mrf.mxu0
        %1225 = vdwg.mxu0
        %1228 = vrot.lane.b32.xlu0 %v972, 16
        %v1229 = vpop.permute.xlu0 %1228
        %1230 = vrot.lane.b32.xlu0 %v975, 16
        %v1231 = vpop.permute.xlu0 %1230
        %1236 = vrot.lane.b32.xlu0 %v1096, 32
        %v1237 = vpop.permute.xlu0 %1236
        %1238 = vrot.lane.b32.xlu0 %v1099, 32
        %v1239 = vpop.permute.xlu0 %1238
        %1244 = vrot.lane.b32.xlu0 %v1220, 48
        %v1245 = vpop.permute.xlu0 %1244
        %1246 = vrot.lane.b32.xlu0 %v1223, 48
        %v1247 = vpop.permute.xlu0 %1246
        %v1250 = vsel %vm738, %v847, %v1229
        %v1251 = vsel %vm738, %v850, %v1231
        %vm1252 = vcmask 261120
        %v1253 = vsel %vm1252, %v1250, %v1237
        %v1254 = vsel %vm1252, %v1251, %v1239
        %vm1255 = vcmask 392192
        %v1256 = vsel %vm1255, %v1253, %v1245
        %v1257 = vsel %vm1255, %v1254, %v1247
        %v1258 = vpack.c.bf16 %v1257, %v1256
        %v1259 = vld [vmem:[%s6] sm:$0xf]
        %v1260 = vld [vmem:[%s6 + $0x4] sm:$0xf]
        %v1261 = vld [vmem:[%s6 + $0x8] sm:$0xf]
        %v1262 = vld [vmem:[%s6 + $0xc] sm:$0xf]
        %v1263 = vld [vmem:[%s6 + $0x10] sm:$0xf]
        %v1264 = vld [vmem:[%s6 + $0x14] sm:$0xf]
        %v1265 = vld [vmem:[%s6 + $0x18] sm:$0xf]
        %v1266 = vld [vmem:[%s6 + $0x1c] sm:$0xf]
        %v1267 = vld [vmem:[%s7] sm:$0x1]
        %v1269 = vlaneseq
        %v1270 = vshrl.u32 %v1269, 7
        %v1271 = vsub.s32 0, %v1270
        %v1272 = vrot.slane %v1267, %v1271
        %v1282 = vunpack.c.l.b16 %v1259
        %v1283 = vunpack.c.l.b16 %v1260
        %v1284 = vunpack.c.l.b16 %v1261
        %v1285 = vunpack.c.l.b16 %v1262
        %v1286 = vunpack.c.l.b16 %v1263
        %v1287 = vunpack.c.l.b16 %v1264
        %v1288 = vunpack.c.l.b16 %v1265
        %v1289 = vunpack.c.l.b16 %v1266
        %v1290 = vpack.c.b16 %v1283, %v1282
        %v1291 = vpack.c.b16 %v1285, %v1284
        %v1292 = vpack.c.b16 %v1287, %v1286
        %v1293 = vpack.c.b16 %v1289, %v1288
        %v1299 = vsel %vm580, %v1258, 0
        %1301 = vmatprep.subr.bf16.mxu0 0
        %1302 = vmatpush1.bf16.msra.mxu0 0
        %1303 = vmatprep.subr.bf16.mxu0 0
        %1304 = vmatpush1.bf16.msra.mxu0 0
        %1305 = vmatprep.subr.bf16.mxu0 0
        %1306 = vmatpush1.bf16.msra.mxu0 0
        %1307 = vmatprep.subr.bf16.mxu0 0
        %1308 = vmatpush1.bf16.msra.mxu0 0
        %1309 = vmatprep.subr.bf16.mxu0 0
        %1310 = vmatpush1.bf16.msra.mxu0 %v1293
        %1311 = vmatprep.subr.bf16.mxu0 0
        %1312 = vmatpush1.bf16.msra.mxu0 %v1292
        %1313 = vmatprep.subr.bf16.mxu0 0
        %1314 = vmatpush1.bf16.msra.mxu0 %v1291
        %1315 = vmatprep.subr.bf16.mxu0 0
        %1316 = vmatpush1.bf16.msra.mxu0 %v1290
        %1317 = vmatprep.subr.bf16.mxu0 0
        %1318 = vmatpush2.bf16.msra.mxu0 0
        %1319 = vmatprep.subr.bf16.mxu0 0
        %1320 = vmatpush2.bf16.msra.mxu0 0
        %1321 = vmatprep.subr.bf16.mxu0 0
        %1322 = vmatpush2.bf16.msra.mxu0 0
        %1323 = vmatprep.subr.bf16.mxu0 0
        %1324 = vmatpush2.bf16.msra.mxu0 0
        %1325 = vmatprep.subr.bf16.mxu0 0
        %1326 = vmatpush2.bf16.msra.mxu0 0
        %1327 = vmatprep.subr.bf16.mxu0 0
        %1328 = vmatpush2.bf16.msra.mxu0 0
        %1329 = vmatprep.subr.bf16.mxu0 0
        %1330 = vmatpush2.bf16.msra.mxu0 0
        %1331 = vmatprep.subr.bf16.mxu0 0
        %1332 = vmatpush2.bf16.msra.mxu0 0
        %1333 = vmatprep.mubr.bf16.mxu0 0
        %1334 = vmatmul.mubr.bf16.gmra.mxu0 %v1299
        %v1335 = vpop.f32.mrf.mxu0
        %v1336 = vadd.f32 %v1272, %v1335
        %v1337 = vpop.f32.mrf.mxu0
        %v1338 = vpop.f32.mrf.mxu0
        %v1339 = vadd.f32 %v1272, %v1338
        %v1340 = vpop.f32.mrf.mxu0
        %1341 = vdwg.mxu0
        %v1342 = vadd.f32 %v576, %v1336
        %v1343 = vadd.f32 %v577, %v1339
        %v1344 = vld [vmem:[%s8] sm:$0x1]
        %v1345 = vld [vmem:[%s9] sm:$0x1]
        %v1346 = vsel %vm580, %v1342, 0.0
        %1347 = vadd.xlane.f32.xlu0 %v1346
        %v1348 = vpop.xlane.xlu0 %1347
        %v1349 = vsel %vm580, %v1343, 0.0
        %1350 = vadd.xlane.f32.xlu0 %v1349
        %v1351 = vpop.xlane.xlu0 %1350
        %v1352 = vmul.f32 %v1348, %v587
        %v1353 = vmul.f32 %v1351, %v587
        %v1354 = vsub.f32 %v1342, %v1352
        %v1355 = vsub.f32 %v1343, %v1353
        %v1356 = vmul.f32 %v1354, %v1354
        %v1357 = vmul.f32 %v1355, %v1355
        %v1358 = vsel %vm580, %v1356, 0.0
        %1359 = vadd.xlane.f32.xlu0 %v1358
        %v1360 = vpop.xlane.xlu0 %1359
        %v1361 = vsel %vm580, %v1357, 0.0
        %1362 = vadd.xlane.f32.xlu0 %v1361
        %v1363 = vpop.xlane.xlu0 %1362
        %v1364 = vmul.f32 %v1360, %v587
        %v1365 = vmul.f32 %v1363, %v587
        %v1366 = vadd.f32 %v1364, 1e-05
        %v1367 = vadd.f32 %v1365, 1e-05
        %v1368 = vrsqrt.pop %v1366
        %v1369 = vrsqrt.pop %v1367
        %v1370 = vmul.f32 %v1354, %v1368
        %v1371 = vmul.f32 %v1355, %v1369
        %v1373 = vlaneseq
        %v1374 = vshrl.u32 %v1373, 7
        %v1375 = vsub.s32 0, %v1374
        %v1376 = vrot.slane %v1344, %v1375
        %v1378 = vmul.f32 %v1370, %v1376
        %v1379 = vmul.f32 %v1371, %v1376
        %v1381 = vlaneseq
        %v1382 = vshrl.u32 %v1381, 7
        %v1383 = vsub.s32 0, %v1382
        %v1384 = vrot.slane %v1345, %v1383
        %v1386 = vadd.f32 %v1378, %v1384
        %v1387 = vadd.f32 %v1379, %v1384
        %v1388 = vpack.c.bf16 %v1387, %v1386
        %v1389 = vld [vmem:[%s10] sm:$0xff]
        %v1390 = vld [vmem:[%s10 + $0x8] sm:$0xff]
        %v1391 = vld [vmem:[%s10 + $0x10] sm:$0xff]
        %v1392 = vld [vmem:[%s10 + $0x18] sm:$0xff]
        %v1393 = vld [vmem:[%s10 + $0x20] sm:$0xff]
        %v1394 = vld [vmem:[%s10 + $0x28] sm:$0xff]
        %v1395 = vld [vmem:[%s10 + $0x30] sm:$0xff]
        %v1396 = vld [vmem:[%s10 + $0x38] sm:$0xff]
        %v1397 = vld [vmem:[%s11] sm:$0x3]
        %v1399 = vlaneseq
        %v1400 = vshrl.u32 %v1399, 7
        %v1401 = vsub.s32 0, %v1400
        %v1402 = vrot.slane %v1397, %v1401
        %v1403 = vlaneseq
        %v1404 = vshrl.u32 %v1403, 7
        %v1405 = vsub.s32 1, %v1404
        %v1406 = vrot.slane %v1397, %v1405
        %v1417 = vunpack.c.l.b16 %v1389
        %v1418 = vunpack.c.h.b16 %v1389
        %v1419 = vunpack.c.l.b16 %v1390
        %v1420 = vunpack.c.h.b16 %v1390
        %v1421 = vunpack.c.l.b16 %v1391
        %v1422 = vunpack.c.h.b16 %v1391
        %v1423 = vunpack.c.l.b16 %v1392
        %v1424 = vunpack.c.h.b16 %v1392
        %v1425 = vunpack.c.l.b16 %v1393
        %v1426 = vunpack.c.h.b16 %v1393
        %v1427 = vunpack.c.l.b16 %v1394
        %v1428 = vunpack.c.h.b16 %v1394
        %v1429 = vunpack.c.l.b16 %v1395
        %v1430 = vunpack.c.h.b16 %v1395
        %v1431 = vunpack.c.l.b16 %v1396
        %v1432 = vunpack.c.h.b16 %v1396
        %v1433 = vpack.c.b16 %v1419, %v1417
        %v1434 = vpack.c.b16 %v1420, %v1418
        %v1435 = vpack.c.b16 %v1423, %v1421
        %v1436 = vpack.c.b16 %v1424, %v1422
        %v1437 = vpack.c.b16 %v1427, %v1425
        %v1438 = vpack.c.b16 %v1428, %v1426
        %v1439 = vpack.c.b16 %v1431, %v1429
        %v1440 = vpack.c.b16 %v1432, %v1430
        %v1450 = vsel %vm580, %v1388, 0
        %1452 = vmatprep.subr.bf16.mxu0 0
        %1453 = vmatpush1.bf16.msra.mxu0 0
        %1454 = vmatprep.subr.bf16.mxu0 0
        %1455 = vmatpush1.bf16.msra.mxu0 0
        %1456 = vmatprep.subr.bf16.mxu0 0
        %1457 = vmatpush1.bf16.msra.mxu0 0
        %1458 = vmatprep.subr.bf16.mxu0 0
        %1459 = vmatpush1.bf16.msra.mxu0 0
        %1460 = vmatprep.subr.bf16.mxu0 %v1440
        %1461 = vmatpush1.bf16.msra.mxu0 %v1439
        %1462 = vmatprep.subr.bf16.mxu0 %v1438
        %1463 = vmatpush1.bf16.msra.mxu0 %v1437
        %1464 = vmatprep.subr.bf16.mxu0 %v1436
        %1465 = vmatpush1.bf16.msra.mxu0 %v1435
        %1466 = vmatprep.subr.bf16.mxu0 %v1434
        %1467 = vmatpush1.bf16.msra.mxu0 %v1433
        %1468 = vmatprep.subr.bf16.mxu0 0
        %1469 = vmatpush2.bf16.msra.mxu0 0
        %1470 = vmatprep.subr.bf16.mxu0 0
        %1471 = vmatpush2.bf16.msra.mxu0 0
        %1472 = vmatprep.subr.bf16.mxu0 0
        %1473 = vmatpush2.bf16.msra.mxu0 0
        %1474 = vmatprep.subr.bf16.mxu0 0
        %1475 = vmatpush2.bf16.msra.mxu0 0
        %1476 = vmatprep.subr.bf16.mxu0 0
        %1477 = vmatpush2.bf16.msra.mxu0 0
        %1478 = vmatprep.subr.bf16.mxu0 0
        %1479 = vmatpush2.bf16.msra.mxu0 0
        %1480 = vmatprep.subr.bf16.mxu0 0
        %1481 = vmatpush2.bf16.msra.mxu0 0
        %1482 = vmatprep.subr.bf16.mxu0 0
        %1483 = vmatpush2.bf16.msra.mxu0 0
        %1484 = vmatprep.mubr.bf16.mxu0 0
        %1485 = vmatmul.mubr.bf16.gmra.mxu0 %v1450
        %v1486 = vpop.f32.mrf.mxu0
        %v1487 = vadd.f32 %v1402, %v1486
        %v1488 = vpop.f32.mrf.mxu0
        %v1489 = vadd.f32 %v1406, %v1488
        %v1490 = vpop.f32.mrf.mxu0
        %v1491 = vadd.f32 %v1402, %v1490
        %v1492 = vpop.f32.mrf.mxu0
        %v1493 = vadd.f32 %v1406, %v1492
        %1494 = vdwg.mxu0
        %v1495 = vmul.f32 %v1487, %v1487
        %v1496 = vmul.f32 %v1489, %v1489
        %v1497 = vmul.f32 %v1491, %v1491
        %v1498 = vmul.f32 %v1493, %v1493
        %v1499 = vmul.f32 %v1487, %v1495
        %v1500 = vmul.f32 %v1489, %v1496
        %v1501 = vmul.f32 %v1491, %v1497
        %v1502 = vmul.f32 %v1493, %v1498
        %v1503 = vmul.f32 %v1499, 0.044715
        %v1504 = vmul.f32 %v1500, 0.044715
        %v1505 = vmul.f32 %v1501, 0.044715
        %v1506 = vmul.f32 %v1502, 0.044715
        %v1507 = vadd.f32 %v1487, %v1503
        %v1508 = vadd.f32 %v1489, %v1504
        %v1509 = vadd.f32 %v1491, %v1505
        %v1510 = vadd.f32 %v1493, %v1506
        %v1511 = vmul.f32 %v1507, 0.7978846
        %v1512 = vmul.f32 %v1508, 0.7978846
        %v1513 = vmul.f32 %v1509, 0.7978846
        %v1514 = vmul.f32 %v1510, 0.7978846
        %v1515 = vtanh.pop %v1511
        %v1516 = vtanh.pop %v1512
        %v1517 = vtanh.pop %v1513
        %v1518 = vtanh.pop %v1514
        %v1519 = vadd.f32 %v1515, 1.0
        %v1520 = vadd.f32 %v1516, 1.0
        %v1521 = vadd.f32 %v1517, 1.0
        %v1522 = vadd.f32 %v1518, 1.0
        %v1523 = vmul.f32 %v1519, 0.5
        %v1524 = vmul.f32 %v1520, 0.5
        %v1525 = vmul.f32 %v1521, 0.5
        %v1526 = vmul.f32 %v1522, 0.5
        %v1527 = vmul.f32 %v1487, %v1523
        %v1528 = vmul.f32 %v1489, %v1524
        %v1529 = vmul.f32 %v1491, %v1525
        %v1530 = vmul.f32 %v1493, %v1526
        %v1531 = vpack.c.bf16 %v1529, %v1527
        %v1532 = vpack.c.bf16 %v1530, %v1528
        %v1533 = vld [vmem:[%s12] sm:$0xf]
        %v1534 = vld [vmem:[%s12 + $0x4] sm:$0xf]
        %v1535 = vld [vmem:[%s12 + $0x8] sm:$0xf]
        %v1536 = vld [vmem:[%s12 + $0xc] sm:$0xf]
        %v1537 = vld [vmem:[%s12 + $0x10] sm:$0xf]
        %v1538 = vld [vmem:[%s12 + $0x14] sm:$0xf]
        %v1539 = vld [vmem:[%s12 + $0x18] sm:$0xf]
        %v1540 = vld [vmem:[%s12 + $0x1c] sm:$0xf]
        %v1541 = vld [vmem:[%s12 + $0x20] sm:$0xf]
        %v1542 = vld [vmem:[%s12 + $0x24] sm:$0xf]
        %v1543 = vld [vmem:[%s12 + $0x28] sm:$0xf]
        %v1544 = vld [vmem:[%s12 + $0x2c] sm:$0xf]
        %v1545 = vld [vmem:[%s12 + $0x30] sm:$0xf]
        %v1546 = vld [vmem:[%s12 + $0x34] sm:$0xf]
        %v1547 = vld [vmem:[%s12 + $0x38] sm:$0xf]
        %v1548 = vld [vmem:[%s12 + $0x3c] sm:$0xf]
        %v1549 = vld [vmem:[%s12 + $0x40] sm:$0xf]
        %v1550 = vld [vmem:[%s12 + $0x44] sm:$0xf]
        %v1551 = vld [vmem:[%s12 + $0x48] sm:$0xf]
        %v1552 = vld [vmem:[%s12 + $0x4c] sm:$0xf]
        %v1553 = vld [vmem:[%s12 + $0x50] sm:$0xf]
        %v1554 = vld [vmem:[%s12 + $0x54] sm:$0xf]
        %v1555 = vld [vmem:[%s12 + $0x58] sm:$0xf]
        %v1556 = vld [vmem:[%s12 + $0x5c] sm:$0xf]
        %v1557 = vld [vmem:[%s12 + $0x60] sm:$0xf]
        %v1558 = vld [vmem:[%s12 + $0x64] sm:$0xf]
        %v1559 = vld [vmem:[%s12 + $0x68] sm:$0xf]
        %v1560 = vld [vmem:[%s12 + $0x6c] sm:$0xf]
        %v1561 = vld [vmem:[%s12 + $0x70] sm:$0xf]
        %v1562 = vld [vmem:[%s12 + $0x74] sm:$0xf]
        %v1563 = vld [vmem:[%s12 + $0x78] sm:$0xf]
        %v1564 = vld [vmem:[%s12 + $0x7c] sm:$0xf]
        %v1565 = vld [vmem:[%s13] sm:$0x1]
        %v1567 = vlaneseq
        %v1568 = vshrl.u32 %v1567, 7
        %v1569 = vsub.s32 0, %v1568
        %v1570 = vrot.slane %v1565, %v1569
        %v1604 = vunpack.c.l.b16 %v1533
        %v1605 = vunpack.c.l.b16 %v1534
        %v1606 = vunpack.c.l.b16 %v1535
        %v1607 = vunpack.c.l.b16 %v1536
        %v1608 = vunpack.c.l.b16 %v1537
        %v1609 = vunpack.c.l.b16 %v1538
        %v1610 = vunpack.c.l.b16 %v1539
        %v1611 = vunpack.c.l.b16 %v1540
        %v1612 = vunpack.c.l.b16 %v1541
        %v1613 = vunpack.c.l.b16 %v1542
        %v1614 = vunpack.c.l.b16 %v1543
        %v1615 = vunpack.c.l.b16 %v1544
        %v1616 = vunpack.c.l.b16 %v1545
        %v1617 = vunpack.c.l.b16 %v1546
        %v1618 = vunpack.c.l.b16 %v1547
        %v1619 = vunpack.c.l.b16 %v1548
        %v1620 = vunpack.c.l.b16 %v1549
        %v1621 = vunpack.c.l.b16 %v1550
        %v1622 = vunpack.c.l.b16 %v1551
        %v1623 = vunpack.c.l.b16 %v1552
        %v1624 = vunpack.c.l.b16 %v1553
        %v1625 = vunpack.c.l.b16 %v1554
        %v1626 = vunpack.c.l.b16 %v1555
        %v1627 = vunpack.c.l.b16 %v1556
        %v1628 = vunpack.c.l.b16 %v1557
        %v1629 = vunpack.c.l.b16 %v1558
        %v1630 = vunpack.c.l.b16 %v1559
        %v1631 = vunpack.c.l.b16 %v1560
        %v1632 = vunpack.c.l.b16 %v1561
        %v1633 = vunpack.c.l.b16 %v1562
        %v1634 = vunpack.c.l.b16 %v1563
        %v1635 = vunpack.c.l.b16 %v1564
        %v1636 = vpack.c.b16 %v1605, %v1604
        %v1637 = vpack.c.b16 %v1607, %v1606
        %v1638 = vpack.c.b16 %v1609, %v1608
        %v1639 = vpack.c.b16 %v1611, %v1610
        %v1640 = vpack.c.b16 %v1613, %v1612
        %v1641 = vpack.c.b16 %v1615, %v1614
        %v1642 = vpack.c.b16 %v1617, %v1616
        %v1643 = vpack.c.b16 %v1619, %v1618
        %v1644 = vpack.c.b16 %v1621, %v1620
        %v1645 = vpack.c.b16 %v1623, %v1622
        %v1646 = vpack.c.b16 %v1625, %v1624
        %v1647 = vpack.c.b16 %v1627, %v1626
        %v1648 = vpack.c.b16 %v1629, %v1628
        %v1649 = vpack.c.b16 %v1631, %v1630
        %v1650 = vpack.c.b16 %v1633, %v1632
        %v1651 = vpack.c.b16 %v1635, %v1634
        %1668 = vmatprep.subr.bf16.mxu0 0
        %1669 = vmatpush1.bf16.msra.mxu0 %v1643
        %1670 = vmatprep.subr.bf16.mxu0 0
        %1671 = vmatpush1.bf16.msra.mxu0 %v1642
        %1672 = vmatprep.subr.bf16.mxu0 0
        %1673 = vmatpush1.bf16.msra.mxu0 %v1641
        %1674 = vmatprep.subr.bf16.mxu0 0
        %1675 = vmatpush1.bf16.msra.mxu0 %v1640
        %1676 = vmatprep.subr.bf16.mxu0 0
        %1677 = vmatpush1.bf16.msra.mxu0 %v1639
        %1678 = vmatprep.subr.bf16.mxu0 0
        %1679 = vmatpush1.bf16.msra.mxu0 %v1638
        %1680 = vmatprep.subr.bf16.mxu0 0
        %1681 = vmatpush1.bf16.msra.mxu0 %v1637
        %1682 = vmatprep.subr.bf16.mxu0 0
        %1683 = vmatpush1.bf16.msra.mxu0 %v1636
        %1684 = vmatprep.subr.bf16.mxu0 0
        %1685 = vmatpush2.bf16.msra.mxu0 %v1651
        %1686 = vmatprep.subr.bf16.mxu0 0
        %1687 = vmatpush2.bf16.msra.mxu0 %v1650
        %1688 = vmatprep.subr.bf16.mxu0 0
        %1689 = vmatpush2.bf16.msra.mxu0 %v1649
        %1690 = vmatprep.subr.bf16.mxu0 0
        %1691 = vmatpush2.bf16.msra.mxu0 %v1648
        %1692 = vmatprep.subr.bf16.mxu0 0
        %1693 = vmatpush2.bf16.msra.mxu0 %v1647
        %1694 = vmatprep.subr.bf16.mxu0 0
        %1695 = vmatpush2.bf16.msra.mxu0 %v1646
        %1696 = vmatprep.subr.bf16.mxu0 0
        %1697 = vmatpush2.bf16.msra.mxu0 %v1645
        %1698 = vmatprep.subr.bf16.mxu0 0
        %1699 = vmatpush2.bf16.msra.mxu0 %v1644
        %1700 = vmatprep.mubr.bf16.mxu0 %v1532
        %1701 = vmatmul.mubr.bf16.gmra.mxu0 %v1531
        %v1702 = vpop.f32.mrf.mxu0
        %v1703 = vadd.f32 %v1570, %v1702
        %v1704 = vpop.f32.mrf.mxu0
        %v1705 = vpop.f32.mrf.mxu0
        %v1706 = vadd.f32 %v1570, %v1705
        %v1707 = vpop.f32.mrf.mxu0
        %1708 = vdwg.mxu0
        %v1709 = vadd.f32 %v1342, %v1703
        %v1710 = vadd.f32 %v1343, %v1706
        %v1711 = vld [vmem:[%s14] sm:$0x1]
        %v1712 = vld [vmem:[%s15] sm:$0x1]
        %v1713 = vsel %vm580, %v1709, 0.0
        %1714 = vadd.xlane.f32.xlu0 %v1713
        %v1715 = vpop.xlane.xlu0 %1714
        %v1716 = vsel %vm580, %v1710, 0.0
        %1717 = vadd.xlane.f32.xlu0 %v1716
        %v1718 = vpop.xlane.xlu0 %1717
        %v1719 = vmul.f32 %v1715, %v587
        %v1720 = vmul.f32 %v1718, %v587
        %v1721 = vsub.f32 %v1709, %v1719
        %v1722 = vsub.f32 %v1710, %v1720
        %v1723 = vmul.f32 %v1721, %v1721
        %v1724 = vmul.f32 %v1722, %v1722
        %v1725 = vsel %vm580, %v1723, 0.0
        %1726 = vadd.xlane.f32.xlu0 %v1725
        %v1727 = vpop.xlane.xlu0 %1726
        %v1728 = vsel %vm580, %v1724, 0.0
        %1729 = vadd.xlane.f32.xlu0 %v1728
        %v1730 = vpop.xlane.xlu0 %1729
        %v1731 = vmul.f32 %v1727, %v587
        %v1732 = vmul.f32 %v1730, %v587
        %v1733 = vadd.f32 %v1731, 1e-05
        %v1734 = vadd.f32 %v1732, 1e-05
        %v1735 = vrsqrt.pop %v1733
        %v1736 = vrsqrt.pop %v1734
        %v1737 = vmul.f32 %v1721, %v1735
        %v1738 = vmul.f32 %v1722, %v1736
        %v1740 = vlaneseq
        %v1741 = vshrl.u32 %v1740, 7
        %v1742 = vsub.s32 0, %v1741
        %v1743 = vrot.slane %v1711, %v1742
        %v1745 = vmul.f32 %v1737, %v1743
        %v1746 = vmul.f32 %v1738, %v1743
        %v1748 = vlaneseq
        %v1749 = vshrl.u32 %v1748, 7
        %v1750 = vsub.s32 0, %v1749
        %v1751 = vrot.slane %v1712, %v1750
        %v1753 = vadd.f32 %v1745, %v1751
        %v1754 = vadd.f32 %v1746, %v1751
        %v1755 = vsel %vm580, %v1753, 0.0
        %v1756 = vsel %vm580, %v1754, 0.0
        %v1757 = vadd.f32 %v1755, %v1756
        %v1758 = vrot.slane %v1757, 4
        %v1759 = vadd.f32 %v1757, %v1758
        %v1760 = vrot.slane %v1759, 2
        %v1761 = vadd.f32 %v1759, %v1760
        %v1762 = vrot.slane %v1761, 1
        %v1763 = vadd.f32 %v1761, %v1762
        %v1764 = vrcp.pop 16.0
        %v1765 = vmul.f32 %v1763, %v1764
        %v1766 = vpack.c.bf16 %v1765, %v1765
        %v1767 = vld [vmem:[%s16] sm:$0xf]
        %v1768 = vld [vmem:[%s16 + $0x4] sm:$0xf]
        %v1769 = vld [vmem:[%s16 + $0x8] sm:$0xf]
        %v1770 = vld [vmem:[%s16 + $0xc] sm:$0xf]
        %v1771 = vld [vmem:[%s16 + $0x10] sm:$0xf]
        %v1772 = vld [vmem:[%s16 + $0x14] sm:$0xf]
        %v1773 = vld [vmem:[%s16 + $0x18] sm:$0xf]
        %v1774 = vld [vmem:[%s16 + $0x1c] sm:$0xf]
        %v1775 = vld [vmem:[%s17] sm:$0x1]
        %v1784 = vunpack.c.l.b16 %v1767
        %v1785 = vunpack.c.l.b16 %v1768
        %v1786 = vunpack.c.l.b16 %v1769
        %v1787 = vunpack.c.l.b16 %v1770
        %v1788 = vunpack.c.l.b16 %v1771
        %v1789 = vunpack.c.l.b16 %v1772
        %v1790 = vunpack.c.l.b16 %v1773
        %v1791 = vunpack.c.l.b16 %v1774
        %v1792 = vpack.c.b16 %v1785, %v1784
        %v1793 = vpack.c.b16 %v1787, %v1786
        %v1794 = vpack.c.b16 %v1789, %v1788
        %v1795 = vpack.c.b16 %v1791, %v1790
        %v1801 = vsel %vm580, %v1766, 0
        %1803 = vmatprep.subr.bf16.mxu0 0
        %1804 = vmatpush1.bf16.msra.mxu0 0
        %1805 = vmatprep.subr.bf16.mxu0 0
        %1806 = vmatpush1.bf16.msra.mxu0 0
        %1807 = vmatprep.subr.bf16.mxu0 0
        %1808 = vmatpush1.bf16.msra.mxu0 0
        %1809 = vmatprep.subr.bf16.mxu0 0
        %1810 = vmatpush1.bf16.msra.mxu0 0
        %1811 = vmatprep.subr.bf16.mxu0 0
        %1812 = vmatpush1.bf16.msra.mxu0 %v1795
        %1813 = vmatprep.subr.bf16.mxu0 0
        %1814 = vmatpush1.bf16.msra.mxu0 %v1794
        %1815 = vmatprep.subr.bf16.mxu0 0
        %1816 = vmatpush1.bf16.msra.mxu0 %v1793
        %1817 = vmatprep.subr.bf16.mxu0 0
        %1818 = vmatpush1.bf16.msra.mxu0 %v1792
        %1819 = vmatprep.subr.bf16.mxu0 0
        %1820 = vmatpush2.bf16.msra.mxu0 0
        %1821 = vmatprep.subr.bf16.mxu0 0
        %1822 = vmatpush2.bf16.msra.mxu0 0
        %1823 = vmatprep.subr.bf16.mxu0 0
        %1824 = vmatpush2.bf16.msra.mxu0 0
        %1825 = vmatprep.subr.bf16.mxu0 0
        %1826 = vmatpush2.bf16.msra.mxu0 0
        %1827 = vmatprep.subr.bf16.mxu0 0
        %1828 = vmatpush2.bf16.msra.mxu0 0
        %1829 = vmatprep.subr.bf16.mxu0 0
        %1830 = vmatpush2.bf16.msra.mxu0 0
        %1831 = vmatprep.subr.bf16.mxu0 0
        %1832 = vmatpush2.bf16.msra.mxu0 0
        %1833 = vmatprep.subr.bf16.mxu0 0
        %1834 = vmatpush2.bf16.msra.mxu0 0
        %1835 = vmatprep.mubr.bf16.mxu0 0
        %1836 = vmatmul.mubr.bf16.gmra.mxu0 %v1801
        %v1837 = vpop.f32.mrf.mxu0
        %v1838 = vadd.f32 %v1775, %v1837
        %v1839 = vpop.f32.mrf.mxu0
        %v1840 = vpop.f32.mrf.mxu0
        %v1841 = vpop.f32.mrf.mxu0
        %1842 = vdwg.mxu0
        %vm1843 = vcmask 8192
        %1844 = vst.msk [vmem:[%s567] sm:$0x1] %vm1843, %v1838
        %s1845 = sand.u32 %s423, 1
        %s1846 = scalar_lea.sflag [#allocation3], %s1845
        %s1847 = sand.u32 %s423, 1
        %s1848 = scalar_lea.vmem [#allocation2], %s1847
        // Predicated region
        $region93: #{swin_forward.7} parent=91 // pred_check
          %p1849 = pneg %p433
        $region94: #{swin_forward.7} parent=91 // pred_check_branch
          %1851 = sbr.rel (%p1849) target = $region96
        $region95: #{swin_forward.7} parent=91 // pred_region
          %s1853 = ssub.s32 16, 16
          %1854 = vsyncadd %s1846, %s1853
          %s1855 = smul.addr %s32, 16
          %s1856 = scalar_lea.hbm %s18, %s1855
          %s1858 = sshll.u32 %s1848, 4
          %s1859 = int_to_ptr.vmem [resolvable:$true] %s1858
          %1861 = dma.vmem_to_hbm [thread:$0]  %s1859, 16, %s1856, %s1846
        $region96: #{swin_forward.7} parent=91 // pred_fallthru
          _
      $region92: #{swin_forward.7} parent=5 // pred_fallthru
        _
      %p1862 = scmp.le.s32.totalorder 2, %s27
      // Predicated region
      $region97: #{swin_forward.7} parent=5 // pred_check
        %p1863 = pneg %p1862
      $region98: #{swin_forward.7} parent=5 // pred_check_branch
        %1865 = sbr.rel (%p1863) target = $region100
      $region99: #{swin_forward.7} parent=5 // pred_region
        %s1866 = ssub.s32 %s27, 2
        // Predicated region
        $region101: #{swin_forward.7} parent=99 // pred_check
          %p1867 = pneg %p439
        $region102: #{swin_forward.7} parent=99 // pred_check_branch
          %1869 = sbr.rel (%p1867) target = $region104
        $region103: #{swin_forward.7} parent=99 // pred_region
          %s1870 = sand.u32 %s424, 1
          %s1871 = scalar_lea.sflag [#allocation3], %s1870
          %s1872 = sand.u32 %s424, 1
          %s1873 = scalar_lea.vmem [#allocation2], %s1872
          %1874 = dma.done %s1871, 16
        $region104: #{swin_forward.7} parent=99 // pred_fallthru
          _
      $region100: #{swin_forward.7} parent=5 // pred_fallthru
        _
    $region6: #{swin_forward.7} parent=1 // loop_footer
      %s31 = sadd.s32 1, %s27
    $region7: #{swin_forward.7} parent=1 // loop_footer_branch
      %26 = sbr.rel target = $region3
    $region8: #{swin_forward.7} parent=1 // loop_exit
      _
    %1875 = vsyncpa [#allocation3], 1
    %s1876 = scalar_lea.sflag [#allocation3], 1
    %1877 = vsyncpa %s1876, 1

// kernel: swin_forward.6
$region0: #{swin_forward.6}
  #allocation0 [shape = 'u32[]', space=smem, size = 0x4, offset = 0x4, fixed_abs, tag = 'smem constant byte address 0x4 - core index']
  #allocation1 [shape = 'u32[144,128]{1,0:T(1,128)}', space=vmem, size = 0x12000, scoped, tag = 'internal scratch']
  %s0 = inlined_call_operand.vmem [shape: bf16[2,16,128], index: 0, kind: input, shape index: {}]
  %s1 = inlined_call_operand.vmem [shape: f32[1,128], index: 1, kind: input, shape index: {}]
  %s2 = inlined_call_operand.vmem [shape: f32[1,128], index: 2, kind: input, shape index: {}]
  %s3 = inlined_call_operand.vmem [shape: bf16[128,64], index: 3, kind: input, shape index: {}]
  %s4 = inlined_call_operand.vmem [shape: f32[4,16,16], index: 4, kind: input, shape index: {}]
  %s5 = inlined_call_operand.vmem [shape: f32[1,64], index: 5, kind: input, shape index: {}]
  %s6 = inlined_call_operand.vmem [shape: f32[1,64], index: 6, kind: input, shape index: {}]
  %s7 = inlined_call_operand.vmem [shape: bf16[64,192], index: 7, kind: input, shape index: {}]
  %s8 = inlined_call_operand.vmem [shape: f32[1,192], index: 8, kind: input, shape index: {}]
  %s9 = inlined_call_operand.vmem [shape: bf16[64,64], index: 9, kind: input, shape index: {}]
  %s10 = inlined_call_operand.vmem [shape: f32[1,64], index: 10, kind: input, shape index: {}]
  %s11 = inlined_call_operand.vmem [shape: f32[1,64], index: 11, kind: input, shape index: {}]
  %s12 = inlined_call_operand.vmem [shape: f32[1,64], index: 12, kind: input, shape index: {}]
  %s13 = inlined_call_operand.vmem [shape: bf16[64,256], index: 13, kind: input, shape index: {}]
  %s14 = inlined_call_operand.vmem [shape: f32[1,256], index: 14, kind: input, shape index: {}]
  %s15 = inlined_call_operand.vmem [shape: bf16[256,64], index: 15, kind: input, shape index: {}]
  %s16 = inlined_call_operand.vmem [shape: f32[1,64], index: 16, kind: input, shape index: {}]
  %s17 = inlined_call_operand.vmem [shape: bf16[2,16,64], index: 17, kind: output, shape index: {}]
  %s18 = sld [smem:[#allocation0]]
  $region101: #{swin_forward.6} parent=0
    _
  %s20 = ssub.s32 1, %s18
  %s21 = scalar_select 0, %s20, %s18
  loop: start=0, step=1, limit=4
  $region2: #{swin_forward.6} parent=0 // loop_pre_header
    _
  $region3: #{swin_forward.6} parent=0 // loop_header
    %s23 = sphi 0, %s27
    %p24 = scmp.ge.s32.totalorder %s23, 4
    %s33 = sphi 0, %s35
    %s36 = sphi 0, %s33
    %s37 = sphi 0, %s36
    %s53 = sphi 0, %s37
    %s57 = sphi 0, %s57
    %s59 = sphi 0, %s57
    %s60 = sphi 0, %s59
    %s74 = sphi 0, %s60
    %s78 = sphi 0, %s78
    %s80 = sphi 0, %s78
    %s81 = sphi 0, %s80
    %s95 = sphi 0, %s81
    %s99 = sphi 0, %s99
    %s101 = sphi 0, %s99
    %s102 = sphi 0, %s101
    %s116 = sphi 0, %s102
    %s120 = sphi 0, %s120
    %s122 = sphi 0, %s120
    %s123 = sphi 0, %s122
    %s137 = sphi 0, %s123
    %s141 = sphi 0, %s141
    %s143 = sphi 0, %s141
    %s144 = sphi 0, %s143
    %s158 = sphi 0, %s144
    %s162 = sphi 0, %s162
    %s164 = sphi 0, %s162
    %s165 = sphi 0, %s164
    %s179 = sphi 0, %s165
    %s183 = sphi 0, %s183
    %s185 = sphi 0, %s183
    %s186 = sphi 0, %s185
    %s200 = sphi 0, %s186
    %s204 = sphi 0, %s204
    %s206 = sphi 0, %s204
    %s207 = sphi 0, %s206
    %s221 = sphi 0, %s207
    %s225 = sphi 0, %s225
    %s227 = sphi 0, %s225
    %s228 = sphi 0, %s227
    %s242 = sphi 0, %s228
    %s246 = sphi 0, %s246
    %s248 = sphi 0, %s246
    %s249 = sphi 0, %s248
    %s263 = sphi 0, %s249
    %s267 = sphi 0, %s267
    %s269 = sphi 0, %s267
    %s270 = sphi 0, %s269
    %s284 = sphi 0, %s270
    %s288 = sphi 0, %s288
    %s290 = sphi 0, %s288
    %s291 = sphi 0, %s290
    %s305 = sphi 0, %s291
    %s309 = sphi 0, %s309
    %s311 = sphi 0, %s309
    %s312 = sphi 0, %s311
    %s326 = sphi 0, %s312
    %s330 = sphi 0, %s330
    %s332 = sphi 0, %s330
    %s333 = sphi 0, %s332
    %s347 = sphi 0, %s333
    %s351 = sphi 0, %s351
    %s353 = sphi 0, %s351
    %s354 = sphi 0, %s353
    %s368 = sphi 0, %s354
    %s372 = sphi 0, %s372
    %s374 = sphi 0, %s372
    %s375 = sphi 0, %s374
    %s389 = sphi 0, %s375
    %s395 = sphi 0, %s397
    %s398 = sphi 0, %s395
    %s399 = sphi 0, %s398
    %s415 = sphi 0, %s399
  $region4: #{swin_forward.6} parent=0 // loop_header_branch
    %26 = sbr.rel (%p24) target = $region8
  $region5: #{swin_forward.6} parent=0 // loop_body
    %s28 = ssub.s32 %s23, 1
    %s29 = ssub.s32 %s23, 2
    %s30 = sadd.s32 %s23, 1
    %s31 = ssub.s32 %s23, %s30
    %p32 = scmp.eq.s32.totalorder %s31, 0
    %s34 = sadd.s32 %s33, 1
    %s35 = scalar_select %p32, %s33, %s34
    %p38 = pneg %p32
    %p39 = scmp.eq.s32.totalorder %s23, 1
    %p40 = por %p38, %p39
    %p41 = scmp.ne.s32.totalorder %s33, %s36
    %p42 = scmp.eq.s32.totalorder %s23, 0
    %p43 = por %p41, %p42
    %p44 = scmp.ne.s32.totalorder %s33, %s36
    %p45 = scmp.eq.s32.totalorder %s28, 1
    %p46 = por %p44, %p45
    %p47 = scmp.ne.s32.totalorder %s36, %s37
    %p48 = scmp.eq.s32.totalorder %s28, 0
    %p49 = por %p47, %p48
    %p50 = scmp.ne.s32.totalorder %s36, %s37
    %p51 = scmp.eq.s32.totalorder %s29, 1
    %p52 = por %p50, %p51
    %p54 = scmp.ne.s32.totalorder %s37, %s53
    %p55 = scmp.eq.s32.totalorder %s29, 0
    %p56 = por %p54, %p55
    %s58 = sadd.s32 %s57, 1
    %p61 = scmp.eq.s32.totalorder %s23, 1
    %p62 = scmp.ne.s32.totalorder %s57, %s59
    %p63 = scmp.eq.s32.totalorder %s23, 0
    %p64 = por %p62, %p63
    %p65 = scmp.ne.s32.totalorder %s57, %s59
    %p66 = scmp.eq.s32.totalorder %s28, 1
    %p67 = por %p65, %p66
    %p68 = scmp.ne.s32.totalorder %s59, %s60
    %p69 = scmp.eq.s32.totalorder %s28, 0
    %p70 = por %p68, %p69
    %p71 = scmp.ne.s32.totalorder %s59, %s60
    %p72 = scmp.eq.s32.totalorder %s29, 1
    %p73 = por %p71, %p72
    %p75 = scmp.ne.s32.totalorder %s60, %s74
    %p76 = scmp.eq.s32.totalorder %s29, 0
    %p77 = por %p75, %p76
    %s79 = sadd.s32 %s78, 1
    %p82 = scmp.eq.s32.totalorder %s23, 1
    %p83 = scmp.ne.s32.totalorder %s78, %s80
    %p84 = scmp.eq.s32.totalorder %s23, 0
    %p85 = por %p83, %p84
    %p86 = scmp.ne.s32.totalorder %s78, %s80
    %p87 = scmp.eq.s32.totalorder %s28, 1
    %p88 = por %p86, %p87
    %p89 = scmp.ne.s32.totalorder %s80, %s81
    %p90 = scmp.eq.s32.totalorder %s28, 0
    %p91 = por %p89, %p90
    %p92 = scmp.ne.s32.totalorder %s80, %s81
    %p93 = scmp.eq.s32.totalorder %s29, 1
    %p94 = por %p92, %p93
    %p96 = scmp.ne.s32.totalorder %s81, %s95
    %p97 = scmp.eq.s32.totalorder %s29, 0
    %p98 = por %p96, %p97
    %s100 = sadd.s32 %s99, 1
    %p103 = scmp.eq.s32.totalorder %s23, 1
    %p104 = scmp.ne.s32.totalorder %s99, %s101
    %p105 = scmp.eq.s32.totalorder %s23, 0
    %p106 = por %p104, %p105
    %p107 = scmp.ne.s32.totalorder %s99, %s101
    %p108 = scmp.eq.s32.totalorder %s28, 1
    %p109 = por %p107, %p108
    %p110 = scmp.ne.s32.totalorder %s101, %s102
    %p111 = scmp.eq.s32.totalorder %s28, 0
    %p112 = por %p110, %p111
    %p113 = scmp.ne.s32.totalorder %s101, %s102
    %p114 = scmp.eq.s32.totalorder %s29, 1
    %p115 = por %p113, %p114
    %p117 = scmp.ne.s32.totalorder %s102, %s116
    %p118 = scmp.eq.s32.totalorder %s29, 0
    %p119 = por %p117, %p118
    %s121 = sadd.s32 %s120, 1
    %p124 = scmp.eq.s32.totalorder %s23, 1
    %p125 = scmp.ne.s32.totalorder %s120, %s122
    %p126 = scmp.eq.s32.totalorder %s23, 0
    %p127 = por %p125, %p126
    %p128 = scmp.ne.s32.totalorder %s120, %s122
    %p129 = scmp.eq.s32.totalorder %s28, 1
    %p130 = por %p128, %p129
    %p131 = scmp.ne.s32.totalorder %s122, %s123
    %p132 = scmp.eq.s32.totalorder %s28, 0
    %p133 = por %p131, %p132
    %p134 = scmp.ne.s32.totalorder %s122, %s123
    %p135 = scmp.eq.s32.totalorder %s29, 1
    %p136 = por %p134, %p135
    %p138 = scmp.ne.s32.totalorder %s123, %s137
    %p139 = scmp.eq.s32.totalorder %s29, 0
    %p140 = por %p138, %p139
    %s142 = sadd.s32 %s141, 1
    %p145 = scmp.eq.s32.totalorder %s23, 1
    %p146 = scmp.ne.s32.totalorder %s141, %s143
    %p147 = scmp.eq.s32.totalorder %s23, 0
    %p148 = por %p146, %p147
    %p149 = scmp.ne.s32.totalorder %s141, %s143
    %p150 = scmp.eq.s32.totalorder %s28, 1
    %p151 = por %p149, %p150
    %p152 = scmp.ne.s32.totalorder %s143, %s144
    %p153 = scmp.eq.s32.totalorder %s28, 0
    %p154 = por %p152, %p153
    %p155 = scmp.ne.s32.totalorder %s143, %s144
    %p156 = scmp.eq.s32.totalorder %s29, 1
    %p157 = por %p155, %p156
    %p159 = scmp.ne.s32.totalorder %s144, %s158
    %p160 = scmp.eq.s32.totalorder %s29, 0
    %p161 = por %p159, %p160
    %s163 = sadd.s32 %s162, 1
    %p166 = scmp.eq.s32.totalorder %s23, 1
    %p167 = scmp.ne.s32.totalorder %s162, %s164
    %p168 = scmp.eq.s32.totalorder %s23, 0
    %p169 = por %p167, %p168
    %p170 = scmp.ne.s32.totalorder %s162, %s164
    %p171 = scmp.eq.s32.totalorder %s28, 1
    %p172 = por %p170, %p171
    %p173 = scmp.ne.s32.totalorder %s164, %s165
    %p174 = scmp.eq.s32.totalorder %s28, 0
    %p175 = por %p173, %p174
    %p176 = scmp.ne.s32.totalorder %s164, %s165
    %p177 = scmp.eq.s32.totalorder %s29, 1
    %p178 = por %p176, %p177
    %p180 = scmp.ne.s32.totalorder %s165, %s179
    %p181 = scmp.eq.s32.totalorder %s29, 0
    %p182 = por %p180, %p181
    %s184 = sadd.s32 %s183, 1
    %p187 = scmp.eq.s32.totalorder %s23, 1
    %p188 = scmp.ne.s32.totalorder %s183, %s185
    %p189 = scmp.eq.s32.totalorder %s23, 0
    %p190 = por %p188, %p189
    %p191 = scmp.ne.s32.totalorder %s183, %s185
    %p192 = scmp.eq.s32.totalorder %s28, 1
    %p193 = por %p191, %p192
    %p194 = scmp.ne.s32.totalorder %s185, %s186
    %p195 = scmp.eq.s32.totalorder %s28, 0
    %p196 = por %p194, %p195
    %p197 = scmp.ne.s32.totalorder %s185, %s186
    %p198 = scmp.eq.s32.totalorder %s29, 1
    %p199 = por %p197, %p198
    %p201 = scmp.ne.s32.totalorder %s186, %s200
    %p202 = scmp.eq.s32.totalorder %s29, 0
    %p203 = por %p201, %p202
    %s205 = sadd.s32 %s204, 1
    %p208 = scmp.eq.s32.totalorder %s23, 1
    %p209 = scmp.ne.s32.totalorder %s204, %s206
    %p210 = scmp.eq.s32.totalorder %s23, 0
    %p211 = por %p209, %p210
    %p212 = scmp.ne.s32.totalorder %s204, %s206
    %p213 = scmp.eq.s32.totalorder %s28, 1
    %p214 = por %p212, %p213
    %p215 = scmp.ne.s32.totalorder %s206, %s207
    %p216 = scmp.eq.s32.totalorder %s28, 0
    %p217 = por %p215, %p216
    %p218 = scmp.ne.s32.totalorder %s206, %s207
    %p219 = scmp.eq.s32.totalorder %s29, 1
    %p220 = por %p218, %p219
    %p222 = scmp.ne.s32.totalorder %s207, %s221
    %p223 = scmp.eq.s32.totalorder %s29, 0
    %p224 = por %p222, %p223
    %s226 = sadd.s32 %s225, 1
    %p229 = scmp.eq.s32.totalorder %s23, 1
    %p230 = scmp.ne.s32.totalorder %s225, %s227
    %p231 = scmp.eq.s32.totalorder %s23, 0
    %p232 = por %p230, %p231
    %p233 = scmp.ne.s32.totalorder %s225, %s227
    %p234 = scmp.eq.s32.totalorder %s28, 1
    %p235 = por %p233, %p234
    %p236 = scmp.ne.s32.totalorder %s227, %s228
    %p237 = scmp.eq.s32.totalorder %s28, 0
    %p238 = por %p236, %p237
    %p239 = scmp.ne.s32.totalorder %s227, %s228
    %p240 = scmp.eq.s32.totalorder %s29, 1
    %p241 = por %p239, %p240
    %p243 = scmp.ne.s32.totalorder %s228, %s242
    %p244 = scmp.eq.s32.totalorder %s29, 0
    %p245 = por %p243, %p244
    %s247 = sadd.s32 %s246, 1
    %p250 = scmp.eq.s32.totalorder %s23, 1
    %p251 = scmp.ne.s32.totalorder %s246, %s248
    %p252 = scmp.eq.s32.totalorder %s23, 0
    %p253 = por %p251, %p252
    %p254 = scmp.ne.s32.totalorder %s246, %s248
    %p255 = scmp.eq.s32.totalorder %s28, 1
    %p256 = por %p254, %p255
    %p257 = scmp.ne.s32.totalorder %s248, %s249
    %p258 = scmp.eq.s32.totalorder %s28, 0
    %p259 = por %p257, %p258
    %p260 = scmp.ne.s32.totalorder %s248, %s249
    %p261 = scmp.eq.s32.totalorder %s29, 1
    %p262 = por %p260, %p261
    %p264 = scmp.ne.s32.totalorder %s249, %s263
    %p265 = scmp.eq.s32.totalorder %s29, 0
    %p266 = por %p264, %p265
    %s268 = sadd.s32 %s267, 1
    %p271 = scmp.eq.s32.totalorder %s23, 1
    %p272 = scmp.ne.s32.totalorder %s267, %s269
    %p273 = scmp.eq.s32.totalorder %s23, 0
    %p274 = por %p272, %p273
    %p275 = scmp.ne.s32.totalorder %s267, %s269
    %p276 = scmp.eq.s32.totalorder %s28, 1
    %p277 = por %p275, %p276
    %p278 = scmp.ne.s32.totalorder %s269, %s270
    %p279 = scmp.eq.s32.totalorder %s28, 0
    %p280 = por %p278, %p279
    %p281 = scmp.ne.s32.totalorder %s269, %s270
    %p282 = scmp.eq.s32.totalorder %s29, 1
    %p283 = por %p281, %p282
    %p285 = scmp.ne.s32.totalorder %s270, %s284
    %p286 = scmp.eq.s32.totalorder %s29, 0
    %p287 = por %p285, %p286
    %s289 = sadd.s32 %s288, 1
    %p292 = scmp.eq.s32.totalorder %s23, 1
    %p293 = scmp.ne.s32.totalorder %s288, %s290
    %p294 = scmp.eq.s32.totalorder %s23, 0
    %p295 = por %p293, %p294
    %p296 = scmp.ne.s32.totalorder %s288, %s290
    %p297 = scmp.eq.s32.totalorder %s28, 1
    %p298 = por %p296, %p297
    %p299 = scmp.ne.s32.totalorder %s290, %s291
    %p300 = scmp.eq.s32.totalorder %s28, 0
    %p301 = por %p299, %p300
    %p302 = scmp.ne.s32.totalorder %s290, %s291
    %p303 = scmp.eq.s32.totalorder %s29, 1
    %p304 = por %p302, %p303
    %p306 = scmp.ne.s32.totalorder %s291, %s305
    %p307 = scmp.eq.s32.totalorder %s29, 0
    %p308 = por %p306, %p307
    %s310 = sadd.s32 %s309, 1
    %p313 = scmp.eq.s32.totalorder %s23, 1
    %p314 = scmp.ne.s32.totalorder %s309, %s311
    %p315 = scmp.eq.s32.totalorder %s23, 0
    %p316 = por %p314, %p315
    %p317 = scmp.ne.s32.totalorder %s309, %s311
    %p318 = scmp.eq.s32.totalorder %s28, 1
    %p319 = por %p317, %p318
    %p320 = scmp.ne.s32.totalorder %s311, %s312
    %p321 = scmp.eq.s32.totalorder %s28, 0
    %p322 = por %p320, %p321
    %p323 = scmp.ne.s32.totalorder %s311, %s312
    %p324 = scmp.eq.s32.totalorder %s29, 1
    %p325 = por %p323, %p324
    %p327 = scmp.ne.s32.totalorder %s312, %s326
    %p328 = scmp.eq.s32.totalorder %s29, 0
    %p329 = por %p327, %p328
    %s331 = sadd.s32 %s330, 1
    %p334 = scmp.eq.s32.totalorder %s23, 1
    %p335 = scmp.ne.s32.totalorder %s330, %s332
    %p336 = scmp.eq.s32.totalorder %s23, 0
    %p337 = por %p335, %p336
    %p338 = scmp.ne.s32.totalorder %s330, %s332
    %p339 = scmp.eq.s32.totalorder %s28, 1
    %p340 = por %p338, %p339
    %p341 = scmp.ne.s32.totalorder %s332, %s333
    %p342 = scmp.eq.s32.totalorder %s28, 0
    %p343 = por %p341, %p342
    %p344 = scmp.ne.s32.totalorder %s332, %s333
    %p345 = scmp.eq.s32.totalorder %s29, 1
    %p346 = por %p344, %p345
    %p348 = scmp.ne.s32.totalorder %s333, %s347
    %p349 = scmp.eq.s32.totalorder %s29, 0
    %p350 = por %p348, %p349
    %s352 = sadd.s32 %s351, 1
    %p355 = scmp.eq.s32.totalorder %s23, 1
    %p356 = scmp.ne.s32.totalorder %s351, %s353
    %p357 = scmp.eq.s32.totalorder %s23, 0
    %p358 = por %p356, %p357
    %p359 = scmp.ne.s32.totalorder %s351, %s353
    %p360 = scmp.eq.s32.totalorder %s28, 1
    %p361 = por %p359, %p360
    %p362 = scmp.ne.s32.totalorder %s353, %s354
    %p363 = scmp.eq.s32.totalorder %s28, 0
    %p364 = por %p362, %p363
    %p365 = scmp.ne.s32.totalorder %s353, %s354
    %p366 = scmp.eq.s32.totalorder %s29, 1
    %p367 = por %p365, %p366
    %p369 = scmp.ne.s32.totalorder %s354, %s368
    %p370 = scmp.eq.s32.totalorder %s29, 0
    %p371 = por %p369, %p370
    %s373 = sadd.s32 %s372, 1
    %p376 = scmp.eq.s32.totalorder %s23, 1
    %p377 = scmp.ne.s32.totalorder %s372, %s374
    %p378 = scmp.eq.s32.totalorder %s23, 0
    %p379 = por %p377, %p378
    %p380 = scmp.ne.s32.totalorder %s372, %s374
    %p381 = scmp.eq.s32.totalorder %s28, 1
    %p382 = por %p380, %p381
    %p383 = scmp.ne.s32.totalorder %s374, %s375
    %p384 = scmp.eq.s32.totalorder %s28, 0
    %p385 = por %p383, %p384
    %p386 = scmp.ne.s32.totalorder %s374, %s375
    %p387 = scmp.eq.s32.totalorder %s29, 1
    %p388 = por %p386, %p387
    %p390 = scmp.ne.s32.totalorder %s375, %s389
    %p391 = scmp.eq.s32.totalorder %s29, 0
    %p392 = por %p390, %p391
    %s393 = ssub.s32 %s23, %s30
    %p394 = scmp.eq.s32.totalorder %s393, 0
    %s396 = sadd.s32 %s395, 1
    %s397 = scalar_select %p394, %s395, %s396
    %p400 = pneg %p394
    %p401 = scmp.eq.s32.totalorder %s23, 1
    %p402 = por %p400, %p401
    %p403 = scmp.ne.s32.totalorder %s395, %s398
    %p404 = scmp.eq.s32.totalorder %s23, 0
    %p405 = por %p403, %p404
    %p406 = scmp.ne.s32.totalorder %s395, %s398
    %p407 = scmp.eq.s32.totalorder %s28, 1
    %p408 = por %p406, %p407
    %p409 = scmp.ne.s32.totalorder %s398, %s399
    %p410 = scmp.eq.s32.totalorder %s28, 0
    %p411 = por %p409, %p410
    %p412 = scmp.ne.s32.totalorder %s398, %s399
    %p413 = scmp.eq.s32.totalorder %s29, 1
    %p414 = por %p412, %p413
    %p416 = scmp.ne.s32.totalorder %s399, %s415
    %p417 = scmp.eq.s32.totalorder %s29, 0
    %p418 = por %p416, %p417
    %p419 = scmp.le.s32.totalorder 1, %s23
    %p420 = scmp.lt.s32.totalorder %s23, 3
    %p421 = pnand %p419, %p420
    %p422 = pneg %p421
    // Predicated region
    $region9: #{swin_forward.6} parent=5 // pred_check
      _
    $region10: #{swin_forward.6} parent=5 // pred_check_branch
      %424 = sbr.rel (%p421) target = $region12
    $region11: #{swin_forward.6} parent=5 // pred_region
      %s425 = ssub.s32 %s23, 1
      // Predicated region
      $region13: #{swin_forward.6} parent=11 // pred_check
        %p426 = pneg %p70
      $region14: #{swin_forward.6} parent=11 // pred_check_branch
        %428 = sbr.rel (%p426) target = $region16
      $region15: #{swin_forward.6} parent=11 // pred_region
        _
      $region16: #{swin_forward.6} parent=11 // pred_fallthru
        _
      // Predicated region
      $region17: #{swin_forward.6} parent=11 // pred_check
        %p429 = pneg %p91
      $region18: #{swin_forward.6} parent=11 // pred_check_branch
        %431 = sbr.rel (%p429) target = $region20
      $region19: #{swin_forward.6} parent=11 // pred_region
        _
      $region20: #{swin_forward.6} parent=11 // pred_fallthru
        _
      // Predicated region
      $region21: #{swin_forward.6} parent=11 // pred_check
        %p432 = pneg %p112
      $region22: #{swin_forward.6} parent=11 // pred_check_branch
        %434 = sbr.rel (%p432) target = $region24
      $region23: #{swin_forward.6} parent=11 // pred_region
        _
      $region24: #{swin_forward.6} parent=11 // pred_fallthru
        _
      // Predicated region
      $region25: #{swin_forward.6} parent=11 // pred_check
        %p435 = pneg %p133
      $region26: #{swin_forward.6} parent=11 // pred_check_branch
        %437 = sbr.rel (%p435) target = $region28
      $region27: #{swin_forward.6} parent=11 // pred_region
        _
      $region28: #{swin_forward.6} parent=11 // pred_fallthru
        _
      // Predicated region
      $region29: #{swin_forward.6} parent=11 // pred_check
        %p438 = pneg %p154
      $region30: #{swin_forward.6} parent=11 // pred_check_branch
        %440 = sbr.rel (%p438) target = $region32
      $region31: #{swin_forward.6} parent=11 // pred_region
        _
      $region32: #{swin_forward.6} parent=11 // pred_fallthru
        _
      // Predicated region
      $region33: #{swin_forward.6} parent=11 // pred_check
        %p441 = pneg %p175
      $region34: #{swin_forward.6} parent=11 // pred_check_branch
        %443 = sbr.rel (%p441) target = $region36
      $region35: #{swin_forward.6} parent=11 // pred_region
        _
      $region36: #{swin_forward.6} parent=11 // pred_fallthru
        _
      // Predicated region
      $region37: #{swin_forward.6} parent=11 // pred_check
        %p444 = pneg %p196
      $region38: #{swin_forward.6} parent=11 // pred_check_branch
        %446 = sbr.rel (%p444) target = $region40
      $region39: #{swin_forward.6} parent=11 // pred_region
        _
      $region40: #{swin_forward.6} parent=11 // pred_fallthru
        _
      // Predicated region
      $region41: #{swin_forward.6} parent=11 // pred_check
        %p447 = pneg %p217
      $region42: #{swin_forward.6} parent=11 // pred_check_branch
        %449 = sbr.rel (%p447) target = $region44
      $region43: #{swin_forward.6} parent=11 // pred_region
        _
      $region44: #{swin_forward.6} parent=11 // pred_fallthru
        _
      // Predicated region
      $region45: #{swin_forward.6} parent=11 // pred_check
        %p450 = pneg %p238
      $region46: #{swin_forward.6} parent=11 // pred_check_branch
        %452 = sbr.rel (%p450) target = $region48
      $region47: #{swin_forward.6} parent=11 // pred_region
        _
      $region48: #{swin_forward.6} parent=11 // pred_fallthru
        _
      // Predicated region
      $region49: #{swin_forward.6} parent=11 // pred_check
        %p453 = pneg %p259
      $region50: #{swin_forward.6} parent=11 // pred_check_branch
        %455 = sbr.rel (%p453) target = $region52
      $region51: #{swin_forward.6} parent=11 // pred_region
        _
      $region52: #{swin_forward.6} parent=11 // pred_fallthru
        _
      // Predicated region
      $region53: #{swin_forward.6} parent=11 // pred_check
        %p456 = pneg %p280
      $region54: #{swin_forward.6} parent=11 // pred_check_branch
        %458 = sbr.rel (%p456) target = $region56
      $region55: #{swin_forward.6} parent=11 // pred_region
        _
      $region56: #{swin_forward.6} parent=11 // pred_fallthru
        _
      // Predicated region
      $region57: #{swin_forward.6} parent=11 // pred_check
        %p459 = pneg %p301
      $region58: #{swin_forward.6} parent=11 // pred_check_branch
        %461 = sbr.rel (%p459) target = $region60
      $region59: #{swin_forward.6} parent=11 // pred_region
        _
      $region60: #{swin_forward.6} parent=11 // pred_fallthru
        _
      // Predicated region
      $region61: #{swin_forward.6} parent=11 // pred_check
        %p462 = pneg %p322
      $region62: #{swin_forward.6} parent=11 // pred_check_branch
        %464 = sbr.rel (%p462) target = $region64
      $region63: #{swin_forward.6} parent=11 // pred_region
        _
      $region64: #{swin_forward.6} parent=11 // pred_fallthru
        _
      // Predicated region
      $region65: #{swin_forward.6} parent=11 // pred_check
        %p465 = pneg %p343
      $region66: #{swin_forward.6} parent=11 // pred_check_branch
        %467 = sbr.rel (%p465) target = $region68
      $region67: #{swin_forward.6} parent=11 // pred_region
        _
      $region68: #{swin_forward.6} parent=11 // pred_fallthru
        _
      // Predicated region
      $region69: #{swin_forward.6} parent=11 // pred_check
        %p468 = pneg %p364
      $region70: #{swin_forward.6} parent=11 // pred_check_branch
        %470 = sbr.rel (%p468) target = $region72
      $region71: #{swin_forward.6} parent=11 // pred_region
        _
      $region72: #{swin_forward.6} parent=11 // pred_fallthru
        _
      // Predicated region
      $region73: #{swin_forward.6} parent=11 // pred_check
        %p471 = pneg %p385
      $region74: #{swin_forward.6} parent=11 // pred_check_branch
        %473 = sbr.rel (%p471) target = $region76
      $region75: #{swin_forward.6} parent=11 // pred_region
        _
      $region76: #{swin_forward.6} parent=11 // pred_fallthru
        _
    $region12: #{swin_forward.6} parent=5 // pred_fallthru
      _
    %p474 = scmp.lt.s32.totalorder %s23, 2
    // Predicated region
    $region77: #{swin_forward.6} parent=5 // pred_check
      %p475 = pneg %p474
    $region78: #{swin_forward.6} parent=5 // pred_check_branch
      %477 = sbr.rel (%p475) target = $region80
    $region79: #{swin_forward.6} parent=5 // pred_region
      // Predicated region
      $region81: #{swin_forward.6} parent=79 // pred_check
        %p478 = pneg %p43
      $region82: #{swin_forward.6} parent=79 // pred_check_branch
        %480 = sbr.rel (%p478) target = $region84
      $region83: #{swin_forward.6} parent=79 // pred_region
        %p481 = scmp.lt.s32.totalorder %s23, 1
        %s482 = scalar_select %p481, %s23, 1
        %s483 = smul.addr %s482, 2
        %s484 = smul.addr %s483, 4
        %s485 = scalar_lea.vmem %s0, %s484
      $region84: #{swin_forward.6} parent=79 // pred_fallthru
        _
    $region80: #{swin_forward.6} parent=5 // pred_fallthru
      _
    %p486 = scmp.le.s32.totalorder 1, %s23
    %p487 = scmp.lt.s32.totalorder %s23, 3
    %p488 = pnand %p486, %p487
    %p489 = pneg %p488
    // Predicated region
    $region85: #{swin_forward.6} parent=5 // pred_check
      _
    $region86: #{swin_forward.6} parent=5 // pred_check_branch
      %491 = sbr.rel (%p488) target = $region88
    $region87: #{swin_forward.6} parent=5 // pred_region
      %s492 = ssub.s32 %s23, 1
      %p493 = scmp.lt.s32.totalorder %s28, 1
      %s494 = scalar_select %p493, %s28, 1
      %s495 = smul.addr %s494, 2
      %s496 = smul.addr %s495, 4
      %s497 = scalar_lea.vmem %s0, %s496
      %p498 = pneg %p49
      %p499 = pneg %p46
      %p500 = pneg %p70
      %p501 = pneg %p67
      %p502 = pneg %p91
      %p503 = pneg %p88
      %p504 = pneg %p112
      %p505 = pneg %p109
      %p506 = pneg %p133
      %p507 = pneg %p130
      %p508 = pneg %p154
      %p509 = pneg %p151
      %p510 = pneg %p175
      %p511 = pneg %p172
      %p512 = pneg %p196
      %p513 = pneg %p193
      %p514 = pneg %p217
      %p515 = pneg %p214
      %p516 = pneg %p238
      %p517 = pneg %p235
      %p518 = pneg %p259
      %p519 = pneg %p256
      %p520 = pneg %p280
      %p521 = pneg %p277
      %p522 = pneg %p301
      %p523 = pneg %p298
      %p524 = pneg %p322
      %p525 = pneg %p319
      %p526 = pneg %p343
      %p527 = pneg %p340
      %p528 = pneg %p364
      %p529 = pneg %p361
      %p530 = pneg %p385
      %p531 = pneg %p382
      %p532 = pneg %p411
      %p533 = pneg %p408
      %p534 = scmp.lt.s32.totalorder %s28, 1
      %s535 = scalar_select %p534, %s28, 1
      %s536 = smul.addr %s535, 2
      %s537 = smul.addr %s536, 4
      %s538 = scalar_lea.vmem %s17, %s537
      %p539 = scmp.lt.s32.totalorder %s28, 1
      %s540 = scalar_select %p539, %s28, 1
      %s541 = smul.addr %s540, 2
      %s542 = smul.addr %s541, 4
      %s543 = scalar_lea.vmem %s0, %s542
      %p544 = scmp.lt.s32.totalorder %s28, 1
      %s545 = scalar_select %p544, %s28, 1
      %s546 = smul.addr %s545, 2
      %s547 = smul.addr %s546, 4
      %s548 = scalar_lea.vmem %s17, %s547
      %v550 = vld [vmem:[%s543] sm:$0xf]
      %v551 = vld [vmem:[%s543 + $0x4] sm:$0xf]
      %v552 = vunpack.c.l.bf16 %v550
      %v553 = vunpack.c.l.bf16 %v551
      %v554 = vld [vmem:[%s1] sm:$0x1]
      %v555 = vld [vmem:[%s2] sm:$0x1]
      %556 = vadd.xlane.f32.xlu0 %v552
      %v557 = vpop.xlane.xlu0 %556
      %558 = vadd.xlane.f32.xlu0 %v553
      %v559 = vpop.xlane.xlu0 %558
      %v560 = vrcp.pop 128.0
      %v561 = vmul.f32 %v557, %v560
      %v562 = vmul.f32 %v559, %v560
      %v563 = vsub.f32 %v552, %v561
      %v564 = vsub.f32 %v553, %v562
      %v565 = vmul.f32 %v563, %v563
      %v566 = vmul.f32 %v564, %v564
      %567 = vadd.xlane.f32.xlu0 %v565
      %v568 = vpop.xlane.xlu0 %567
      %569 = vadd.xlane.f32.xlu0 %v566
      %v570 = vpop.xlane.xlu0 %569
      %v571 = vmul.f32 %v568, %v560
      %v572 = vmul.f32 %v570, %v560
      %v573 = vadd.f32 %v571, 1e-05
      %v574 = vadd.f32 %v572, 1e-05
      %v575 = vrsqrt.pop %v573
      %v576 = vrsqrt.pop %v574
      %v577 = vmul.f32 %v563, %v575
      %v578 = vmul.f32 %v564, %v576
      %v580 = vlaneseq
      %v581 = vshrl.u32 %v580, 7
      %v582 = vsub.s32 0, %v581
      %v583 = vrot.slane %v554, %v582
      %v585 = vmul.f32 %v577, %v583
      %v586 = vmul.f32 %v578, %v583
      %v588 = vlaneseq
      %v589 = vshrl.u32 %v588, 7
      %v590 = vsub.s32 0, %v589
      %v591 = vrot.slane %v555, %v590
      %v593 = vadd.f32 %v585, %v591
      %v594 = vadd.f32 %v586, %v591
      %v595 = vpack.c.bf16 %v594, %v593
      %v596 = vld [vmem:[%s3] sm:$0xf]
      %v597 = vld [vmem:[%s3 + $0x4] sm:$0xf]
      %v598 = vld [vmem:[%s3 + $0x8] sm:$0xf]
      %v599 = vld [vmem:[%s3 + $0xc] sm:$0xf]
      %v600 = vld [vmem:[%s3 + $0x10] sm:$0xf]
      %v601 = vld [vmem:[%s3 + $0x14] sm:$0xf]
      %v602 = vld [vmem:[%s3 + $0x18] sm:$0xf]
      %v603 = vld [vmem:[%s3 + $0x1c] sm:$0xf]
      %v604 = vld [vmem:[%s3 + $0x20] sm:$0xf]
      %v605 = vld [vmem:[%s3 + $0x24] sm:$0xf]
      %v606 = vld [vmem:[%s3 + $0x28] sm:$0xf]
      %v607 = vld [vmem:[%s3 + $0x2c] sm:$0xf]
      %v608 = vld [vmem:[%s3 + $0x30] sm:$0xf]
      %v609 = vld [vmem:[%s3 + $0x34] sm:$0xf]
      %v610 = vld [vmem:[%s3 + $0x38] sm:$0xf]
      %v611 = vld [vmem:[%s3 + $0x3c] sm:$0xf]
      %v628 = vunpack.c.l.b16 %v596
      %v629 = vunpack.c.l.b16 %v597
      %v630 = vunpack.c.l.b16 %v598
      %v631 = vunpack.c.l.b16 %v599
      %v632 = vunpack.c.l.b16 %v600
      %v633 = vunpack.c.l.b16 %v601
      %v634 = vunpack.c.l.b16 %v602
      %v635 = vunpack.c.l.b16 %v603
      %v636 = vunpack.c.l.b16 %v604
      %v637 = vunpack.c.l.b16 %v605
      %v638 = vunpack.c.l.b16 %v606
      %v639 = vunpack.c.l.b16 %v607
      %v640 = vunpack.c.l.b16 %v608
      %v641 = vunpack.c.l.b16 %v609
      %v642 = vunpack.c.l.b16 %v610
      %v643 = vunpack.c.l.b16 %v611
      %v644 = vpack.c.b16 %v629, %v628
      %v645 = vpack.c.b16 %v631, %v630
      %v646 = vpack.c.b16 %v633, %v632
      %v647 = vpack.c.b16 %v635, %v634
      %v648 = vpack.c.b16 %v637, %v636
      %v649 = vpack.c.b16 %v639, %v638
      %v650 = vpack.c.b16 %v641, %v640
      %v651 = vpack.c.b16 %v643, %v642
      %660 = vmatprep.subr.bf16.mxu0 0
      %661 = vmatpush1.bf16.msra.mxu0 %v651
      %662 = vmatprep.subr.bf16.mxu0 0
      %663 = vmatpush1.bf16.msra.mxu0 %v650
      %664 = vmatprep.subr.bf16.mxu0 0
      %665 = vmatpush1.bf16.msra.mxu0 %v649
      %666 = vmatprep.subr.bf16.mxu0 0
      %667 = vmatpush1.bf16.msra.mxu0 %v648
      %668 = vmatprep.subr.bf16.mxu0 0
      %669 = vmatpush1.bf16.msra.mxu0 %v647
      %670 = vmatprep.subr.bf16.mxu0 0
      %671 = vmatpush1.bf16.msra.mxu0 %v646
      %672 = vmatprep.subr.bf16.mxu0 0
      %673 = vmatpush1.bf16.msra.mxu0 %v645
      %674 = vmatprep.subr.bf16.mxu0 0
      %675 = vmatpush1.bf16.msra.mxu0 %v644
      %676 = vmatprep.subr.bf16.mxu0 0
      %677 = vmatpush2.bf16.msra.mxu0 0
      %678 = vmatprep.subr.bf16.mxu0 0
      %679 = vmatpush2.bf16.msra.mxu0 0
      %680 = vmatprep.subr.bf16.mxu0 0
      %681 = vmatpush2.bf16.msra.mxu0 0
      %682 = vmatprep.subr.bf16.mxu0 0
      %683 = vmatpush2.bf16.msra.mxu0 0
      %684 = vmatprep.subr.bf16.mxu0 0
      %685 = vmatpush2.bf16.msra.mxu0 0
      %686 = vmatprep.subr.bf16.mxu0 0
      %687 = vmatpush2.bf16.msra.mxu0 0
      %688 = vmatprep.subr.bf16.mxu0 0
      %689 = vmatpush2.bf16.msra.mxu0 0
      %690 = vmatprep.subr.bf16.mxu0 0
      %691 = vmatpush2.bf16.msra.mxu0 0
      %692 = vmatprep.mubr.bf16.mxu0 0
      %693 = vmatmul.mubr.bf16.gmra.mxu0 %v595
      %v694 = vpop.f32.mrf.mxu0
      %v695 = vadd.f32 0.0, %v694
      %v696 = vpop.f32.mrf.mxu0
      %v697 = vpop.f32.mrf.mxu0
      %v698 = vadd.f32 0.0, %v697
      %v699 = vpop.f32.mrf.mxu0
      %700 = vdwg.mxu0
      %v701 = vld [vmem:[%s5] sm:$0x1]
      %v702 = vld [vmem:[%s6] sm:$0x1]
      %vm703 = vcmask 523264
      %v704 = vsel %vm703, %v695, 0.0
      %705 = vadd.xlane.f32.xlu0 %v704
      %v706 = vpop.xlane.xlu0 %705
      %v707 = vsel %vm703, %v698, 0.0
      %708 = vadd.xlane.f32.xlu0 %v707
      %v709 = vpop.xlane.xlu0 %708
      %v710 = vrcp.pop 64.0
      %v711 = vmul.f32 %v706, %v710
      %v712 = vmul.f32 %v709, %v710
      %v713 = vsub.f32 %v695, %v711
      %v714 = vsub.f32 %v698, %v712
      %v715 = vmul.f32 %v713, %v713
      %v716 = vmul.f32 %v714, %v714
      %v717 = vsel %vm703, %v715, 0.0
      %718 = vadd.xlane.f32.xlu0 %v717
      %v719 = vpop.xlane.xlu0 %718
      %v720 = vsel %vm703, %v716, 0.0
      %721 = vadd.xlane.f32.xlu0 %v720
      %v722 = vpop.xlane.xlu0 %721
      %v723 = vmul.f32 %v719, %v710
      %v724 = vmul.f32 %v722, %v710
      %v725 = vadd.f32 %v723, 1e-05
      %v726 = vadd.f32 %v724, 1e-05
      %v727 = vrsqrt.pop %v725
      %v728 = vrsqrt.pop %v726
      %v729 = vmul.f32 %v713, %v727
      %v730 = vmul.f32 %v714, %v728
      %v732 = vlaneseq
      %v733 = vshrl.u32 %v732, 7
      %v734 = vsub.s32 0, %v733
      %v735 = vrot.slane %v701, %v734
      %v737 = vmul.f32 %v729, %v735
      %v738 = vmul.f32 %v730, %v735
      %v740 = vlaneseq
      %v741 = vshrl.u32 %v740, 7
      %v742 = vsub.s32 0, %v741
      %v743 = vrot.slane %v702, %v742
      %v745 = vadd.f32 %v737, %v743
      %v746 = vadd.f32 %v738, %v743
      %v747 = vpack.c.bf16 %v746, %v745
      %v748 = vld [vmem:[%s7] sm:$0xff]
      %v749 = vld [vmem:[%s7 + $0x8] sm:$0xff]
      %v750 = vld [vmem:[%s7 + $0x10] sm:$0xff]
      %v751 = vld [vmem:[%s7 + $0x18] sm:$0xff]
      %v752 = vld [vmem:[%s7 + $0x20] sm:$0xff]
      %v753 = vld [vmem:[%s7 + $0x28] sm:$0xff]
      %v754 = vld [vmem:[%s7 + $0x30] sm:$0xff]
      %v755 = vld [vmem:[%s7 + $0x38] sm:$0xff]
      %v756 = vld [vmem:[%s8] sm:$0x3]
      %v758 = vlaneseq
      %v759 = vshrl.u32 %v758, 7
      %v760 = vsub.s32 0, %v759
      %v761 = vrot.slane %v756, %v760
      %v762 = vlaneseq
      %v763 = vshrl.u32 %v762, 7
      %v764 = vsub.s32 1, %v763
      %v765 = vrot.slane %v756, %v764
      %v776 = vunpack.c.l.b16 %v748
      %v777 = vunpack.c.h.b16 %v748
      %v778 = vunpack.c.l.b16 %v749
      %v779 = vunpack.c.h.b16 %v749
      %v780 = vunpack.c.l.b16 %v750
      %v781 = vunpack.c.h.b16 %v750
      %v782 = vunpack.c.l.b16 %v751
      %v783 = vunpack.c.h.b16 %v751
      %v784 = vunpack.c.l.b16 %v752
      %v785 = vunpack.c.h.b16 %v752
      %v786 = vunpack.c.l.b16 %v753
      %v787 = vunpack.c.h.b16 %v753
      %v788 = vunpack.c.l.b16 %v754
      %v789 = vunpack.c.h.b16 %v754
      %v790 = vunpack.c.l.b16 %v755
      %v791 = vunpack.c.h.b16 %v755
      %v792 = vpack.c.b16 %v778, %v776
      %v793 = vpack.c.b16 %v779, %v777
      %v794 = vpack.c.b16 %v782, %v780
      %v795 = vpack.c.b16 %v783, %v781
      %v796 = vpack.c.b16 %v786, %v784
      %v797 = vpack.c.b16 %v787, %v785
      %v798 = vpack.c.b16 %v790, %v788
      %v799 = vpack.c.b16 %v791, %v789
      %v809 = vsel %vm703, %v747, 0
      %811 = vmatprep.subr.bf16.mxu0 0
      %812 = vmatpush1.bf16.msra.mxu0 0
      %813 = vmatprep.subr.bf16.mxu0 0
      %814 = vmatpush1.bf16.msra.mxu0 0
      %815 = vmatprep.subr.bf16.mxu0 0
      %816 = vmatpush1.bf16.msra.mxu0 0
      %817 = vmatprep.subr.bf16.mxu0 0
      %818 = vmatpush1.bf16.msra.mxu0 0
      %819 = vmatprep.subr.bf16.mxu0 %v799
      %820 = vmatpush1.bf16.msra.mxu0 %v798
      %821 = vmatprep.subr.bf16.mxu0 %v797
      %822 = vmatpush1.bf16.msra.mxu0 %v796
      %823 = vmatprep.subr.bf16.mxu0 %v795
      %824 = vmatpush1.bf16.msra.mxu0 %v794
      %825 = vmatprep.subr.bf16.mxu0 %v793
      %826 = vmatpush1.bf16.msra.mxu0 %v792
      %827 = vmatprep.subr.bf16.mxu0 0
      %828 = vmatpush2.bf16.msra.mxu0 0
      %829 = vmatprep.subr.bf16.mxu0 0
      %830 = vmatpush2.bf16.msra.mxu0 0
      %831 = vmatprep.subr.bf16.mxu0 0
      %832 = vmatpush2.bf16.msra.mxu0 0
      %833 = vmatprep.subr.bf16.mxu0 0
      %834 = vmatpush2.bf16.msra.mxu0 0
      %835 = vmatprep.subr.bf16.mxu0 0
      %836 = vmatpush2.bf16.msra.mxu0 0
      %837 = vmatprep.subr.bf16.mxu0 0
      %838 = vmatpush2.bf16.msra.mxu0 0
      %839 = vmatprep.subr.bf16.mxu0 0
      %840 = vmatpush2.bf16.msra.mxu0 0
      %841 = vmatprep.subr.bf16.mxu0 0
      %842 = vmatpush2.bf16.msra.mxu0 0
      %843 = vmatprep.mubr.bf16.mxu0 0
      %844 = vmatmul.mubr.bf16.gmra.mxu0 %v809
      %v845 = vpop.f32.mrf.mxu0
      %v846 = vadd.f32 %v761, %v845
      %v847 = vpop.f32.mrf.mxu0
      %v848 = vadd.f32 %v765, %v847
      %v849 = vpop.f32.mrf.mxu0
      %v850 = vadd.f32 %v761, %v849
      %v851 = vpop.f32.mrf.mxu0
      %v852 = vadd.f32 %v765, %v851
      %853 = vdwg.mxu0
      %v854 = vpack.c.bf16 %v850, %v846
      %v855 = vpack.c.bf16 %v852, %v848
      %v856 = vld [vmem:[%s4] sm:$0xff]
      %v857 = vld [vmem:[%s4 + $0x8] sm:$0xff]
      %859 = vrot.lane.b32.xlu0 %v854, 64
      %v860 = vpop.permute.xlu0 %859
      %vm861 = vcmask 130048
      %v863 = vsel %vm861, %v854, 0
      %v866 = vsel %vm861, %v860, 0
      %868 = vmatprep.subr.bf16.mxu0 0
      %869 = vmatpush1.bf16.xpose.msra.mxu0 0
      %870 = vmatprep.subr.bf16.mxu0 0
      %871 = vmatpush1.bf16.xpose.msra.mxu0 0
      %872 = vmatprep.subr.bf16.mxu0 0
      %873 = vmatpush1.bf16.xpose.msra.mxu0 0
      %874 = vmatprep.subr.bf16.mxu0 0
      %875 = vmatpush1.bf16.xpose.msra.mxu0 0
      %876 = vmatprep.subr.bf16.mxu0 0
      %877 = vmatpush1.bf16.xpose.msra.mxu0 0
      %878 = vmatprep.subr.bf16.mxu0 0
      %879 = vmatpush1.bf16.xpose.msra.mxu0 0
      %880 = vmatprep.subr.bf16.mxu0 0
      %881 = vmatpush1.bf16.xpose.msra.mxu0 0
      %882 = vmatprep.subr.bf16.mxu0 0
      %883 = vmatpush1.bf16.xpose.msra.mxu0 %v866
      %884 = vmatprep.subr.bf16.mxu0 0
      %885 = vmatpush2.bf16.xpose.msra.mxu0 0
      %886 = vmatprep.subr.bf16.mxu0 0
      %887 = vmatpush2.bf16.xpose.msra.mxu0 0
      %888 = vmatprep.subr.bf16.mxu0 0
      %889 = vmatpush2.bf16.xpose.msra.mxu0 0
      %890 = vmatprep.subr.bf16.mxu0 0
      %891 = vmatpush2.bf16.xpose.msra.mxu0 0
      %892 = vmatprep.subr.bf16.mxu0 0
      %893 = vmatpush2.bf16.xpose.msra.mxu0 0
      %894 = vmatprep.subr.bf16.mxu0 0
      %895 = vmatpush2.bf16.xpose.msra.mxu0 0
      %896 = vmatprep.subr.bf16.mxu0 0
      %897 = vmatpush2.bf16.xpose.msra.mxu0 0
      %898 = vmatprep.subr.bf16.mxu0 0
      %899 = vmatpush2.bf16.xpose.msra.mxu0 0
      %900 = vmatprep.mubr.bf16.mxu0 0
      %901 = vmatmul.mubr.bf16.gmra.mxu0 %v863
      %v902 = vpop.f32.mrf.mxu0
      %v903 = vadd.f32 %v856, %v902
      %v904 = vpop.f32.mrf.mxu0
      %v905 = vpop.f32.mrf.mxu0
      %v906 = vadd.f32 %v857, %v905
      %v907 = vpop.f32.mrf.mxu0
      %908 = vdwg.mxu0
      %v909 = vsel %vm861, %v903, -inf
      %910 = vmax.xlane.f32.xlu0 %v909
      %v911 = vpop.xlane.xlu0 %910
      %v912 = vsel %vm861, %v906, -inf
      %913 = vmax.xlane.f32.xlu0 %v912
      %v914 = vpop.xlane.xlu0 %913
      %v915 = vsub.f32 %v903, %v911
      %v916 = vsub.f32 %v906, %v914
      %v917 = vmul.f32 %v915, 1.442695
      %v918 = vpow.pop %v917
      %v919 = vmul.f32 %v916, 1.442695
      %v920 = vpow.pop %v919
      %v921 = vsel %vm861, %v918, 0.0
      %922 = vadd.xlane.f32.xlu0 %v921
      %v923 = vpop.xlane.xlu0 %922
      %v924 = vsel %vm861, %v920, 0.0
      %925 = vadd.xlane.f32.xlu0 %v924
      %v926 = vpop.xlane.xlu0 %925
      %v927 = vrcp.pop %v923
      %v928 = vrcp.pop %v926
      %v929 = vmul.f32 %v918, %v927
      %v930 = vmul.f32 %v920, %v928
      %v931 = vpack.c.bf16 %v930, %v929
      %v933 = vsel %vm861, %v931, 0
      %935 = vmatprep.subr.bf16.mxu0 0
      %936 = vmatpush1.bf16.msra.mxu0 0
      %937 = vmatprep.subr.bf16.mxu0 0
      %938 = vmatpush1.bf16.msra.mxu0 0
      %939 = vmatprep.subr.bf16.mxu0 0
      %940 = vmatpush1.bf16.msra.mxu0 0
      %941 = vmatprep.subr.bf16.mxu0 0
      %942 = vmatpush1.bf16.msra.mxu0 0
      %943 = vmatprep.subr.bf16.mxu0 0
      %944 = vmatpush1.bf16.msra.mxu0 0
      %945 = vmatprep.subr.bf16.mxu0 0
      %946 = vmatpush1.bf16.msra.mxu0 0
      %947 = vmatprep.subr.bf16.mxu0 0
      %948 = vmatpush1.bf16.msra.mxu0 0
      %949 = vmatprep.subr.bf16.mxu0 0
      %950 = vmatpush1.bf16.msra.mxu0 %v855
      %951 = vmatprep.subr.bf16.mxu0 0
      %952 = vmatpush2.bf16.msra.mxu0 0
      %953 = vmatprep.subr.bf16.mxu0 0
      %954 = vmatpush2.bf16.msra.mxu0 0
      %955 = vmatprep.subr.bf16.mxu0 0
      %956 = vmatpush2.bf16.msra.mxu0 0
      %957 = vmatprep.subr.bf16.mxu0 0
      %958 = vmatpush2.bf16.msra.mxu0 0
      %959 = vmatprep.subr.bf16.mxu0 0
      %960 = vmatpush2.bf16.msra.mxu0 0
      %961 = vmatprep.subr.bf16.mxu0 0
      %962 = vmatpush2.bf16.msra.mxu0 0
      %963 = vmatprep.subr.bf16.mxu0 0
      %964 = vmatpush2.bf16.msra.mxu0 0
      %965 = vmatprep.subr.bf16.mxu0 0
      %966 = vmatpush2.bf16.msra.mxu0 0
      %967 = vmatprep.mubr.bf16.mxu0 0
      %968 = vmatmul.mubr.bf16.gmra.mxu0 %v933
      %v969 = vpop.f32.mrf.mxu0
      %v970 = vadd.f32 0.0, %v969
      %v971 = vpop.f32.mrf.mxu0
      %v972 = vpop.f32.mrf.mxu0
      %v973 = vadd.f32 0.0, %v972
      %v974 = vpop.f32.mrf.mxu0
      %975 = vdwg.mxu0
      %s976 = scalar_lea.vmem %s4, 16
      %v977 = vld [vmem:[%s976] sm:$0xff]
      %v978 = vld [vmem:[%s976 + $0x8] sm:$0xff]
      %979 = vrot.lane.b32.xlu0 %v854, 112
      %v980 = vpop.permute.xlu0 %979
      %981 = vrot.lane.b32.xlu0 %v854, 48
      %v982 = vpop.permute.xlu0 %981
      %v984 = vsel %vm861, %v980, 0
      %v987 = vsel %vm861, %v982, 0
      %989 = vmatprep.subr.bf16.mxu0 0
      %990 = vmatpush1.bf16.xpose.msra.mxu0 0
      %991 = vmatprep.subr.bf16.mxu0 0
      %992 = vmatpush1.bf16.xpose.msra.mxu0 0
      %993 = vmatprep.subr.bf16.mxu0 0
      %994 = vmatpush1.bf16.xpose.msra.mxu0 0
      %995 = vmatprep.subr.bf16.mxu0 0
      %996 = vmatpush1.bf16.xpose.msra.mxu0 0
      %997 = vmatprep.subr.bf16.mxu0 0
      %998 = vmatpush1.bf16.xpose.msra.mxu0 0
      %999 = vmatprep.subr.bf16.mxu0 0
      %1000 = vmatpush1.bf16.xpose.msra.mxu0 0
      %1001 = vmatprep.subr.bf16.mxu0 0
      %1002 = vmatpush1.bf16.xpose.msra.mxu0 0
      %1003 = vmatprep.subr.bf16.mxu0 0
      %1004 = vmatpush1.bf16.xpose.msra.mxu0 %v987
      %1005 = vmatprep.subr.bf16.mxu0 0
      %1006 = vmatpush2.bf16.xpose.msra.mxu0 0
      %1007 = vmatprep.subr.bf16.mxu0 0
      %1008 = vmatpush2.bf16.xpose.msra.mxu0 0
      %1009 = vmatprep.subr.bf16.mxu0 0
      %1010 = vmatpush2.bf16.xpose.msra.mxu0 0
      %1011 = vmatprep.subr.bf16.mxu0 0
      %1012 = vmatpush2.bf16.xpose.msra.mxu0 0
      %1013 = vmatprep.subr.bf16.mxu0 0
      %1014 = vmatpush2.bf16.xpose.msra.mxu0 0
      %1015 = vmatprep.subr.bf16.mxu0 0
      %1016 = vmatpush2.bf16.xpose.msra.mxu0 0
      %1017 = vmatprep.subr.bf16.mxu0 0
      %1018 = vmatpush2.bf16.xpose.msra.mxu0 0
      %1019 = vmatprep.subr.bf16.mxu0 0
      %1020 = vmatpush2.bf16.xpose.msra.mxu0 0
      %1021 = vmatprep.mubr.bf16.mxu0 0
      %1022 = vmatmul.mubr.bf16.gmra.mxu0 %v984
      %v1023 = vpop.f32.mrf.mxu0
      %v1024 = vadd.f32 %v977, %v1023
      %v1025 = vpop.f32.mrf.mxu0
      %v1026 = vpop.f32.mrf.mxu0
      %v1027 = vadd.f32 %v978, %v1026
      %v1028 = vpop.f32.mrf.mxu0
      %1029 = vdwg.mxu0
      %v1030 = vsel %vm861, %v1024, -inf
      %1031 = vmax.xlane.f32.xlu0 %v1030
      %v1032 = vpop.xlane.xlu0 %1031
      %v1033 = vsel %vm861, %v1027, -inf
      %1034 = vmax.xlane.f32.xlu0 %v1033
      %v1035 = vpop.xlane.xlu0 %1034
      %v1036 = vsub.f32 %v1024, %v1032
      %v1037 = vsub.f32 %v1027, %v1035
      %v1038 = vmul.f32 %v1036, 1.442695
      %v1039 = vpow.pop %v1038
      %v1040 = vmul.f32 %v1037, 1.442695
      %v1041 = vpow.pop %v1040
      %v1042 = vsel %vm861, %v1039, 0.0
      %1043 = vadd.xlane.f32.xlu0 %v1042
      %v1044 = vpop.xlane.xlu0 %1043
      %v1045 = vsel %vm861, %v1041, 0.0
      %1046 = vadd.xlane.f32.xlu0 %v1045
      %v1047 = vpop.xlane.xlu0 %1046
      %v1048 = vrcp.pop %v1044
      %v1049 = vrcp.pop %v1047
      %v1050 = vmul.f32 %v1039, %v1048
      %v1051 = vmul.f32 %v1041, %v1049
      %v1052 = vpack.c.bf16 %v1051, %v1050
      %1054 = vrot.lane.b32.xlu0 %v855, 112
      %v1055 = vpop.permute.xlu0 %1054
      %v1058 = vsel %vm861, %v1052, 0
      %1060 = vmatprep.subr.bf16.mxu0 0
      %1061 = vmatpush1.bf16.msra.mxu0 0
      %1062 = vmatprep.subr.bf16.mxu0 0
      %1063 = vmatpush1.bf16.msra.mxu0 0
      %1064 = vmatprep.subr.bf16.mxu0 0
      %1065 = vmatpush1.bf16.msra.mxu0 0
      %1066 = vmatprep.subr.bf16.mxu0 0
      %1067 = vmatpush1.bf16.msra.mxu0 0
      %1068 = vmatprep.subr.bf16.mxu0 0
      %1069 = vmatpush1.bf16.msra.mxu0 0
      %1070 = vmatprep.subr.bf16.mxu0 0
      %1071 = vmatpush1.bf16.msra.mxu0 0
      %1072 = vmatprep.subr.bf16.mxu0 0
      %1073 = vmatpush1.bf16.msra.mxu0 0
      %1074 = vmatprep.subr.bf16.mxu0 0
      %1075 = vmatpush1.bf16.msra.mxu0 %v1055
      %1076 = vmatprep.subr.bf16.mxu0 0
      %1077 = vmatpush2.bf16.msra.mxu0 0
      %1078 = vmatprep.subr.bf16.mxu0 0
      %1079 = vmatpush2.bf16.msra.mxu0 0
      %1080 = vmatprep.subr.bf16.mxu0 0
      %1081 = vmatpush2.bf16.msra.mxu0 0
      %1082 = vmatprep.subr.bf16.mxu0 0
      %1083 = vmatpush2.bf16.msra.mxu0 0
      %1084 = vmatprep.subr.bf16.mxu0 0
      %1085 = vmatpush2.bf16.msra.mxu0 0
      %1086 = vmatprep.subr.bf16.mxu0 0
      %1087 = vmatpush2.bf16.msra.mxu0 0
      %1088 = vmatprep.subr.bf16.mxu0 0
      %1089 = vmatpush2.bf16.msra.mxu0 0
      %1090 = vmatprep.subr.bf16.mxu0 0
      %1091 = vmatpush2.bf16.msra.mxu0 0
      %1092 = vmatprep.mubr.bf16.mxu0 0
      %1093 = vmatmul.mubr.bf16.gmra.mxu0 %v1058
      %v1094 = vpop.f32.mrf.mxu0
      %v1095 = vadd.f32 0.0, %v1094
      %v1096 = vpop.f32.mrf.mxu0
      %v1097 = vpop.f32.mrf.mxu0
      %v1098 = vadd.f32 0.0, %v1097
      %v1099 = vpop.f32.mrf.mxu0
      %1100 = vdwg.mxu0
      %s1101 = scalar_lea.vmem %s4, 32
      %v1102 = vld [vmem:[%s1101] sm:$0xff]
      %v1103 = vld [vmem:[%s1101 + $0x8] sm:$0xff]
      %1104 = vrot.lane.b32.xlu0 %v854, 96
      %v1105 = vpop.permute.xlu0 %1104
      %1106 = vrot.lane.b32.xlu0 %v854, 32
      %v1107 = vpop.permute.xlu0 %1106
      %v1109 = vsel %vm861, %v1105, 0
      %v1112 = vsel %vm861, %v1107, 0
      %1114 = vmatprep.subr.bf16.mxu0 0
      %1115 = vmatpush1.bf16.xpose.msra.mxu0 0
      %1116 = vmatprep.subr.bf16.mxu0 0
      %1117 = vmatpush1.bf16.xpose.msra.mxu0 0
      %1118 = vmatprep.subr.bf16.mxu0 0
      %1119 = vmatpush1.bf16.xpose.msra.mxu0 0
      %1120 = vmatprep.subr.bf16.mxu0 0
      %1121 = vmatpush1.bf16.xpose.msra.mxu0 0
      %1122 = vmatprep.subr.bf16.mxu0 0
      %1123 = vmatpush1.bf16.xpose.msra.mxu0 0
      %1124 = vmatprep.subr.bf16.mxu0 0
      %1125 = vmatpush1.bf16.xpose.msra.mxu0 0
      %1126 = vmatprep.subr.bf16.mxu0 0
      %1127 = vmatpush1.bf16.xpose.msra.mxu0 0
      %1128 = vmatprep.subr.bf16.mxu0 0
      %1129 = vmatpush1.bf16.xpose.msra.mxu0 %v1112
      %1130 = vmatprep.subr.bf16.mxu0 0
      %1131 = vmatpush2.bf16.xpose.msra.mxu0 0
      %1132 = vmatprep.subr.bf16.mxu0 0
      %1133 = vmatpush2.bf16.xpose.msra.mxu0 0
      %1134 = vmatprep.subr.bf16.mxu0 0
      %1135 = vmatpush2.bf16.xpose.msra.mxu0 0
      %1136 = vmatprep.subr.bf16.mxu0 0
      %1137 = vmatpush2.bf16.xpose.msra.mxu0 0
      %1138 = vmatprep.subr.bf16.mxu0 0
      %1139 = vmatpush2.bf16.xpose.msra.mxu0 0
      %1140 = vmatprep.subr.bf16.mxu0 0
      %1141 = vmatpush2.bf16.xpose.msra.mxu0 0
      %1142 = vmatprep.subr.bf16.mxu0 0
      %1143 = vmatpush2.bf16.xpose.msra.mxu0 0
      %1144 = vmatprep.subr.bf16.mxu0 0
      %1145 = vmatpush2.bf16.xpose.msra.mxu0 0
      %1146 = vmatprep.mubr.bf16.mxu0 0
      %1147 = vmatmul.mubr.bf16.gmra.mxu0 %v1109
      %v1148 = vpop.f32.mrf.mxu0
      %v1149 = vadd.f32 %v1102, %v1148
      %v1150 = vpop.f32.mrf.mxu0
      %v1151 = vpop.f32.mrf.mxu0
      %v1152 = vadd.f32 %v1103, %v1151
      %v1153 = vpop.f32.mrf.mxu0
      %1154 = vdwg.mxu0
      %v1155 = vsel %vm861, %v1149, -inf
      %1156 = vmax.xlane.f32.xlu0 %v1155
      %v1157 = vpop.xlane.xlu0 %1156
      %v1158 = vsel %vm861, %v1152, -inf
      %1159 = vmax.xlane.f32.xlu0 %v1158
      %v1160 = vpop.xlane.xlu0 %1159
      %v1161 = vsub.f32 %v1149, %v1157
      %v1162 = vsub.f32 %v1152, %v1160
      %v1163 = vmul.f32 %v1161, 1.442695
      %v1164 = vpow.pop %v1163
      %v1165 = vmul.f32 %v1162, 1.442695
      %v1166 = vpow.pop %v1165
      %v1167 = vsel %vm861, %v1164, 0.0
      %1168 = vadd.xlane.f32.xlu0 %v1167
      %v1169 = vpop.xlane.xlu0 %1168
      %v1170 = vsel %vm861, %v1166, 0.0
      %1171 = vadd.xlane.f32.xlu0 %v1170
      %v1172 = vpop.xlane.xlu0 %1171
      %v1173 = vrcp.pop %v1169
      %v1174 = vrcp.pop %v1172
      %v1175 = vmul.f32 %v1164, %v1173
      %v1176 = vmul.f32 %v1166, %v1174
      %v1177 = vpack.c.bf16 %v1176, %v1175
      %1178 = vrot.lane.b32.xlu0 %v855, 96
      %v1179 = vpop.permute.xlu0 %1178
      %v1182 = vsel %vm861, %v1177, 0
      %1184 = vmatprep.subr.bf16.mxu0 0
      %1185 = vmatpush1.bf16.msra.mxu0 0
      %1186 = vmatprep.subr.bf16.mxu0 0
      %1187 = vmatpush1.bf16.msra.mxu0 0
      %1188 = vmatprep.subr.bf16.mxu0 0
      %1189 = vmatpush1.bf16.msra.mxu0 0
      %1190 = vmatprep.subr.bf16.mxu0 0
      %1191 = vmatpush1.bf16.msra.mxu0 0
      %1192 = vmatprep.subr.bf16.mxu0 0
      %1193 = vmatpush1.bf16.msra.mxu0 0
      %1194 = vmatprep.subr.bf16.mxu0 0
      %1195 = vmatpush1.bf16.msra.mxu0 0
      %1196 = vmatprep.subr.bf16.mxu0 0
      %1197 = vmatpush1.bf16.msra.mxu0 0
      %1198 = vmatprep.subr.bf16.mxu0 0
      %1199 = vmatpush1.bf16.msra.mxu0 %v1179
      %1200 = vmatprep.subr.bf16.mxu0 0
      %1201 = vmatpush2.bf16.msra.mxu0 0
      %1202 = vmatprep.subr.bf16.mxu0 0
      %1203 = vmatpush2.bf16.msra.mxu0 0
      %1204 = vmatprep.subr.bf16.mxu0 0
      %1205 = vmatpush2.bf16.msra.mxu0 0
      %1206 = vmatprep.subr.bf16.mxu0 0
      %1207 = vmatpush2.bf16.msra.mxu0 0
      %1208 = vmatprep.subr.bf16.mxu0 0
      %1209 = vmatpush2.bf16.msra.mxu0 0
      %1210 = vmatprep.subr.bf16.mxu0 0
      %1211 = vmatpush2.bf16.msra.mxu0 0
      %1212 = vmatprep.subr.bf16.mxu0 0
      %1213 = vmatpush2.bf16.msra.mxu0 0
      %1214 = vmatprep.subr.bf16.mxu0 0
      %1215 = vmatpush2.bf16.msra.mxu0 0
      %1216 = vmatprep.mubr.bf16.mxu0 0
      %1217 = vmatmul.mubr.bf16.gmra.mxu0 %v1182
      %v1218 = vpop.f32.mrf.mxu0
      %v1219 = vadd.f32 0.0, %v1218
      %v1220 = vpop.f32.mrf.mxu0
      %v1221 = vpop.f32.mrf.mxu0
      %v1222 = vadd.f32 0.0, %v1221
      %v1223 = vpop.f32.mrf.mxu0
      %1224 = vdwg.mxu0
      %s1225 = scalar_lea.vmem %s4, 48
      %v1226 = vld [vmem:[%s1225] sm:$0xff]
      %v1227 = vld [vmem:[%s1225 + $0x8] sm:$0xff]
      %1228 = vrot.lane.b32.xlu0 %v854, 80
      %v1229 = vpop.permute.xlu0 %1228
      %1230 = vrot.lane.b32.xlu0 %v854, 16
      %v1231 = vpop.permute.xlu0 %1230
      %v1233 = vsel %vm861, %v1229, 0
      %v1236 = vsel %vm861, %v1231, 0
      %1238 = vmatprep.subr.bf16.mxu0 0
      %1239 = vmatpush1.bf16.xpose.msra.mxu0 0
      %1240 = vmatprep.subr.bf16.mxu0 0
      %1241 = vmatpush1.bf16.xpose.msra.mxu0 0
      %1242 = vmatprep.subr.bf16.mxu0 0
      %1243 = vmatpush1.bf16.xpose.msra.mxu0 0
      %1244 = vmatprep.subr.bf16.mxu0 0
      %1245 = vmatpush1.bf16.xpose.msra.mxu0 0
      %1246 = vmatprep.subr.bf16.mxu0 0
      %1247 = vmatpush1.bf16.xpose.msra.mxu0 0
      %1248 = vmatprep.subr.bf16.mxu0 0
      %1249 = vmatpush1.bf16.xpose.msra.mxu0 0
      %1250 = vmatprep.subr.bf16.mxu0 0
      %1251 = vmatpush1.bf16.xpose.msra.mxu0 0
      %1252 = vmatprep.subr.bf16.mxu0 0
      %1253 = vmatpush1.bf16.xpose.msra.mxu0 %v1236
      %1254 = vmatprep.subr.bf16.mxu0 0
      %1255 = vmatpush2.bf16.xpose.msra.mxu0 0
      %1256 = vmatprep.subr.bf16.mxu0 0
      %1257 = vmatpush2.bf16.xpose.msra.mxu0 0
      %1258 = vmatprep.subr.bf16.mxu0 0
      %1259 = vmatpush2.bf16.xpose.msra.mxu0 0
      %1260 = vmatprep.subr.bf16.mxu0 0
      %1261 = vmatpush2.bf16.xpose.msra.mxu0 0
      %1262 = vmatprep.subr.bf16.mxu0 0
      %1263 = vmatpush2.bf16.xpose.msra.mxu0 0
      %1264 = vmatprep.subr.bf16.mxu0 0
      %1265 = vmatpush2.bf16.xpose.msra.mxu0 0
      %1266 = vmatprep.subr.bf16.mxu0 0
      %1267 = vmatpush2.bf16.xpose.msra.mxu0 0
      %1268 = vmatprep.subr.bf16.mxu0 0
      %1269 = vmatpush2.bf16.xpose.msra.mxu0 0
      %1270 = vmatprep.mubr.bf16.mxu0 0
      %1271 = vmatmul.mubr.bf16.gmra.mxu0 %v1233
      %v1272 = vpop.f32.mrf.mxu0
      %v1273 = vadd.f32 %v1226, %v1272
      %v1274 = vpop.f32.mrf.mxu0
      %v1275 = vpop.f32.mrf.mxu0
      %v1276 = vadd.f32 %v1227, %v1275
      %v1277 = vpop.f32.mrf.mxu0
      %1278 = vdwg.mxu0
      %v1279 = vsel %vm861, %v1273, -inf
      %1280 = vmax.xlane.f32.xlu0 %v1279
      %v1281 = vpop.xlane.xlu0 %1280
      %v1282 = vsel %vm861, %v1276, -inf
      %1283 = vmax.xlane.f32.xlu0 %v1282
      %v1284 = vpop.xlane.xlu0 %1283
      %v1285 = vsub.f32 %v1273, %v1281
      %v1286 = vsub.f32 %v1276, %v1284
      %v1287 = vmul.f32 %v1285, 1.442695
      %v1288 = vpow.pop %v1287
      %v1289 = vmul.f32 %v1286, 1.442695
      %v1290 = vpow.pop %v1289
      %v1291 = vsel %vm861, %v1288, 0.0
      %1292 = vadd.xlane.f32.xlu0 %v1291
      %v1293 = vpop.xlane.xlu0 %1292
      %v1294 = vsel %vm861, %v1290, 0.0
      %1295 = vadd.xlane.f32.xlu0 %v1294
      %v1296 = vpop.xlane.xlu0 %1295
      %v1297 = vrcp.pop %v1293
      %v1298 = vrcp.pop %v1296
      %v1299 = vmul.f32 %v1288, %v1297
      %v1300 = vmul.f32 %v1290, %v1298
      %v1301 = vpack.c.bf16 %v1300, %v1299
      %1302 = vrot.lane.b32.xlu0 %v855, 80
      %v1303 = vpop.permute.xlu0 %1302
      %v1306 = vsel %vm861, %v1301, 0
      %1308 = vmatprep.subr.bf16.mxu0 0
      %1309 = vmatpush1.bf16.msra.mxu0 0
      %1310 = vmatprep.subr.bf16.mxu0 0
      %1311 = vmatpush1.bf16.msra.mxu0 0
      %1312 = vmatprep.subr.bf16.mxu0 0
      %1313 = vmatpush1.bf16.msra.mxu0 0
      %1314 = vmatprep.subr.bf16.mxu0 0
      %1315 = vmatpush1.bf16.msra.mxu0 0
      %1316 = vmatprep.subr.bf16.mxu0 0
      %1317 = vmatpush1.bf16.msra.mxu0 0
      %1318 = vmatprep.subr.bf16.mxu0 0
      %1319 = vmatpush1.bf16.msra.mxu0 0
      %1320 = vmatprep.subr.bf16.mxu0 0
      %1321 = vmatpush1.bf16.msra.mxu0 0
      %1322 = vmatprep.subr.bf16.mxu0 0
      %1323 = vmatpush1.bf16.msra.mxu0 %v1303
      %1324 = vmatprep.subr.bf16.mxu0 0
      %1325 = vmatpush2.bf16.msra.mxu0 0
      %1326 = vmatprep.subr.bf16.mxu0 0
      %1327 = vmatpush2.bf16.msra.mxu0 0
      %1328 = vmatprep.subr.bf16.mxu0 0
      %1329 = vmatpush2.bf16.msra.mxu0 0
      %1330 = vmatprep.subr.bf16.mxu0 0
      %1331 = vmatpush2.bf16.msra.mxu0 0
      %1332 = vmatprep.subr.bf16.mxu0 0
      %1333 = vmatpush2.bf16.msra.mxu0 0
      %1334 = vmatprep.subr.bf16.mxu0 0
      %1335 = vmatpush2.bf16.msra.mxu0 0
      %1336 = vmatprep.subr.bf16.mxu0 0
      %1337 = vmatpush2.bf16.msra.mxu0 0
      %1338 = vmatprep.subr.bf16.mxu0 0
      %1339 = vmatpush2.bf16.msra.mxu0 0
      %1340 = vmatprep.mubr.bf16.mxu0 0
      %1341 = vmatmul.mubr.bf16.gmra.mxu0 %v1306
      %v1342 = vpop.f32.mrf.mxu0
      %v1343 = vadd.f32 0.0, %v1342
      %v1344 = vpop.f32.mrf.mxu0
      %v1345 = vpop.f32.mrf.mxu0
      %v1346 = vadd.f32 0.0, %v1345
      %v1347 = vpop.f32.mrf.mxu0
      %1348 = vdwg.mxu0
      %1351 = vrot.lane.b32.xlu0 %v1095, 16
      %v1352 = vpop.permute.xlu0 %1351
      %1353 = vrot.lane.b32.xlu0 %v1098, 16
      %v1354 = vpop.permute.xlu0 %1353
      %1359 = vrot.lane.b32.xlu0 %v1219, 32
      %v1360 = vpop.permute.xlu0 %1359
      %1361 = vrot.lane.b32.xlu0 %v1222, 32
      %v1362 = vpop.permute.xlu0 %1361
      %1367 = vrot.lane.b32.xlu0 %v1343, 48
      %v1368 = vpop.permute.xlu0 %1367
      %1369 = vrot.lane.b32.xlu0 %v1346, 48
      %v1370 = vpop.permute.xlu0 %1369
      %v1373 = vsel %vm861, %v970, %v1352
      %v1374 = vsel %vm861, %v973, %v1354
      %vm1375 = vcmask 261120
      %v1376 = vsel %vm1375, %v1373, %v1360
      %v1377 = vsel %vm1375, %v1374, %v1362
      %vm1378 = vcmask 392192
      %v1379 = vsel %vm1378, %v1376, %v1368
      %v1380 = vsel %vm1378, %v1377, %v1370
      %v1381 = vpack.c.bf16 %v1380, %v1379
      %v1382 = vld [vmem:[%s9] sm:$0xf]
      %v1383 = vld [vmem:[%s9 + $0x4] sm:$0xf]
      %v1384 = vld [vmem:[%s9 + $0x8] sm:$0xf]
      %v1385 = vld [vmem:[%s9 + $0xc] sm:$0xf]
      %v1386 = vld [vmem:[%s9 + $0x10] sm:$0xf]
      %v1387 = vld [vmem:[%s9 + $0x14] sm:$0xf]
      %v1388 = vld [vmem:[%s9 + $0x18] sm:$0xf]
      %v1389 = vld [vmem:[%s9 + $0x1c] sm:$0xf]
      %v1390 = vld [vmem:[%s10] sm:$0x1]
      %v1392 = vlaneseq
      %v1393 = vshrl.u32 %v1392, 7
      %v1394 = vsub.s32 0, %v1393
      %v1395 = vrot.slane %v1390, %v1394
      %v1405 = vunpack.c.l.b16 %v1382
      %v1406 = vunpack.c.l.b16 %v1383
      %v1407 = vunpack.c.l.b16 %v1384
      %v1408 = vunpack.c.l.b16 %v1385
      %v1409 = vunpack.c.l.b16 %v1386
      %v1410 = vunpack.c.l.b16 %v1387
      %v1411 = vunpack.c.l.b16 %v1388
      %v1412 = vunpack.c.l.b16 %v1389
      %v1413 = vpack.c.b16 %v1406, %v1405
      %v1414 = vpack.c.b16 %v1408, %v1407
      %v1415 = vpack.c.b16 %v1410, %v1409
      %v1416 = vpack.c.b16 %v1412, %v1411
      %v1422 = vsel %vm703, %v1381, 0
      %1424 = vmatprep.subr.bf16.mxu0 0
      %1425 = vmatpush1.bf16.msra.mxu0 0
      %1426 = vmatprep.subr.bf16.mxu0 0
      %1427 = vmatpush1.bf16.msra.mxu0 0
      %1428 = vmatprep.subr.bf16.mxu0 0
      %1429 = vmatpush1.bf16.msra.mxu0 0
      %1430 = vmatprep.subr.bf16.mxu0 0
      %1431 = vmatpush1.bf16.msra.mxu0 0
      %1432 = vmatprep.subr.bf16.mxu0 0
      %1433 = vmatpush1.bf16.msra.mxu0 %v1416
      %1434 = vmatprep.subr.bf16.mxu0 0
      %1435 = vmatpush1.bf16.msra.mxu0 %v1415
      %1436 = vmatprep.subr.bf16.mxu0 0
      %1437 = vmatpush1.bf16.msra.mxu0 %v1414
      %1438 = vmatprep.subr.bf16.mxu0 0
      %1439 = vmatpush1.bf16.msra.mxu0 %v1413
      %1440 = vmatprep.subr.bf16.mxu0 0
      %1441 = vmatpush2.bf16.msra.mxu0 0
      %1442 = vmatprep.subr.bf16.mxu0 0
      %1443 = vmatpush2.bf16.msra.mxu0 0
      %1444 = vmatprep.subr.bf16.mxu0 0
      %1445 = vmatpush2.bf16.msra.mxu0 0
      %1446 = vmatprep.subr.bf16.mxu0 0
      %1447 = vmatpush2.bf16.msra.mxu0 0
      %1448 = vmatprep.subr.bf16.mxu0 0
      %1449 = vmatpush2.bf16.msra.mxu0 0
      %1450 = vmatprep.subr.bf16.mxu0 0
      %1451 = vmatpush2.bf16.msra.mxu0 0
      %1452 = vmatprep.subr.bf16.mxu0 0
      %1453 = vmatpush2.bf16.msra.mxu0 0
      %1454 = vmatprep.subr.bf16.mxu0 0
      %1455 = vmatpush2.bf16.msra.mxu0 0
      %1456 = vmatprep.mubr.bf16.mxu0 0
      %1457 = vmatmul.mubr.bf16.gmra.mxu0 %v1422
      %v1458 = vpop.f32.mrf.mxu0
      %v1459 = vadd.f32 %v1395, %v1458
      %v1460 = vpop.f32.mrf.mxu0
      %v1461 = vpop.f32.mrf.mxu0
      %v1462 = vadd.f32 %v1395, %v1461
      %v1463 = vpop.f32.mrf.mxu0
      %1464 = vdwg.mxu0
      %v1465 = vadd.f32 %v695, %v1459
      %v1466 = vadd.f32 %v698, %v1462
      %v1467 = vld [vmem:[%s11] sm:$0x1]
      %v1468 = vld [vmem:[%s12] sm:$0x1]
      %v1469 = vsel %vm703, %v1465, 0.0
      %1470 = vadd.xlane.f32.xlu0 %v1469
      %v1471 = vpop.xlane.xlu0 %1470
      %v1472 = vsel %vm703, %v1466, 0.0
      %1473 = vadd.xlane.f32.xlu0 %v1472
      %v1474 = vpop.xlane.xlu0 %1473
      %v1475 = vmul.f32 %v1471, %v710
      %v1476 = vmul.f32 %v1474, %v710
      %v1477 = vsub.f32 %v1465, %v1475
      %v1478 = vsub.f32 %v1466, %v1476
      %v1479 = vmul.f32 %v1477, %v1477
      %v1480 = vmul.f32 %v1478, %v1478
      %v1481 = vsel %vm703, %v1479, 0.0
      %1482 = vadd.xlane.f32.xlu0 %v1481
      %v1483 = vpop.xlane.xlu0 %1482
      %v1484 = vsel %vm703, %v1480, 0.0
      %1485 = vadd.xlane.f32.xlu0 %v1484
      %v1486 = vpop.xlane.xlu0 %1485
      %v1487 = vmul.f32 %v1483, %v710
      %v1488 = vmul.f32 %v1486, %v710
      %v1489 = vadd.f32 %v1487, 1e-05
      %v1490 = vadd.f32 %v1488, 1e-05
      %v1491 = vrsqrt.pop %v1489
      %v1492 = vrsqrt.pop %v1490
      %v1493 = vmul.f32 %v1477, %v1491
      %v1494 = vmul.f32 %v1478, %v1492
      %v1496 = vlaneseq
      %v1497 = vshrl.u32 %v1496, 7
      %v1498 = vsub.s32 0, %v1497
      %v1499 = vrot.slane %v1467, %v1498
      %v1501 = vmul.f32 %v1493, %v1499
      %v1502 = vmul.f32 %v1494, %v1499
      %v1504 = vlaneseq
      %v1505 = vshrl.u32 %v1504, 7
      %v1506 = vsub.s32 0, %v1505
      %v1507 = vrot.slane %v1468, %v1506
      %v1509 = vadd.f32 %v1501, %v1507
      %v1510 = vadd.f32 %v1502, %v1507
      %v1511 = vpack.c.bf16 %v1510, %v1509
      %v1512 = vld [vmem:[%s13] sm:$0xff]
      %v1513 = vld [vmem:[%s13 + $0x8] sm:$0xff]
      %v1514 = vld [vmem:[%s13 + $0x10] sm:$0xff]
      %v1515 = vld [vmem:[%s13 + $0x18] sm:$0xff]
      %v1516 = vld [vmem:[%s13 + $0x20] sm:$0xff]
      %v1517 = vld [vmem:[%s13 + $0x28] sm:$0xff]
      %v1518 = vld [vmem:[%s13 + $0x30] sm:$0xff]
      %v1519 = vld [vmem:[%s13 + $0x38] sm:$0xff]
      %v1520 = vld [vmem:[%s14] sm:$0x3]
      %v1522 = vlaneseq
      %v1523 = vshrl.u32 %v1522, 7
      %v1524 = vsub.s32 0, %v1523
      %v1525 = vrot.slane %v1520, %v1524
      %v1526 = vlaneseq
      %v1527 = vshrl.u32 %v1526, 7
      %v1528 = vsub.s32 1, %v1527
      %v1529 = vrot.slane %v1520, %v1528
      %v1540 = vunpack.c.l.b16 %v1512
      %v1541 = vunpack.c.h.b16 %v1512
      %v1542 = vunpack.c.l.b16 %v1513
      %v1543 = vunpack.c.h.b16 %v1513
      %v1544 = vunpack.c.l.b16 %v1514
      %v1545 = vunpack.c.h.b16 %v1514
      %v1546 = vunpack.c.l.b16 %v1515
      %v1547 = vunpack.c.h.b16 %v1515
      %v1548 = vunpack.c.l.b16 %v1516
      %v1549 = vunpack.c.h.b16 %v1516
      %v1550 = vunpack.c.l.b16 %v1517
      %v1551 = vunpack.c.h.b16 %v1517
      %v1552 = vunpack.c.l.b16 %v1518
      %v1553 = vunpack.c.h.b16 %v1518
      %v1554 = vunpack.c.l.b16 %v1519
      %v1555 = vunpack.c.h.b16 %v1519
      %v1556 = vpack.c.b16 %v1542, %v1540
      %v1557 = vpack.c.b16 %v1543, %v1541
      %v1558 = vpack.c.b16 %v1546, %v1544
      %v1559 = vpack.c.b16 %v1547, %v1545
      %v1560 = vpack.c.b16 %v1550, %v1548
      %v1561 = vpack.c.b16 %v1551, %v1549
      %v1562 = vpack.c.b16 %v1554, %v1552
      %v1563 = vpack.c.b16 %v1555, %v1553
      %v1573 = vsel %vm703, %v1511, 0
      %1575 = vmatprep.subr.bf16.mxu0 0
      %1576 = vmatpush1.bf16.msra.mxu0 0
      %1577 = vmatprep.subr.bf16.mxu0 0
      %1578 = vmatpush1.bf16.msra.mxu0 0
      %1579 = vmatprep.subr.bf16.mxu0 0
      %1580 = vmatpush1.bf16.msra.mxu0 0
      %1581 = vmatprep.subr.bf16.mxu0 0
      %1582 = vmatpush1.bf16.msra.mxu0 0
      %1583 = vmatprep.subr.bf16.mxu0 %v1563
      %1584 = vmatpush1.bf16.msra.mxu0 %v1562
      %1585 = vmatprep.subr.bf16.mxu0 %v1561
      %1586 = vmatpush1.bf16.msra.mxu0 %v1560
      %1587 = vmatprep.subr.bf16.mxu0 %v1559
      %1588 = vmatpush1.bf16.msra.mxu0 %v1558
      %1589 = vmatprep.subr.bf16.mxu0 %v1557
      %1590 = vmatpush1.bf16.msra.mxu0 %v1556
      %1591 = vmatprep.subr.bf16.mxu0 0
      %1592 = vmatpush2.bf16.msra.mxu0 0
      %1593 = vmatprep.subr.bf16.mxu0 0
      %1594 = vmatpush2.bf16.msra.mxu0 0
      %1595 = vmatprep.subr.bf16.mxu0 0
      %1596 = vmatpush2.bf16.msra.mxu0 0
      %1597 = vmatprep.subr.bf16.mxu0 0
      %1598 = vmatpush2.bf16.msra.mxu0 0
      %1599 = vmatprep.subr.bf16.mxu0 0
      %1600 = vmatpush2.bf16.msra.mxu0 0
      %1601 = vmatprep.subr.bf16.mxu0 0
      %1602 = vmatpush2.bf16.msra.mxu0 0
      %1603 = vmatprep.subr.bf16.mxu0 0
      %1604 = vmatpush2.bf16.msra.mxu0 0
      %1605 = vmatprep.subr.bf16.mxu0 0
      %1606 = vmatpush2.bf16.msra.mxu0 0
      %1607 = vmatprep.mubr.bf16.mxu0 0
      %1608 = vmatmul.mubr.bf16.gmra.mxu0 %v1573
      %v1609 = vpop.f32.mrf.mxu0
      %v1610 = vadd.f32 %v1525, %v1609
      %v1611 = vpop.f32.mrf.mxu0
      %v1612 = vadd.f32 %v1529, %v1611
      %v1613 = vpop.f32.mrf.mxu0
      %v1614 = vadd.f32 %v1525, %v1613
      %v1615 = vpop.f32.mrf.mxu0
      %v1616 = vadd.f32 %v1529, %v1615
      %1617 = vdwg.mxu0
      %v1618 = vmul.f32 %v1610, %v1610
      %v1619 = vmul.f32 %v1612, %v1612
      %v1620 = vmul.f32 %v1614, %v1614
      %v1621 = vmul.f32 %v1616, %v1616
      %v1622 = vmul.f32 %v1610, %v1618
      %v1623 = vmul.f32 %v1612, %v1619
      %v1624 = vmul.f32 %v1614, %v1620
      %v1625 = vmul.f32 %v1616, %v1621
      %v1626 = vmul.f32 %v1622, 0.044715
      %v1627 = vmul.f32 %v1623, 0.044715
      %v1628 = vmul.f32 %v1624, 0.044715
      %v1629 = vmul.f32 %v1625, 0.044715
      %v1630 = vadd.f32 %v1610, %v1626
      %v1631 = vadd.f32 %v1612, %v1627
      %v1632 = vadd.f32 %v1614, %v1628
      %v1633 = vadd.f32 %v1616, %v1629
      %v1634 = vmul.f32 %v1630, 0.7978846
      %v1635 = vmul.f32 %v1631, 0.7978846
      %v1636 = vmul.f32 %v1632, 0.7978846
      %v1637 = vmul.f32 %v1633, 0.7978846
      %v1638 = vtanh.pop %v1634
      %v1639 = vtanh.pop %v1635
      %v1640 = vtanh.pop %v1636
      %v1641 = vtanh.pop %v1637
      %v1642 = vadd.f32 %v1638, 1.0
      %v1643 = vadd.f32 %v1639, 1.0
      %v1644 = vadd.f32 %v1640, 1.0
      %v1645 = vadd.f32 %v1641, 1.0
      %v1646 = vmul.f32 %v1642, 0.5
      %v1647 = vmul.f32 %v1643, 0.5
      %v1648 = vmul.f32 %v1644, 0.5
      %v1649 = vmul.f32 %v1645, 0.5
      %v1650 = vmul.f32 %v1610, %v1646
      %v1651 = vmul.f32 %v1612, %v1647
      %v1652 = vmul.f32 %v1614, %v1648
      %v1653 = vmul.f32 %v1616, %v1649
      %v1654 = vpack.c.bf16 %v1652, %v1650
      %v1655 = vpack.c.bf16 %v1653, %v1651
      %v1656 = vld [vmem:[%s15] sm:$0xf]
      %v1657 = vld [vmem:[%s15 + $0x4] sm:$0xf]
      %v1658 = vld [vmem:[%s15 + $0x8] sm:$0xf]
      %v1659 = vld [vmem:[%s15 + $0xc] sm:$0xf]
      %v1660 = vld [vmem:[%s15 + $0x10] sm:$0xf]
      %v1661 = vld [vmem:[%s15 + $0x14] sm:$0xf]
      %v1662 = vld [vmem:[%s15 + $0x18] sm:$0xf]
      %v1663 = vld [vmem:[%s15 + $0x1c] sm:$0xf]
      %v1664 = vld [vmem:[%s15 + $0x20] sm:$0xf]
      %v1665 = vld [vmem:[%s15 + $0x24] sm:$0xf]
      %v1666 = vld [vmem:[%s15 + $0x28] sm:$0xf]
      %v1667 = vld [vmem:[%s15 + $0x2c] sm:$0xf]
      %v1668 = vld [vmem:[%s15 + $0x30] sm:$0xf]
      %v1669 = vld [vmem:[%s15 + $0x34] sm:$0xf]
      %v1670 = vld [vmem:[%s15 + $0x38] sm:$0xf]
      %v1671 = vld [vmem:[%s15 + $0x3c] sm:$0xf]
      %v1672 = vld [vmem:[%s15 + $0x40] sm:$0xf]
      %v1673 = vld [vmem:[%s15 + $0x44] sm:$0xf]
      %v1674 = vld [vmem:[%s15 + $0x48] sm:$0xf]
      %v1675 = vld [vmem:[%s15 + $0x4c] sm:$0xf]
      %v1676 = vld [vmem:[%s15 + $0x50] sm:$0xf]
      %v1677 = vld [vmem:[%s15 + $0x54] sm:$0xf]
      %v1678 = vld [vmem:[%s15 + $0x58] sm:$0xf]
      %v1679 = vld [vmem:[%s15 + $0x5c] sm:$0xf]
      %v1680 = vld [vmem:[%s15 + $0x60] sm:$0xf]
      %v1681 = vld [vmem:[%s15 + $0x64] sm:$0xf]
      %v1682 = vld [vmem:[%s15 + $0x68] sm:$0xf]
      %v1683 = vld [vmem:[%s15 + $0x6c] sm:$0xf]
      %v1684 = vld [vmem:[%s15 + $0x70] sm:$0xf]
      %v1685 = vld [vmem:[%s15 + $0x74] sm:$0xf]
      %v1686 = vld [vmem:[%s15 + $0x78] sm:$0xf]
      %v1687 = vld [vmem:[%s15 + $0x7c] sm:$0xf]
      %v1688 = vld [vmem:[%s16] sm:$0x1]
      %v1690 = vlaneseq
      %v1691 = vshrl.u32 %v1690, 7
      %v1692 = vsub.s32 0, %v1691
      %v1693 = vrot.slane %v1688, %v1692
      %v1727 = vunpack.c.l.b16 %v1656
      %v1728 = vunpack.c.l.b16 %v1657
      %v1729 = vunpack.c.l.b16 %v1658
      %v1730 = vunpack.c.l.b16 %v1659
      %v1731 = vunpack.c.l.b16 %v1660
      %v1732 = vunpack.c.l.b16 %v1661
      %v1733 = vunpack.c.l.b16 %v1662
      %v1734 = vunpack.c.l.b16 %v1663
      %v1735 = vunpack.c.l.b16 %v1664
      %v1736 = vunpack.c.l.b16 %v1665
      %v1737 = vunpack.c.l.b16 %v1666
      %v1738 = vunpack.c.l.b16 %v1667
      %v1739 = vunpack.c.l.b16 %v1668
      %v1740 = vunpack.c.l.b16 %v1669
      %v1741 = vunpack.c.l.b16 %v1670
      %v1742 = vunpack.c.l.b16 %v1671
      %v1743 = vunpack.c.l.b16 %v1672
      %v1744 = vunpack.c.l.b16 %v1673
      %v1745 = vunpack.c.l.b16 %v1674
      %v1746 = vunpack.c.l.b16 %v1675
      %v1747 = vunpack.c.l.b16 %v1676
      %v1748 = vunpack.c.l.b16 %v1677
      %v1749 = vunpack.c.l.b16 %v1678
      %v1750 = vunpack.c.l.b16 %v1679
      %v1751 = vunpack.c.l.b16 %v1680
      %v1752 = vunpack.c.l.b16 %v1681
      %v1753 = vunpack.c.l.b16 %v1682
      %v1754 = vunpack.c.l.b16 %v1683
      %v1755 = vunpack.c.l.b16 %v1684
      %v1756 = vunpack.c.l.b16 %v1685
      %v1757 = vunpack.c.l.b16 %v1686
      %v1758 = vunpack.c.l.b16 %v1687
      %v1759 = vpack.c.b16 %v1728, %v1727
      %v1760 = vpack.c.b16 %v1730, %v1729
      %v1761 = vpack.c.b16 %v1732, %v1731
      %v1762 = vpack.c.b16 %v1734, %v1733
      %v1763 = vpack.c.b16 %v1736, %v1735
      %v1764 = vpack.c.b16 %v1738, %v1737
      %v1765 = vpack.c.b16 %v1740, %v1739
      %v1766 = vpack.c.b16 %v1742, %v1741
      %v1767 = vpack.c.b16 %v1744, %v1743
      %v1768 = vpack.c.b16 %v1746, %v1745
      %v1769 = vpack.c.b16 %v1748, %v1747
      %v1770 = vpack.c.b16 %v1750, %v1749
      %v1771 = vpack.c.b16 %v1752, %v1751
      %v1772 = vpack.c.b16 %v1754, %v1753
      %v1773 = vpack.c.b16 %v1756, %v1755
      %v1774 = vpack.c.b16 %v1758, %v1757
      %1791 = vmatprep.subr.bf16.mxu0 0
      %1792 = vmatpush1.bf16.msra.mxu0 %v1766
      %1793 = vmatprep.subr.bf16.mxu0 0
      %1794 = vmatpush1.bf16.msra.mxu0 %v1765
      %1795 = vmatprep.subr.bf16.mxu0 0
      %1796 = vmatpush1.bf16.msra.mxu0 %v1764
      %1797 = vmatprep.subr.bf16.mxu0 0
      %1798 = vmatpush1.bf16.msra.mxu0 %v1763
      %1799 = vmatprep.subr.bf16.mxu0 0
      %1800 = vmatpush1.bf16.msra.mxu0 %v1762
      %1801 = vmatprep.subr.bf16.mxu0 0
      %1802 = vmatpush1.bf16.msra.mxu0 %v1761
      %1803 = vmatprep.subr.bf16.mxu0 0
      %1804 = vmatpush1.bf16.msra.mxu0 %v1760
      %1805 = vmatprep.subr.bf16.mxu0 0
      %1806 = vmatpush1.bf16.msra.mxu0 %v1759
      %1807 = vmatprep.subr.bf16.mxu0 0
      %1808 = vmatpush2.bf16.msra.mxu0 %v1774
      %1809 = vmatprep.subr.bf16.mxu0 0
      %1810 = vmatpush2.bf16.msra.mxu0 %v1773
      %1811 = vmatprep.subr.bf16.mxu0 0
      %1812 = vmatpush2.bf16.msra.mxu0 %v1772
      %1813 = vmatprep.subr.bf16.mxu0 0
      %1814 = vmatpush2.bf16.msra.mxu0 %v1771
      %1815 = vmatprep.subr.bf16.mxu0 0
      %1816 = vmatpush2.bf16.msra.mxu0 %v1770
      %1817 = vmatprep.subr.bf16.mxu0 0
      %1818 = vmatpush2.bf16.msra.mxu0 %v1769
      %1819 = vmatprep.subr.bf16.mxu0 0
      %1820 = vmatpush2.bf16.msra.mxu0 %v1768
      %1821 = vmatprep.subr.bf16.mxu0 0
      %1822 = vmatpush2.bf16.msra.mxu0 %v1767
      %1823 = vmatprep.mubr.bf16.mxu0 %v1655
      %1824 = vmatmul.mubr.bf16.gmra.mxu0 %v1654
      %v1825 = vpop.f32.mrf.mxu0
      %v1826 = vadd.f32 %v1693, %v1825
      %v1827 = vpop.f32.mrf.mxu0
      %v1828 = vpop.f32.mrf.mxu0
      %v1829 = vadd.f32 %v1693, %v1828
      %v1830 = vpop.f32.mrf.mxu0
      %1831 = vdwg.mxu0
      %v1832 = vadd.f32 %v1465, %v1826
      %v1833 = vadd.f32 %v1466, %v1829
      %v1834 = vpack.c.bf16 %v1833, %v1832
      %v1836 = vunpack.c.l.b16 %v1834
      %v1837 = vunpack.c.h.b16 %v1834
      %v1838 = vpack.c.b16 %v1836, %v1836
      %v1839 = vpack.c.b16 %v1837, %v1837
      %vm1842 = vcmask 519168
      %1843 = vst.msk [vmem:[%s548] sm:$0xf] %vm1842, %v1838
      %1844 = vst.msk [vmem:[%s548 + $0x4] sm:$0xf] %vm1842, %v1839
      %p1845 = scmp.lt.s32.totalorder %s28, 1
      %s1846 = scalar_select %p1845, %s28, 1
      %s1847 = smul.addr %s1846, 2
      %s1848 = smul.addr %s1847, 4
      %s1849 = scalar_lea.vmem %s17, %s1848
      // Predicated region
      $region89: #{swin_forward.6} parent=87 // pred_check
        %p1850 = pneg %p408
      $region90: #{swin_forward.6} parent=87 // pred_check_branch
        %1852 = sbr.rel (%p1850) target = $region92
      $region91: #{swin_forward.6} parent=87 // pred_region
        _
      $region92: #{swin_forward.6} parent=87 // pred_fallthru
        _
    $region88: #{swin_forward.6} parent=5 // pred_fallthru
      _
    %p1853 = scmp.le.s32.totalorder 2, %s23
    // Predicated region
    $region93: #{swin_forward.6} parent=5 // pred_check
      %p1854 = pneg %p1853
    $region94: #{swin_forward.6} parent=5 // pred_check_branch
      %1856 = sbr.rel (%p1854) target = $region96
    $region95: #{swin_forward.6} parent=5 // pred_region
      %s1857 = ssub.s32 %s23, 2
      // Predicated region
      $region97: #{swin_forward.6} parent=95 // pred_check
        %p1858 = pneg %p414
      $region98: #{swin_forward.6} parent=95 // pred_check_branch
        %1860 = sbr.rel (%p1858) target = $region100
      $region99: #{swin_forward.6} parent=95 // pred_region
        %p1861 = scmp.lt.s32.totalorder %s29, 1
        %s1862 = scalar_select %p1861, %s29, 1
        %s1863 = smul.addr %s1862, 2
        %s1864 = smul.addr %s1863, 4
        %s1865 = scalar_lea.vmem %s17, %s1864
      $region100: #{swin_forward.6} parent=95 // pred_fallthru
        _
    $region96: #{swin_forward.6} parent=5 // pred_fallthru
      _
  $region6: #{swin_forward.6} parent=0 // loop_footer
    %s27 = sadd.s32 1, %s23
  $region7: #{swin_forward.6} parent=0 // loop_footer_branch
    %22 = sbr.rel target = $region3
  $region8: #{swin_forward.6} parent=0 // loop_exit
    _

</llo_original>
